<compile_context>
chip_gen: v5e
topology: v5e:2x2
jax: 0.10.0
libtpu: 0.0.40
codegen_flags: <defaults>
</compile_context>

<pallas_src>
import functools
import math

import jax
import jax.numpy as jnp
from jax.experimental import pallas as pl
from jax.experimental.pallas import tpu as pltpu


def _full_spec(shape):
    """Whole-array VMEM block for a single-step grid."""
    nd = len(shape)
    return pl.BlockSpec(tuple(shape), lambda *_: (0,) * nd)


# --------------------------- transformer encoder kernel -----------------------------

def _encoder_kernel(x_ref,
                    wqkv_ref, bqkv_ref, wout_ref, bout_ref,
                    ln1g_ref, ln1b_ref,
                    wff1_ref, bff1_ref, wff2_ref, bff2_ref,
                    ln2g_ref, ln2b_ref,
                    o_ref,
                    *, num_layers, num_heads, batch, seq, ln_eps):
    e = x_ref.shape[-1]
    dh = e // num_heads
    scale = 1.0 / math.sqrt(dh)
    x = x_ref[...].astype(jnp.float32)                       # (B*S, E) lane-dense tokens

    def layer_norm(v, g, b):
        mu = jnp.mean(v, axis=-1, keepdims=True)
        var = jnp.mean(jnp.square(v - mu), axis=-1, keepdims=True)
        return (v - mu) * jax.lax.rsqrt(var + ln_eps) * g + b

    for l in range(num_layers):                              # statically unrolled (3)
        # ---- multi-head self-attention: fused QKV projection on the MXU ----
        qkv = jnp.dot(x, wqkv_ref[l], preferred_element_type=jnp.float32) + bqkv_ref[l]
        qkv = qkv.reshape(batch, seq, 3 * e)
        q = qkv[:, :, 0 * e:1 * e] * scale
        k = qkv[:, :, 1 * e:2 * e]
        v = qkv[:, :, 2 * e:3 * e]
        w_out = wout_ref[l]                                  # (E, E), pre-transposed

        attn = None
        for h in range(num_heads):                           # statically unrolled heads
            lo, hi = h * dh, (h + 1) * dh
            sco = jnp.einsum('bqd,bkd->bqk', q[:, :, lo:hi], k[:, :, lo:hi],
                             preferred_element_type=jnp.float32)
            sco = sco - jnp.max(sco, axis=-1, keepdims=True)
            p = jnp.exp(sco)
            p = p / jnp.sum(p, axis=-1, keepdims=True)
            ctx_h = jnp.einsum('bqk,bkd->bqd', p, v[:, :, lo:hi],
                               preferred_element_type=jnp.float32)       # (B, S, dh)
            # Fold the head-concat into the output projection:
            #   concat_h(ctx_h) @ Wout^T == sum_h ctx_h @ Wout^T[lo:hi, :]
            part = jnp.dot(ctx_h.reshape(batch * seq, dh), w_out[lo:hi, :],
                           preferred_element_type=jnp.float32)           # (B*S, E)
            attn = part if attn is None else attn + part
        attn = attn + bout_ref[l]
        x = layer_norm(x + attn, ln1g_ref[l], ln1b_ref[l])

        # ---- feed-forward (relu) ----
        h1 = jnp.dot(x, wff1_ref[l], preferred_element_type=jnp.float32) + bff1_ref[l]
        h1 = jnp.maximum(h1, 0.0)
        h2 = jnp.dot(h1, wff2_ref[l], preferred_element_type=jnp.float32) + bff2_ref[l]
        x = layer_norm(x + h2, ln2g_ref[l], ln2b_ref[l])

    o_ref[...] = x.astype(o_ref.dtype)


# ------------------------------- DWConv block kernel --------------------------------

def _dwconv_kernel(xpad_ref, wd_ref, bn1s_ref, bn1b_ref,
                   wp_ref, bn2s_ref, bn2b_ref, o_ref,
                   *, out_h, out_w):
    xpad = xpad_ref[...].astype(jnp.float32)                 # (B, H+2, W+2, Cf), NHWC
    b = xpad.shape[0]
    cf = xpad.shape[-1]

    def silu(v):
        return v * (1.0 / (1.0 + jnp.exp(-v)))

    # Depthwise 3x3 (stride 1, halo already padded) as 9 shifted VPU FMAs.
    acc = jnp.zeros((b, out_h, out_w, cf), jnp.float32)
    for kh in range(3):
        for kw in range(3):
            acc = acc + xpad[:, kh:kh + out_h, kw:kw + out_w, :] * wd_ref[kh, kw]
    y = silu(acc * bn1s_ref[...] + bn1b_ref[...])            # folded BN1 (eval) + SiLU

    # Pointwise 1x1 conv as one MXU matmul + folded BN2 (eval) + SiLU.
    z = jnp.dot(y.reshape(b * out_h * out_w, cf), wp_ref[...],
                preferred_element_type=jnp.float32)
    z = silu(z * bn2s_ref[...] + bn2b_ref[...])
    o_ref[...] = z.astype(o_ref.dtype)                       # (B*H*W, Cout) lane-dense


# ------------------------------------ module -----------------------------------------

class MultiLevelTransformerFusionPallas:
    """JAX/Pallas equivalent of MultiLevelTransformerFusionModule (eval-mode forward).

    The original module hard-codes d_model=256 and fusion_conv 512->256 channels; here
    the channel counts follow d_model so a small test configuration can be used.
    """

    NUM_LAYERS = 3

    def __init__(self, max_len, d_model=256, num_heads=8, key=None):
        assert (2 * d_model) % num_heads == 0
        self.max_len = max_len
        self.d_model = d_model
        self.num_heads = num_heads
        e = 2 * d_model                     # transformer width
        f = 2 * d_model                     # dim_feedforward = d_model * 2
        cf, co = 2 * d_model, d_model       # DWConv channels
        L = self.NUM_LAYERS

        key = jax.random.PRNGKey(42) if key is None else key
        ks = jax.random.split(key, 24)
        nrm = lambda k, shp, s: s * jax.random.normal(k, shp, jnp.float32)
        wsc = 0.5 / math.sqrt(e)

        # ---- transformer encoder params (PyTorch layout, stacked over layers) ----
        self.in_proj_w = nrm(ks[0], (L, 3 * e, e), wsc)
        self.in_proj_b = nrm(ks[1], (L, 3 * e), 0.02)
        self.out_w = nrm(ks[2], (L, e, e), wsc)
        self.out_b = nrm(ks[3], (L, e), 0.02)
        self.ln1_g = 1.0 + nrm(ks[4], (L, e), 0.05)
        self.ln1_b = nrm(ks[5], (L, e), 0.05)
        self.ff1_w = nrm(ks[6], (L, f, e), wsc)
        self.ff1_b = nrm(ks[7], (L, f), 0.02)
        self.ff2_w = nrm(ks[8], (L, e, f), wsc)
        self.ff2_b = nrm(ks[9], (L, e), 0.02)
        self.ln2_g = 1.0 + nrm(ks[10], (L, e), 0.05)
        self.ln2_b = nrm(ks[11], (L, e), 0.05)

        # ---- DWConv params (PyTorch layout, conv bias=False as in BaseConv) ----
        self.dw_w = nrm(ks[12], (cf, 1, 3, 3), 0.3)
        self.bn1_g = 1.0 + nrm(ks[13], (cf,), 0.05)
        self.bn1_b = nrm(ks[14], (cf,), 0.05)
        self.bn1_m = nrm(ks[15], (cf,), 0.05)
        self.bn1_v = 1.0 + jnp.abs(nrm(ks[16], (cf,), 0.05))
        self.pw_w = nrm(ks[17], (co, cf, 1, 1), 1.0 / math.sqrt(cf))
        self.bn2_g = 1.0 + nrm(ks[18], (co,), 0.05)
        self.bn2_b = nrm(ks[19], (co,), 0.05)
        self.bn2_m = nrm(ks[20], (co,), 0.05)
        self.bn2_v = 1.0 + jnp.abs(nrm(ks[21], (co,), 0.05))

        # ---- positional encoding: replicate the PyTorch double loop exactly ----
        # (only columns [0, d_model) are written; columns [d_model, 2*d_model) stay 0)
        pe = jnp.zeros((max_len, e), jnp.float32)
        pos = jnp.arange(max_len, dtype=jnp.float32)[:, None]
        i = jnp.arange(0, d_model, 2, dtype=jnp.float32)[None, :]
        pe = pe.at[:, 0:d_model:2].set(jnp.sin(pos / jnp.power(10000.0, 2.0 * i / d_model)))
        pe = pe.at[:, 1:d_model:2].set(jnp.cos(pos / jnp.power(10000.0, 2.0 * (i + 1.0) / d_model)))
        self.pe = pe

        # ---- kernel-layout params (computed ONCE: pre-transposed weights, folded BN) ----
        self._wqkv_t = jnp.transpose(self.in_proj_w, (0, 2, 1))   # (L, E, 3E)
        self._wout_t = jnp.transpose(self.out_w, (0, 2, 1))       # (L, E, E)
        self._wff1_t = jnp.transpose(self.ff1_w, (0, 2, 1))       # (L, E, F)
        self._wff2_t = jnp.transpose(self.ff2_w, (0, 2, 1))       # (L, F, E)
        eps = 1e-5
        s1 = self.bn1_g / jnp.sqrt(self.bn1_v + eps)
        self._bn1_s = s1.reshape(1, cf)
        self._bn1_sh = (self.bn1_b - self.bn1_m * s1).reshape(1, cf)
        s2 = self.bn2_g / jnp.sqrt(self.bn2_v + eps)
        self._bn2_s = s2.reshape(1, co)
        self._bn2_sh = (self.bn2_b - self.bn2_m * s2).reshape(1, co)
        self._wd = jnp.transpose(self.dw_w.reshape(cf, 3, 3), (1, 2, 0))   # (3, 3, Cf)
        self._wp = self.pw_w.reshape(co, cf).T                             # (Cf, Co)

    # ------------------------------ pallas wrappers ------------------------------

    def _encoder_pallas(self, tokens, batch, seq):
        bs, e = tokens.shape
        L, heads = self.NUM_LAYERS, self.num_heads
        f = self._wff1_t.shape[-1]
        dh = e // heads
        args = (tokens, self._wqkv_t, self.in_proj_b, self._wout_t, self.out_b,
                self.ln1_g, self.ln1_b, self._wff1_t, self.ff1_b,
                self._wff2_t, self.ff2_b, self.ln2_g, self.ln2_b)
        kernel = functools.partial(_encoder_kernel, num_layers=L, num_heads=heads,
                                   batch=batch, seq=seq, ln_eps=1e-5)
        flops = L * (2 * bs * e * 3 * e + 4 * batch * heads * seq * seq * dh
                     + 2 * bs * e * e + 4 * bs * e * f)
        trans = L * (batch * heads * seq * seq + 2 * bs)
        nbytes = sum(int(a.size) * a.dtype.itemsize for a in args) + bs * e * 4
        return pl.pallas_call(
            kernel,
            out_shape=jax.ShapeDtypeStruct((bs, e), jnp.float32),
            grid=(1,),
            in_specs=[_full_spec(a.shape) for a in args],
            out_specs=_full_spec((bs, e)),
            compiler_params=pltpu.CompilerParams(dimension_semantics=("arbitrary",)),
            cost_estimate=pl.CostEstimate(flops=int(flops), transcendentals=int(trans),
                                          bytes_accessed=int(nbytes)),
        )(*args)

    def _dwconv_pallas(self, xpad_nhwc, out_h, out_w):
        b = xpad_nhwc.shape[0]
        co = self._wp.shape[-1]
        args = (xpad_nhwc, self._wd, self._bn1_s, self._bn1_sh,
                self._wp, self._bn2_s, self._bn2_sh)
        kernel = functools.partial(_dwconv_kernel, out_h=out_h, out_w=out_w)
        return pl.pallas_call(
            kernel,
            out_shape=jax.ShapeDtypeStruct((b * out_h * out_w, co), jnp.float32),
            grid=(1,),
            in_specs=[_full_spec(a.shape) for a in args],
            out_specs=_full_spec((b * out_h * out_w, co)),
            compiler_params=pltpu.CompilerParams(dimension_semantics=("arbitrary",)),
        )(*args)

    # --------------------------------- forward -----------------------------------

    def __call__(self, x, x_ir):
        b, c, h, w = x.shape
        assert c == self.d_model and h * w == self.max_len
        s = h * w
        e = 2 * c

        # concat along channels + PE (matches fusion_feat + self.pe.permute(0, 2, 1))
        fusion = jnp.concatenate([x.reshape(b, c, s), x_ir.reshape(b, c, s)], axis=1)
        fusion = fusion + self.pe.T[None]                      # (B, E, S)

        # full 3-layer encoder on a lane-dense (B*S, E) token slab (one pallas_call)
        tokens = fusion.transpose(0, 2, 1).reshape(b * s, e)
        enc = self._encoder_pallas(tokens, b, s)               # (B*S, E)

        # PyTorch: encoder output is (S, B, E); .view(B, 2C, H, W) reinterprets memory
        feat = enc.reshape(b, s, e).transpose(1, 0, 2).reshape(b, e, h, w)

        # fused DWConv block (one pallas_call, NHWC inside so channels sit on lanes)
        feat_nhwc = jnp.transpose(feat, (0, 2, 3, 1))
        feat_pad = jnp.pad(feat_nhwc, ((0, 0), (1, 1), (1, 1), (0, 0)))
        y = self._dwconv_pallas(feat_pad, h, w)                # (B*H*W, C)
        y = y.reshape(b, h, w, c)
        return jnp.transpose(y, (0, 3, 1, 2))                  # (B, C, H, W)

    # ---------------------------- pure-JAX reference -----------------------------

    def reference(self, x, x_ir):
        hp = jax.lax.Precision.HIGHEST
        b, c, h, w = x.shape
        s, e = h * w, 2 * c
        heads = self.num_heads
        dh = e // heads
        eps = 1e-5

        fusion = jnp.concatenate([x.reshape(b, c, s), x_ir.reshape(b, c, s)], axis=1)
        fusion = fusion + self.pe.T[None]
        src = jnp.transpose(fusion, (2, 0, 1))                 # (S, B, E)

        def ln(v, g, bb):
            mu = v.mean(-1, keepdims=True)
            var = ((v - mu) ** 2).mean(-1, keepdims=True)
            return (v - mu) / jnp.sqrt(var + eps) * g + bb

        for l in range(self.NUM_LAYERS):
            qkv = jnp.einsum('sbe,fe->sbf', src, self.in_proj_w[l], precision=hp) \
                + self.in_proj_b[l]
            q, k, v = qkv[..., :e], qkv[..., e:2 * e], qkv[..., 2 * e:]
            q = (q * (1.0 / math.sqrt(dh))).reshape(s, b, heads, dh).transpose(1, 2, 0, 3)
            k = k.reshape(s, b, heads, dh).transpose(1, 2, 0, 3)
            v = v.reshape(s, b, heads, dh).transpose(1, 2, 0, 3)
            sc = jnp.einsum('bhqd,bhkd->bhqk', q, k, precision=hp)
            pr = jax.nn.softmax(sc, axis=-1)
            ctx = jnp.einsum('bhqk,bhkd->bhqd', pr, v, precision=hp)
            ctx = ctx.transpose(2, 0, 1, 3).reshape(s, b, e)
            attn = jnp.einsum('sbe,fe->sbf', ctx, self.out_w[l], precision=hp) + self.out_b[l]
            src = ln(src + attn, self.ln1_g[l], self.ln1_b[l])
            h1 = jnp.maximum(jnp.einsum('sbe,fe->sbf', src, self.ff1_w[l], precision=hp)
                             + self.ff1_b[l], 0.0)
            h2 = jnp.einsum('sbf,ef->sbe', h1, self.ff2_w[l], precision=hp) + self.ff2_b[l]
            src = ln(src + h2, self.ln2_g[l], self.ln2_b[l])

        feat = src.reshape(b, e, h, w)                         # torch .view reinterpretation

        def silu(v):
            return v * (1.0 / (1.0 + jnp.exp(-v)))

        def bn(v, g, bb, m, var):
            return (v - m[None, :, None, None]) / jnp.sqrt(var + eps)[None, :, None, None] \
                * g[None, :, None, None] + bb[None, :, None, None]

        y = jax.lax.conv_general_dilated(
            feat, self.dw_w, (1, 1), ((1, 1), (1, 1)),
            dimension_numbers=('NCHW', 'OIHW', 'NCHW'),
            feature_group_count=e, precision=hp)
        y = silu(bn(y, self.bn1_g, self.bn1_b, self.bn1_m, self.bn1_v))
        z = jax.lax.conv_general_dilated(
            y, self.pw_w, (1, 1), ((0, 0), (0, 0)),
            dimension_numbers=('NCHW', 'OIHW', 'NCHW'), precision=hp)
        z = silu(bn(z, self.bn2_g, self.bn2_b, self.bn2_m, self.bn2_v))
        return z


# --------------------------------------- test ----------------------------------------

if __name__ == "__main__":
    # Small but lane-dense config: d_model=64 -> transformer width E = 128 (one full
    # lane tile), H*W = 16 = max_len, B = 2.  (The original module uses d_model=256.)
    batch, d_model, height, width = 2, 64, 4, 4
    num_heads = 8
    max_len = height * width

    module = MultiLevelTransformerFusionPallas(max_len=max_len, d_model=d_model,
                                               num_heads=num_heads,
                                               key=jax.random.PRNGKey(42))

    kx, kir = jax.random.split(jax.random.PRNGKey(0))
    x = jax.random.normal(kx, (batch, d_model, height, width), jnp.float32)
    x_ir = jax.random.normal(kir, (batch, d_model, height, width), jnp.float32)

    fwd = jax.jit(module.__call__)
    out = jax.block_until_ready(fwd(x, x_ir))
    assert out.shape == (batch, d_model, height, width), out.shape

    ref = module.reference(x, x_ir)
    err = float(jnp.max(jnp.abs(out - ref)))
    assert jnp.allclose(out, ref, atol=3e-3, rtol=3e-3), \
        f"mismatch vs reference (max|err|={err})"

    print("KERNEL_OK")
</pallas_src>

<mosaic_0001>
module attributes {stable_mosaic.version = 11 : i64} {
  func.func @_encoder_kernel(%arg0: i32, %arg1: memref<32x128xf32, #tpu.memory_space<vmem>>, %arg2: memref<3x128x384xf32, #tpu.memory_space<vmem>>, %arg3: memref<3x384xf32, #tpu.memory_space<vmem>>, %arg4: memref<3x128x128xf32, #tpu.memory_space<vmem>>, %arg5: memref<3x128xf32, #tpu.memory_space<vmem>>, %arg6: memref<3x128xf32, #tpu.memory_space<vmem>>, %arg7: memref<3x128xf32, #tpu.memory_space<vmem>>, %arg8: memref<3x128x128xf32, #tpu.memory_space<vmem>>, %arg9: memref<3x128xf32, #tpu.memory_space<vmem>>, %arg10: memref<3x128x128xf32, #tpu.memory_space<vmem>>, %arg11: memref<3x128xf32, #tpu.memory_space<vmem>>, %arg12: memref<3x128xf32, #tpu.memory_space<vmem>>, %arg13: memref<3x128xf32, #tpu.memory_space<vmem>>, %arg14: memref<32x128xf32, #tpu.memory_space<vmem>>) attributes {dimension_semantics = [#tpu.dimension_semantics<arbitrary>], iteration_bounds = array<i64: 1>, scalar_prefetch = 0 : i64, scratch_operands = 0 : i64, tpu.core_type = #tpu.core_type<tc>, window_params = [{pipeline_mode = #tpu.pipeline_mode<synchronous>, transform_indices = @transform_0, window_bounds = array<i64: 32, 128>}, {pipeline_mode = #tpu.pipeline_mode<synchronous>, transform_indices = @transform_1, window_bounds = array<i64: 3, 128, 384>}, {pipeline_mode = #tpu.pipeline_mode<synchronous>, transform_indices = @transform_2, window_bounds = array<i64: 3, 384>}, {pipeline_mode = #tpu.pipeline_mode<synchronous>, transform_indices = @transform_3, window_bounds = array<i64: 3, 128, 128>}, {pipeline_mode = #tpu.pipeline_mode<synchronous>, transform_indices = @transform_4, window_bounds = array<i64: 3, 128>}, {pipeline_mode = #tpu.pipeline_mode<synchronous>, transform_indices = @transform_5, window_bounds = array<i64: 3, 128>}, {pipeline_mode = #tpu.pipeline_mode<synchronous>, transform_indices = @transform_6, window_bounds = array<i64: 3, 128>}, {pipeline_mode = #tpu.pipeline_mode<synchronous>, transform_indices = @transform_7, window_bounds = array<i64: 3, 128, 128>}, {pipeline_mode = #tpu.pipeline_mode<synchronous>, transform_indices = @transform_8, window_bounds = array<i64: 3, 128>}, {pipeline_mode = #tpu.pipeline_mode<synchronous>, transform_indices = @transform_9, window_bounds = array<i64: 3, 128, 128>}, {pipeline_mode = #tpu.pipeline_mode<synchronous>, transform_indices = @transform_10, window_bounds = array<i64: 3, 128>}, {pipeline_mode = #tpu.pipeline_mode<synchronous>, transform_indices = @transform_11, window_bounds = array<i64: 3, 128>}, {pipeline_mode = #tpu.pipeline_mode<synchronous>, transform_indices = @transform_12, window_bounds = array<i64: 3, 128>}, {pipeline_mode = #tpu.pipeline_mode<synchronous>, transform_indices = @transform_13, window_bounds = array<i64: 32, 128>}]} {
    %c0 = arith.constant 0 : index
    %c0_0 = arith.constant 0 : index
    %0 = vector.load %arg1[%c0, %c0_0] : memref<32x128xf32, #tpu.memory_space<vmem>>, vector<32x128xf32>
    %c0_1 = arith.constant 0 : index
    %c0_2 = arith.constant 0 : index
    %c0_3 = arith.constant 0 : index
    %1 = vector.load %arg2[%c0_1, %c0_2, %c0_3] : memref<3x128x384xf32, #tpu.memory_space<vmem>>, vector<1x128x384xf32>
    %2 = vector.shape_cast %1 : vector<1x128x384xf32> to vector<128x384xf32>
    %cst = arith.constant dense<0.000000e+00> : vector<32x384xf32>
    %3 = tpu.matmul %0, %2, %cst {dimension_numbers = #tpu.dot_dimension_numbers<[1], [0], [0], [1], [0, 0, 1, 1], [], []>} : vector<32x128xf32>, vector<128x384xf32>, vector<32x384xf32> -> vector<32x384xf32>
    %c0_4 = arith.constant 0 : index
    %c0_5 = arith.constant 0 : index
    %4 = vector.load %arg3[%c0_4, %c0_5] : memref<3x384xf32, #tpu.memory_space<vmem>>, vector<1x384xf32>
    %5 = vector.shape_cast %4 : vector<1x384xf32> to vector<384xf32>
    %6 = vector.shape_cast %5 : vector<384xf32> to vector<1x384xf32>
    %7 = vector.broadcast %6 : vector<1x384xf32> to vector<32x384xf32>
    %8 = arith.addf %3, %7 : vector<32x384xf32>
    %9 = vector.shape_cast %8 : vector<32x384xf32> to vector<2x16x384xf32>
    %10 = vector.extract_strided_slice %9 {offsets = [0, 0, 0], sizes = [2, 16, 128], strides = [1, 1, 1]} : vector<2x16x384xf32> to vector<2x16x128xf32>
    %cst_6 = arith.constant 2.500000e-01 : f32
    %11 = vector.broadcast %cst_6 : f32 to vector<2x16x128xf32>
    %12 = arith.mulf %10, %11 : vector<2x16x128xf32>
    %13 = vector.extract_strided_slice %9 {offsets = [0, 0, 128], sizes = [2, 16, 128], strides = [1, 1, 1]} : vector<2x16x384xf32> to vector<2x16x128xf32>
    %14 = vector.extract_strided_slice %9 {offsets = [0, 0, 256], sizes = [2, 16, 128], strides = [1, 1, 1]} : vector<2x16x384xf32> to vector<2x16x128xf32>
    %c0_7 = arith.constant 0 : index
    %c0_8 = arith.constant 0 : index
    %c0_9 = arith.constant 0 : index
    %15 = vector.load %arg4[%c0_7, %c0_8, %c0_9] : memref<3x128x128xf32, #tpu.memory_space<vmem>>, vector<1x128x128xf32>
    %16 = vector.shape_cast %15 : vector<1x128x128xf32> to vector<128x128xf32>
    %17 = vector.extract_strided_slice %12 {offsets = [0, 0, 0], sizes = [2, 16, 16], strides = [1, 1, 1]} : vector<2x16x128xf32> to vector<2x16x16xf32>
    %18 = vector.extract_strided_slice %13 {offsets = [0, 0, 0], sizes = [2, 16, 16], strides = [1, 1, 1]} : vector<2x16x128xf32> to vector<2x16x16xf32>
    "tpu.trace_start"() <{level = 10 : i32, message = "bqd,bkd->bqk"}> : () -> ()
    %cst_10 = arith.constant dense<0.000000e+00> : vector<2x16x16xf32>
    %19 = tpu.matmul %17, %18, %cst_10 {dimension_numbers = #tpu.dot_dimension_numbers<[2], [2], [1], [1], [0, 0, 0, 1, 1, 1], [0], [0]>} : vector<2x16x16xf32>, vector<2x16x16xf32>, vector<2x16x16xf32> -> vector<2x16x16xf32>
    "tpu.trace_stop"() : () -> ()
    %cst_11 = arith.constant dense<0xFF800000> : vector<2x16xf32>
    %20 = vector.multi_reduction <maximumf>, %19, %cst_11 [2] : vector<2x16x16xf32> to vector<2x16xf32>
    %21 = vector.shape_cast %20 : vector<2x16xf32> to vector<2x16x1xf32>
    %22 = vector.broadcast %21 : vector<2x16x1xf32> to vector<2x16x16xf32>
    %23 = arith.subf %19, %22 : vector<2x16x16xf32>
    %24 = math.exp %23 : vector<2x16x16xf32>
    %cst_12 = arith.constant dense<0.000000e+00> : vector<2x16xf32>
    %25 = vector.multi_reduction <add>, %24, %cst_12 [2] : vector<2x16x16xf32> to vector<2x16xf32>
    %26 = vector.shape_cast %25 : vector<2x16xf32> to vector<2x16x1xf32>
    %27 = vector.broadcast %26 : vector<2x16x1xf32> to vector<2x16x16xf32>
    %28 = arith.divf %24, %27 : vector<2x16x16xf32>
    %29 = vector.extract_strided_slice %14 {offsets = [0, 0, 0], sizes = [2, 16, 16], strides = [1, 1, 1]} : vector<2x16x128xf32> to vector<2x16x16xf32>
    "tpu.trace_start"() <{level = 10 : i32, message = "bqk,bkd->bqd"}> : () -> ()
    %cst_13 = arith.constant dense<0.000000e+00> : vector<2x16x16xf32>
    %30 = tpu.matmul %28, %29, %cst_13 {dimension_numbers = #tpu.dot_dimension_numbers<[2], [1], [1], [2], [0, 0, 0, 1, 1, 2], [0], [0]>} : vector<2x16x16xf32>, vector<2x16x16xf32>, vector<2x16x16xf32> -> vector<2x16x16xf32>
    "tpu.trace_stop"() : () -> ()
    %31 = vector.shape_cast %30 : vector<2x16x16xf32> to vector<32x16xf32>
    %32 = vector.extract_strided_slice %16 {offsets = [0, 0], sizes = [16, 128], strides = [1, 1]} : vector<128x128xf32> to vector<16x128xf32>
    %cst_14 = arith.constant dense<0.000000e+00> : vector<32x128xf32>
    %33 = tpu.matmul %31, %32, %cst_14 {dimension_numbers = #tpu.dot_dimension_numbers<[1], [0], [0], [1], [0, 0, 1, 1], [], []>} : vector<32x16xf32>, vector<16x128xf32>, vector<32x128xf32> -> vector<32x128xf32>
    %34 = vector.extract_strided_slice %12 {offsets = [0, 0, 16], sizes = [2, 16, 16], strides = [1, 1, 1]} : vector<2x16x128xf32> to vector<2x16x16xf32>
    %35 = vector.extract_strided_slice %13 {offsets = [0, 0, 16], sizes = [2, 16, 16], strides = [1, 1, 1]} : vector<2x16x128xf32> to vector<2x16x16xf32>
    "tpu.trace_start"() <{level = 10 : i32, message = "bqd,bkd->bqk"}> : () -> ()
    %cst_15 = arith.constant dense<0.000000e+00> : vector<2x16x16xf32>
    %36 = tpu.matmul %34, %35, %cst_15 {dimension_numbers = #tpu.dot_dimension_numbers<[2], [2], [1], [1], [0, 0, 0, 1, 1, 1], [0], [0]>} : vector<2x16x16xf32>, vector<2x16x16xf32>, vector<2x16x16xf32> -> vector<2x16x16xf32>
    "tpu.trace_stop"() : () -> ()
    %cst_16 = arith.constant dense<0xFF800000> : vector<2x16xf32>
    %37 = vector.multi_reduction <maximumf>, %36, %cst_16 [2] : vector<2x16x16xf32> to vector<2x16xf32>
    %38 = vector.shape_cast %37 : vector<2x16xf32> to vector<2x16x1xf32>
    %39 = vector.broadcast %38 : vector<2x16x1xf32> to vector<2x16x16xf32>
    %40 = arith.subf %36, %39 : vector<2x16x16xf32>
    %41 = math.exp %40 : vector<2x16x16xf32>
    %cst_17 = arith.constant dense<0.000000e+00> : vector<2x16xf32>
    %42 = vector.multi_reduction <add>, %41, %cst_17 [2] : vector<2x16x16xf32> to vector<2x16xf32>
    %43 = vector.shape_cast %42 : vector<2x16xf32> to vector<2x16x1xf32>
    %44 = vector.broadcast %43 : vector<2x16x1xf32> to vector<2x16x16xf32>
    %45 = arith.divf %41, %44 : vector<2x16x16xf32>
    %46 = vector.extract_strided_slice %14 {offsets = [0, 0, 16], sizes = [2, 16, 16], strides = [1, 1, 1]} : vector<2x16x128xf32> to vector<2x16x16xf32>
    "tpu.trace_start"() <{level = 10 : i32, message = "bqk,bkd->bqd"}> : () -> ()
    %cst_18 = arith.constant dense<0.000000e+00> : vector<2x16x16xf32>
    %47 = tpu.matmul %45, %46, %cst_18 {dimension_numbers = #tpu.dot_dimension_numbers<[2], [1], [1], [2], [0, 0, 0, 1, 1, 2], [0], [0]>} : vector<2x16x16xf32>, vector<2x16x16xf32>, vector<2x16x16xf32> -> vector<2x16x16xf32>
    "tpu.trace_stop"() : () -> ()
    %48 = vector.shape_cast %47 : vector<2x16x16xf32> to vector<32x16xf32>
    %49 = vector.extract_strided_slice %16 {offsets = [16, 0], sizes = [16, 128], strides = [1, 1]} : vector<128x128xf32> to vector<16x128xf32>
    %cst_19 = arith.constant dense<0.000000e+00> : vector<32x128xf32>
    %50 = tpu.matmul %48, %49, %cst_19 {dimension_numbers = #tpu.dot_dimension_numbers<[1], [0], [0], [1], [0, 0, 1, 1], [], []>} : vector<32x16xf32>, vector<16x128xf32>, vector<32x128xf32> -> vector<32x128xf32>
    %51 = arith.addf %33, %50 : vector<32x128xf32>
    %52 = vector.extract_strided_slice %12 {offsets = [0, 0, 32], sizes = [2, 16, 16], strides = [1, 1, 1]} : vector<2x16x128xf32> to vector<2x16x16xf32>
    %53 = vector.extract_strided_slice %13 {offsets = [0, 0, 32], sizes = [2, 16, 16], strides = [1, 1, 1]} : vector<2x16x128xf32> to vector<2x16x16xf32>
    "tpu.trace_start"() <{level = 10 : i32, message = "bqd,bkd->bqk"}> : () -> ()
    %cst_20 = arith.constant dense<0.000000e+00> : vector<2x16x16xf32>
    %54 = tpu.matmul %52, %53, %cst_20 {dimension_numbers = #tpu.dot_dimension_numbers<[2], [2], [1], [1], [0, 0, 0, 1, 1, 1], [0], [0]>} : vector<2x16x16xf32>, vector<2x16x16xf32>, vector<2x16x16xf32> -> vector<2x16x16xf32>
    "tpu.trace_stop"() : () -> ()
    %cst_21 = arith.constant dense<0xFF800000> : vector<2x16xf32>
    %55 = vector.multi_reduction <maximumf>, %54, %cst_21 [2] : vector<2x16x16xf32> to vector<2x16xf32>
    %56 = vector.shape_cast %55 : vector<2x16xf32> to vector<2x16x1xf32>
    %57 = vector.broadcast %56 : vector<2x16x1xf32> to vector<2x16x16xf32>
    %58 = arith.subf %54, %57 : vector<2x16x16xf32>
    %59 = math.exp %58 : vector<2x16x16xf32>
    %cst_22 = arith.constant dense<0.000000e+00> : vector<2x16xf32>
    %60 = vector.multi_reduction <add>, %59, %cst_22 [2] : vector<2x16x16xf32> to vector<2x16xf32>
    %61 = vector.shape_cast %60 : vector<2x16xf32> to vector<2x16x1xf32>
    %62 = vector.broadcast %61 : vector<2x16x1xf32> to vector<2x16x16xf32>
    %63 = arith.divf %59, %62 : vector<2x16x16xf32>
    %64 = vector.extract_strided_slice %14 {offsets = [0, 0, 32], sizes = [2, 16, 16], strides = [1, 1, 1]} : vector<2x16x128xf32> to vector<2x16x16xf32>
    "tpu.trace_start"() <{level = 10 : i32, message = "bqk,bkd->bqd"}> : () -> ()
    %cst_23 = arith.constant dense<0.000000e+00> : vector<2x16x16xf32>
    %65 = tpu.matmul %63, %64, %cst_23 {dimension_numbers = #tpu.dot_dimension_numbers<[2], [1], [1], [2], [0, 0, 0, 1, 1, 2], [0], [0]>} : vector<2x16x16xf32>, vector<2x16x16xf32>, vector<2x16x16xf32> -> vector<2x16x16xf32>
    "tpu.trace_stop"() : () -> ()
    %66 = vector.shape_cast %65 : vector<2x16x16xf32> to vector<32x16xf32>
    %67 = vector.extract_strided_slice %16 {offsets = [32, 0], sizes = [16, 128], strides = [1, 1]} : vector<128x128xf32> to vector<16x128xf32>
    %cst_24 = arith.constant dense<0.000000e+00> : vector<32x128xf32>
    %68 = tpu.matmul %66, %67, %cst_24 {dimension_numbers = #tpu.dot_dimension_numbers<[1], [0], [0], [1], [0, 0, 1, 1], [], []>} : vector<32x16xf32>, vector<16x128xf32>, vector<32x128xf32> -> vector<32x128xf32>
    %69 = arith.addf %51, %68 : vector<32x128xf32>
    %70 = vector.extract_strided_slice %12 {offsets = [0, 0, 48], sizes = [2, 16, 16], strides = [1, 1, 1]} : vector<2x16x128xf32> to vector<2x16x16xf32>
    %71 = vector.extract_strided_slice %13 {offsets = [0, 0, 48], sizes = [2, 16, 16], strides = [1, 1, 1]} : vector<2x16x128xf32> to vector<2x16x16xf32>
    "tpu.trace_start"() <{level = 10 : i32, message = "bqd,bkd->bqk"}> : () -> ()
    %cst_25 = arith.constant dense<0.000000e+00> : vector<2x16x16xf32>
    %72 = tpu.matmul %70, %71, %cst_25 {dimension_numbers = #tpu.dot_dimension_numbers<[2], [2], [1], [1], [0, 0, 0, 1, 1, 1], [0], [0]>} : vector<2x16x16xf32>, vector<2x16x16xf32>, vector<2x16x16xf32> -> vector<2x16x16xf32>
    "tpu.trace_stop"() : () -> ()
    %cst_26 = arith.constant dense<0xFF800000> : vector<2x16xf32>
    %73 = vector.multi_reduction <maximumf>, %72, %cst_26 [2] : vector<2x16x16xf32> to vector<2x16xf32>
    %74 = vector.shape_cast %73 : vector<2x16xf32> to vector<2x16x1xf32>
    %75 = vector.broadcast %74 : vector<2x16x1xf32> to vector<2x16x16xf32>
    %76 = arith.subf %72, %75 : vector<2x16x16xf32>
    %77 = math.exp %76 : vector<2x16x16xf32>
    %cst_27 = arith.constant dense<0.000000e+00> : vector<2x16xf32>
    %78 = vector.multi_reduction <add>, %77, %cst_27 [2] : vector<2x16x16xf32> to vector<2x16xf32>
    %79 = vector.shape_cast %78 : vector<2x16xf32> to vector<2x16x1xf32>
    %80 = vector.broadcast %79 : vector<2x16x1xf32> to vector<2x16x16xf32>
    %81 = arith.divf %77, %80 : vector<2x16x16xf32>
    %82 = vector.extract_strided_slice %14 {offsets = [0, 0, 48], sizes = [2, 16, 16], strides = [1, 1, 1]} : vector<2x16x128xf32> to vector<2x16x16xf32>
    "tpu.trace_start"() <{level = 10 : i32, message = "bqk,bkd->bqd"}> : () -> ()
    %cst_28 = arith.constant dense<0.000000e+00> : vector<2x16x16xf32>
    %83 = tpu.matmul %81, %82, %cst_28 {dimension_numbers = #tpu.dot_dimension_numbers<[2], [1], [1], [2], [0, 0, 0, 1, 1, 2], [0], [0]>} : vector<2x16x16xf32>, vector<2x16x16xf32>, vector<2x16x16xf32> -> vector<2x16x16xf32>
    "tpu.trace_stop"() : () -> ()
    %84 = vector.shape_cast %83 : vector<2x16x16xf32> to vector<32x16xf32>
    %85 = vector.extract_strided_slice %16 {offsets = [48, 0], sizes = [16, 128], strides = [1, 1]} : vector<128x128xf32> to vector<16x128xf32>
    %cst_29 = arith.constant dense<0.000000e+00> : vector<32x128xf32>
    %86 = tpu.matmul %84, %85, %cst_29 {dimension_numbers = #tpu.dot_dimension_numbers<[1], [0], [0], [1], [0, 0, 1, 1], [], []>} : vector<32x16xf32>, vector<16x128xf32>, vector<32x128xf32> -> vector<32x128xf32>
    %87 = arith.addf %69, %86 : vector<32x128xf32>
    %88 = vector.extract_strided_slice %12 {offsets = [0, 0, 64], sizes = [2, 16, 16], strides = [1, 1, 1]} : vector<2x16x128xf32> to vector<2x16x16xf32>
    %89 = vector.extract_strided_slice %13 {offsets = [0, 0, 64], sizes = [2, 16, 16], strides = [1, 1, 1]} : vector<2x16x128xf32> to vector<2x16x16xf32>
    "tpu.trace_start"() <{level = 10 : i32, message = "bqd,bkd->bqk"}> : () -> ()
    %cst_30 = arith.constant dense<0.000000e+00> : vector<2x16x16xf32>
    %90 = tpu.matmul %88, %89, %cst_30 {dimension_numbers = #tpu.dot_dimension_numbers<[2], [2], [1], [1], [0, 0, 0, 1, 1, 1], [0], [0]>} : vector<2x16x16xf32>, vector<2x16x16xf32>, vector<2x16x16xf32> -> vector<2x16x16xf32>
    "tpu.trace_stop"() : () -> ()
    %cst_31 = arith.constant dense<0xFF800000> : vector<2x16xf32>
    %91 = vector.multi_reduction <maximumf>, %90, %cst_31 [2] : vector<2x16x16xf32> to vector<2x16xf32>
    %92 = vector.shape_cast %91 : vector<2x16xf32> to vector<2x16x1xf32>
    %93 = vector.broadcast %92 : vector<2x16x1xf32> to vector<2x16x16xf32>
    %94 = arith.subf %90, %93 : vector<2x16x16xf32>
    %95 = math.exp %94 : vector<2x16x16xf32>
    %cst_32 = arith.constant dense<0.000000e+00> : vector<2x16xf32>
    %96 = vector.multi_reduction <add>, %95, %cst_32 [2] : vector<2x16x16xf32> to vector<2x16xf32>
    %97 = vector.shape_cast %96 : vector<2x16xf32> to vector<2x16x1xf32>
    %98 = vector.broadcast %97 : vector<2x16x1xf32> to vector<2x16x16xf32>
    %99 = arith.divf %95, %98 : vector<2x16x16xf32>
    %100 = vector.extract_strided_slice %14 {offsets = [0, 0, 64], sizes = [2, 16, 16], strides = [1, 1, 1]} : vector<2x16x128xf32> to vector<2x16x16xf32>
    "tpu.trace_start"() <{level = 10 : i32, message = "bqk,bkd->bqd"}> : () -> ()
    %cst_33 = arith.constant dense<0.000000e+00> : vector<2x16x16xf32>
    %101 = tpu.matmul %99, %100, %cst_33 {dimension_numbers = #tpu.dot_dimension_numbers<[2], [1], [1], [2], [0, 0, 0, 1, 1, 2], [0], [0]>} : vector<2x16x16xf32>, vector<2x16x16xf32>, vector<2x16x16xf32> -> vector<2x16x16xf32>
    "tpu.trace_stop"() : () -> ()
    %102 = vector.shape_cast %101 : vector<2x16x16xf32> to vector<32x16xf32>
    %103 = vector.extract_strided_slice %16 {offsets = [64, 0], sizes = [16, 128], strides = [1, 1]} : vector<128x128xf32> to vector<16x128xf32>
    %cst_34 = arith.constant dense<0.000000e+00> : vector<32x128xf32>
    %104 = tpu.matmul %102, %103, %cst_34 {dimension_numbers = #tpu.dot_dimension_numbers<[1], [0], [0], [1], [0, 0, 1, 1], [], []>} : vector<32x16xf32>, vector<16x128xf32>, vector<32x128xf32> -> vector<32x128xf32>
    %105 = arith.addf %87, %104 : vector<32x128xf32>
    %106 = vector.extract_strided_slice %12 {offsets = [0, 0, 80], sizes = [2, 16, 16], strides = [1, 1, 1]} : vector<2x16x128xf32> to vector<2x16x16xf32>
    %107 = vector.extract_strided_slice %13 {offsets = [0, 0, 80], sizes = [2, 16, 16], strides = [1, 1, 1]} : vector<2x16x128xf32> to vector<2x16x16xf32>
    "tpu.trace_start"() <{level = 10 : i32, message = "bqd,bkd->bqk"}> : () -> ()
    %cst_35 = arith.constant dense<0.000000e+00> : vector<2x16x16xf32>
    %108 = tpu.matmul %106, %107, %cst_35 {dimension_numbers = #tpu.dot_dimension_numbers<[2], [2], [1], [1], [0, 0, 0, 1, 1, 1], [0], [0]>} : vector<2x16x16xf32>, vector<2x16x16xf32>, vector<2x16x16xf32> -> vector<2x16x16xf32>
    "tpu.trace_stop"() : () -> ()
    %cst_36 = arith.constant dense<0xFF800000> : vector<2x16xf32>
    %109 = vector.multi_reduction <maximumf>, %108, %cst_36 [2] : vector<2x16x16xf32> to vector<2x16xf32>
    %110 = vector.shape_cast %109 : vector<2x16xf32> to vector<2x16x1xf32>
    %111 = vector.broadcast %110 : vector<2x16x1xf32> to vector<2x16x16xf32>
    %112 = arith.subf %108, %111 : vector<2x16x16xf32>
    %113 = math.exp %112 : vector<2x16x16xf32>
    %cst_37 = arith.constant dense<0.000000e+00> : vector<2x16xf32>
    %114 = vector.multi_reduction <add>, %113, %cst_37 [2] : vector<2x16x16xf32> to vector<2x16xf32>
    %115 = vector.shape_cast %114 : vector<2x16xf32> to vector<2x16x1xf32>
    %116 = vector.broadcast %115 : vector<2x16x1xf32> to vector<2x16x16xf32>
    %117 = arith.divf %113, %116 : vector<2x16x16xf32>
    %118 = vector.extract_strided_slice %14 {offsets = [0, 0, 80], sizes = [2, 16, 16], strides = [1, 1, 1]} : vector<2x16x128xf32> to vector<2x16x16xf32>
    "tpu.trace_start"() <{level = 10 : i32, message = "bqk,bkd->bqd"}> : () -> ()
    %cst_38 = arith.constant dense<0.000000e+00> : vector<2x16x16xf32>
    %119 = tpu.matmul %117, %118, %cst_38 {dimension_numbers = #tpu.dot_dimension_numbers<[2], [1], [1], [2], [0, 0, 0, 1, 1, 2], [0], [0]>} : vector<2x16x16xf32>, vector<2x16x16xf32>, vector<2x16x16xf32> -> vector<2x16x16xf32>
    "tpu.trace_stop"() : () -> ()
    %120 = vector.shape_cast %119 : vector<2x16x16xf32> to vector<32x16xf32>
    %121 = vector.extract_strided_slice %16 {offsets = [80, 0], sizes = [16, 128], strides = [1, 1]} : vector<128x128xf32> to vector<16x128xf32>
    %cst_39 = arith.constant dense<0.000000e+00> : vector<32x128xf32>
    %122 = tpu.matmul %120, %121, %cst_39 {dimension_numbers = #tpu.dot_dimension_numbers<[1], [0], [0], [1], [0, 0, 1, 1], [], []>} : vector<32x16xf32>, vector<16x128xf32>, vector<32x128xf32> -> vector<32x128xf32>
    %123 = arith.addf %105, %122 : vector<32x128xf32>
    %124 = vector.extract_strided_slice %12 {offsets = [0, 0, 96], sizes = [2, 16, 16], strides = [1, 1, 1]} : vector<2x16x128xf32> to vector<2x16x16xf32>
    %125 = vector.extract_strided_slice %13 {offsets = [0, 0, 96], sizes = [2, 16, 16], strides = [1, 1, 1]} : vector<2x16x128xf32> to vector<2x16x16xf32>
    "tpu.trace_start"() <{level = 10 : i32, message = "bqd,bkd->bqk"}> : () -> ()
    %cst_40 = arith.constant dense<0.000000e+00> : vector<2x16x16xf32>
    %126 = tpu.matmul %124, %125, %cst_40 {dimension_numbers = #tpu.dot_dimension_numbers<[2], [2], [1], [1], [0, 0, 0, 1, 1, 1], [0], [0]>} : vector<2x16x16xf32>, vector<2x16x16xf32>, vector<2x16x16xf32> -> vector<2x16x16xf32>
    "tpu.trace_stop"() : () -> ()
    %cst_41 = arith.constant dense<0xFF800000> : vector<2x16xf32>
    %127 = vector.multi_reduction <maximumf>, %126, %cst_41 [2] : vector<2x16x16xf32> to vector<2x16xf32>
    %128 = vector.shape_cast %127 : vector<2x16xf32> to vector<2x16x1xf32>
    %129 = vector.broadcast %128 : vector<2x16x1xf32> to vector<2x16x16xf32>
    %130 = arith.subf %126, %129 : vector<2x16x16xf32>
    %131 = math.exp %130 : vector<2x16x16xf32>
    %cst_42 = arith.constant dense<0.000000e+00> : vector<2x16xf32>
    %132 = vector.multi_reduction <add>, %131, %cst_42 [2] : vector<2x16x16xf32> to vector<2x16xf32>
    %133 = vector.shape_cast %132 : vector<2x16xf32> to vector<2x16x1xf32>
    %134 = vector.broadcast %133 : vector<2x16x1xf32> to vector<2x16x16xf32>
    %135 = arith.divf %131, %134 : vector<2x16x16xf32>
    %136 = vector.extract_strided_slice %14 {offsets = [0, 0, 96], sizes = [2, 16, 16], strides = [1, 1, 1]} : vector<2x16x128xf32> to vector<2x16x16xf32>
    "tpu.trace_start"() <{level = 10 : i32, message = "bqk,bkd->bqd"}> : () -> ()
    %cst_43 = arith.constant dense<0.000000e+00> : vector<2x16x16xf32>
    %137 = tpu.matmul %135, %136, %cst_43 {dimension_numbers = #tpu.dot_dimension_numbers<[2], [1], [1], [2], [0, 0, 0, 1, 1, 2], [0], [0]>} : vector<2x16x16xf32>, vector<2x16x16xf32>, vector<2x16x16xf32> -> vector<2x16x16xf32>
    "tpu.trace_stop"() : () -> ()
    %138 = vector.shape_cast %137 : vector<2x16x16xf32> to vector<32x16xf32>
    %139 = vector.extract_strided_slice %16 {offsets = [96, 0], sizes = [16, 128], strides = [1, 1]} : vector<128x128xf32> to vector<16x128xf32>
    %cst_44 = arith.constant dense<0.000000e+00> : vector<32x128xf32>
    %140 = tpu.matmul %138, %139, %cst_44 {dimension_numbers = #tpu.dot_dimension_numbers<[1], [0], [0], [1], [0, 0, 1, 1], [], []>} : vector<32x16xf32>, vector<16x128xf32>, vector<32x128xf32> -> vector<32x128xf32>
    %141 = arith.addf %123, %140 : vector<32x128xf32>
    %142 = vector.extract_strided_slice %12 {offsets = [0, 0, 112], sizes = [2, 16, 16], strides = [1, 1, 1]} : vector<2x16x128xf32> to vector<2x16x16xf32>
    %143 = vector.extract_strided_slice %13 {offsets = [0, 0, 112], sizes = [2, 16, 16], strides = [1, 1, 1]} : vector<2x16x128xf32> to vector<2x16x16xf32>
    "tpu.trace_start"() <{level = 10 : i32, message = "bqd,bkd->bqk"}> : () -> ()
    %cst_45 = arith.constant dense<0.000000e+00> : vector<2x16x16xf32>
    %144 = tpu.matmul %142, %143, %cst_45 {dimension_numbers = #tpu.dot_dimension_numbers<[2], [2], [1], [1], [0, 0, 0, 1, 1, 1], [0], [0]>} : vector<2x16x16xf32>, vector<2x16x16xf32>, vector<2x16x16xf32> -> vector<2x16x16xf32>
    "tpu.trace_stop"() : () -> ()
    %cst_46 = arith.constant dense<0xFF800000> : vector<2x16xf32>
    %145 = vector.multi_reduction <maximumf>, %144, %cst_46 [2] : vector<2x16x16xf32> to vector<2x16xf32>
    %146 = vector.shape_cast %145 : vector<2x16xf32> to vector<2x16x1xf32>
    %147 = vector.broadcast %146 : vector<2x16x1xf32> to vector<2x16x16xf32>
    %148 = arith.subf %144, %147 : vector<2x16x16xf32>
    %149 = math.exp %148 : vector<2x16x16xf32>
    %cst_47 = arith.constant dense<0.000000e+00> : vector<2x16xf32>
    %150 = vector.multi_reduction <add>, %149, %cst_47 [2] : vector<2x16x16xf32> to vector<2x16xf32>
    %151 = vector.shape_cast %150 : vector<2x16xf32> to vector<2x16x1xf32>
    %152 = vector.broadcast %151 : vector<2x16x1xf32> to vector<2x16x16xf32>
    %153 = arith.divf %149, %152 : vector<2x16x16xf32>
    %154 = vector.extract_strided_slice %14 {offsets = [0, 0, 112], sizes = [2, 16, 16], strides = [1, 1, 1]} : vector<2x16x128xf32> to vector<2x16x16xf32>
    "tpu.trace_start"() <{level = 10 : i32, message = "bqk,bkd->bqd"}> : () -> ()
    %cst_48 = arith.constant dense<0.000000e+00> : vector<2x16x16xf32>
    %155 = tpu.matmul %153, %154, %cst_48 {dimension_numbers = #tpu.dot_dimension_numbers<[2], [1], [1], [2], [0, 0, 0, 1, 1, 2], [0], [0]>} : vector<2x16x16xf32>, vector<2x16x16xf32>, vector<2x16x16xf32> -> vector<2x16x16xf32>
    "tpu.trace_stop"() : () -> ()
    %156 = vector.shape_cast %155 : vector<2x16x16xf32> to vector<32x16xf32>
    %157 = vector.extract_strided_slice %16 {offsets = [112, 0], sizes = [16, 128], strides = [1, 1]} : vector<128x128xf32> to vector<16x128xf32>
    %cst_49 = arith.constant dense<0.000000e+00> : vector<32x128xf32>
    %158 = tpu.matmul %156, %157, %cst_49 {dimension_numbers = #tpu.dot_dimension_numbers<[1], [0], [0], [1], [0, 0, 1, 1], [], []>} : vector<32x16xf32>, vector<16x128xf32>, vector<32x128xf32> -> vector<32x128xf32>
    %159 = arith.addf %141, %158 : vector<32x128xf32>
    %c0_50 = arith.constant 0 : index
    %c0_51 = arith.constant 0 : index
    %160 = vector.load %arg5[%c0_50, %c0_51] : memref<3x128xf32, #tpu.memory_space<vmem>>, vector<1x128xf32>
    %161 = vector.shape_cast %160 : vector<1x128xf32> to vector<128xf32>
    %162 = vector.shape_cast %161 : vector<128xf32> to vector<1x128xf32>
    %163 = vector.broadcast %162 : vector<1x128xf32> to vector<32x128xf32>
    %164 = arith.addf %159, %163 : vector<32x128xf32>
    %165 = arith.addf %0, %164 : vector<32x128xf32>
    %c0_52 = arith.constant 0 : index
    %c0_53 = arith.constant 0 : index
    %166 = vector.load %arg6[%c0_52, %c0_53] : memref<3x128xf32, #tpu.memory_space<vmem>>, vector<1x128xf32>
    %167 = vector.shape_cast %166 : vector<1x128xf32> to vector<128xf32>
    %c0_54 = arith.constant 0 : index
    %c0_55 = arith.constant 0 : index
    %168 = vector.load %arg7[%c0_54, %c0_55] : memref<3x128xf32, #tpu.memory_space<vmem>>, vector<1x128xf32>
    %169 = vector.shape_cast %168 : vector<1x128xf32> to vector<128xf32>
    %cst_56 = arith.constant dense<0.000000e+00> : vector<32xf32>
    %170 = vector.multi_reduction <add>, %165, %cst_56 [1] : vector<32x128xf32> to vector<32xf32>
    %171 = vector.shape_cast %170 : vector<32xf32> to vector<32x1xf32>
    %cst_57 = arith.constant 1.280000e+02 : f32
    %172 = vector.broadcast %cst_57 : f32 to vector<32x1xf32>
    %173 = arith.divf %171, %172 : vector<32x1xf32>
    %174 = vector.broadcast %173 : vector<32x1xf32> to vector<32x128xf32>
    %175 = arith.subf %165, %174 : vector<32x128xf32>
    %176 = arith.mulf %175, %175 : vector<32x128xf32>
    %cst_58 = arith.constant dense<0.000000e+00> : vector<32xf32>
    %177 = vector.multi_reduction <add>, %176, %cst_58 [1] : vector<32x128xf32> to vector<32xf32>
    %178 = vector.shape_cast %177 : vector<32xf32> to vector<32x1xf32>
    %cst_59 = arith.constant 1.280000e+02 : f32
    %179 = vector.broadcast %cst_59 : f32 to vector<32x1xf32>
    %180 = arith.divf %178, %179 : vector<32x1xf32>
    %181 = vector.broadcast %173 : vector<32x1xf32> to vector<32x128xf32>
    %182 = arith.subf %165, %181 : vector<32x128xf32>
    %cst_60 = arith.constant 9.99999974E-6 : f32
    %183 = vector.broadcast %cst_60 : f32 to vector<32x1xf32>
    %184 = arith.addf %180, %183 : vector<32x1xf32>
    %185 = math.rsqrt %184 : vector<32x1xf32>
    %186 = vector.broadcast %185 : vector<32x1xf32> to vector<32x128xf32>
    %187 = arith.mulf %182, %186 : vector<32x128xf32>
    %188 = vector.shape_cast %167 : vector<128xf32> to vector<1x128xf32>
    %189 = vector.broadcast %188 : vector<1x128xf32> to vector<32x128xf32>
    %190 = arith.mulf %187, %189 : vector<32x128xf32>
    %191 = vector.shape_cast %169 : vector<128xf32> to vector<1x128xf32>
    %192 = vector.broadcast %191 : vector<1x128xf32> to vector<32x128xf32>
    %193 = arith.addf %190, %192 : vector<32x128xf32>
    %c0_61 = arith.constant 0 : index
    %c0_62 = arith.constant 0 : index
    %c0_63 = arith.constant 0 : index
    %194 = vector.load %arg8[%c0_61, %c0_62, %c0_63] : memref<3x128x128xf32, #tpu.memory_space<vmem>>, vector<1x128x128xf32>
    %195 = vector.shape_cast %194 : vector<1x128x128xf32> to vector<128x128xf32>
    %cst_64 = arith.constant dense<0.000000e+00> : vector<32x128xf32>
    %196 = tpu.matmul %193, %195, %cst_64 {dimension_numbers = #tpu.dot_dimension_numbers<[1], [0], [0], [1], [0, 0, 1, 1], [], []>} : vector<32x128xf32>, vector<128x128xf32>, vector<32x128xf32> -> vector<32x128xf32>
    %c0_65 = arith.constant 0 : index
    %c0_66 = arith.constant 0 : index
    %197 = vector.load %arg9[%c0_65, %c0_66] : memref<3x128xf32, #tpu.memory_space<vmem>>, vector<1x128xf32>
    %198 = vector.shape_cast %197 : vector<1x128xf32> to vector<128xf32>
    %199 = vector.shape_cast %198 : vector<128xf32> to vector<1x128xf32>
    %200 = vector.broadcast %199 : vector<1x128xf32> to vector<32x128xf32>
    %201 = arith.addf %196, %200 : vector<32x128xf32>
    %cst_67 = arith.constant 0.000000e+00 : f32
    %202 = vector.broadcast %cst_67 : f32 to vector<32x128xf32>
    %203 = arith.maximumf %201, %202 : vector<32x128xf32>
    %c0_68 = arith.constant 0 : index
    %c0_69 = arith.constant 0 : index
    %c0_70 = arith.constant 0 : index
    %204 = vector.load %arg10[%c0_68, %c0_69, %c0_70] : memref<3x128x128xf32, #tpu.memory_space<vmem>>, vector<1x128x128xf32>
    %205 = vector.shape_cast %204 : vector<1x128x128xf32> to vector<128x128xf32>
    %cst_71 = arith.constant dense<0.000000e+00> : vector<32x128xf32>
    %206 = tpu.matmul %203, %205, %cst_71 {dimension_numbers = #tpu.dot_dimension_numbers<[1], [0], [0], [1], [0, 0, 1, 1], [], []>} : vector<32x128xf32>, vector<128x128xf32>, vector<32x128xf32> -> vector<32x128xf32>
    %c0_72 = arith.constant 0 : index
    %c0_73 = arith.constant 0 : index
    %207 = vector.load %arg11[%c0_72, %c0_73] : memref<3x128xf32, #tpu.memory_space<vmem>>, vector<1x128xf32>
    %208 = vector.shape_cast %207 : vector<1x128xf32> to vector<128xf32>
    %209 = vector.shape_cast %208 : vector<128xf32> to vector<1x128xf32>
    %210 = vector.broadcast %209 : vector<1x128xf32> to vector<32x128xf32>
    %211 = arith.addf %206, %210 : vector<32x128xf32>
    %212 = arith.addf %193, %211 : vector<32x128xf32>
    %c0_74 = arith.constant 0 : index
    %c0_75 = arith.constant 0 : index
    %213 = vector.load %arg12[%c0_74, %c0_75] : memref<3x128xf32, #tpu.memory_space<vmem>>, vector<1x128xf32>
    %214 = vector.shape_cast %213 : vector<1x128xf32> to vector<128xf32>
    %c0_76 = arith.constant 0 : index
    %c0_77 = arith.constant 0 : index
    %215 = vector.load %arg13[%c0_76, %c0_77] : memref<3x128xf32, #tpu.memory_space<vmem>>, vector<1x128xf32>
    %216 = vector.shape_cast %215 : vector<1x128xf32> to vector<128xf32>
    %cst_78 = arith.constant dense<0.000000e+00> : vector<32xf32>
    %217 = vector.multi_reduction <add>, %212, %cst_78 [1] : vector<32x128xf32> to vector<32xf32>
    %218 = vector.shape_cast %217 : vector<32xf32> to vector<32x1xf32>
    %cst_79 = arith.constant 1.280000e+02 : f32
    %219 = vector.broadcast %cst_79 : f32 to vector<32x1xf32>
    %220 = arith.divf %218, %219 : vector<32x1xf32>
    %221 = vector.broadcast %220 : vector<32x1xf32> to vector<32x128xf32>
    %222 = arith.subf %212, %221 : vector<32x128xf32>
    %223 = arith.mulf %222, %222 : vector<32x128xf32>
    %cst_80 = arith.constant dense<0.000000e+00> : vector<32xf32>
    %224 = vector.multi_reduction <add>, %223, %cst_80 [1] : vector<32x128xf32> to vector<32xf32>
    %225 = vector.shape_cast %224 : vector<32xf32> to vector<32x1xf32>
    %cst_81 = arith.constant 1.280000e+02 : f32
    %226 = vector.broadcast %cst_81 : f32 to vector<32x1xf32>
    %227 = arith.divf %225, %226 : vector<32x1xf32>
    %228 = vector.broadcast %220 : vector<32x1xf32> to vector<32x128xf32>
    %229 = arith.subf %212, %228 : vector<32x128xf32>
    %cst_82 = arith.constant 9.99999974E-6 : f32
    %230 = vector.broadcast %cst_82 : f32 to vector<32x1xf32>
    %231 = arith.addf %227, %230 : vector<32x1xf32>
    %232 = math.rsqrt %231 : vector<32x1xf32>
    %233 = vector.broadcast %232 : vector<32x1xf32> to vector<32x128xf32>
    %234 = arith.mulf %229, %233 : vector<32x128xf32>
    %235 = vector.shape_cast %214 : vector<128xf32> to vector<1x128xf32>
    %236 = vector.broadcast %235 : vector<1x128xf32> to vector<32x128xf32>
    %237 = arith.mulf %234, %236 : vector<32x128xf32>
    %238 = vector.shape_cast %216 : vector<128xf32> to vector<1x128xf32>
    %239 = vector.broadcast %238 : vector<1x128xf32> to vector<32x128xf32>
    %240 = arith.addf %237, %239 : vector<32x128xf32>
    %c1 = arith.constant 1 : index
    %c0_83 = arith.constant 0 : index
    %c0_84 = arith.constant 0 : index
    %241 = vector.load %arg2[%c1, %c0_83, %c0_84] : memref<3x128x384xf32, #tpu.memory_space<vmem>>, vector<1x128x384xf32>
    %242 = vector.shape_cast %241 : vector<1x128x384xf32> to vector<128x384xf32>
    %cst_85 = arith.constant dense<0.000000e+00> : vector<32x384xf32>
    %243 = tpu.matmul %240, %242, %cst_85 {dimension_numbers = #tpu.dot_dimension_numbers<[1], [0], [0], [1], [0, 0, 1, 1], [], []>} : vector<32x128xf32>, vector<128x384xf32>, vector<32x384xf32> -> vector<32x384xf32>
    %c1_86 = arith.constant 1 : index
    %c0_87 = arith.constant 0 : index
    %244 = vector.load %arg3[%c1_86, %c0_87] : memref<3x384xf32, #tpu.memory_space<vmem>>, vector<1x384xf32>
    %245 = vector.shape_cast %244 : vector<1x384xf32> to vector<384xf32>
    %246 = vector.shape_cast %245 : vector<384xf32> to vector<1x384xf32>
    %247 = vector.broadcast %246 : vector<1x384xf32> to vector<32x384xf32>
    %248 = arith.addf %243, %247 : vector<32x384xf32>
    %249 = vector.shape_cast %248 : vector<32x384xf32> to vector<2x16x384xf32>
    %250 = vector.extract_strided_slice %249 {offsets = [0, 0, 0], sizes = [2, 16, 128], strides = [1, 1, 1]} : vector<2x16x384xf32> to vector<2x16x128xf32>
    %cst_88 = arith.constant 2.500000e-01 : f32
    %251 = vector.broadcast %cst_88 : f32 to vector<2x16x128xf32>
    %252 = arith.mulf %250, %251 : vector<2x16x128xf32>
    %253 = vector.extract_strided_slice %249 {offsets = [0, 0, 128], sizes = [2, 16, 128], strides = [1, 1, 1]} : vector<2x16x384xf32> to vector<2x16x128xf32>
    %254 = vector.extract_strided_slice %249 {offsets = [0, 0, 256], sizes = [2, 16, 128], strides = [1, 1, 1]} : vector<2x16x384xf32> to vector<2x16x128xf32>
    %c1_89 = arith.constant 1 : index
    %c0_90 = arith.constant 0 : index
    %c0_91 = arith.constant 0 : index
    %255 = vector.load %arg4[%c1_89, %c0_90, %c0_91] : memref<3x128x128xf32, #tpu.memory_space<vmem>>, vector<1x128x128xf32>
    %256 = vector.shape_cast %255 : vector<1x128x128xf32> to vector<128x128xf32>
    %257 = vector.extract_strided_slice %252 {offsets = [0, 0, 0], sizes = [2, 16, 16], strides = [1, 1, 1]} : vector<2x16x128xf32> to vector<2x16x16xf32>
    %258 = vector.extract_strided_slice %253 {offsets = [0, 0, 0], sizes = [2, 16, 16], strides = [1, 1, 1]} : vector<2x16x128xf32> to vector<2x16x16xf32>
    "tpu.trace_start"() <{level = 10 : i32, message = "bqd,bkd->bqk"}> : () -> ()
    %cst_92 = arith.constant dense<0.000000e+00> : vector<2x16x16xf32>
    %259 = tpu.matmul %257, %258, %cst_92 {dimension_numbers = #tpu.dot_dimension_numbers<[2], [2], [1], [1], [0, 0, 0, 1, 1, 1], [0], [0]>} : vector<2x16x16xf32>, vector<2x16x16xf32>, vector<2x16x16xf32> -> vector<2x16x16xf32>
    "tpu.trace_stop"() : () -> ()
    %cst_93 = arith.constant dense<0xFF800000> : vector<2x16xf32>
    %260 = vector.multi_reduction <maximumf>, %259, %cst_93 [2] : vector<2x16x16xf32> to vector<2x16xf32>
    %261 = vector.shape_cast %260 : vector<2x16xf32> to vector<2x16x1xf32>
    %262 = vector.broadcast %261 : vector<2x16x1xf32> to vector<2x16x16xf32>
    %263 = arith.subf %259, %262 : vector<2x16x16xf32>
    %264 = math.exp %263 : vector<2x16x16xf32>
    %cst_94 = arith.constant dense<0.000000e+00> : vector<2x16xf32>
    %265 = vector.multi_reduction <add>, %264, %cst_94 [2] : vector<2x16x16xf32> to vector<2x16xf32>
    %266 = vector.shape_cast %265 : vector<2x16xf32> to vector<2x16x1xf32>
    %267 = vector.broadcast %266 : vector<2x16x1xf32> to vector<2x16x16xf32>
    %268 = arith.divf %264, %267 : vector<2x16x16xf32>
    %269 = vector.extract_strided_slice %254 {offsets = [0, 0, 0], sizes = [2, 16, 16], strides = [1, 1, 1]} : vector<2x16x128xf32> to vector<2x16x16xf32>
    "tpu.trace_start"() <{level = 10 : i32, message = "bqk,bkd->bqd"}> : () -> ()
    %cst_95 = arith.constant dense<0.000000e+00> : vector<2x16x16xf32>
    %270 = tpu.matmul %268, %269, %cst_95 {dimension_numbers = #tpu.dot_dimension_numbers<[2], [1], [1], [2], [0, 0, 0, 1, 1, 2], [0], [0]>} : vector<2x16x16xf32>, vector<2x16x16xf32>, vector<2x16x16xf32> -> vector<2x16x16xf32>
    "tpu.trace_stop"() : () -> ()
    %271 = vector.shape_cast %270 : vector<2x16x16xf32> to vector<32x16xf32>
    %272 = vector.extract_strided_slice %256 {offsets = [0, 0], sizes = [16, 128], strides = [1, 1]} : vector<128x128xf32> to vector<16x128xf32>
    %cst_96 = arith.constant dense<0.000000e+00> : vector<32x128xf32>
    %273 = tpu.matmul %271, %272, %cst_96 {dimension_numbers = #tpu.dot_dimension_numbers<[1], [0], [0], [1], [0, 0, 1, 1], [], []>} : vector<32x16xf32>, vector<16x128xf32>, vector<32x128xf32> -> vector<32x128xf32>
    %274 = vector.extract_strided_slice %252 {offsets = [0, 0, 16], sizes = [2, 16, 16], strides = [1, 1, 1]} : vector<2x16x128xf32> to vector<2x16x16xf32>
    %275 = vector.extract_strided_slice %253 {offsets = [0, 0, 16], sizes = [2, 16, 16], strides = [1, 1, 1]} : vector<2x16x128xf32> to vector<2x16x16xf32>
    "tpu.trace_start"() <{level = 10 : i32, message = "bqd,bkd->bqk"}> : () -> ()
    %cst_97 = arith.constant dense<0.000000e+00> : vector<2x16x16xf32>
    %276 = tpu.matmul %274, %275, %cst_97 {dimension_numbers = #tpu.dot_dimension_numbers<[2], [2], [1], [1], [0, 0, 0, 1, 1, 1], [0], [0]>} : vector<2x16x16xf32>, vector<2x16x16xf32>, vector<2x16x16xf32> -> vector<2x16x16xf32>
    "tpu.trace_stop"() : () -> ()
    %cst_98 = arith.constant dense<0xFF800000> : vector<2x16xf32>
    %277 = vector.multi_reduction <maximumf>, %276, %cst_98 [2] : vector<2x16x16xf32> to vector<2x16xf32>
    %278 = vector.shape_cast %277 : vector<2x16xf32> to vector<2x16x1xf32>
    %279 = vector.broadcast %278 : vector<2x16x1xf32> to vector<2x16x16xf32>
    %280 = arith.subf %276, %279 : vector<2x16x16xf32>
    %281 = math.exp %280 : vector<2x16x16xf32>
    %cst_99 = arith.constant dense<0.000000e+00> : vector<2x16xf32>
    %282 = vector.multi_reduction <add>, %281, %cst_99 [2] : vector<2x16x16xf32> to vector<2x16xf32>
    %283 = vector.shape_cast %282 : vector<2x16xf32> to vector<2x16x1xf32>
    %284 = vector.broadcast %283 : vector<2x16x1xf32> to vector<2x16x16xf32>
    %285 = arith.divf %281, %284 : vector<2x16x16xf32>
    %286 = vector.extract_strided_slice %254 {offsets = [0, 0, 16], sizes = [2, 16, 16], strides = [1, 1, 1]} : vector<2x16x128xf32> to vector<2x16x16xf32>
    "tpu.trace_start"() <{level = 10 : i32, message = "bqk,bkd->bqd"}> : () -> ()
    %cst_100 = arith.constant dense<0.000000e+00> : vector<2x16x16xf32>
    %287 = tpu.matmul %285, %286, %cst_100 {dimension_numbers = #tpu.dot_dimension_numbers<[2], [1], [1], [2], [0, 0, 0, 1, 1, 2], [0], [0]>} : vector<2x16x16xf32>, vector<2x16x16xf32>, vector<2x16x16xf32> -> vector<2x16x16xf32>
    "tpu.trace_stop"() : () -> ()
    %288 = vector.shape_cast %287 : vector<2x16x16xf32> to vector<32x16xf32>
    %289 = vector.extract_strided_slice %256 {offsets = [16, 0], sizes = [16, 128], strides = [1, 1]} : vector<128x128xf32> to vector<16x128xf32>
    %cst_101 = arith.constant dense<0.000000e+00> : vector<32x128xf32>
    %290 = tpu.matmul %288, %289, %cst_101 {dimension_numbers = #tpu.dot_dimension_numbers<[1], [0], [0], [1], [0, 0, 1, 1], [], []>} : vector<32x16xf32>, vector<16x128xf32>, vector<32x128xf32> -> vector<32x128xf32>
    %291 = arith.addf %273, %290 : vector<32x128xf32>
    %292 = vector.extract_strided_slice %252 {offsets = [0, 0, 32], sizes = [2, 16, 16], strides = [1, 1, 1]} : vector<2x16x128xf32> to vector<2x16x16xf32>
    %293 = vector.extract_strided_slice %253 {offsets = [0, 0, 32], sizes = [2, 16, 16], strides = [1, 1, 1]} : vector<2x16x128xf32> to vector<2x16x16xf32>
    "tpu.trace_start"() <{level = 10 : i32, message = "bqd,bkd->bqk"}> : () -> ()
    %cst_102 = arith.constant dense<0.000000e+00> : vector<2x16x16xf32>
    %294 = tpu.matmul %292, %293, %cst_102 {dimension_numbers = #tpu.dot_dimension_numbers<[2], [2], [1], [1], [0, 0, 0, 1, 1, 1], [0], [0]>} : vector<2x16x16xf32>, vector<2x16x16xf32>, vector<2x16x16xf32> -> vector<2x16x16xf32>
    "tpu.trace_stop"() : () -> ()
    %cst_103 = arith.constant dense<0xFF800000> : vector<2x16xf32>
    %295 = vector.multi_reduction <maximumf>, %294, %cst_103 [2] : vector<2x16x16xf32> to vector<2x16xf32>
    %296 = vector.shape_cast %295 : vector<2x16xf32> to vector<2x16x1xf32>
    %297 = vector.broadcast %296 : vector<2x16x1xf32> to vector<2x16x16xf32>
    %298 = arith.subf %294, %297 : vector<2x16x16xf32>
    %299 = math.exp %298 : vector<2x16x16xf32>
    %cst_104 = arith.constant dense<0.000000e+00> : vector<2x16xf32>
    %300 = vector.multi_reduction <add>, %299, %cst_104 [2] : vector<2x16x16xf32> to vector<2x16xf32>
    %301 = vector.shape_cast %300 : vector<2x16xf32> to vector<2x16x1xf32>
    %302 = vector.broadcast %301 : vector<2x16x1xf32> to vector<2x16x16xf32>
    %303 = arith.divf %299, %302 : vector<2x16x16xf32>
    %304 = vector.extract_strided_slice %254 {offsets = [0, 0, 32], sizes = [2, 16, 16], strides = [1, 1, 1]} : vector<2x16x128xf32> to vector<2x16x16xf32>
    "tpu.trace_start"() <{level = 10 : i32, message = "bqk,bkd->bqd"}> : () -> ()
    %cst_105 = arith.constant dense<0.000000e+00> : vector<2x16x16xf32>
    %305 = tpu.matmul %303, %304, %cst_105 {dimension_numbers = #tpu.dot_dimension_numbers<[2], [1], [1], [2], [0, 0, 0, 1, 1, 2], [0], [0]>} : vector<2x16x16xf32>, vector<2x16x16xf32>, vector<2x16x16xf32> -> vector<2x16x16xf32>
    "tpu.trace_stop"() : () -> ()
    %306 = vector.shape_cast %305 : vector<2x16x16xf32> to vector<32x16xf32>
    %307 = vector.extract_strided_slice %256 {offsets = [32, 0], sizes = [16, 128], strides = [1, 1]} : vector<128x128xf32> to vector<16x128xf32>
    %cst_106 = arith.constant dense<0.000000e+00> : vector<32x128xf32>
    %308 = tpu.matmul %306, %307, %cst_106 {dimension_numbers = #tpu.dot_dimension_numbers<[1], [0], [0], [1], [0, 0, 1, 1], [], []>} : vector<32x16xf32>, vector<16x128xf32>, vector<32x128xf32> -> vector<32x128xf32>
    %309 = arith.addf %291, %308 : vector<32x128xf32>
    %310 = vector.extract_strided_slice %252 {offsets = [0, 0, 48], sizes = [2, 16, 16], strides = [1, 1, 1]} : vector<2x16x128xf32> to vector<2x16x16xf32>
    %311 = vector.extract_strided_slice %253 {offsets = [0, 0, 48], sizes = [2, 16, 16], strides = [1, 1, 1]} : vector<2x16x128xf32> to vector<2x16x16xf32>
    "tpu.trace_start"() <{level = 10 : i32, message = "bqd,bkd->bqk"}> : () -> ()
    %cst_107 = arith.constant dense<0.000000e+00> : vector<2x16x16xf32>
    %312 = tpu.matmul %310, %311, %cst_107 {dimension_numbers = #tpu.dot_dimension_numbers<[2], [2], [1], [1], [0, 0, 0, 1, 1, 1], [0], [0]>} : vector<2x16x16xf32>, vector<2x16x16xf32>, vector<2x16x16xf32> -> vector<2x16x16xf32>
    "tpu.trace_stop"() : () -> ()
    %cst_108 = arith.constant dense<0xFF800000> : vector<2x16xf32>
    %313 = vector.multi_reduction <maximumf>, %312, %cst_108 [2] : vector<2x16x16xf32> to vector<2x16xf32>
    %314 = vector.shape_cast %313 : vector<2x16xf32> to vector<2x16x1xf32>
    %315 = vector.broadcast %314 : vector<2x16x1xf32> to vector<2x16x16xf32>
    %316 = arith.subf %312, %315 : vector<2x16x16xf32>
    %317 = math.exp %316 : vector<2x16x16xf32>
    %cst_109 = arith.constant dense<0.000000e+00> : vector<2x16xf32>
    %318 = vector.multi_reduction <add>, %317, %cst_109 [2] : vector<2x16x16xf32> to vector<2x16xf32>
    %319 = vector.shape_cast %318 : vector<2x16xf32> to vector<2x16x1xf32>
    %320 = vector.broadcast %319 : vector<2x16x1xf32> to vector<2x16x16xf32>
    %321 = arith.divf %317, %320 : vector<2x16x16xf32>
    %322 = vector.extract_strided_slice %254 {offsets = [0, 0, 48], sizes = [2, 16, 16], strides = [1, 1, 1]} : vector<2x16x128xf32> to vector<2x16x16xf32>
    "tpu.trace_start"() <{level = 10 : i32, message = "bqk,bkd->bqd"}> : () -> ()
    %cst_110 = arith.constant dense<0.000000e+00> : vector<2x16x16xf32>
    %323 = tpu.matmul %321, %322, %cst_110 {dimension_numbers = #tpu.dot_dimension_numbers<[2], [1], [1], [2], [0, 0, 0, 1, 1, 2], [0], [0]>} : vector<2x16x16xf32>, vector<2x16x16xf32>, vector<2x16x16xf32> -> vector<2x16x16xf32>
    "tpu.trace_stop"() : () -> ()
    %324 = vector.shape_cast %323 : vector<2x16x16xf32> to vector<32x16xf32>
    %325 = vector.extract_strided_slice %256 {offsets = [48, 0], sizes = [16, 128], strides = [1, 1]} : vector<128x128xf32> to vector<16x128xf32>
    %cst_111 = arith.constant dense<0.000000e+00> : vector<32x128xf32>
    %326 = tpu.matmul %324, %325, %cst_111 {dimension_numbers = #tpu.dot_dimension_numbers<[1], [0], [0], [1], [0, 0, 1, 1], [], []>} : vector<32x16xf32>, vector<16x128xf32>, vector<32x128xf32> -> vector<32x128xf32>
    %327 = arith.addf %309, %326 : vector<32x128xf32>
    %328 = vector.extract_strided_slice %252 {offsets = [0, 0, 64], sizes = [2, 16, 16], strides = [1, 1, 1]} : vector<2x16x128xf32> to vector<2x16x16xf32>
    %329 = vector.extract_strided_slice %253 {offsets = [0, 0, 64], sizes = [2, 16, 16], strides = [1, 1, 1]} : vector<2x16x128xf32> to vector<2x16x16xf32>
    "tpu.trace_start"() <{level = 10 : i32, message = "bqd,bkd->bqk"}> : () -> ()
    %cst_112 = arith.constant dense<0.000000e+00> : vector<2x16x16xf32>
    %330 = tpu.matmul %328, %329, %cst_112 {dimension_numbers = #tpu.dot_dimension_numbers<[2], [2], [1], [1], [0, 0, 0, 1, 1, 1], [0], [0]>} : vector<2x16x16xf32>, vector<2x16x16xf32>, vector<2x16x16xf32> -> vector<2x16x16xf32>
    "tpu.trace_stop"() : () -> ()
    %cst_113 = arith.constant dense<0xFF800000> : vector<2x16xf32>
    %331 = vector.multi_reduction <maximumf>, %330, %cst_113 [2] : vector<2x16x16xf32> to vector<2x16xf32>
    %332 = vector.shape_cast %331 : vector<2x16xf32> to vector<2x16x1xf32>
    %333 = vector.broadcast %332 : vector<2x16x1xf32> to vector<2x16x16xf32>
    %334 = arith.subf %330, %333 : vector<2x16x16xf32>
    %335 = math.exp %334 : vector<2x16x16xf32>
    %cst_114 = arith.constant dense<0.000000e+00> : vector<2x16xf32>
    %336 = vector.multi_reduction <add>, %335, %cst_114 [2] : vector<2x16x16xf32> to vector<2x16xf32>
    %337 = vector.shape_cast %336 : vector<2x16xf32> to vector<2x16x1xf32>
    %338 = vector.broadcast %337 : vector<2x16x1xf32> to vector<2x16x16xf32>
    %339 = arith.divf %335, %338 : vector<2x16x16xf32>
    %340 = vector.extract_strided_slice %254 {offsets = [0, 0, 64], sizes = [2, 16, 16], strides = [1, 1, 1]} : vector<2x16x128xf32> to vector<2x16x16xf32>
    "tpu.trace_start"() <{level = 10 : i32, message = "bqk,bkd->bqd"}> : () -> ()
    %cst_115 = arith.constant dense<0.000000e+00> : vector<2x16x16xf32>
    %341 = tpu.matmul %339, %340, %cst_115 {dimension_numbers = #tpu.dot_dimension_numbers<[2], [1], [1], [2], [0, 0, 0, 1, 1, 2], [0], [0]>} : vector<2x16x16xf32>, vector<2x16x16xf32>, vector<2x16x16xf32> -> vector<2x16x16xf32>
    "tpu.trace_stop"() : () -> ()
    %342 = vector.shape_cast %341 : vector<2x16x16xf32> to vector<32x16xf32>
    %343 = vector.extract_strided_slice %256 {offsets = [64, 0], sizes = [16, 128], strides = [1, 1]} : vector<128x128xf32> to vector<16x128xf32>
    %cst_116 = arith.constant dense<0.000000e+00> : vector<32x128xf32>
    %344 = tpu.matmul %342, %343, %cst_116 {dimension_numbers = #tpu.dot_dimension_numbers<[1], [0], [0], [1], [0, 0, 1, 1], [], []>} : vector<32x16xf32>, vector<16x128xf32>, vector<32x128xf32> -> vector<32x128xf32>
    %345 = arith.addf %327, %344 : vector<32x128xf32>
    %346 = vector.extract_strided_slice %252 {offsets = [0, 0, 80], sizes = [2, 16, 16], strides = [1, 1, 1]} : vector<2x16x128xf32> to vector<2x16x16xf32>
    %347 = vector.extract_strided_slice %253 {offsets = [0, 0, 80], sizes = [2, 16, 16], strides = [1, 1, 1]} : vector<2x16x128xf32> to vector<2x16x16xf32>
    "tpu.trace_start"() <{level = 10 : i32, message = "bqd,bkd->bqk"}> : () -> ()
    %cst_117 = arith.constant dense<0.000000e+00> : vector<2x16x16xf32>
    %348 = tpu.matmul %346, %347, %cst_117 {dimension_numbers = #tpu.dot_dimension_numbers<[2], [2], [1], [1], [0, 0, 0, 1, 1, 1], [0], [0]>} : vector<2x16x16xf32>, vector<2x16x16xf32>, vector<2x16x16xf32> -> vector<2x16x16xf32>
    "tpu.trace_stop"() : () -> ()
    %cst_118 = arith.constant dense<0xFF800000> : vector<2x16xf32>
    %349 = vector.multi_reduction <maximumf>, %348, %cst_118 [2] : vector<2x16x16xf32> to vector<2x16xf32>
    %350 = vector.shape_cast %349 : vector<2x16xf32> to vector<2x16x1xf32>
    %351 = vector.broadcast %350 : vector<2x16x1xf32> to vector<2x16x16xf32>
    %352 = arith.subf %348, %351 : vector<2x16x16xf32>
    %353 = math.exp %352 : vector<2x16x16xf32>
    %cst_119 = arith.constant dense<0.000000e+00> : vector<2x16xf32>
    %354 = vector.multi_reduction <add>, %353, %cst_119 [2] : vector<2x16x16xf32> to vector<2x16xf32>
    %355 = vector.shape_cast %354 : vector<2x16xf32> to vector<2x16x1xf32>
    %356 = vector.broadcast %355 : vector<2x16x1xf32> to vector<2x16x16xf32>
    %357 = arith.divf %353, %356 : vector<2x16x16xf32>
    %358 = vector.extract_strided_slice %254 {offsets = [0, 0, 80], sizes = [2, 16, 16], strides = [1, 1, 1]} : vector<2x16x128xf32> to vector<2x16x16xf32>
    "tpu.trace_start"() <{level = 10 : i32, message = "bqk,bkd->bqd"}> : () -> ()
    %cst_120 = arith.constant dense<0.000000e+00> : vector<2x16x16xf32>
    %359 = tpu.matmul %357, %358, %cst_120 {dimension_numbers = #tpu.dot_dimension_numbers<[2], [1], [1], [2], [0, 0, 0, 1, 1, 2], [0], [0]>} : vector<2x16x16xf32>, vector<2x16x16xf32>, vector<2x16x16xf32> -> vector<2x16x16xf32>
    "tpu.trace_stop"() : () -> ()
    %360 = vector.shape_cast %359 : vector<2x16x16xf32> to vector<32x16xf32>
    %361 = vector.extract_strided_slice %256 {offsets = [80, 0], sizes = [16, 128], strides = [1, 1]} : vector<128x128xf32> to vector<16x128xf32>
    %cst_121 = arith.constant dense<0.000000e+00> : vector<32x128xf32>
    %362 = tpu.matmul %360, %361, %cst_121 {dimension_numbers = #tpu.dot_dimension_numbers<[1], [0], [0], [1], [0, 0, 1, 1], [], []>} : vector<32x16xf32>, vector<16x128xf32>, vector<32x128xf32> -> vector<32x128xf32>
    %363 = arith.addf %345, %362 : vector<32x128xf32>
    %364 = vector.extract_strided_slice %252 {offsets = [0, 0, 96], sizes = [2, 16, 16], strides = [1, 1, 1]} : vector<2x16x128xf32> to vector<2x16x16xf32>
    %365 = vector.extract_strided_slice %253 {offsets = [0, 0, 96], sizes = [2, 16, 16], strides = [1, 1, 1]} : vector<2x16x128xf32> to vector<2x16x16xf32>
    "tpu.trace_start"() <{level = 10 : i32, message = "bqd,bkd->bqk"}> : () -> ()
    %cst_122 = arith.constant dense<0.000000e+00> : vector<2x16x16xf32>
    %366 = tpu.matmul %364, %365, %cst_122 {dimension_numbers = #tpu.dot_dimension_numbers<[2], [2], [1], [1], [0, 0, 0, 1, 1, 1], [0], [0]>} : vector<2x16x16xf32>, vector<2x16x16xf32>, vector<2x16x16xf32> -> vector<2x16x16xf32>
    "tpu.trace_stop"() : () -> ()
    %cst_123 = arith.constant dense<0xFF800000> : vector<2x16xf32>
    %367 = vector.multi_reduction <maximumf>, %366, %cst_123 [2] : vector<2x16x16xf32> to vector<2x16xf32>
    %368 = vector.shape_cast %367 : vector<2x16xf32> to vector<2x16x1xf32>
    %369 = vector.broadcast %368 : vector<2x16x1xf32> to vector<2x16x16xf32>
    %370 = arith.subf %366, %369 : vector<2x16x16xf32>
    %371 = math.exp %370 : vector<2x16x16xf32>
    %cst_124 = arith.constant dense<0.000000e+00> : vector<2x16xf32>
    %372 = vector.multi_reduction <add>, %371, %cst_124 [2] : vector<2x16x16xf32> to vector<2x16xf32>
    %373 = vector.shape_cast %372 : vector<2x16xf32> to vector<2x16x1xf32>
    %374 = vector.broadcast %373 : vector<2x16x1xf32> to vector<2x16x16xf32>
    %375 = arith.divf %371, %374 : vector<2x16x16xf32>
    %376 = vector.extract_strided_slice %254 {offsets = [0, 0, 96], sizes = [2, 16, 16], strides = [1, 1, 1]} : vector<2x16x128xf32> to vector<2x16x16xf32>
    "tpu.trace_start"() <{level = 10 : i32, message = "bqk,bkd->bqd"}> : () -> ()
    %cst_125 = arith.constant dense<0.000000e+00> : vector<2x16x16xf32>
    %377 = tpu.matmul %375, %376, %cst_125 {dimension_numbers = #tpu.dot_dimension_numbers<[2], [1], [1], [2], [0, 0, 0, 1, 1, 2], [0], [0]>} : vector<2x16x16xf32>, vector<2x16x16xf32>, vector<2x16x16xf32> -> vector<2x16x16xf32>
    "tpu.trace_stop"() : () -> ()
    %378 = vector.shape_cast %377 : vector<2x16x16xf32> to vector<32x16xf32>
    %379 = vector.extract_strided_slice %256 {offsets = [96, 0], sizes = [16, 128], strides = [1, 1]} : vector<128x128xf32> to vector<16x128xf32>
    %cst_126 = arith.constant dense<0.000000e+00> : vector<32x128xf32>
    %380 = tpu.matmul %378, %379, %cst_126 {dimension_numbers = #tpu.dot_dimension_numbers<[1], [0], [0], [1], [0, 0, 1, 1], [], []>} : vector<32x16xf32>, vector<16x128xf32>, vector<32x128xf32> -> vector<32x128xf32>
    %381 = arith.addf %363, %380 : vector<32x128xf32>
    %382 = vector.extract_strided_slice %252 {offsets = [0, 0, 112], sizes = [2, 16, 16], strides = [1, 1, 1]} : vector<2x16x128xf32> to vector<2x16x16xf32>
    %383 = vector.extract_strided_slice %253 {offsets = [0, 0, 112], sizes = [2, 16, 16], strides = [1, 1, 1]} : vector<2x16x128xf32> to vector<2x16x16xf32>
    "tpu.trace_start"() <{level = 10 : i32, message = "bqd,bkd->bqk"}> : () -> ()
    %cst_127 = arith.constant dense<0.000000e+00> : vector<2x16x16xf32>
    %384 = tpu.matmul %382, %383, %cst_127 {dimension_numbers = #tpu.dot_dimension_numbers<[2], [2], [1], [1], [0, 0, 0, 1, 1, 1], [0], [0]>} : vector<2x16x16xf32>, vector<2x16x16xf32>, vector<2x16x16xf32> -> vector<2x16x16xf32>
    "tpu.trace_stop"() : () -> ()
    %cst_128 = arith.constant dense<0xFF800000> : vector<2x16xf32>
    %385 = vector.multi_reduction <maximumf>, %384, %cst_128 [2] : vector<2x16x16xf32> to vector<2x16xf32>
    %386 = vector.shape_cast %385 : vector<2x16xf32> to vector<2x16x1xf32>
    %387 = vector.broadcast %386 : vector<2x16x1xf32> to vector<2x16x16xf32>
    %388 = arith.subf %384, %387 : vector<2x16x16xf32>
    %389 = math.exp %388 : vector<2x16x16xf32>
    %cst_129 = arith.constant dense<0.000000e+00> : vector<2x16xf32>
    %390 = vector.multi_reduction <add>, %389, %cst_129 [2] : vector<2x16x16xf32> to vector<2x16xf32>
    %391 = vector.shape_cast %390 : vector<2x16xf32> to vector<2x16x1xf32>
    %392 = vector.broadcast %391 : vector<2x16x1xf32> to vector<2x16x16xf32>
    %393 = arith.divf %389, %392 : vector<2x16x16xf32>
    %394 = vector.extract_strided_slice %254 {offsets = [0, 0, 112], sizes = [2, 16, 16], strides = [1, 1, 1]} : vector<2x16x128xf32> to vector<2x16x16xf32>
    "tpu.trace_start"() <{level = 10 : i32, message = "bqk,bkd->bqd"}> : () -> ()
    %cst_130 = arith.constant dense<0.000000e+00> : vector<2x16x16xf32>
    %395 = tpu.matmul %393, %394, %cst_130 {dimension_numbers = #tpu.dot_dimension_numbers<[2], [1], [1], [2], [0, 0, 0, 1, 1, 2], [0], [0]>} : vector<2x16x16xf32>, vector<2x16x16xf32>, vector<2x16x16xf32> -> vector<2x16x16xf32>
    "tpu.trace_stop"() : () -> ()
    %396 = vector.shape_cast %395 : vector<2x16x16xf32> to vector<32x16xf32>
    %397 = vector.extract_strided_slice %256 {offsets = [112, 0], sizes = [16, 128], strides = [1, 1]} : vector<128x128xf32> to vector<16x128xf32>
    %cst_131 = arith.constant dense<0.000000e+00> : vector<32x128xf32>
    %398 = tpu.matmul %396, %397, %cst_131 {dimension_numbers = #tpu.dot_dimension_numbers<[1], [0], [0], [1], [0, 0, 1, 1], [], []>} : vector<32x16xf32>, vector<16x128xf32>, vector<32x128xf32> -> vector<32x128xf32>
    %399 = arith.addf %381, %398 : vector<32x128xf32>
    %c1_132 = arith.constant 1 : index
    %c0_133 = arith.constant 0 : index
    %400 = vector.load %arg5[%c1_132, %c0_133] : memref<3x128xf32, #tpu.memory_space<vmem>>, vector<1x128xf32>
    %401 = vector.shape_cast %400 : vector<1x128xf32> to vector<128xf32>
    %402 = vector.shape_cast %401 : vector<128xf32> to vector<1x128xf32>
    %403 = vector.broadcast %402 : vector<1x128xf32> to vector<32x128xf32>
    %404 = arith.addf %399, %403 : vector<32x128xf32>
    %405 = arith.addf %240, %404 : vector<32x128xf32>
    %c1_134 = arith.constant 1 : index
    %c0_135 = arith.constant 0 : index
    %406 = vector.load %arg6[%c1_134, %c0_135] : memref<3x128xf32, #tpu.memory_space<vmem>>, vector<1x128xf32>
    %407 = vector.shape_cast %406 : vector<1x128xf32> to vector<128xf32>
    %c1_136 = arith.constant 1 : index
    %c0_137 = arith.constant 0 : index
    %408 = vector.load %arg7[%c1_136, %c0_137] : memref<3x128xf32, #tpu.memory_space<vmem>>, vector<1x128xf32>
    %409 = vector.shape_cast %408 : vector<1x128xf32> to vector<128xf32>
    %cst_138 = arith.constant dense<0.000000e+00> : vector<32xf32>
    %410 = vector.multi_reduction <add>, %405, %cst_138 [1] : vector<32x128xf32> to vector<32xf32>
    %411 = vector.shape_cast %410 : vector<32xf32> to vector<32x1xf32>
    %cst_139 = arith.constant 1.280000e+02 : f32
    %412 = vector.broadcast %cst_139 : f32 to vector<32x1xf32>
    %413 = arith.divf %411, %412 : vector<32x1xf32>
    %414 = vector.broadcast %413 : vector<32x1xf32> to vector<32x128xf32>
    %415 = arith.subf %405, %414 : vector<32x128xf32>
    %416 = arith.mulf %415, %415 : vector<32x128xf32>
    %cst_140 = arith.constant dense<0.000000e+00> : vector<32xf32>
    %417 = vector.multi_reduction <add>, %416, %cst_140 [1] : vector<32x128xf32> to vector<32xf32>
    %418 = vector.shape_cast %417 : vector<32xf32> to vector<32x1xf32>
    %cst_141 = arith.constant 1.280000e+02 : f32
    %419 = vector.broadcast %cst_141 : f32 to vector<32x1xf32>
    %420 = arith.divf %418, %419 : vector<32x1xf32>
    %421 = vector.broadcast %413 : vector<32x1xf32> to vector<32x128xf32>
    %422 = arith.subf %405, %421 : vector<32x128xf32>
    %cst_142 = arith.constant 9.99999974E-6 : f32
    %423 = vector.broadcast %cst_142 : f32 to vector<32x1xf32>
    %424 = arith.addf %420, %423 : vector<32x1xf32>
    %425 = math.rsqrt %424 : vector<32x1xf32>
    %426 = vector.broadcast %425 : vector<32x1xf32> to vector<32x128xf32>
    %427 = arith.mulf %422, %426 : vector<32x128xf32>
    %428 = vector.shape_cast %407 : vector<128xf32> to vector<1x128xf32>
    %429 = vector.broadcast %428 : vector<1x128xf32> to vector<32x128xf32>
    %430 = arith.mulf %427, %429 : vector<32x128xf32>
    %431 = vector.shape_cast %409 : vector<128xf32> to vector<1x128xf32>
    %432 = vector.broadcast %431 : vector<1x128xf32> to vector<32x128xf32>
    %433 = arith.addf %430, %432 : vector<32x128xf32>
    %c1_143 = arith.constant 1 : index
    %c0_144 = arith.constant 0 : index
    %c0_145 = arith.constant 0 : index
    %434 = vector.load %arg8[%c1_143, %c0_144, %c0_145] : memref<3x128x128xf32, #tpu.memory_space<vmem>>, vector<1x128x128xf32>
    %435 = vector.shape_cast %434 : vector<1x128x128xf32> to vector<128x128xf32>
    %cst_146 = arith.constant dense<0.000000e+00> : vector<32x128xf32>
    %436 = tpu.matmul %433, %435, %cst_146 {dimension_numbers = #tpu.dot_dimension_numbers<[1], [0], [0], [1], [0, 0, 1, 1], [], []>} : vector<32x128xf32>, vector<128x128xf32>, vector<32x128xf32> -> vector<32x128xf32>
    %c1_147 = arith.constant 1 : index
    %c0_148 = arith.constant 0 : index
    %437 = vector.load %arg9[%c1_147, %c0_148] : memref<3x128xf32, #tpu.memory_space<vmem>>, vector<1x128xf32>
    %438 = vector.shape_cast %437 : vector<1x128xf32> to vector<128xf32>
    %439 = vector.shape_cast %438 : vector<128xf32> to vector<1x128xf32>
    %440 = vector.broadcast %439 : vector<1x128xf32> to vector<32x128xf32>
    %441 = arith.addf %436, %440 : vector<32x128xf32>
    %cst_149 = arith.constant 0.000000e+00 : f32
    %442 = vector.broadcast %cst_149 : f32 to vector<32x128xf32>
    %443 = arith.maximumf %441, %442 : vector<32x128xf32>
    %c1_150 = arith.constant 1 : index
    %c0_151 = arith.constant 0 : index
    %c0_152 = arith.constant 0 : index
    %444 = vector.load %arg10[%c1_150, %c0_151, %c0_152] : memref<3x128x128xf32, #tpu.memory_space<vmem>>, vector<1x128x128xf32>
    %445 = vector.shape_cast %444 : vector<1x128x128xf32> to vector<128x128xf32>
    %cst_153 = arith.constant dense<0.000000e+00> : vector<32x128xf32>
    %446 = tpu.matmul %443, %445, %cst_153 {dimension_numbers = #tpu.dot_dimension_numbers<[1], [0], [0], [1], [0, 0, 1, 1], [], []>} : vector<32x128xf32>, vector<128x128xf32>, vector<32x128xf32> -> vector<32x128xf32>
    %c1_154 = arith.constant 1 : index
    %c0_155 = arith.constant 0 : index
    %447 = vector.load %arg11[%c1_154, %c0_155] : memref<3x128xf32, #tpu.memory_space<vmem>>, vector<1x128xf32>
    %448 = vector.shape_cast %447 : vector<1x128xf32> to vector<128xf32>
    %449 = vector.shape_cast %448 : vector<128xf32> to vector<1x128xf32>
    %450 = vector.broadcast %449 : vector<1x128xf32> to vector<32x128xf32>
    %451 = arith.addf %446, %450 : vector<32x128xf32>
    %452 = arith.addf %433, %451 : vector<32x128xf32>
    %c1_156 = arith.constant 1 : index
    %c0_157 = arith.constant 0 : index
    %453 = vector.load %arg12[%c1_156, %c0_157] : memref<3x128xf32, #tpu.memory_space<vmem>>, vector<1x128xf32>
    %454 = vector.shape_cast %453 : vector<1x128xf32> to vector<128xf32>
    %c1_158 = arith.constant 1 : index
    %c0_159 = arith.constant 0 : index
    %455 = vector.load %arg13[%c1_158, %c0_159] : memref<3x128xf32, #tpu.memory_space<vmem>>, vector<1x128xf32>
    %456 = vector.shape_cast %455 : vector<1x128xf32> to vector<128xf32>
    %cst_160 = arith.constant dense<0.000000e+00> : vector<32xf32>
    %457 = vector.multi_reduction <add>, %452, %cst_160 [1] : vector<32x128xf32> to vector<32xf32>
    %458 = vector.shape_cast %457 : vector<32xf32> to vector<32x1xf32>
    %cst_161 = arith.constant 1.280000e+02 : f32
    %459 = vector.broadcast %cst_161 : f32 to vector<32x1xf32>
    %460 = arith.divf %458, %459 : vector<32x1xf32>
    %461 = vector.broadcast %460 : vector<32x1xf32> to vector<32x128xf32>
    %462 = arith.subf %452, %461 : vector<32x128xf32>
    %463 = arith.mulf %462, %462 : vector<32x128xf32>
    %cst_162 = arith.constant dense<0.000000e+00> : vector<32xf32>
    %464 = vector.multi_reduction <add>, %463, %cst_162 [1] : vector<32x128xf32> to vector<32xf32>
    %465 = vector.shape_cast %464 : vector<32xf32> to vector<32x1xf32>
    %cst_163 = arith.constant 1.280000e+02 : f32
    %466 = vector.broadcast %cst_163 : f32 to vector<32x1xf32>
    %467 = arith.divf %465, %466 : vector<32x1xf32>
    %468 = vector.broadcast %460 : vector<32x1xf32> to vector<32x128xf32>
    %469 = arith.subf %452, %468 : vector<32x128xf32>
    %cst_164 = arith.constant 9.99999974E-6 : f32
    %470 = vector.broadcast %cst_164 : f32 to vector<32x1xf32>
    %471 = arith.addf %467, %470 : vector<32x1xf32>
    %472 = math.rsqrt %471 : vector<32x1xf32>
    %473 = vector.broadcast %472 : vector<32x1xf32> to vector<32x128xf32>
    %474 = arith.mulf %469, %473 : vector<32x128xf32>
    %475 = vector.shape_cast %454 : vector<128xf32> to vector<1x128xf32>
    %476 = vector.broadcast %475 : vector<1x128xf32> to vector<32x128xf32>
    %477 = arith.mulf %474, %476 : vector<32x128xf32>
    %478 = vector.shape_cast %456 : vector<128xf32> to vector<1x128xf32>
    %479 = vector.broadcast %478 : vector<1x128xf32> to vector<32x128xf32>
    %480 = arith.addf %477, %479 : vector<32x128xf32>
    %c2 = arith.constant 2 : index
    %c0_165 = arith.constant 0 : index
    %c0_166 = arith.constant 0 : index
    %481 = vector.load %arg2[%c2, %c0_165, %c0_166] : memref<3x128x384xf32, #tpu.memory_space<vmem>>, vector<1x128x384xf32>
    %482 = vector.shape_cast %481 : vector<1x128x384xf32> to vector<128x384xf32>
    %cst_167 = arith.constant dense<0.000000e+00> : vector<32x384xf32>
    %483 = tpu.matmul %480, %482, %cst_167 {dimension_numbers = #tpu.dot_dimension_numbers<[1], [0], [0], [1], [0, 0, 1, 1], [], []>} : vector<32x128xf32>, vector<128x384xf32>, vector<32x384xf32> -> vector<32x384xf32>
    %c2_168 = arith.constant 2 : index
    %c0_169 = arith.constant 0 : index
    %484 = vector.load %arg3[%c2_168, %c0_169] : memref<3x384xf32, #tpu.memory_space<vmem>>, vector<1x384xf32>
    %485 = vector.shape_cast %484 : vector<1x384xf32> to vector<384xf32>
    %486 = vector.shape_cast %485 : vector<384xf32> to vector<1x384xf32>
    %487 = vector.broadcast %486 : vector<1x384xf32> to vector<32x384xf32>
    %488 = arith.addf %483, %487 : vector<32x384xf32>
    %489 = vector.shape_cast %488 : vector<32x384xf32> to vector<2x16x384xf32>
    %490 = vector.extract_strided_slice %489 {offsets = [0, 0, 0], sizes = [2, 16, 128], strides = [1, 1, 1]} : vector<2x16x384xf32> to vector<2x16x128xf32>
    %cst_170 = arith.constant 2.500000e-01 : f32
    %491 = vector.broadcast %cst_170 : f32 to vector<2x16x128xf32>
    %492 = arith.mulf %490, %491 : vector<2x16x128xf32>
    %493 = vector.extract_strided_slice %489 {offsets = [0, 0, 128], sizes = [2, 16, 128], strides = [1, 1, 1]} : vector<2x16x384xf32> to vector<2x16x128xf32>
    %494 = vector.extract_strided_slice %489 {offsets = [0, 0, 256], sizes = [2, 16, 128], strides = [1, 1, 1]} : vector<2x16x384xf32> to vector<2x16x128xf32>
    %c2_171 = arith.constant 2 : index
    %c0_172 = arith.constant 0 : index
    %c0_173 = arith.constant 0 : index
    %495 = vector.load %arg4[%c2_171, %c0_172, %c0_173] : memref<3x128x128xf32, #tpu.memory_space<vmem>>, vector<1x128x128xf32>
    %496 = vector.shape_cast %495 : vector<1x128x128xf32> to vector<128x128xf32>
    %497 = vector.extract_strided_slice %492 {offsets = [0, 0, 0], sizes = [2, 16, 16], strides = [1, 1, 1]} : vector<2x16x128xf32> to vector<2x16x16xf32>
    %498 = vector.extract_strided_slice %493 {offsets = [0, 0, 0], sizes = [2, 16, 16], strides = [1, 1, 1]} : vector<2x16x128xf32> to vector<2x16x16xf32>
    "tpu.trace_start"() <{level = 10 : i32, message = "bqd,bkd->bqk"}> : () -> ()
    %cst_174 = arith.constant dense<0.000000e+00> : vector<2x16x16xf32>
    %499 = tpu.matmul %497, %498, %cst_174 {dimension_numbers = #tpu.dot_dimension_numbers<[2], [2], [1], [1], [0, 0, 0, 1, 1, 1], [0], [0]>} : vector<2x16x16xf32>, vector<2x16x16xf32>, vector<2x16x16xf32> -> vector<2x16x16xf32>
    "tpu.trace_stop"() : () -> ()
    %cst_175 = arith.constant dense<0xFF800000> : vector<2x16xf32>
    %500 = vector.multi_reduction <maximumf>, %499, %cst_175 [2] : vector<2x16x16xf32> to vector<2x16xf32>
    %501 = vector.shape_cast %500 : vector<2x16xf32> to vector<2x16x1xf32>
    %502 = vector.broadcast %501 : vector<2x16x1xf32> to vector<2x16x16xf32>
    %503 = arith.subf %499, %502 : vector<2x16x16xf32>
    %504 = math.exp %503 : vector<2x16x16xf32>
    %cst_176 = arith.constant dense<0.000000e+00> : vector<2x16xf32>
    %505 = vector.multi_reduction <add>, %504, %cst_176 [2] : vector<2x16x16xf32> to vector<2x16xf32>
    %506 = vector.shape_cast %505 : vector<2x16xf32> to vector<2x16x1xf32>
    %507 = vector.broadcast %506 : vector<2x16x1xf32> to vector<2x16x16xf32>
    %508 = arith.divf %504, %507 : vector<2x16x16xf32>
    %509 = vector.extract_strided_slice %494 {offsets = [0, 0, 0], sizes = [2, 16, 16], strides = [1, 1, 1]} : vector<2x16x128xf32> to vector<2x16x16xf32>
    "tpu.trace_start"() <{level = 10 : i32, message = "bqk,bkd->bqd"}> : () -> ()
    %cst_177 = arith.constant dense<0.000000e+00> : vector<2x16x16xf32>
    %510 = tpu.matmul %508, %509, %cst_177 {dimension_numbers = #tpu.dot_dimension_numbers<[2], [1], [1], [2], [0, 0, 0, 1, 1, 2], [0], [0]>} : vector<2x16x16xf32>, vector<2x16x16xf32>, vector<2x16x16xf32> -> vector<2x16x16xf32>
    "tpu.trace_stop"() : () -> ()
    %511 = vector.shape_cast %510 : vector<2x16x16xf32> to vector<32x16xf32>
    %512 = vector.extract_strided_slice %496 {offsets = [0, 0], sizes = [16, 128], strides = [1, 1]} : vector<128x128xf32> to vector<16x128xf32>
    %cst_178 = arith.constant dense<0.000000e+00> : vector<32x128xf32>
    %513 = tpu.matmul %511, %512, %cst_178 {dimension_numbers = #tpu.dot_dimension_numbers<[1], [0], [0], [1], [0, 0, 1, 1], [], []>} : vector<32x16xf32>, vector<16x128xf32>, vector<32x128xf32> -> vector<32x128xf32>
    %514 = vector.extract_strided_slice %492 {offsets = [0, 0, 16], sizes = [2, 16, 16], strides = [1, 1, 1]} : vector<2x16x128xf32> to vector<2x16x16xf32>
    %515 = vector.extract_strided_slice %493 {offsets = [0, 0, 16], sizes = [2, 16, 16], strides = [1, 1, 1]} : vector<2x16x128xf32> to vector<2x16x16xf32>
    "tpu.trace_start"() <{level = 10 : i32, message = "bqd,bkd->bqk"}> : () -> ()
    %cst_179 = arith.constant dense<0.000000e+00> : vector<2x16x16xf32>
    %516 = tpu.matmul %514, %515, %cst_179 {dimension_numbers = #tpu.dot_dimension_numbers<[2], [2], [1], [1], [0, 0, 0, 1, 1, 1], [0], [0]>} : vector<2x16x16xf32>, vector<2x16x16xf32>, vector<2x16x16xf32> -> vector<2x16x16xf32>
    "tpu.trace_stop"() : () -> ()
    %cst_180 = arith.constant dense<0xFF800000> : vector<2x16xf32>
    %517 = vector.multi_reduction <maximumf>, %516, %cst_180 [2] : vector<2x16x16xf32> to vector<2x16xf32>
    %518 = vector.shape_cast %517 : vector<2x16xf32> to vector<2x16x1xf32>
    %519 = vector.broadcast %518 : vector<2x16x1xf32> to vector<2x16x16xf32>
    %520 = arith.subf %516, %519 : vector<2x16x16xf32>
    %521 = math.exp %520 : vector<2x16x16xf32>
    %cst_181 = arith.constant dense<0.000000e+00> : vector<2x16xf32>
    %522 = vector.multi_reduction <add>, %521, %cst_181 [2] : vector<2x16x16xf32> to vector<2x16xf32>
    %523 = vector.shape_cast %522 : vector<2x16xf32> to vector<2x16x1xf32>
    %524 = vector.broadcast %523 : vector<2x16x1xf32> to vector<2x16x16xf32>
    %525 = arith.divf %521, %524 : vector<2x16x16xf32>
    %526 = vector.extract_strided_slice %494 {offsets = [0, 0, 16], sizes = [2, 16, 16], strides = [1, 1, 1]} : vector<2x16x128xf32> to vector<2x16x16xf32>
    "tpu.trace_start"() <{level = 10 : i32, message = "bqk,bkd->bqd"}> : () -> ()
    %cst_182 = arith.constant dense<0.000000e+00> : vector<2x16x16xf32>
    %527 = tpu.matmul %525, %526, %cst_182 {dimension_numbers = #tpu.dot_dimension_numbers<[2], [1], [1], [2], [0, 0, 0, 1, 1, 2], [0], [0]>} : vector<2x16x16xf32>, vector<2x16x16xf32>, vector<2x16x16xf32> -> vector<2x16x16xf32>
    "tpu.trace_stop"() : () -> ()
    %528 = vector.shape_cast %527 : vector<2x16x16xf32> to vector<32x16xf32>
    %529 = vector.extract_strided_slice %496 {offsets = [16, 0], sizes = [16, 128], strides = [1, 1]} : vector<128x128xf32> to vector<16x128xf32>
    %cst_183 = arith.constant dense<0.000000e+00> : vector<32x128xf32>
    %530 = tpu.matmul %528, %529, %cst_183 {dimension_numbers = #tpu.dot_dimension_numbers<[1], [0], [0], [1], [0, 0, 1, 1], [], []>} : vector<32x16xf32>, vector<16x128xf32>, vector<32x128xf32> -> vector<32x128xf32>
    %531 = arith.addf %513, %530 : vector<32x128xf32>
    %532 = vector.extract_strided_slice %492 {offsets = [0, 0, 32], sizes = [2, 16, 16], strides = [1, 1, 1]} : vector<2x16x128xf32> to vector<2x16x16xf32>
    %533 = vector.extract_strided_slice %493 {offsets = [0, 0, 32], sizes = [2, 16, 16], strides = [1, 1, 1]} : vector<2x16x128xf32> to vector<2x16x16xf32>
    "tpu.trace_start"() <{level = 10 : i32, message = "bqd,bkd->bqk"}> : () -> ()
    %cst_184 = arith.constant dense<0.000000e+00> : vector<2x16x16xf32>
    %534 = tpu.matmul %532, %533, %cst_184 {dimension_numbers = #tpu.dot_dimension_numbers<[2], [2], [1], [1], [0, 0, 0, 1, 1, 1], [0], [0]>} : vector<2x16x16xf32>, vector<2x16x16xf32>, vector<2x16x16xf32> -> vector<2x16x16xf32>
    "tpu.trace_stop"() : () -> ()
    %cst_185 = arith.constant dense<0xFF800000> : vector<2x16xf32>
    %535 = vector.multi_reduction <maximumf>, %534, %cst_185 [2] : vector<2x16x16xf32> to vector<2x16xf32>
    %536 = vector.shape_cast %535 : vector<2x16xf32> to vector<2x16x1xf32>
    %537 = vector.broadcast %536 : vector<2x16x1xf32> to vector<2x16x16xf32>
    %538 = arith.subf %534, %537 : vector<2x16x16xf32>
    %539 = math.exp %538 : vector<2x16x16xf32>
    %cst_186 = arith.constant dense<0.000000e+00> : vector<2x16xf32>
    %540 = vector.multi_reduction <add>, %539, %cst_186 [2] : vector<2x16x16xf32> to vector<2x16xf32>
    %541 = vector.shape_cast %540 : vector<2x16xf32> to vector<2x16x1xf32>
    %542 = vector.broadcast %541 : vector<2x16x1xf32> to vector<2x16x16xf32>
    %543 = arith.divf %539, %542 : vector<2x16x16xf32>
    %544 = vector.extract_strided_slice %494 {offsets = [0, 0, 32], sizes = [2, 16, 16], strides = [1, 1, 1]} : vector<2x16x128xf32> to vector<2x16x16xf32>
    "tpu.trace_start"() <{level = 10 : i32, message = "bqk,bkd->bqd"}> : () -> ()
    %cst_187 = arith.constant dense<0.000000e+00> : vector<2x16x16xf32>
    %545 = tpu.matmul %543, %544, %cst_187 {dimension_numbers = #tpu.dot_dimension_numbers<[2], [1], [1], [2], [0, 0, 0, 1, 1, 2], [0], [0]>} : vector<2x16x16xf32>, vector<2x16x16xf32>, vector<2x16x16xf32> -> vector<2x16x16xf32>
    "tpu.trace_stop"() : () -> ()
    %546 = vector.shape_cast %545 : vector<2x16x16xf32> to vector<32x16xf32>
    %547 = vector.extract_strided_slice %496 {offsets = [32, 0], sizes = [16, 128], strides = [1, 1]} : vector<128x128xf32> to vector<16x128xf32>
    %cst_188 = arith.constant dense<0.000000e+00> : vector<32x128xf32>
    %548 = tpu.matmul %546, %547, %cst_188 {dimension_numbers = #tpu.dot_dimension_numbers<[1], [0], [0], [1], [0, 0, 1, 1], [], []>} : vector<32x16xf32>, vector<16x128xf32>, vector<32x128xf32> -> vector<32x128xf32>
    %549 = arith.addf %531, %548 : vector<32x128xf32>
    %550 = vector.extract_strided_slice %492 {offsets = [0, 0, 48], sizes = [2, 16, 16], strides = [1, 1, 1]} : vector<2x16x128xf32> to vector<2x16x16xf32>
    %551 = vector.extract_strided_slice %493 {offsets = [0, 0, 48], sizes = [2, 16, 16], strides = [1, 1, 1]} : vector<2x16x128xf32> to vector<2x16x16xf32>
    "tpu.trace_start"() <{level = 10 : i32, message = "bqd,bkd->bqk"}> : () -> ()
    %cst_189 = arith.constant dense<0.000000e+00> : vector<2x16x16xf32>
    %552 = tpu.matmul %550, %551, %cst_189 {dimension_numbers = #tpu.dot_dimension_numbers<[2], [2], [1], [1], [0, 0, 0, 1, 1, 1], [0], [0]>} : vector<2x16x16xf32>, vector<2x16x16xf32>, vector<2x16x16xf32> -> vector<2x16x16xf32>
    "tpu.trace_stop"() : () -> ()
    %cst_190 = arith.constant dense<0xFF800000> : vector<2x16xf32>
    %553 = vector.multi_reduction <maximumf>, %552, %cst_190 [2] : vector<2x16x16xf32> to vector<2x16xf32>
    %554 = vector.shape_cast %553 : vector<2x16xf32> to vector<2x16x1xf32>
    %555 = vector.broadcast %554 : vector<2x16x1xf32> to vector<2x16x16xf32>
    %556 = arith.subf %552, %555 : vector<2x16x16xf32>
    %557 = math.exp %556 : vector<2x16x16xf32>
    %cst_191 = arith.constant dense<0.000000e+00> : vector<2x16xf32>
    %558 = vector.multi_reduction <add>, %557, %cst_191 [2] : vector<2x16x16xf32> to vector<2x16xf32>
    %559 = vector.shape_cast %558 : vector<2x16xf32> to vector<2x16x1xf32>
    %560 = vector.broadcast %559 : vector<2x16x1xf32> to vector<2x16x16xf32>
    %561 = arith.divf %557, %560 : vector<2x16x16xf32>
    %562 = vector.extract_strided_slice %494 {offsets = [0, 0, 48], sizes = [2, 16, 16], strides = [1, 1, 1]} : vector<2x16x128xf32> to vector<2x16x16xf32>
    "tpu.trace_start"() <{level = 10 : i32, message = "bqk,bkd->bqd"}> : () -> ()
    %cst_192 = arith.constant dense<0.000000e+00> : vector<2x16x16xf32>
    %563 = tpu.matmul %561, %562, %cst_192 {dimension_numbers = #tpu.dot_dimension_numbers<[2], [1], [1], [2], [0, 0, 0, 1, 1, 2], [0], [0]>} : vector<2x16x16xf32>, vector<2x16x16xf32>, vector<2x16x16xf32> -> vector<2x16x16xf32>
    "tpu.trace_stop"() : () -> ()
    %564 = vector.shape_cast %563 : vector<2x16x16xf32> to vector<32x16xf32>
    %565 = vector.extract_strided_slice %496 {offsets = [48, 0], sizes = [16, 128], strides = [1, 1]} : vector<128x128xf32> to vector<16x128xf32>
    %cst_193 = arith.constant dense<0.000000e+00> : vector<32x128xf32>
    %566 = tpu.matmul %564, %565, %cst_193 {dimension_numbers = #tpu.dot_dimension_numbers<[1], [0], [0], [1], [0, 0, 1, 1], [], []>} : vector<32x16xf32>, vector<16x128xf32>, vector<32x128xf32> -> vector<32x128xf32>
    %567 = arith.addf %549, %566 : vector<32x128xf32>
    %568 = vector.extract_strided_slice %492 {offsets = [0, 0, 64], sizes = [2, 16, 16], strides = [1, 1, 1]} : vector<2x16x128xf32> to vector<2x16x16xf32>
    %569 = vector.extract_strided_slice %493 {offsets = [0, 0, 64], sizes = [2, 16, 16], strides = [1, 1, 1]} : vector<2x16x128xf32> to vector<2x16x16xf32>
    "tpu.trace_start"() <{level = 10 : i32, message = "bqd,bkd->bqk"}> : () -> ()
    %cst_194 = arith.constant dense<0.000000e+00> : vector<2x16x16xf32>
    %570 = tpu.matmul %568, %569, %cst_194 {dimension_numbers = #tpu.dot_dimension_numbers<[2], [2], [1], [1], [0, 0, 0, 1, 1, 1], [0], [0]>} : vector<2x16x16xf32>, vector<2x16x16xf32>, vector<2x16x16xf32> -> vector<2x16x16xf32>
    "tpu.trace_stop"() : () -> ()
    %cst_195 = arith.constant dense<0xFF800000> : vector<2x16xf32>
    %571 = vector.multi_reduction <maximumf>, %570, %cst_195 [2] : vector<2x16x16xf32> to vector<2x16xf32>
    %572 = vector.shape_cast %571 : vector<2x16xf32> to vector<2x16x1xf32>
    %573 = vector.broadcast %572 : vector<2x16x1xf32> to vector<2x16x16xf32>
    %574 = arith.subf %570, %573 : vector<2x16x16xf32>
    %575 = math.exp %574 : vector<2x16x16xf32>
    %cst_196 = arith.constant dense<0.000000e+00> : vector<2x16xf32>
    %576 = vector.multi_reduction <add>, %575, %cst_196 [2] : vector<2x16x16xf32> to vector<2x16xf32>
    %577 = vector.shape_cast %576 : vector<2x16xf32> to vector<2x16x1xf32>
    %578 = vector.broadcast %577 : vector<2x16x1xf32> to vector<2x16x16xf32>
    %579 = arith.divf %575, %578 : vector<2x16x16xf32>
    %580 = vector.extract_strided_slice %494 {offsets = [0, 0, 64], sizes = [2, 16, 16], strides = [1, 1, 1]} : vector<2x16x128xf32> to vector<2x16x16xf32>
    "tpu.trace_start"() <{level = 10 : i32, message = "bqk,bkd->bqd"}> : () -> ()
    %cst_197 = arith.constant dense<0.000000e+00> : vector<2x16x16xf32>
    %581 = tpu.matmul %579, %580, %cst_197 {dimension_numbers = #tpu.dot_dimension_numbers<[2], [1], [1], [2], [0, 0, 0, 1, 1, 2], [0], [0]>} : vector<2x16x16xf32>, vector<2x16x16xf32>, vector<2x16x16xf32> -> vector<2x16x16xf32>
    "tpu.trace_stop"() : () -> ()
    %582 = vector.shape_cast %581 : vector<2x16x16xf32> to vector<32x16xf32>
    %583 = vector.extract_strided_slice %496 {offsets = [64, 0], sizes = [16, 128], strides = [1, 1]} : vector<128x128xf32> to vector<16x128xf32>
    %cst_198 = arith.constant dense<0.000000e+00> : vector<32x128xf32>
    %584 = tpu.matmul %582, %583, %cst_198 {dimension_numbers = #tpu.dot_dimension_numbers<[1], [0], [0], [1], [0, 0, 1, 1], [], []>} : vector<32x16xf32>, vector<16x128xf32>, vector<32x128xf32> -> vector<32x128xf32>
    %585 = arith.addf %567, %584 : vector<32x128xf32>
    %586 = vector.extract_strided_slice %492 {offsets = [0, 0, 80], sizes = [2, 16, 16], strides = [1, 1, 1]} : vector<2x16x128xf32> to vector<2x16x16xf32>
    %587 = vector.extract_strided_slice %493 {offsets = [0, 0, 80], sizes = [2, 16, 16], strides = [1, 1, 1]} : vector<2x16x128xf32> to vector<2x16x16xf32>
    "tpu.trace_start"() <{level = 10 : i32, message = "bqd,bkd->bqk"}> : () -> ()
    %cst_199 = arith.constant dense<0.000000e+00> : vector<2x16x16xf32>
    %588 = tpu.matmul %586, %587, %cst_199 {dimension_numbers = #tpu.dot_dimension_numbers<[2], [2], [1], [1], [0, 0, 0, 1, 1, 1], [0], [0]>} : vector<2x16x16xf32>, vector<2x16x16xf32>, vector<2x16x16xf32> -> vector<2x16x16xf32>
    "tpu.trace_stop"() : () -> ()
    %cst_200 = arith.constant dense<0xFF800000> : vector<2x16xf32>
    %589 = vector.multi_reduction <maximumf>, %588, %cst_200 [2] : vector<2x16x16xf32> to vector<2x16xf32>
    %590 = vector.shape_cast %589 : vector<2x16xf32> to vector<2x16x1xf32>
    %591 = vector.broadcast %590 : vector<2x16x1xf32> to vector<2x16x16xf32>
    %592 = arith.subf %588, %591 : vector<2x16x16xf32>
    %593 = math.exp %592 : vector<2x16x16xf32>
    %cst_201 = arith.constant dense<0.000000e+00> : vector<2x16xf32>
    %594 = vector.multi_reduction <add>, %593, %cst_201 [2] : vector<2x16x16xf32> to vector<2x16xf32>
    %595 = vector.shape_cast %594 : vector<2x16xf32> to vector<2x16x1xf32>
    %596 = vector.broadcast %595 : vector<2x16x1xf32> to vector<2x16x16xf32>
    %597 = arith.divf %593, %596 : vector<2x16x16xf32>
    %598 = vector.extract_strided_slice %494 {offsets = [0, 0, 80], sizes = [2, 16, 16], strides = [1, 1, 1]} : vector<2x16x128xf32> to vector<2x16x16xf32>
    "tpu.trace_start"() <{level = 10 : i32, message = "bqk,bkd->bqd"}> : () -> ()
    %cst_202 = arith.constant dense<0.000000e+00> : vector<2x16x16xf32>
    %599 = tpu.matmul %597, %598, %cst_202 {dimension_numbers = #tpu.dot_dimension_numbers<[2], [1], [1], [2], [0, 0, 0, 1, 1, 2], [0], [0]>} : vector<2x16x16xf32>, vector<2x16x16xf32>, vector<2x16x16xf32> -> vector<2x16x16xf32>
    "tpu.trace_stop"() : () -> ()
    %600 = vector.shape_cast %599 : vector<2x16x16xf32> to vector<32x16xf32>
    %601 = vector.extract_strided_slice %496 {offsets = [80, 0], sizes = [16, 128], strides = [1, 1]} : vector<128x128xf32> to vector<16x128xf32>
    %cst_203 = arith.constant dense<0.000000e+00> : vector<32x128xf32>
    %602 = tpu.matmul %600, %601, %cst_203 {dimension_numbers = #tpu.dot_dimension_numbers<[1], [0], [0], [1], [0, 0, 1, 1], [], []>} : vector<32x16xf32>, vector<16x128xf32>, vector<32x128xf32> -> vector<32x128xf32>
    %603 = arith.addf %585, %602 : vector<32x128xf32>
    %604 = vector.extract_strided_slice %492 {offsets = [0, 0, 96], sizes = [2, 16, 16], strides = [1, 1, 1]} : vector<2x16x128xf32> to vector<2x16x16xf32>
    %605 = vector.extract_strided_slice %493 {offsets = [0, 0, 96], sizes = [2, 16, 16], strides = [1, 1, 1]} : vector<2x16x128xf32> to vector<2x16x16xf32>
    "tpu.trace_start"() <{level = 10 : i32, message = "bqd,bkd->bqk"}> : () -> ()
    %cst_204 = arith.constant dense<0.000000e+00> : vector<2x16x16xf32>
    %606 = tpu.matmul %604, %605, %cst_204 {dimension_numbers = #tpu.dot_dimension_numbers<[2], [2], [1], [1], [0, 0, 0, 1, 1, 1], [0], [0]>} : vector<2x16x16xf32>, vector<2x16x16xf32>, vector<2x16x16xf32> -> vector<2x16x16xf32>
    "tpu.trace_stop"() : () -> ()
    %cst_205 = arith.constant dense<0xFF800000> : vector<2x16xf32>
    %607 = vector.multi_reduction <maximumf>, %606, %cst_205 [2] : vector<2x16x16xf32> to vector<2x16xf32>
    %608 = vector.shape_cast %607 : vector<2x16xf32> to vector<2x16x1xf32>
    %609 = vector.broadcast %608 : vector<2x16x1xf32> to vector<2x16x16xf32>
    %610 = arith.subf %606, %609 : vector<2x16x16xf32>
    %611 = math.exp %610 : vector<2x16x16xf32>
    %cst_206 = arith.constant dense<0.000000e+00> : vector<2x16xf32>
    %612 = vector.multi_reduction <add>, %611, %cst_206 [2] : vector<2x16x16xf32> to vector<2x16xf32>
    %613 = vector.shape_cast %612 : vector<2x16xf32> to vector<2x16x1xf32>
    %614 = vector.broadcast %613 : vector<2x16x1xf32> to vector<2x16x16xf32>
    %615 = arith.divf %611, %614 : vector<2x16x16xf32>
    %616 = vector.extract_strided_slice %494 {offsets = [0, 0, 96], sizes = [2, 16, 16], strides = [1, 1, 1]} : vector<2x16x128xf32> to vector<2x16x16xf32>
    "tpu.trace_start"() <{level = 10 : i32, message = "bqk,bkd->bqd"}> : () -> ()
    %cst_207 = arith.constant dense<0.000000e+00> : vector<2x16x16xf32>
    %617 = tpu.matmul %615, %616, %cst_207 {dimension_numbers = #tpu.dot_dimension_numbers<[2], [1], [1], [2], [0, 0, 0, 1, 1, 2], [0], [0]>} : vector<2x16x16xf32>, vector<2x16x16xf32>, vector<2x16x16xf32> -> vector<2x16x16xf32>
    "tpu.trace_stop"() : () -> ()
    %618 = vector.shape_cast %617 : vector<2x16x16xf32> to vector<32x16xf32>
    %619 = vector.extract_strided_slice %496 {offsets = [96, 0], sizes = [16, 128], strides = [1, 1]} : vector<128x128xf32> to vector<16x128xf32>
    %cst_208 = arith.constant dense<0.000000e+00> : vector<32x128xf32>
    %620 = tpu.matmul %618, %619, %cst_208 {dimension_numbers = #tpu.dot_dimension_numbers<[1], [0], [0], [1], [0, 0, 1, 1], [], []>} : vector<32x16xf32>, vector<16x128xf32>, vector<32x128xf32> -> vector<32x128xf32>
    %621 = arith.addf %603, %620 : vector<32x128xf32>
    %622 = vector.extract_strided_slice %492 {offsets = [0, 0, 112], sizes = [2, 16, 16], strides = [1, 1, 1]} : vector<2x16x128xf32> to vector<2x16x16xf32>
    %623 = vector.extract_strided_slice %493 {offsets = [0, 0, 112], sizes = [2, 16, 16], strides = [1, 1, 1]} : vector<2x16x128xf32> to vector<2x16x16xf32>
    "tpu.trace_start"() <{level = 10 : i32, message = "bqd,bkd->bqk"}> : () -> ()
    %cst_209 = arith.constant dense<0.000000e+00> : vector<2x16x16xf32>
    %624 = tpu.matmul %622, %623, %cst_209 {dimension_numbers = #tpu.dot_dimension_numbers<[2], [2], [1], [1], [0, 0, 0, 1, 1, 1], [0], [0]>} : vector<2x16x16xf32>, vector<2x16x16xf32>, vector<2x16x16xf32> -> vector<2x16x16xf32>
    "tpu.trace_stop"() : () -> ()
    %cst_210 = arith.constant dense<0xFF800000> : vector<2x16xf32>
    %625 = vector.multi_reduction <maximumf>, %624, %cst_210 [2] : vector<2x16x16xf32> to vector<2x16xf32>
    %626 = vector.shape_cast %625 : vector<2x16xf32> to vector<2x16x1xf32>
    %627 = vector.broadcast %626 : vector<2x16x1xf32> to vector<2x16x16xf32>
    %628 = arith.subf %624, %627 : vector<2x16x16xf32>
    %629 = math.exp %628 : vector<2x16x16xf32>
    %cst_211 = arith.constant dense<0.000000e+00> : vector<2x16xf32>
    %630 = vector.multi_reduction <add>, %629, %cst_211 [2] : vector<2x16x16xf32> to vector<2x16xf32>
    %631 = vector.shape_cast %630 : vector<2x16xf32> to vector<2x16x1xf32>
    %632 = vector.broadcast %631 : vector<2x16x1xf32> to vector<2x16x16xf32>
    %633 = arith.divf %629, %632 : vector<2x16x16xf32>
    %634 = vector.extract_strided_slice %494 {offsets = [0, 0, 112], sizes = [2, 16, 16], strides = [1, 1, 1]} : vector<2x16x128xf32> to vector<2x16x16xf32>
    "tpu.trace_start"() <{level = 10 : i32, message = "bqk,bkd->bqd"}> : () -> ()
    %cst_212 = arith.constant dense<0.000000e+00> : vector<2x16x16xf32>
    %635 = tpu.matmul %633, %634, %cst_212 {dimension_numbers = #tpu.dot_dimension_numbers<[2], [1], [1], [2], [0, 0, 0, 1, 1, 2], [0], [0]>} : vector<2x16x16xf32>, vector<2x16x16xf32>, vector<2x16x16xf32> -> vector<2x16x16xf32>
    "tpu.trace_stop"() : () -> ()
    %636 = vector.shape_cast %635 : vector<2x16x16xf32> to vector<32x16xf32>
    %637 = vector.extract_strided_slice %496 {offsets = [112, 0], sizes = [16, 128], strides = [1, 1]} : vector<128x128xf32> to vector<16x128xf32>
    %cst_213 = arith.constant dense<0.000000e+00> : vector<32x128xf32>
    %638 = tpu.matmul %636, %637, %cst_213 {dimension_numbers = #tpu.dot_dimension_numbers<[1], [0], [0], [1], [0, 0, 1, 1], [], []>} : vector<32x16xf32>, vector<16x128xf32>, vector<32x128xf32> -> vector<32x128xf32>
    %639 = arith.addf %621, %638 : vector<32x128xf32>
    %c2_214 = arith.constant 2 : index
    %c0_215 = arith.constant 0 : index
    %640 = vector.load %arg5[%c2_214, %c0_215] : memref<3x128xf32, #tpu.memory_space<vmem>>, vector<1x128xf32>
    %641 = vector.shape_cast %640 : vector<1x128xf32> to vector<128xf32>
    %642 = vector.shape_cast %641 : vector<128xf32> to vector<1x128xf32>
    %643 = vector.broadcast %642 : vector<1x128xf32> to vector<32x128xf32>
    %644 = arith.addf %639, %643 : vector<32x128xf32>
    %645 = arith.addf %480, %644 : vector<32x128xf32>
    %c2_216 = arith.constant 2 : index
    %c0_217 = arith.constant 0 : index
    %646 = vector.load %arg6[%c2_216, %c0_217] : memref<3x128xf32, #tpu.memory_space<vmem>>, vector<1x128xf32>
    %647 = vector.shape_cast %646 : vector<1x128xf32> to vector<128xf32>
    %c2_218 = arith.constant 2 : index
    %c0_219 = arith.constant 0 : index
    %648 = vector.load %arg7[%c2_218, %c0_219] : memref<3x128xf32, #tpu.memory_space<vmem>>, vector<1x128xf32>
    %649 = vector.shape_cast %648 : vector<1x128xf32> to vector<128xf32>
    %cst_220 = arith.constant dense<0.000000e+00> : vector<32xf32>
    %650 = vector.multi_reduction <add>, %645, %cst_220 [1] : vector<32x128xf32> to vector<32xf32>
    %651 = vector.shape_cast %650 : vector<32xf32> to vector<32x1xf32>
    %cst_221 = arith.constant 1.280000e+02 : f32
    %652 = vector.broadcast %cst_221 : f32 to vector<32x1xf32>
    %653 = arith.divf %651, %652 : vector<32x1xf32>
    %654 = vector.broadcast %653 : vector<32x1xf32> to vector<32x128xf32>
    %655 = arith.subf %645, %654 : vector<32x128xf32>
    %656 = arith.mulf %655, %655 : vector<32x128xf32>
    %cst_222 = arith.constant dense<0.000000e+00> : vector<32xf32>
    %657 = vector.multi_reduction <add>, %656, %cst_222 [1] : vector<32x128xf32> to vector<32xf32>
    %658 = vector.shape_cast %657 : vector<32xf32> to vector<32x1xf32>
    %cst_223 = arith.constant 1.280000e+02 : f32
    %659 = vector.broadcast %cst_223 : f32 to vector<32x1xf32>
    %660 = arith.divf %658, %659 : vector<32x1xf32>
    %661 = vector.broadcast %653 : vector<32x1xf32> to vector<32x128xf32>
    %662 = arith.subf %645, %661 : vector<32x128xf32>
    %cst_224 = arith.constant 9.99999974E-6 : f32
    %663 = vector.broadcast %cst_224 : f32 to vector<32x1xf32>
    %664 = arith.addf %660, %663 : vector<32x1xf32>
    %665 = math.rsqrt %664 : vector<32x1xf32>
    %666 = vector.broadcast %665 : vector<32x1xf32> to vector<32x128xf32>
    %667 = arith.mulf %662, %666 : vector<32x128xf32>
    %668 = vector.shape_cast %647 : vector<128xf32> to vector<1x128xf32>
    %669 = vector.broadcast %668 : vector<1x128xf32> to vector<32x128xf32>
    %670 = arith.mulf %667, %669 : vector<32x128xf32>
    %671 = vector.shape_cast %649 : vector<128xf32> to vector<1x128xf32>
    %672 = vector.broadcast %671 : vector<1x128xf32> to vector<32x128xf32>
    %673 = arith.addf %670, %672 : vector<32x128xf32>
    %c2_225 = arith.constant 2 : index
    %c0_226 = arith.constant 0 : index
    %c0_227 = arith.constant 0 : index
    %674 = vector.load %arg8[%c2_225, %c0_226, %c0_227] : memref<3x128x128xf32, #tpu.memory_space<vmem>>, vector<1x128x128xf32>
    %675 = vector.shape_cast %674 : vector<1x128x128xf32> to vector<128x128xf32>
    %cst_228 = arith.constant dense<0.000000e+00> : vector<32x128xf32>
    %676 = tpu.matmul %673, %675, %cst_228 {dimension_numbers = #tpu.dot_dimension_numbers<[1], [0], [0], [1], [0, 0, 1, 1], [], []>} : vector<32x128xf32>, vector<128x128xf32>, vector<32x128xf32> -> vector<32x128xf32>
    %c2_229 = arith.constant 2 : index
    %c0_230 = arith.constant 0 : index
    %677 = vector.load %arg9[%c2_229, %c0_230] : memref<3x128xf32, #tpu.memory_space<vmem>>, vector<1x128xf32>
    %678 = vector.shape_cast %677 : vector<1x128xf32> to vector<128xf32>
    %679 = vector.shape_cast %678 : vector<128xf32> to vector<1x128xf32>
    %680 = vector.broadcast %679 : vector<1x128xf32> to vector<32x128xf32>
    %681 = arith.addf %676, %680 : vector<32x128xf32>
    %cst_231 = arith.constant 0.000000e+00 : f32
    %682 = vector.broadcast %cst_231 : f32 to vector<32x128xf32>
    %683 = arith.maximumf %681, %682 : vector<32x128xf32>
    %c2_232 = arith.constant 2 : index
    %c0_233 = arith.constant 0 : index
    %c0_234 = arith.constant 0 : index
    %684 = vector.load %arg10[%c2_232, %c0_233, %c0_234] : memref<3x128x128xf32, #tpu.memory_space<vmem>>, vector<1x128x128xf32>
    %685 = vector.shape_cast %684 : vector<1x128x128xf32> to vector<128x128xf32>
    %cst_235 = arith.constant dense<0.000000e+00> : vector<32x128xf32>
    %686 = tpu.matmul %683, %685, %cst_235 {dimension_numbers = #tpu.dot_dimension_numbers<[1], [0], [0], [1], [0, 0, 1, 1], [], []>} : vector<32x128xf32>, vector<128x128xf32>, vector<32x128xf32> -> vector<32x128xf32>
    %c2_236 = arith.constant 2 : index
    %c0_237 = arith.constant 0 : index
    %687 = vector.load %arg11[%c2_236, %c0_237] : memref<3x128xf32, #tpu.memory_space<vmem>>, vector<1x128xf32>
    %688 = vector.shape_cast %687 : vector<1x128xf32> to vector<128xf32>
    %689 = vector.shape_cast %688 : vector<128xf32> to vector<1x128xf32>
    %690 = vector.broadcast %689 : vector<1x128xf32> to vector<32x128xf32>
    %691 = arith.addf %686, %690 : vector<32x128xf32>
    %692 = arith.addf %673, %691 : vector<32x128xf32>
    %c2_238 = arith.constant 2 : index
    %c0_239 = arith.constant 0 : index
    %693 = vector.load %arg12[%c2_238, %c0_239] : memref<3x128xf32, #tpu.memory_space<vmem>>, vector<1x128xf32>
    %694 = vector.shape_cast %693 : vector<1x128xf32> to vector<128xf32>
    %c2_240 = arith.constant 2 : index
    %c0_241 = arith.constant 0 : index
    %695 = vector.load %arg13[%c2_240, %c0_241] : memref<3x128xf32, #tpu.memory_space<vmem>>, vector<1x128xf32>
    %696 = vector.shape_cast %695 : vector<1x128xf32> to vector<128xf32>
    %cst_242 = arith.constant dense<0.000000e+00> : vector<32xf32>
    %697 = vector.multi_reduction <add>, %692, %cst_242 [1] : vector<32x128xf32> to vector<32xf32>
    %698 = vector.shape_cast %697 : vector<32xf32> to vector<32x1xf32>
    %cst_243 = arith.constant 1.280000e+02 : f32
    %699 = vector.broadcast %cst_243 : f32 to vector<32x1xf32>
    %700 = arith.divf %698, %699 : vector<32x1xf32>
    %701 = vector.broadcast %700 : vector<32x1xf32> to vector<32x128xf32>
    %702 = arith.subf %692, %701 : vector<32x128xf32>
    %703 = arith.mulf %702, %702 : vector<32x128xf32>
    %cst_244 = arith.constant dense<0.000000e+00> : vector<32xf32>
    %704 = vector.multi_reduction <add>, %703, %cst_244 [1] : vector<32x128xf32> to vector<32xf32>
    %705 = vector.shape_cast %704 : vector<32xf32> to vector<32x1xf32>
    %cst_245 = arith.constant 1.280000e+02 : f32
    %706 = vector.broadcast %cst_245 : f32 to vector<32x1xf32>
    %707 = arith.divf %705, %706 : vector<32x1xf32>
    %708 = vector.broadcast %700 : vector<32x1xf32> to vector<32x128xf32>
    %709 = arith.subf %692, %708 : vector<32x128xf32>
    %cst_246 = arith.constant 9.99999974E-6 : f32
    %710 = vector.broadcast %cst_246 : f32 to vector<32x1xf32>
    %711 = arith.addf %707, %710 : vector<32x1xf32>
    %712 = math.rsqrt %711 : vector<32x1xf32>
    %713 = vector.broadcast %712 : vector<32x1xf32> to vector<32x128xf32>
    %714 = arith.mulf %709, %713 : vector<32x128xf32>
    %715 = vector.shape_cast %694 : vector<128xf32> to vector<1x128xf32>
    %716 = vector.broadcast %715 : vector<1x128xf32> to vector<32x128xf32>
    %717 = arith.mulf %714, %716 : vector<32x128xf32>
    %718 = vector.shape_cast %696 : vector<128xf32> to vector<1x128xf32>
    %719 = vector.broadcast %718 : vector<1x128xf32> to vector<32x128xf32>
    %720 = arith.addf %717, %719 : vector<32x128xf32>
    %c0_247 = arith.constant 0 : index
    %c0_248 = arith.constant 0 : index
    %721 = vector.load %arg14[%c0_247, %c0_248] : memref<32x128xf32, #tpu.memory_space<vmem>>, vector<32x128xf32>
    tpu.vector_store %arg14[%c0_247, %c0_248], %720 {strides = array<i32>} : memref<32x128xf32, #tpu.memory_space<vmem>>, vector<32x128xf32>,
    return
  }
  func.func @transform_0(%arg0: i32) -> (i32, i32) {
    %c0_i32 = arith.constant 0 : i32
    %c0_i32_0 = arith.constant 0 : i32
    %c0_i32_1 = arith.constant 0 : i32
    return %c0_i32, %c0_i32_0 : i32, i32
  }
  func.func @transform_1(%arg0: i32) -> (i32, i32, i32) {
    %c0_i32 = arith.constant 0 : i32
    %c0_i32_0 = arith.constant 0 : i32
    %c0_i32_1 = arith.constant 0 : i32
    %c0_i32_2 = arith.constant 0 : i32
    return %c0_i32, %c0_i32_0, %c0_i32_1 : i32, i32, i32
  }
  func.func @transform_2(%arg0: i32) -> (i32, i32) {
    %c0_i32 = arith.constant 0 : i32
    %c0_i32_0 = arith.constant 0 : i32
    %c0_i32_1 = arith.constant 0 : i32
    return %c0_i32, %c0_i32_0 : i32, i32
  }
  func.func @transform_3(%arg0: i32) -> (i32, i32, i32) {
    %c0_i32 = arith.constant 0 : i32
    %c0_i32_0 = arith.constant 0 : i32
    %c0_i32_1 = arith.constant 0 : i32
    %c0_i32_2 = arith.constant 0 : i32
    return %c0_i32, %c0_i32_0, %c0_i32_1 : i32, i32, i32
  }
  func.func @transform_4(%arg0: i32) -> (i32, i32) {
    %c0_i32 = arith.constant 0 : i32
    %c0_i32_0 = arith.constant 0 : i32
    %c0_i32_1 = arith.constant 0 : i32
    return %c0_i32, %c0_i32_0 : i32, i32
  }
  func.func @transform_5(%arg0: i32) -> (i32, i32) {
    %c0_i32 = arith.constant 0 : i32
    %c0_i32_0 = arith.constant 0 : i32
    %c0_i32_1 = arith.constant 0 : i32
    return %c0_i32, %c0_i32_0 : i32, i32
  }
  func.func @transform_6(%arg0: i32) -> (i32, i32) {
    %c0_i32 = arith.constant 0 : i32
    %c0_i32_0 = arith.constant 0 : i32
    %c0_i32_1 = arith.constant 0 : i32
    return %c0_i32, %c0_i32_0 : i32, i32
  }
  func.func @transform_7(%arg0: i32) -> (i32, i32, i32) {
    %c0_i32 = arith.constant 0 : i32
    %c0_i32_0 = arith.constant 0 : i32
    %c0_i32_1 = arith.constant 0 : i32
    %c0_i32_2 = arith.constant 0 : i32
    return %c0_i32, %c0_i32_0, %c0_i32_1 : i32, i32, i32
  }
  func.func @transform_8(%arg0: i32) -> (i32, i32) {
    %c0_i32 = arith.constant 0 : i32
    %c0_i32_0 = arith.constant 0 : i32
    %c0_i32_1 = arith.constant 0 : i32
    return %c0_i32, %c0_i32_0 : i32, i32
  }
  func.func @transform_9(%arg0: i32) -> (i32, i32, i32) {
    %c0_i32 = arith.constant 0 : i32
    %c0_i32_0 = arith.constant 0 : i32
    %c0_i32_1 = arith.constant 0 : i32
    %c0_i32_2 = arith.constant 0 : i32
    return %c0_i32, %c0_i32_0, %c0_i32_1 : i32, i32, i32
  }
  func.func @transform_10(%arg0: i32) -> (i32, i32) {
    %c0_i32 = arith.constant 0 : i32
    %c0_i32_0 = arith.constant 0 : i32
    %c0_i32_1 = arith.constant 0 : i32
    return %c0_i32, %c0_i32_0 : i32, i32
  }
  func.func @transform_11(%arg0: i32) -> (i32, i32) {
    %c0_i32 = arith.constant 0 : i32
    %c0_i32_0 = arith.constant 0 : i32
    %c0_i32_1 = arith.constant 0 : i32
    return %c0_i32, %c0_i32_0 : i32, i32
  }
  func.func @transform_12(%arg0: i32) -> (i32, i32) {
    %c0_i32 = arith.constant 0 : i32
    %c0_i32_0 = arith.constant 0 : i32
    %c0_i32_1 = arith.constant 0 : i32
    return %c0_i32, %c0_i32_0 : i32, i32
  }
  func.func @transform_13(%arg0: i32) -> (i32, i32) {
    %c0_i32 = arith.constant 0 : i32
    %c0_i32_0 = arith.constant 0 : i32
    %c0_i32_1 = arith.constant 0 : i32
    return %c0_i32, %c0_i32_0 : i32, i32
  }
}

module attributes {stable_mosaic.version = 11 : i64} {
  func.func @_dwconv_kernel(%arg0: i32, %arg1: memref<2x6x6x128xf32, #tpu.memory_space<vmem>>, %arg2: memref<3x3x128xf32, #tpu.memory_space<vmem>>, %arg3: memref<1x128xf32, #tpu.memory_space<vmem>>, %arg4: memref<1x128xf32, #tpu.memory_space<vmem>>, %arg5: memref<128x64xf32, #tpu.memory_space<vmem>>, %arg6: memref<1x64xf32, #tpu.memory_space<vmem>>, %arg7: memref<1x64xf32, #tpu.memory_space<vmem>>, %arg8: memref<32x64xf32, #tpu.memory_space<vmem>>) attributes {dimension_semantics = [#tpu.dimension_semantics<arbitrary>], iteration_bounds = array<i64: 1>, scalar_prefetch = 0 : i64, scratch_operands = 0 : i64, tpu.core_type = #tpu.core_type<tc>, window_params = [{pipeline_mode = #tpu.pipeline_mode<synchronous>, transform_indices = @transform_0, window_bounds = array<i64: 2, 6, 6, 128>}, {pipeline_mode = #tpu.pipeline_mode<synchronous>, transform_indices = @transform_1, window_bounds = array<i64: 3, 3, 128>}, {pipeline_mode = #tpu.pipeline_mode<synchronous>, transform_indices = @transform_2, window_bounds = array<i64: 1, 128>}, {pipeline_mode = #tpu.pipeline_mode<synchronous>, transform_indices = @transform_3, window_bounds = array<i64: 1, 128>}, {pipeline_mode = #tpu.pipeline_mode<synchronous>, transform_indices = @transform_4, window_bounds = array<i64: 128, 64>}, {pipeline_mode = #tpu.pipeline_mode<synchronous>, transform_indices = @transform_5, window_bounds = array<i64: 1, 64>}, {pipeline_mode = #tpu.pipeline_mode<synchronous>, transform_indices = @transform_6, window_bounds = array<i64: 1, 64>}, {pipeline_mode = #tpu.pipeline_mode<synchronous>, transform_indices = @transform_7, window_bounds = array<i64: 32, 64>}]} {
    %c0 = arith.constant 0 : index
    %c0_0 = arith.constant 0 : index
    %c0_1 = arith.constant 0 : index
    %c0_2 = arith.constant 0 : index
    %0 = vector.load %arg1[%c0, %c0_0, %c0_1, %c0_2] : memref<2x6x6x128xf32, #tpu.memory_space<vmem>>, vector<2x6x6x128xf32>
    %cst = arith.constant 0.000000e+00 : f32
    %1 = vector.broadcast %cst : f32 to vector<2x4x4x128xf32>
    %2 = vector.extract_strided_slice %0 {offsets = [0, 0, 0, 0], sizes = [2, 4, 4, 128], strides = [1, 1, 1, 1]} : vector<2x6x6x128xf32> to vector<2x4x4x128xf32>
    %c0_3 = arith.constant 0 : index
    %c0_4 = arith.constant 0 : index
    %c0_5 = arith.constant 0 : index
    %3 = vector.load %arg2[%c0_3, %c0_4, %c0_5] : memref<3x3x128xf32, #tpu.memory_space<vmem>>, vector<1x1x128xf32>
    %4 = vector.shape_cast %3 : vector<1x1x128xf32> to vector<128xf32>
    %5 = vector.shape_cast %4 : vector<128xf32> to vector<1x1x1x128xf32>
    %6 = vector.broadcast %5 : vector<1x1x1x128xf32> to vector<2x4x4x128xf32>
    %7 = arith.mulf %2, %6 : vector<2x4x4x128xf32>
    %8 = arith.addf %1, %7 : vector<2x4x4x128xf32>
    %9 = vector.extract_strided_slice %0 {offsets = [0, 0, 1, 0], sizes = [2, 4, 4, 128], strides = [1, 1, 1, 1]} : vector<2x6x6x128xf32> to vector<2x4x4x128xf32>
    %c0_6 = arith.constant 0 : index
    %c1 = arith.constant 1 : index
    %c0_7 = arith.constant 0 : index
    %10 = vector.load %arg2[%c0_6, %c1, %c0_7] : memref<3x3x128xf32, #tpu.memory_space<vmem>>, vector<1x1x128xf32>
    %11 = vector.shape_cast %10 : vector<1x1x128xf32> to vector<128xf32>
    %12 = vector.shape_cast %11 : vector<128xf32> to vector<1x1x1x128xf32>
    %13 = vector.broadcast %12 : vector<1x1x1x128xf32> to vector<2x4x4x128xf32>
    %14 = arith.mulf %9, %13 : vector<2x4x4x128xf32>
    %15 = arith.addf %8, %14 : vector<2x4x4x128xf32>
    %16 = vector.extract_strided_slice %0 {offsets = [0, 0, 2, 0], sizes = [2, 4, 4, 128], strides = [1, 1, 1, 1]} : vector<2x6x6x128xf32> to vector<2x4x4x128xf32>
    %c0_8 = arith.constant 0 : index
    %c2 = arith.constant 2 : index
    %c0_9 = arith.constant 0 : index
    %17 = vector.load %arg2[%c0_8, %c2, %c0_9] : memref<3x3x128xf32, #tpu.memory_space<vmem>>, vector<1x1x128xf32>
    %18 = vector.shape_cast %17 : vector<1x1x128xf32> to vector<128xf32>
    %19 = vector.shape_cast %18 : vector<128xf32> to vector<1x1x1x128xf32>
    %20 = vector.broadcast %19 : vector<1x1x1x128xf32> to vector<2x4x4x128xf32>
    %21 = arith.mulf %16, %20 : vector<2x4x4x128xf32>
    %22 = arith.addf %15, %21 : vector<2x4x4x128xf32>
    %23 = vector.extract_strided_slice %0 {offsets = [0, 1, 0, 0], sizes = [2, 4, 4, 128], strides = [1, 1, 1, 1]} : vector<2x6x6x128xf32> to vector<2x4x4x128xf32>
    %c1_10 = arith.constant 1 : index
    %c0_11 = arith.constant 0 : index
    %c0_12 = arith.constant 0 : index
    %24 = vector.load %arg2[%c1_10, %c0_11, %c0_12] : memref<3x3x128xf32, #tpu.memory_space<vmem>>, vector<1x1x128xf32>
    %25 = vector.shape_cast %24 : vector<1x1x128xf32> to vector<128xf32>
    %26 = vector.shape_cast %25 : vector<128xf32> to vector<1x1x1x128xf32>
    %27 = vector.broadcast %26 : vector<1x1x1x128xf32> to vector<2x4x4x128xf32>
    %28 = arith.mulf %23, %27 : vector<2x4x4x128xf32>
    %29 = arith.addf %22, %28 : vector<2x4x4x128xf32>
    %30 = vector.extract_strided_slice %0 {offsets = [0, 1, 1, 0], sizes = [2, 4, 4, 128], strides = [1, 1, 1, 1]} : vector<2x6x6x128xf32> to vector<2x4x4x128xf32>
    %c1_13 = arith.constant 1 : index
    %c1_14 = arith.constant 1 : index
    %c0_15 = arith.constant 0 : index
    %31 = vector.load %arg2[%c1_13, %c1_14, %c0_15] : memref<3x3x128xf32, #tpu.memory_space<vmem>>, vector<1x1x128xf32>
    %32 = vector.shape_cast %31 : vector<1x1x128xf32> to vector<128xf32>
    %33 = vector.shape_cast %32 : vector<128xf32> to vector<1x1x1x128xf32>
    %34 = vector.broadcast %33 : vector<1x1x1x128xf32> to vector<2x4x4x128xf32>
    %35 = arith.mulf %30, %34 : vector<2x4x4x128xf32>
    %36 = arith.addf %29, %35 : vector<2x4x4x128xf32>
    %37 = vector.extract_strided_slice %0 {offsets = [0, 1, 2, 0], sizes = [2, 4, 4, 128], strides = [1, 1, 1, 1]} : vector<2x6x6x128xf32> to vector<2x4x4x128xf32>
    %c1_16 = arith.constant 1 : index
    %c2_17 = arith.constant 2 : index
    %c0_18 = arith.constant 0 : index
    %38 = vector.load %arg2[%c1_16, %c2_17, %c0_18] : memref<3x3x128xf32, #tpu.memory_space<vmem>>, vector<1x1x128xf32>
    %39 = vector.shape_cast %38 : vector<1x1x128xf32> to vector<128xf32>
    %40 = vector.shape_cast %39 : vector<128xf32> to vector<1x1x1x128xf32>
    %41 = vector.broadcast %40 : vector<1x1x1x128xf32> to vector<2x4x4x128xf32>
    %42 = arith.mulf %37, %41 : vector<2x4x4x128xf32>
    %43 = arith.addf %36, %42 : vector<2x4x4x128xf32>
    %44 = vector.extract_strided_slice %0 {offsets = [0, 2, 0, 0], sizes = [2, 4, 4, 128], strides = [1, 1, 1, 1]} : vector<2x6x6x128xf32> to vector<2x4x4x128xf32>
    %c2_19 = arith.constant 2 : index
    %c0_20 = arith.constant 0 : index
    %c0_21 = arith.constant 0 : index
    %45 = vector.load %arg2[%c2_19, %c0_20, %c0_21] : memref<3x3x128xf32, #tpu.memory_space<vmem>>, vector<1x1x128xf32>
    %46 = vector.shape_cast %45 : vector<1x1x128xf32> to vector<128xf32>
    %47 = vector.shape_cast %46 : vector<128xf32> to vector<1x1x1x128xf32>
    %48 = vector.broadcast %47 : vector<1x1x1x128xf32> to vector<2x4x4x128xf32>
    %49 = arith.mulf %44, %48 : vector<2x4x4x128xf32>
    %50 = arith.addf %43, %49 : vector<2x4x4x128xf32>
    %51 = vector.extract_strided_slice %0 {offsets = [0, 2, 1, 0], sizes = [2, 4, 4, 128], strides = [1, 1, 1, 1]} : vector<2x6x6x128xf32> to vector<2x4x4x128xf32>
    %c2_22 = arith.constant 2 : index
    %c1_23 = arith.constant 1 : index
    %c0_24 = arith.constant 0 : index
    %52 = vector.load %arg2[%c2_22, %c1_23, %c0_24] : memref<3x3x128xf32, #tpu.memory_space<vmem>>, vector<1x1x128xf32>
    %53 = vector.shape_cast %52 : vector<1x1x128xf32> to vector<128xf32>
    %54 = vector.shape_cast %53 : vector<128xf32> to vector<1x1x1x128xf32>
    %55 = vector.broadcast %54 : vector<1x1x1x128xf32> to vector<2x4x4x128xf32>
    %56 = arith.mulf %51, %55 : vector<2x4x4x128xf32>
    %57 = arith.addf %50, %56 : vector<2x4x4x128xf32>
    %58 = vector.extract_strided_slice %0 {offsets = [0, 2, 2, 0], sizes = [2, 4, 4, 128], strides = [1, 1, 1, 1]} : vector<2x6x6x128xf32> to vector<2x4x4x128xf32>
    %c2_25 = arith.constant 2 : index
    %c2_26 = arith.constant 2 : index
    %c0_27 = arith.constant 0 : index
    %59 = vector.load %arg2[%c2_25, %c2_26, %c0_27] : memref<3x3x128xf32, #tpu.memory_space<vmem>>, vector<1x1x128xf32>
    %60 = vector.shape_cast %59 : vector<1x1x128xf32> to vector<128xf32>
    %61 = vector.shape_cast %60 : vector<128xf32> to vector<1x1x1x128xf32>
    %62 = vector.broadcast %61 : vector<1x1x1x128xf32> to vector<2x4x4x128xf32>
    %63 = arith.mulf %58, %62 : vector<2x4x4x128xf32>
    %64 = arith.addf %57, %63 : vector<2x4x4x128xf32>
    %c0_28 = arith.constant 0 : index
    %c0_29 = arith.constant 0 : index
    %65 = vector.load %arg3[%c0_28, %c0_29] : memref<1x128xf32, #tpu.memory_space<vmem>>, vector<1x128xf32>
    %66 = vector.shape_cast %65 : vector<1x128xf32> to vector<1x1x1x128xf32>
    %67 = vector.broadcast %66 : vector<1x1x1x128xf32> to vector<2x4x4x128xf32>
    %68 = arith.mulf %64, %67 : vector<2x4x4x128xf32>
    %c0_30 = arith.constant 0 : index
    %c0_31 = arith.constant 0 : index
    %69 = vector.load %arg4[%c0_30, %c0_31] : memref<1x128xf32, #tpu.memory_space<vmem>>, vector<1x128xf32>
    %70 = vector.shape_cast %69 : vector<1x128xf32> to vector<1x1x1x128xf32>
    %71 = vector.broadcast %70 : vector<1x1x1x128xf32> to vector<2x4x4x128xf32>
    %72 = arith.addf %68, %71 : vector<2x4x4x128xf32>
    %cst_32 = arith.constant 0.000000e+00 : f32
    %73 = vector.broadcast %cst_32 : f32 to vector<2x4x4x128xf32>
    %74 = arith.subf %73, %72 : vector<2x4x4x128xf32>
    %75 = math.exp %74 : vector<2x4x4x128xf32>
    %cst_33 = arith.constant 1.000000e+00 : f32
    %76 = vector.broadcast %cst_33 : f32 to vector<2x4x4x128xf32>
    %77 = arith.addf %76, %75 : vector<2x4x4x128xf32>
    %cst_34 = arith.constant 1.000000e+00 : f32
    %78 = vector.broadcast %cst_34 : f32 to vector<2x4x4x128xf32>
    %79 = arith.divf %78, %77 : vector<2x4x4x128xf32>
    %80 = arith.mulf %72, %79 : vector<2x4x4x128xf32>
    %81 = vector.shape_cast %80 : vector<2x4x4x128xf32> to vector<32x128xf32>
    %c0_35 = arith.constant 0 : index
    %c0_36 = arith.constant 0 : index
    %82 = vector.load %arg5[%c0_35, %c0_36] : memref<128x64xf32, #tpu.memory_space<vmem>>, vector<128x64xf32>
    %cst_37 = arith.constant dense<0.000000e+00> : vector<32x64xf32>
    %83 = tpu.matmul %81, %82, %cst_37 {dimension_numbers = #tpu.dot_dimension_numbers<[1], [0], [0], [1], [0, 0, 1, 1], [], []>} : vector<32x128xf32>, vector<128x64xf32>, vector<32x64xf32> -> vector<32x64xf32>
    %c0_38 = arith.constant 0 : index
    %c0_39 = arith.constant 0 : index
    %84 = vector.load %arg6[%c0_38, %c0_39] : memref<1x64xf32, #tpu.memory_space<vmem>>, vector<1x64xf32>
    %85 = vector.broadcast %84 : vector<1x64xf32> to vector<32x64xf32>
    %86 = arith.mulf %83, %85 : vector<32x64xf32>
    %c0_40 = arith.constant 0 : index
    %c0_41 = arith.constant 0 : index
    %87 = vector.load %arg7[%c0_40, %c0_41] : memref<1x64xf32, #tpu.memory_space<vmem>>, vector<1x64xf32>
    %88 = vector.broadcast %87 : vector<1x64xf32> to vector<32x64xf32>
    %89 = arith.addf %86, %88 : vector<32x64xf32>
    %cst_42 = arith.constant 0.000000e+00 : f32
    %90 = vector.broadcast %cst_42 : f32 to vector<32x64xf32>
    %91 = arith.subf %90, %89 : vector<32x64xf32>
    %92 = math.exp %91 : vector<32x64xf32>
    %cst_43 = arith.constant 1.000000e+00 : f32
    %93 = vector.broadcast %cst_43 : f32 to vector<32x64xf32>
    %94 = arith.addf %93, %92 : vector<32x64xf32>
    %cst_44 = arith.constant 1.000000e+00 : f32
    %95 = vector.broadcast %cst_44 : f32 to vector<32x64xf32>
    %96 = arith.divf %95, %94 : vector<32x64xf32>
    %97 = arith.mulf %89, %96 : vector<32x64xf32>
    %c0_45 = arith.constant 0 : index
    %c0_46 = arith.constant 0 : index
    %98 = vector.load %arg8[%c0_45, %c0_46] : memref<32x64xf32, #tpu.memory_space<vmem>>, vector<32x64xf32>
    tpu.vector_store %arg8[%c0_45, %c0_46], %97 {strides = array<i32>} : memref<32x64xf32, #tpu.memory_space<vmem>>, vector<32x64xf32>,
    return
  }
  func.func @transform_0(%arg0: i32) -> (i32, i32, i32, i32) {
    %c0_i32 = arith.constant 0 : i32
    %c0_i32_0 = arith.constant 0 : i32
    %c0_i32_1 = arith.constant 0 : i32
    %c0_i32_2 = arith.constant 0 : i32
    %c0_i32_3 = arith.constant 0 : i32
    return %c0_i32, %c0_i32_0, %c0_i32_1, %c0_i32_2 : i32, i32, i32, i32
  }
  func.func @transform_1(%arg0: i32) -> (i32, i32, i32) {
    %c0_i32 = arith.constant 0 : i32
    %c0_i32_0 = arith.constant 0 : i32
    %c0_i32_1 = arith.constant 0 : i32
    %c0_i32_2 = arith.constant 0 : i32
    return %c0_i32, %c0_i32_0, %c0_i32_1 : i32, i32, i32
  }
  func.func @transform_2(%arg0: i32) -> (i32, i32) {
    %c0_i32 = arith.constant 0 : i32
    %c0_i32_0 = arith.constant 0 : i32
    %c0_i32_1 = arith.constant 0 : i32
    return %c0_i32, %c0_i32_0 : i32, i32
  }
  func.func @transform_3(%arg0: i32) -> (i32, i32) {
    %c0_i32 = arith.constant 0 : i32
    %c0_i32_0 = arith.constant 0 : i32
    %c0_i32_1 = arith.constant 0 : i32
    return %c0_i32, %c0_i32_0 : i32, i32
  }
  func.func @transform_4(%arg0: i32) -> (i32, i32) {
    %c0_i32 = arith.constant 0 : i32
    %c0_i32_0 = arith.constant 0 : i32
    %c0_i32_1 = arith.constant 0 : i32
    return %c0_i32, %c0_i32_0 : i32, i32
  }
  func.func @transform_5(%arg0: i32) -> (i32, i32) {
    %c0_i32 = arith.constant 0 : i32
    %c0_i32_0 = arith.constant 0 : i32
    %c0_i32_1 = arith.constant 0 : i32
    return %c0_i32, %c0_i32_0 : i32, i32
  }
  func.func @transform_6(%arg0: i32) -> (i32, i32) {
    %c0_i32 = arith.constant 0 : i32
    %c0_i32_0 = arith.constant 0 : i32
    %c0_i32_1 = arith.constant 0 : i32
    return %c0_i32, %c0_i32_0 : i32, i32
  }
  func.func @transform_7(%arg0: i32) -> (i32, i32) {
    %c0_i32 = arith.constant 0 : i32
    %c0_i32_0 = arith.constant 0 : i32
    %c0_i32_1 = arith.constant 0 : i32
    return %c0_i32, %c0_i32_0 : i32, i32
  }
}

</mosaic_0001>

<llo_original>
// kernel: a_call__.3
$region0: #{a_call__.3}
  #allocation0 [shape = 'u32[]', space=smem, size = 0x4, offset = 0x4, fixed_abs, tag = 'smem constant byte address 0x4 - core index']
  #allocation1 [shape = 'u32[72,128]{1,0:T(1,128)}', space=vmem, size = 0x9000, scoped, tag = 'internal scratch']
  %s0 = inlined_call_operand.vmem [shape: f32[2,6,6,128], index: 0, kind: input, shape index: {}]
  %s1 = inlined_call_operand.vmem [shape: f32[3,3,128], index: 1, kind: input, shape index: {}]
  %s2 = inlined_call_operand.vmem [shape: f32[1,128], index: 2, kind: input, shape index: {}]
  %s3 = inlined_call_operand.vmem [shape: f32[1,128], index: 3, kind: input, shape index: {}]
  %s4 = inlined_call_operand.vmem [shape: f32[128,64], index: 4, kind: input, shape index: {}]
  %s5 = inlined_call_operand.vmem [shape: f32[1,64], index: 5, kind: input, shape index: {}]
  %s6 = inlined_call_operand.vmem [shape: f32[1,64], index: 6, kind: input, shape index: {}]
  %s7 = inlined_call_operand.hbm [shape: f32[32,64], index: 7, kind: output, shape index: {}]
  %s8 = sld [smem:[#allocation0]]
  $region38: #{a_call__.3} parent=0
    _
  %s10 = ssub.s32 1, %s8
  %s11 = scalar_select 0, %s10, %s8
  $region1: #{a_call__.3} parent=0
    #allocation2 [shape = 'u8[16384]{0}', space=vmem, size = 0x4000, scoped, tag = 'output window, operand 0, single buffered']
    #allocation3 [shape = 's32[1]{0}', space=sflag, size = 0x4, scoped, tag = 'scoped memory for a_call__.3']
    %12 = vsyncpa [#allocation3], 0
    // Predicated region
    $region2: #{a_call__.3} parent=1 // pred_check
      _
    $region3: #{a_call__.3} parent=1 // pred_check_branch
      %14 = sbr.rel (0) target = $region5
    $region4: #{a_call__.3} parent=1 // pred_region
      _
    $region5: #{a_call__.3} parent=1 // pred_fallthru
      _
    // Predicated region
    $region6: #{a_call__.3} parent=1 // pred_check
      _
    $region7: #{a_call__.3} parent=1 // pred_check_branch
      %16 = sbr.rel (0) target = $region9
    $region8: #{a_call__.3} parent=1 // pred_region
      _
    $region9: #{a_call__.3} parent=1 // pred_fallthru
      _
    // Predicated region
    $region10: #{a_call__.3} parent=1 // pred_check
      _
    $region11: #{a_call__.3} parent=1 // pred_check_branch
      %18 = sbr.rel (0) target = $region13
    $region12: #{a_call__.3} parent=1 // pred_region
      _
    $region13: #{a_call__.3} parent=1 // pred_fallthru
      _
    // Predicated region
    $region14: #{a_call__.3} parent=1 // pred_check
      _
    $region15: #{a_call__.3} parent=1 // pred_check_branch
      %20 = sbr.rel (0) target = $region17
    $region16: #{a_call__.3} parent=1 // pred_region
      _
    $region17: #{a_call__.3} parent=1 // pred_fallthru
      _
    // Predicated region
    $region18: #{a_call__.3} parent=1 // pred_check
      _
    $region19: #{a_call__.3} parent=1 // pred_check_branch
      %22 = sbr.rel (0) target = $region21
    $region20: #{a_call__.3} parent=1 // pred_region
      _
    $region21: #{a_call__.3} parent=1 // pred_fallthru
      _
    // Predicated region
    $region22: #{a_call__.3} parent=1 // pred_check
      _
    $region23: #{a_call__.3} parent=1 // pred_check_branch
      %24 = sbr.rel (0) target = $region25
    $region24: #{a_call__.3} parent=1 // pred_region
      _
    $region25: #{a_call__.3} parent=1 // pred_fallthru
      _
    // Predicated region
    $region26: #{a_call__.3} parent=1 // pred_check
      _
    $region27: #{a_call__.3} parent=1 // pred_check_branch
      %26 = sbr.rel (0) target = $region29
    $region28: #{a_call__.3} parent=1 // pred_region
      _
    $region29: #{a_call__.3} parent=1 // pred_fallthru
      _
    %v27 = vld [vmem:[%s0] sm:$0x3f]
    %v28 = vld [vmem:[%s0 + $0x8] sm:$0x3f]
    %v29 = vld [vmem:[%s0 + $0x10] sm:$0x3f]
    %v30 = vld [vmem:[%s0 + $0x18] sm:$0x3f]
    %v31 = vld [vmem:[%s0 + $0x20] sm:$0x3f]
    %v32 = vld [vmem:[%s0 + $0x28] sm:$0x3f]
    %v33 = vld [vmem:[%s0 + $0x30] sm:$0x3f]
    %v34 = vld [vmem:[%s0 + $0x38] sm:$0x3f]
    %v35 = vld [vmem:[%s0 + $0x40] sm:$0x3f]
    %v36 = vld [vmem:[%s0 + $0x48] sm:$0x3f]
    %v37 = vld [vmem:[%s0 + $0x50] sm:$0x3f]
    %v38 = vld [vmem:[%s0 + $0x58] sm:$0x3f]
    %v39 = vld [vmem:[%s1] sm:$0x1]
    %v40 = vperm.slane %v39, 0
    %v41 = vmul.f32 %v27, %v40
    %v42 = vmul.f32 %v28, %v40
    %v43 = vmul.f32 %v29, %v40
    %v44 = vmul.f32 %v30, %v40
    %v45 = vmul.f32 %v33, %v40
    %v46 = vmul.f32 %v34, %v40
    %v47 = vmul.f32 %v35, %v40
    %v48 = vmul.f32 %v36, %v40
    %v49 = vadd.f32 %v41, 0.0
    %v50 = vadd.f32 %v42, 0.0
    %v51 = vadd.f32 %v43, 0.0
    %v52 = vadd.f32 %v44, 0.0
    %v53 = vadd.f32 %v45, 0.0
    %v54 = vadd.f32 %v46, 0.0
    %v55 = vadd.f32 %v47, 0.0
    %v56 = vadd.f32 %v48, 0.0
    %v57 = vld [vmem:[%s1 + $0x1] sm:$0x1]
    %v58 = vperm.slane %v57, 0
    %v59 = vmul.f32 %v27, %v58
    %v60 = vmul.f32 %v28, %v58
    %v61 = vmul.f32 %v29, %v58
    %v62 = vmul.f32 %v30, %v58
    %v63 = vmul.f32 %v33, %v58
    %v64 = vmul.f32 %v34, %v58
    %v65 = vmul.f32 %v35, %v58
    %v66 = vmul.f32 %v36, %v58
    %v75 = vrot.slane %v59, 1
    %v76 = vrot.slane %v60, 1
    %v77 = vrot.slane %v61, 1
    %v78 = vrot.slane %v62, 1
    %v79 = vrot.slane %v63, 1
    %v80 = vrot.slane %v64, 1
    %v81 = vrot.slane %v65, 1
    %v82 = vrot.slane %v66, 1
    %v91 = vadd.f32 %v49, %v75
    %v92 = vadd.f32 %v50, %v76
    %v93 = vadd.f32 %v51, %v77
    %v94 = vadd.f32 %v52, %v78
    %v95 = vadd.f32 %v53, %v79
    %v96 = vadd.f32 %v54, %v80
    %v97 = vadd.f32 %v55, %v81
    %v98 = vadd.f32 %v56, %v82
    %v99 = vld [vmem:[%s1 + $0x2] sm:$0x1]
    %v100 = vperm.slane %v99, 0
    %v101 = vmul.f32 %v27, %v100
    %v102 = vmul.f32 %v28, %v100
    %v103 = vmul.f32 %v29, %v100
    %v104 = vmul.f32 %v30, %v100
    %v105 = vmul.f32 %v33, %v100
    %v106 = vmul.f32 %v34, %v100
    %v107 = vmul.f32 %v35, %v100
    %v108 = vmul.f32 %v36, %v100
    %v117 = vrot.slane %v101, 2
    %v118 = vrot.slane %v102, 2
    %v119 = vrot.slane %v103, 2
    %v120 = vrot.slane %v104, 2
    %v121 = vrot.slane %v105, 2
    %v122 = vrot.slane %v106, 2
    %v123 = vrot.slane %v107, 2
    %v124 = vrot.slane %v108, 2
    %v133 = vadd.f32 %v91, %v117
    %v134 = vadd.f32 %v92, %v118
    %v135 = vadd.f32 %v93, %v119
    %v136 = vadd.f32 %v94, %v120
    %v137 = vadd.f32 %v95, %v121
    %v138 = vadd.f32 %v96, %v122
    %v139 = vadd.f32 %v97, %v123
    %v140 = vadd.f32 %v98, %v124
    %s141 = scalar_lea.vmem %s1, 4
    %v142 = vld [vmem:[%s141] sm:$0x1]
    %v143 = vperm.slane %v142, 0
    %v144 = vmul.f32 %v28, %v143
    %v145 = vmul.f32 %v29, %v143
    %v146 = vmul.f32 %v30, %v143
    %v147 = vmul.f32 %v31, %v143
    %v148 = vmul.f32 %v34, %v143
    %v149 = vmul.f32 %v35, %v143
    %v150 = vmul.f32 %v36, %v143
    %v151 = vmul.f32 %v37, %v143
    %v152 = vadd.f32 %v133, %v144
    %v153 = vadd.f32 %v134, %v145
    %v154 = vadd.f32 %v135, %v146
    %v155 = vadd.f32 %v136, %v147
    %v156 = vadd.f32 %v137, %v148
    %v157 = vadd.f32 %v138, %v149
    %v158 = vadd.f32 %v139, %v150
    %v159 = vadd.f32 %v140, %v151
    %v160 = vld [vmem:[%s141 + $0x1] sm:$0x1]
    %v161 = vperm.slane %v160, 0
    %v162 = vmul.f32 %v28, %v161
    %v163 = vmul.f32 %v29, %v161
    %v164 = vmul.f32 %v30, %v161
    %v165 = vmul.f32 %v31, %v161
    %v166 = vmul.f32 %v34, %v161
    %v167 = vmul.f32 %v35, %v161
    %v168 = vmul.f32 %v36, %v161
    %v169 = vmul.f32 %v37, %v161
    %v178 = vrot.slane %v162, 1
    %v179 = vrot.slane %v163, 1
    %v180 = vrot.slane %v164, 1
    %v181 = vrot.slane %v165, 1
    %v182 = vrot.slane %v166, 1
    %v183 = vrot.slane %v167, 1
    %v184 = vrot.slane %v168, 1
    %v185 = vrot.slane %v169, 1
    %v194 = vadd.f32 %v152, %v178
    %v195 = vadd.f32 %v153, %v179
    %v196 = vadd.f32 %v154, %v180
    %v197 = vadd.f32 %v155, %v181
    %v198 = vadd.f32 %v156, %v182
    %v199 = vadd.f32 %v157, %v183
    %v200 = vadd.f32 %v158, %v184
    %v201 = vadd.f32 %v159, %v185
    %v202 = vld [vmem:[%s141 + $0x2] sm:$0x1]
    %v203 = vperm.slane %v202, 0
    %v204 = vmul.f32 %v28, %v203
    %v205 = vmul.f32 %v29, %v203
    %v206 = vmul.f32 %v30, %v203
    %v207 = vmul.f32 %v31, %v203
    %v208 = vmul.f32 %v34, %v203
    %v209 = vmul.f32 %v35, %v203
    %v210 = vmul.f32 %v36, %v203
    %v211 = vmul.f32 %v37, %v203
    %v220 = vrot.slane %v204, 2
    %v221 = vrot.slane %v205, 2
    %v222 = vrot.slane %v206, 2
    %v223 = vrot.slane %v207, 2
    %v224 = vrot.slane %v208, 2
    %v225 = vrot.slane %v209, 2
    %v226 = vrot.slane %v210, 2
    %v227 = vrot.slane %v211, 2
    %v236 = vadd.f32 %v194, %v220
    %v237 = vadd.f32 %v195, %v221
    %v238 = vadd.f32 %v196, %v222
    %v239 = vadd.f32 %v197, %v223
    %v240 = vadd.f32 %v198, %v224
    %v241 = vadd.f32 %v199, %v225
    %v242 = vadd.f32 %v200, %v226
    %v243 = vadd.f32 %v201, %v227
    %s244 = scalar_lea.vmem %s1, 8
    %v245 = vld [vmem:[%s244] sm:$0x1]
    %v246 = vperm.slane %v245, 0
    %v247 = vmul.f32 %v29, %v246
    %v248 = vmul.f32 %v30, %v246
    %v249 = vmul.f32 %v31, %v246
    %v250 = vmul.f32 %v32, %v246
    %v251 = vmul.f32 %v35, %v246
    %v252 = vmul.f32 %v36, %v246
    %v253 = vmul.f32 %v37, %v246
    %v254 = vmul.f32 %v38, %v246
    %v255 = vadd.f32 %v236, %v247
    %v256 = vadd.f32 %v237, %v248
    %v257 = vadd.f32 %v238, %v249
    %v258 = vadd.f32 %v239, %v250
    %v259 = vadd.f32 %v240, %v251
    %v260 = vadd.f32 %v241, %v252
    %v261 = vadd.f32 %v242, %v253
    %v262 = vadd.f32 %v243, %v254
    %v263 = vld [vmem:[%s244 + $0x1] sm:$0x1]
    %v264 = vperm.slane %v263, 0
    %v265 = vmul.f32 %v29, %v264
    %v266 = vmul.f32 %v30, %v264
    %v267 = vmul.f32 %v31, %v264
    %v268 = vmul.f32 %v32, %v264
    %v269 = vmul.f32 %v35, %v264
    %v270 = vmul.f32 %v36, %v264
    %v271 = vmul.f32 %v37, %v264
    %v272 = vmul.f32 %v38, %v264
    %v281 = vrot.slane %v265, 1
    %v282 = vrot.slane %v266, 1
    %v283 = vrot.slane %v267, 1
    %v284 = vrot.slane %v268, 1
    %v285 = vrot.slane %v269, 1
    %v286 = vrot.slane %v270, 1
    %v287 = vrot.slane %v271, 1
    %v288 = vrot.slane %v272, 1
    %v297 = vadd.f32 %v255, %v281
    %v298 = vadd.f32 %v256, %v282
    %v299 = vadd.f32 %v257, %v283
    %v300 = vadd.f32 %v258, %v284
    %v301 = vadd.f32 %v259, %v285
    %v302 = vadd.f32 %v260, %v286
    %v303 = vadd.f32 %v261, %v287
    %v304 = vadd.f32 %v262, %v288
    %v305 = vld [vmem:[%s244 + $0x2] sm:$0x1]
    %v306 = vperm.slane %v305, 0
    %v307 = vmul.f32 %v29, %v306
    %v308 = vmul.f32 %v30, %v306
    %v309 = vmul.f32 %v31, %v306
    %v310 = vmul.f32 %v32, %v306
    %v311 = vmul.f32 %v35, %v306
    %v312 = vmul.f32 %v36, %v306
    %v313 = vmul.f32 %v37, %v306
    %v314 = vmul.f32 %v38, %v306
    %v323 = vrot.slane %v307, 2
    %v324 = vrot.slane %v308, 2
    %v325 = vrot.slane %v309, 2
    %v326 = vrot.slane %v310, 2
    %v327 = vrot.slane %v311, 2
    %v328 = vrot.slane %v312, 2
    %v329 = vrot.slane %v313, 2
    %v330 = vrot.slane %v314, 2
    %v339 = vadd.f32 %v297, %v323
    %v340 = vadd.f32 %v298, %v324
    %v341 = vadd.f32 %v299, %v325
    %v342 = vadd.f32 %v300, %v326
    %v343 = vadd.f32 %v301, %v327
    %v344 = vadd.f32 %v302, %v328
    %v345 = vadd.f32 %v303, %v329
    %v346 = vadd.f32 %v304, %v330
    %v347 = vld [vmem:[%s2] sm:$0x1]
    %v349 = vperm.slane %v347, 0
    %v351 = vmul.f32 %v339, %v349
    %v352 = vmul.f32 %v340, %v349
    %v353 = vmul.f32 %v341, %v349
    %v354 = vmul.f32 %v342, %v349
    %v355 = vmul.f32 %v343, %v349
    %v356 = vmul.f32 %v344, %v349
    %v357 = vmul.f32 %v345, %v349
    %v358 = vmul.f32 %v346, %v349
    %v359 = vld [vmem:[%s3] sm:$0x1]
    %v361 = vperm.slane %v359, 0
    %v363 = vadd.f32 %v351, %v361
    %v364 = vadd.f32 %v352, %v361
    %v365 = vadd.f32 %v353, %v361
    %v366 = vadd.f32 %v354, %v361
    %v367 = vadd.f32 %v355, %v361
    %v368 = vadd.f32 %v356, %v361
    %v369 = vadd.f32 %v357, %v361
    %v370 = vadd.f32 %v358, %v361
    %v371 = vsub.f32 0.0, %v363
    %v372 = vsub.f32 0.0, %v364
    %v373 = vsub.f32 0.0, %v365
    %v374 = vsub.f32 0.0, %v366
    %v375 = vsub.f32 0.0, %v367
    %v376 = vsub.f32 0.0, %v368
    %v377 = vsub.f32 0.0, %v369
    %v378 = vsub.f32 0.0, %v370
    %v379 = vmul.f32 %v371, 1.442695
    %v380 = vpow.pop %v379
    %v381 = vmul.f32 %v372, 1.442695
    %v382 = vpow.pop %v381
    %v383 = vmul.f32 %v373, 1.442695
    %v384 = vpow.pop %v383
    %v385 = vmul.f32 %v374, 1.442695
    %v386 = vpow.pop %v385
    %v387 = vmul.f32 %v375, 1.442695
    %v388 = vpow.pop %v387
    %v389 = vmul.f32 %v376, 1.442695
    %v390 = vpow.pop %v389
    %v391 = vmul.f32 %v377, 1.442695
    %v392 = vpow.pop %v391
    %v393 = vmul.f32 %v378, 1.442695
    %v394 = vpow.pop %v393
    %v395 = vadd.f32 %v380, 1.0
    %v396 = vadd.f32 %v382, 1.0
    %v397 = vadd.f32 %v384, 1.0
    %v398 = vadd.f32 %v386, 1.0
    %v399 = vadd.f32 %v388, 1.0
    %v400 = vadd.f32 %v390, 1.0
    %v401 = vadd.f32 %v392, 1.0
    %v402 = vadd.f32 %v394, 1.0
    %v403 = vrcp.pop %v395
    %v404 = vmul.f32 %v395, %v403
    %v405 = vsub.f32 1.0, %v404
    %v406 = vmul.f32 %v403, %v405
    %v407 = vadd.f32 %v403, %v406
    %vm408 = vweird.f32 %v395
    %vm409 = vweird.f32 %v403
    %vm410 = vmor %vm408, %vm409
    %v411 = vsel %vm410, %v403, %v407
    %v412 = vand.u32 2147483647, %v395
    %vm413 = vcmp.eq.f32.partialorder %v412, 8.507059e+37
    %v414 = vand.u32 %v395, 2147483648
    %v415 = vor.u32 1.1754944e-38, %v414
    %v416 = vsel %vm413, %v415, %v411
    %v417 = vmul.f32 1.0, %v416
    %v418 = vrcp.pop %v396
    %v419 = vmul.f32 %v396, %v418
    %v420 = vsub.f32 1.0, %v419
    %v421 = vmul.f32 %v418, %v420
    %v422 = vadd.f32 %v418, %v421
    %vm423 = vweird.f32 %v396
    %vm424 = vweird.f32 %v418
    %vm425 = vmor %vm423, %vm424
    %v426 = vsel %vm425, %v418, %v422
    %v427 = vand.u32 2147483647, %v396
    %vm428 = vcmp.eq.f32.partialorder %v427, 8.507059e+37
    %v429 = vand.u32 %v396, 2147483648
    %v430 = vor.u32 1.1754944e-38, %v429
    %v431 = vsel %vm428, %v430, %v426
    %v432 = vmul.f32 1.0, %v431
    %v433 = vrcp.pop %v397
    %v434 = vmul.f32 %v397, %v433
    %v435 = vsub.f32 1.0, %v434
    %v436 = vmul.f32 %v433, %v435
    %v437 = vadd.f32 %v433, %v436
    %vm438 = vweird.f32 %v397
    %vm439 = vweird.f32 %v433
    %vm440 = vmor %vm438, %vm439
    %v441 = vsel %vm440, %v433, %v437
    %v442 = vand.u32 2147483647, %v397
    %vm443 = vcmp.eq.f32.partialorder %v442, 8.507059e+37
    %v444 = vand.u32 %v397, 2147483648
    %v445 = vor.u32 1.1754944e-38, %v444
    %v446 = vsel %vm443, %v445, %v441
    %v447 = vmul.f32 1.0, %v446
    %v448 = vrcp.pop %v398
    %v449 = vmul.f32 %v398, %v448
    %v450 = vsub.f32 1.0, %v449
    %v451 = vmul.f32 %v448, %v450
    %v452 = vadd.f32 %v448, %v451
    %vm453 = vweird.f32 %v398
    %vm454 = vweird.f32 %v448
    %vm455 = vmor %vm453, %vm454
    %v456 = vsel %vm455, %v448, %v452
    %v457 = vand.u32 2147483647, %v398
    %vm458 = vcmp.eq.f32.partialorder %v457, 8.507059e+37
    %v459 = vand.u32 %v398, 2147483648
    %v460 = vor.u32 1.1754944e-38, %v459
    %v461 = vsel %vm458, %v460, %v456
    %v462 = vmul.f32 1.0, %v461
    %v463 = vrcp.pop %v399
    %v464 = vmul.f32 %v399, %v463
    %v465 = vsub.f32 1.0, %v464
    %v466 = vmul.f32 %v463, %v465
    %v467 = vadd.f32 %v463, %v466
    %vm468 = vweird.f32 %v399
    %vm469 = vweird.f32 %v463
    %vm470 = vmor %vm468, %vm469
    %v471 = vsel %vm470, %v463, %v467
    %v472 = vand.u32 2147483647, %v399
    %vm473 = vcmp.eq.f32.partialorder %v472, 8.507059e+37
    %v474 = vand.u32 %v399, 2147483648
    %v475 = vor.u32 1.1754944e-38, %v474
    %v476 = vsel %vm473, %v475, %v471
    %v477 = vmul.f32 1.0, %v476
    %v478 = vrcp.pop %v400
    %v479 = vmul.f32 %v400, %v478
    %v480 = vsub.f32 1.0, %v479
    %v481 = vmul.f32 %v478, %v480
    %v482 = vadd.f32 %v478, %v481
    %vm483 = vweird.f32 %v400
    %vm484 = vweird.f32 %v478
    %vm485 = vmor %vm483, %vm484
    %v486 = vsel %vm485, %v478, %v482
    %v487 = vand.u32 2147483647, %v400
    %vm488 = vcmp.eq.f32.partialorder %v487, 8.507059e+37
    %v489 = vand.u32 %v400, 2147483648
    %v490 = vor.u32 1.1754944e-38, %v489
    %v491 = vsel %vm488, %v490, %v486
    %v492 = vmul.f32 1.0, %v491
    %v493 = vrcp.pop %v401
    %v494 = vmul.f32 %v401, %v493
    %v495 = vsub.f32 1.0, %v494
    %v496 = vmul.f32 %v493, %v495
    %v497 = vadd.f32 %v493, %v496
    %vm498 = vweird.f32 %v401
    %vm499 = vweird.f32 %v493
    %vm500 = vmor %vm498, %vm499
    %v501 = vsel %vm500, %v493, %v497
    %v502 = vand.u32 2147483647, %v401
    %vm503 = vcmp.eq.f32.partialorder %v502, 8.507059e+37
    %v504 = vand.u32 %v401, 2147483648
    %v505 = vor.u32 1.1754944e-38, %v504
    %v506 = vsel %vm503, %v505, %v501
    %v507 = vmul.f32 1.0, %v506
    %v508 = vrcp.pop %v402
    %v509 = vmul.f32 %v402, %v508
    %v510 = vsub.f32 1.0, %v509
    %v511 = vmul.f32 %v508, %v510
    %v512 = vadd.f32 %v508, %v511
    %vm513 = vweird.f32 %v402
    %vm514 = vweird.f32 %v508
    %vm515 = vmor %vm513, %vm514
    %v516 = vsel %vm515, %v508, %v512
    %v517 = vand.u32 2147483647, %v402
    %vm518 = vcmp.eq.f32.partialorder %v517, 8.507059e+37
    %v519 = vand.u32 %v402, 2147483648
    %v520 = vor.u32 1.1754944e-38, %v519
    %v521 = vsel %vm518, %v520, %v516
    %v522 = vmul.f32 1.0, %v521
    %v523 = vmul.f32 %v363, %v417
    %v524 = vmul.f32 %v364, %v432
    %v525 = vmul.f32 %v365, %v447
    %v526 = vmul.f32 %v366, %v462
    %v527 = vmul.f32 %v367, %v477
    %v528 = vmul.f32 %v368, %v492
    %v529 = vmul.f32 %v369, %v507
    %v530 = vmul.f32 %v370, %v522
    %v531 = vld [vmem:[%s4] sm:$0xff]
    %v532 = vld [vmem:[%s4 + $0x8] sm:$0xff]
    %v533 = vld [vmem:[%s4 + $0x10] sm:$0xff]
    %v534 = vld [vmem:[%s4 + $0x18] sm:$0xff]
    %v535 = vld [vmem:[%s4 + $0x20] sm:$0xff]
    %v536 = vld [vmem:[%s4 + $0x28] sm:$0xff]
    %v537 = vld [vmem:[%s4 + $0x30] sm:$0xff]
    %v538 = vld [vmem:[%s4 + $0x38] sm:$0xff]
    %v539 = vld [vmem:[%s4 + $0x40] sm:$0xff]
    %v540 = vld [vmem:[%s4 + $0x48] sm:$0xff]
    %v541 = vld [vmem:[%s4 + $0x50] sm:$0xff]
    %v542 = vld [vmem:[%s4 + $0x58] sm:$0xff]
    %v543 = vld [vmem:[%s4 + $0x60] sm:$0xff]
    %v544 = vld [vmem:[%s4 + $0x68] sm:$0xff]
    %v545 = vld [vmem:[%s4 + $0x70] sm:$0xff]
    %v546 = vld [vmem:[%s4 + $0x78] sm:$0xff]
    %555 = vst [vmem:[#allocation1] ss:$2 sm:$0xff] %v523
    %s556 = scalar_lea.vmem [#allocation1], 1
    %557 = vst [vmem:[%s556] ss:$2 sm:$0xff] %v524
    %s558 = scalar_lea.vmem [#allocation1], 16
    %559 = vst [vmem:[%s558] ss:$2 sm:$0xff] %v525
    %s560 = scalar_lea.vmem [#allocation1], 17
    %561 = vst [vmem:[%s560] ss:$2 sm:$0xff] %v526
    %s562 = scalar_lea.vmem [#allocation1], 32
    %563 = vst [vmem:[%s562] ss:$2 sm:$0xff] %v527
    %s564 = scalar_lea.vmem [#allocation1], 33
    %565 = vst [vmem:[%s564] ss:$2 sm:$0xff] %v528
    %s566 = scalar_lea.vmem [#allocation1], 48
    %567 = vst [vmem:[%s566] ss:$2 sm:$0xff] %v529
    %s568 = scalar_lea.vmem [#allocation1], 49
    %569 = vst [vmem:[%s568] ss:$2 sm:$0xff] %v530
    %v570 = vld.sshfl [vmem:[#allocation1] sm:$0xff pattern:$0x75316420]
    %v571 = vld.sshfl [vmem:[#allocation1 + $0x10] sm:$0xff pattern:$0x75316420]
    %v572 = vld.sshfl [vmem:[#allocation1 + $0x20] sm:$0xff pattern:$0x75316420]
    %v573 = vld.sshfl [vmem:[#allocation1 + $0x30] sm:$0xff pattern:$0x75316420]
    %578 = vmatpush.msra.mxu0 %v546
    %579 = vmatpush.msra.mxu0 %v545
    %580 = vmatpush.msra.mxu0 %v544
    %581 = vmatpush.msra.mxu0 %v543
    %582 = vmatpush.msra.mxu0 %v542
    %583 = vmatpush.msra.mxu0 %v541
    %584 = vmatpush.msra.mxu0 %v540
    %585 = vmatpush.msra.mxu0 %v539
    %586 = vmatpush.msra.mxu0 %v538
    %587 = vmatpush.msra.mxu0 %v537
    %588 = vmatpush.msra.mxu0 %v536
    %589 = vmatpush.msra.mxu0 %v535
    %590 = vmatpush.msra.mxu0 %v534
    %591 = vmatpush.msra.mxu0 %v533
    %592 = vmatpush.msra.mxu0 %v532
    %593 = vmatpush.msra.mxu0 %v531
    %594 = vmatmul.f32.gmra.mxu0 %v570
    %v595 = vpop.f32.mrf.mxu0
    %v596 = vadd.f32 0.0, %v595
    %597 = vmatmul.f32.gmra.mxu0 %v571
    %v598 = vpop.f32.mrf.mxu0
    %v599 = vadd.f32 0.0, %v598
    %600 = vmatmul.f32.gmra.mxu0 %v572
    %v601 = vpop.f32.mrf.mxu0
    %v602 = vadd.f32 0.0, %v601
    %603 = vmatmul.f32.gmra.mxu0 %v573
    %v604 = vpop.f32.mrf.mxu0
    %v605 = vadd.f32 0.0, %v604
    %606 = vdwg.mxu0
    %v607 = vld [vmem:[%s5] sm:$0x1]
    %v609 = vperm.slane %v607, 0
    %v611 = vmul.f32 %v596, %v609
    %v612 = vmul.f32 %v599, %v609
    %v613 = vmul.f32 %v602, %v609
    %v614 = vmul.f32 %v605, %v609
    %v615 = vld [vmem:[%s6] sm:$0x1]
    %v617 = vperm.slane %v615, 0
    %v619 = vadd.f32 %v611, %v617
    %v620 = vadd.f32 %v612, %v617
    %v621 = vadd.f32 %v613, %v617
    %v622 = vadd.f32 %v614, %v617
    %v623 = vsub.f32 0.0, %v619
    %v624 = vsub.f32 0.0, %v620
    %v625 = vsub.f32 0.0, %v621
    %v626 = vsub.f32 0.0, %v622
    %v627 = vmul.f32 %v623, 1.442695
    %v628 = vpow.pop %v627
    %v629 = vmul.f32 %v624, 1.442695
    %v630 = vpow.pop %v629
    %v631 = vmul.f32 %v625, 1.442695
    %v632 = vpow.pop %v631
    %v633 = vmul.f32 %v626, 1.442695
    %v634 = vpow.pop %v633
    %v635 = vadd.f32 %v628, 1.0
    %v636 = vadd.f32 %v630, 1.0
    %v637 = vadd.f32 %v632, 1.0
    %v638 = vadd.f32 %v634, 1.0
    %v639 = vrcp.pop %v635
    %v640 = vmul.f32 %v635, %v639
    %v641 = vsub.f32 1.0, %v640
    %v642 = vmul.f32 %v639, %v641
    %v643 = vadd.f32 %v639, %v642
    %vm644 = vweird.f32 %v635
    %vm645 = vweird.f32 %v639
    %vm646 = vmor %vm644, %vm645
    %v647 = vsel %vm646, %v639, %v643
    %v648 = vand.u32 2147483647, %v635
    %vm649 = vcmp.eq.f32.partialorder %v648, 8.507059e+37
    %v650 = vand.u32 %v635, 2147483648
    %v651 = vor.u32 1.1754944e-38, %v650
    %v652 = vsel %vm649, %v651, %v647
    %v653 = vmul.f32 1.0, %v652
    %v654 = vrcp.pop %v636
    %v655 = vmul.f32 %v636, %v654
    %v656 = vsub.f32 1.0, %v655
    %v657 = vmul.f32 %v654, %v656
    %v658 = vadd.f32 %v654, %v657
    %vm659 = vweird.f32 %v636
    %vm660 = vweird.f32 %v654
    %vm661 = vmor %vm659, %vm660
    %v662 = vsel %vm661, %v654, %v658
    %v663 = vand.u32 2147483647, %v636
    %vm664 = vcmp.eq.f32.partialorder %v663, 8.507059e+37
    %v665 = vand.u32 %v636, 2147483648
    %v666 = vor.u32 1.1754944e-38, %v665
    %v667 = vsel %vm664, %v666, %v662
    %v668 = vmul.f32 1.0, %v667
    %v669 = vrcp.pop %v637
    %v670 = vmul.f32 %v637, %v669
    %v671 = vsub.f32 1.0, %v670
    %v672 = vmul.f32 %v669, %v671
    %v673 = vadd.f32 %v669, %v672
    %vm674 = vweird.f32 %v637
    %vm675 = vweird.f32 %v669
    %vm676 = vmor %vm674, %vm675
    %v677 = vsel %vm676, %v669, %v673
    %v678 = vand.u32 2147483647, %v637
    %vm679 = vcmp.eq.f32.partialorder %v678, 8.507059e+37
    %v680 = vand.u32 %v637, 2147483648
    %v681 = vor.u32 1.1754944e-38, %v680
    %v682 = vsel %vm679, %v681, %v677
    %v683 = vmul.f32 1.0, %v682
    %v684 = vrcp.pop %v638
    %v685 = vmul.f32 %v638, %v684
    %v686 = vsub.f32 1.0, %v685
    %v687 = vmul.f32 %v684, %v686
    %v688 = vadd.f32 %v684, %v687
    %vm689 = vweird.f32 %v638
    %vm690 = vweird.f32 %v684
    %vm691 = vmor %vm689, %vm690
    %v692 = vsel %vm691, %v684, %v688
    %v693 = vand.u32 2147483647, %v638
    %vm694 = vcmp.eq.f32.partialorder %v693, 8.507059e+37
    %v695 = vand.u32 %v638, 2147483648
    %v696 = vor.u32 1.1754944e-38, %v695
    %v697 = vsel %vm694, %v696, %v692
    %v698 = vmul.f32 1.0, %v697
    %v699 = vmul.f32 %v619, %v653
    %v700 = vmul.f32 %v620, %v668
    %v701 = vmul.f32 %v621, %v683
    %v702 = vmul.f32 %v622, %v698
    %vm703 = vcmask 523264
    %704 = vst.msk [vmem:[#allocation2] sm:$0xff] %vm703, %v699
    %705 = vst.msk [vmem:[#allocation2 + $0x8] sm:$0xff] %vm703, %v700
    %706 = vst.msk [vmem:[#allocation2 + $0x10] sm:$0xff] %vm703, %v701
    %707 = vst.msk [vmem:[#allocation2 + $0x18] sm:$0xff] %vm703, %v702
    // Predicated region
    $region30: #{a_call__.3} parent=1 // pred_check
      _
    $region31: #{a_call__.3} parent=1 // pred_check_branch
      %709 = sbr.rel (0) target = $region33
    $region32: #{a_call__.3} parent=1 // pred_region
      %711 = vsyncadd [#allocation3], 0
      %s712 = sshll.u32 [#allocation2], 4
      %s713 = int_to_ptr.vmem [resolvable:$true] %s712
      %s714 = sshll.u32 %s7, 4
      %s715 = int_to_ptr.hbm [resolvable:$true] %s714
      %720 = dma.vmem_to_hbm [thread:$0]  %s713, 512, %s715, [#allocation3], 128, 128, 8
    $region33: #{a_call__.3} parent=1 // pred_fallthru
      _
    // Predicated region
    $region34: #{a_call__.3} parent=1 // pred_check
      _
    $region35: #{a_call__.3} parent=1 // pred_check_branch
      %722 = sbr.rel (0) target = $region37
    $region36: #{a_call__.3} parent=1 // pred_region
      %724 = dma.done [#allocation3], 512
    $region37: #{a_call__.3} parent=1 // pred_fallthru
      _
    %725 = vsyncpa [#allocation3], 1

// kernel: a_call__.2
$region0: #{a_call__.2}
  #allocation0 [shape = 'u32[]', space=smem, size = 0x4, offset = 0x4, fixed_abs, tag = 'smem constant byte address 0x4 - core index']
  #allocation1 [shape = 'u32[72,128]{1,0:T(1,128)}', space=vmem, size = 0x9000, scoped, tag = 'internal scratch']
  %s0 = inlined_call_operand.vmem [shape: f32[32,128], index: 0, kind: input, shape index: {}]
  %s1 = inlined_call_operand.hbm [shape: f32[3,128,384], index: 1, kind: input, shape index: {}]
  %s2 = inlined_call_operand.vmem [shape: f32[3,384], index: 2, kind: input, shape index: {}]
  %s3 = inlined_call_operand.hbm [shape: f32[3,128,128], index: 3, kind: input, shape index: {}]
  %s4 = inlined_call_operand.vmem [shape: f32[3,128], index: 4, kind: input, shape index: {}]
  %s5 = inlined_call_operand.vmem [shape: f32[3,128], index: 5, kind: input, shape index: {}]
  %s6 = inlined_call_operand.vmem [shape: f32[3,128], index: 6, kind: input, shape index: {}]
  %s7 = inlined_call_operand.hbm [shape: f32[3,128,128], index: 7, kind: input, shape index: {}]
  %s8 = inlined_call_operand.vmem [shape: f32[3,128], index: 8, kind: input, shape index: {}]
  %s9 = inlined_call_operand.hbm [shape: f32[3,128,128], index: 9, kind: input, shape index: {}]
  %s10 = inlined_call_operand.vmem [shape: f32[3,128], index: 10, kind: input, shape index: {}]
  %s11 = inlined_call_operand.vmem [shape: f32[3,128], index: 11, kind: input, shape index: {}]
  %s12 = inlined_call_operand.vmem [shape: f32[3,128], index: 12, kind: input, shape index: {}]
  %s13 = inlined_call_operand.vmem [shape: f32[32,128], index: 13, kind: output, shape index: {}]
  %s14 = sld [smem:[#allocation0]]
  $region78: #{a_call__.2} parent=0
    _
  %s16 = ssub.s32 1, %s14
  %s17 = scalar_select 0, %s16, %s14
  $region1: #{a_call__.2} parent=0
    #allocation2 [shape = 'u8[589824]{0}', space=vmem, size = 0x90000, scoped, tag = 'input window, operand 1, single buffered']
    #allocation3 [shape = 's32[1]{0}', space=sflag, size = 0x4, scoped, tag = 'scoped memory for a_call__.2']
    #allocation4 [shape = 'u8[196608]{0}', space=vmem, size = 0x30000, scoped, tag = 'input window, operand 3, single buffered']
    #allocation5 [shape = 's32[1]{0}', space=sflag, size = 0x4, scoped, tag = 'scoped memory for a_call__.2']
    #allocation6 [shape = 'u8[196608]{0}', space=vmem, size = 0x30000, scoped, tag = 'input window, operand 7, single buffered']
    #allocation7 [shape = 'u8[196608]{0}', space=vmem, size = 0x30000, scoped, tag = 'input window, operand 9, single buffered']
    #allocation8 [shape = 's32[1]{0}', space=sflag, size = 0x4, scoped, tag = 'scoped memory for a_call__.2']
    %18 = vsyncpa [#allocation3], 0
    %19 = vsyncpa [#allocation5], 0
    %20 = vsyncpa [#allocation8], 0
    // Predicated region
    $region2: #{a_call__.2} parent=1 // pred_check
      _
    $region3: #{a_call__.2} parent=1 // pred_check_branch
      %22 = sbr.rel (0) target = $region5
    $region4: #{a_call__.2} parent=1 // pred_region
      _
    $region5: #{a_call__.2} parent=1 // pred_fallthru
      _
    // Predicated region
    $region6: #{a_call__.2} parent=1 // pred_check
      _
    $region7: #{a_call__.2} parent=1 // pred_check_branch
      %24 = sbr.rel (0) target = $region9
    $region8: #{a_call__.2} parent=1 // pred_region
      %26 = vsyncadd [#allocation3], 0
      %s27 = sshll.u32 %s1, 4
      %s28 = int_to_ptr.hbm [resolvable:$true] %s27
      %s29 = sshll.u32 [#allocation2], 4
      %s30 = int_to_ptr.vmem [resolvable:$true] %s29
      %35 = dma.hbm_to_vmem [thread:$0]  %s28, 18432, %s30, [#allocation3], 384, 384, 24
    $region9: #{a_call__.2} parent=1 // pred_fallthru
      _
    // Predicated region
    $region10: #{a_call__.2} parent=1 // pred_check
      _
    $region11: #{a_call__.2} parent=1 // pred_check_branch
      %37 = sbr.rel (0) target = $region13
    $region12: #{a_call__.2} parent=1 // pred_region
      _
    $region13: #{a_call__.2} parent=1 // pred_fallthru
      _
    // Predicated region
    $region14: #{a_call__.2} parent=1 // pred_check
      _
    $region15: #{a_call__.2} parent=1 // pred_check_branch
      %39 = sbr.rel (0) target = $region17
    $region16: #{a_call__.2} parent=1 // pred_region
      %41 = vsyncadd [#allocation5], 0
      %s42 = sshll.u32 %s3, 4
      %s43 = int_to_ptr.hbm [resolvable:$true] %s42
      %s44 = sshll.u32 [#allocation4], 4
      %s45 = int_to_ptr.vmem [resolvable:$true] %s44
      %50 = dma.hbm_to_vmem [thread:$0]  %s43, 6144, %s45, [#allocation5], 128, 128, 8
    $region17: #{a_call__.2} parent=1 // pred_fallthru
      _
    // Predicated region
    $region18: #{a_call__.2} parent=1 // pred_check
      _
    $region19: #{a_call__.2} parent=1 // pred_check_branch
      %52 = sbr.rel (0) target = $region21
    $region20: #{a_call__.2} parent=1 // pred_region
      _
    $region21: #{a_call__.2} parent=1 // pred_fallthru
      _
    // Predicated region
    $region22: #{a_call__.2} parent=1 // pred_check
      _
    $region23: #{a_call__.2} parent=1 // pred_check_branch
      %54 = sbr.rel (0) target = $region25
    $region24: #{a_call__.2} parent=1 // pred_region
      _
    $region25: #{a_call__.2} parent=1 // pred_fallthru
      _
    // Predicated region
    $region26: #{a_call__.2} parent=1 // pred_check
      _
    $region27: #{a_call__.2} parent=1 // pred_check_branch
      %56 = sbr.rel (0) target = $region29
    $region28: #{a_call__.2} parent=1 // pred_region
      _
    $region29: #{a_call__.2} parent=1 // pred_fallthru
      _
    // Predicated region
    $region30: #{a_call__.2} parent=1 // pred_check
      _
    $region31: #{a_call__.2} parent=1 // pred_check_branch
      %58 = sbr.rel (0) target = $region33
    $region32: #{a_call__.2} parent=1 // pred_region
      %60 = vsyncadd [#allocation5], 0
      %s61 = sshll.u32 %s7, 4
      %s62 = int_to_ptr.hbm [resolvable:$true] %s61
      %s63 = sshll.u32 [#allocation6], 4
      %s64 = int_to_ptr.vmem [resolvable:$true] %s63
      %69 = dma.hbm_to_vmem [thread:$0]  %s62, 6144, %s64, [#allocation5], 128, 128, 8
    $region33: #{a_call__.2} parent=1 // pred_fallthru
      _
    // Predicated region
    $region34: #{a_call__.2} parent=1 // pred_check
      _
    $region35: #{a_call__.2} parent=1 // pred_check_branch
      %71 = sbr.rel (0) target = $region37
    $region36: #{a_call__.2} parent=1 // pred_region
      _
    $region37: #{a_call__.2} parent=1 // pred_fallthru
      _
    // Predicated region
    $region38: #{a_call__.2} parent=1 // pred_check
      _
    $region39: #{a_call__.2} parent=1 // pred_check_branch
      %73 = sbr.rel (0) target = $region41
    $region40: #{a_call__.2} parent=1 // pred_region
      %75 = vsyncadd [#allocation8], 0
      %s76 = sshll.u32 %s9, 4
      %s77 = int_to_ptr.hbm [resolvable:$true] %s76
      %s78 = sshll.u32 [#allocation7], 4
      %s79 = int_to_ptr.vmem [resolvable:$true] %s78
      %84 = dma.hbm_to_vmem [thread:$0]  %s77, 6144, %s79, [#allocation8], 128, 128, 8
    $region41: #{a_call__.2} parent=1 // pred_fallthru
      _
    // Predicated region
    $region42: #{a_call__.2} parent=1 // pred_check
      _
    $region43: #{a_call__.2} parent=1 // pred_check_branch
      %86 = sbr.rel (0) target = $region45
    $region44: #{a_call__.2} parent=1 // pred_region
      _
    $region45: #{a_call__.2} parent=1 // pred_fallthru
      _
    // Predicated region
    $region46: #{a_call__.2} parent=1 // pred_check
      _
    $region47: #{a_call__.2} parent=1 // pred_check_branch
      %88 = sbr.rel (0) target = $region49
    $region48: #{a_call__.2} parent=1 // pred_region
      _
    $region49: #{a_call__.2} parent=1 // pred_fallthru
      _
    // Predicated region
    $region50: #{a_call__.2} parent=1 // pred_check
      _
    $region51: #{a_call__.2} parent=1 // pred_check_branch
      %90 = sbr.rel (0) target = $region53
    $region52: #{a_call__.2} parent=1 // pred_region
      _
    $region53: #{a_call__.2} parent=1 // pred_fallthru
      _
    // Predicated region
    $region54: #{a_call__.2} parent=1 // pred_check
      _
    $region55: #{a_call__.2} parent=1 // pred_check_branch
      %92 = sbr.rel (0) target = $region57
    $region56: #{a_call__.2} parent=1 // pred_region
      %94 = dma.done [#allocation3], 18432
    $region57: #{a_call__.2} parent=1 // pred_fallthru
      _
    // Predicated region
    $region58: #{a_call__.2} parent=1 // pred_check
      _
    $region59: #{a_call__.2} parent=1 // pred_check_branch
      %96 = sbr.rel (0) target = $region61
    $region60: #{a_call__.2} parent=1 // pred_region
      %98 = dma.done [#allocation5], 6144
    $region61: #{a_call__.2} parent=1 // pred_fallthru
      _
    // Predicated region
    $region62: #{a_call__.2} parent=1 // pred_check
      _
    $region63: #{a_call__.2} parent=1 // pred_check_branch
      %100 = sbr.rel (0) target = $region65
    $region64: #{a_call__.2} parent=1 // pred_region
      %102 = dma.done [#allocation5], 6144
    $region65: #{a_call__.2} parent=1 // pred_fallthru
      _
    // Predicated region
    $region66: #{a_call__.2} parent=1 // pred_check
      _
    $region67: #{a_call__.2} parent=1 // pred_check_branch
      %104 = sbr.rel (0) target = $region69
    $region68: #{a_call__.2} parent=1 // pred_region
      %106 = dma.done [#allocation8], 6144
    $region69: #{a_call__.2} parent=1 // pred_fallthru
      _
    %v107 = vld [vmem:[%s0] sm:$0xff]
    %v108 = vld [vmem:[%s0 + $0x8] sm:$0xff]
    %v109 = vld [vmem:[%s0 + $0x10] sm:$0xff]
    %v110 = vld [vmem:[%s0 + $0x18] sm:$0xff]
    %v111 = vld [vmem:[#allocation2] sm:$0xff]
    %v112 = vld [vmem:[#allocation2 + $0x8] sm:$0xff]
    %v113 = vld [vmem:[#allocation2 + $0x10] sm:$0xff]
    %v114 = vld [vmem:[#allocation2 + $0x18] sm:$0xff]
    %v115 = vld [vmem:[#allocation2 + $0x20] sm:$0xff]
    %v116 = vld [vmem:[#allocation2 + $0x28] sm:$0xff]
    %v117 = vld [vmem:[#allocation2 + $0x30] sm:$0xff]
    %v118 = vld [vmem:[#allocation2 + $0x38] sm:$0xff]
    %v119 = vld [vmem:[#allocation2 + $0x40] sm:$0xff]
    %v120 = vld [vmem:[#allocation2 + $0x48] sm:$0xff]
    %v121 = vld [vmem:[#allocation2 + $0x50] sm:$0xff]
    %v122 = vld [vmem:[#allocation2 + $0x58] sm:$0xff]
    %v123 = vld [vmem:[#allocation2 + $0x60] sm:$0xff]
    %v124 = vld [vmem:[#allocation2 + $0x68] sm:$0xff]
    %v125 = vld [vmem:[#allocation2 + $0x70] sm:$0xff]
    %v126 = vld [vmem:[#allocation2 + $0x78] sm:$0xff]
    %v127 = vld [vmem:[#allocation2 + $0x80] sm:$0xff]
    %v128 = vld [vmem:[#allocation2 + $0x88] sm:$0xff]
    %v129 = vld [vmem:[#allocation2 + $0x90] sm:$0xff]
    %v130 = vld [vmem:[#allocation2 + $0x98] sm:$0xff]
    %v131 = vld [vmem:[#allocation2 + $0xa0] sm:$0xff]
    %v132 = vld [vmem:[#allocation2 + $0xa8] sm:$0xff]
    %v133 = vld [vmem:[#allocation2 + $0xb0] sm:$0xff]
    %v134 = vld [vmem:[#allocation2 + $0xb8] sm:$0xff]
    %v135 = vld [vmem:[#allocation2 + $0xc0] sm:$0xff]
    %v136 = vld [vmem:[#allocation2 + $0xc8] sm:$0xff]
    %v137 = vld [vmem:[#allocation2 + $0xd0] sm:$0xff]
    %v138 = vld [vmem:[#allocation2 + $0xd8] sm:$0xff]
    %v139 = vld [vmem:[#allocation2 + $0xe0] sm:$0xff]
    %v140 = vld [vmem:[#allocation2 + $0xe8] sm:$0xff]
    %v141 = vld [vmem:[#allocation2 + $0xf0] sm:$0xff]
    %v142 = vld [vmem:[#allocation2 + $0xf8] sm:$0xff]
    %v143 = vld [vmem:[#allocation2 + $0x100] sm:$0xff]
    %v144 = vld [vmem:[#allocation2 + $0x108] sm:$0xff]
    %v145 = vld [vmem:[#allocation2 + $0x110] sm:$0xff]
    %v146 = vld [vmem:[#allocation2 + $0x118] sm:$0xff]
    %v147 = vld [vmem:[#allocation2 + $0x120] sm:$0xff]
    %v148 = vld [vmem:[#allocation2 + $0x128] sm:$0xff]
    %v149 = vld [vmem:[#allocation2 + $0x130] sm:$0xff]
    %v150 = vld [vmem:[#allocation2 + $0x138] sm:$0xff]
    %v151 = vld [vmem:[#allocation2 + $0x140] sm:$0xff]
    %v152 = vld [vmem:[#allocation2 + $0x148] sm:$0xff]
    %v153 = vld [vmem:[#allocation2 + $0x150] sm:$0xff]
    %v154 = vld [vmem:[#allocation2 + $0x158] sm:$0xff]
    %v155 = vld [vmem:[#allocation2 + $0x160] sm:$0xff]
    %v156 = vld [vmem:[#allocation2 + $0x168] sm:$0xff]
    %v157 = vld [vmem:[#allocation2 + $0x170] sm:$0xff]
    %v158 = vld [vmem:[#allocation2 + $0x178] sm:$0xff]
    %v159 = vld [vmem:[%s2] ss:$4 sm:$0x7]
    %v161 = vperm.slane %v159, 0
    %v162 = vperm.slane %v159, 1
    %v163 = vperm.slane %v159, 2
    %167 = vmatpush.msra.mxu0 %v156
    %168 = vmatpush.msra.mxu0 %v153
    %169 = vmatpush.msra.mxu0 %v150
    %170 = vmatpush.msra.mxu0 %v147
    %171 = vmatpush.msra.mxu0 %v144
    %172 = vmatpush.msra.mxu0 %v141
    %173 = vmatpush.msra.mxu0 %v138
    %174 = vmatpush.msra.mxu0 %v135
    %175 = vmatpush.msra.mxu0 %v132
    %176 = vmatpush.msra.mxu0 %v129
    %177 = vmatpush.msra.mxu0 %v126
    %178 = vmatpush.msra.mxu0 %v123
    %179 = vmatpush.msra.mxu0 %v120
    %180 = vmatpush.msra.mxu0 %v117
    %181 = vmatpush.msra.mxu0 %v114
    %182 = vmatpush.msra.mxu0 %v111
    %183 = vmatmul.f32.gmra.mxu0 %v107
    %v184 = vpop.f32.mrf.mxu0
    %v185 = vadd.f32 %v161, %v184
    %186 = vmatmul.f32.gmra.mxu0 %v108
    %v187 = vpop.f32.mrf.mxu0
    %v188 = vadd.f32 %v161, %v187
    %189 = vmatmul.f32.gmra.mxu0 %v109
    %v190 = vpop.f32.mrf.mxu0
    %v191 = vadd.f32 %v161, %v190
    %192 = vmatmul.f32.gmra.mxu0 %v110
    %v193 = vpop.f32.mrf.mxu0
    %v194 = vadd.f32 %v161, %v193
    %195 = vdwg.mxu0
    %196 = vmatpush.msra.mxu0 %v157
    %197 = vmatpush.msra.mxu0 %v154
    %198 = vmatpush.msra.mxu0 %v151
    %199 = vmatpush.msra.mxu0 %v148
    %200 = vmatpush.msra.mxu0 %v145
    %201 = vmatpush.msra.mxu0 %v142
    %202 = vmatpush.msra.mxu0 %v139
    %203 = vmatpush.msra.mxu0 %v136
    %204 = vmatpush.msra.mxu0 %v133
    %205 = vmatpush.msra.mxu0 %v130
    %206 = vmatpush.msra.mxu0 %v127
    %207 = vmatpush.msra.mxu0 %v124
    %208 = vmatpush.msra.mxu0 %v121
    %209 = vmatpush.msra.mxu0 %v118
    %210 = vmatpush.msra.mxu0 %v115
    %211 = vmatpush.msra.mxu0 %v112
    %212 = vmatmul.f32.gmra.mxu0 %v107
    %v213 = vpop.f32.mrf.mxu0
    %v214 = vadd.f32 %v162, %v213
    %215 = vmatmul.f32.gmra.mxu0 %v108
    %v216 = vpop.f32.mrf.mxu0
    %v217 = vadd.f32 %v162, %v216
    %218 = vmatmul.f32.gmra.mxu0 %v109
    %v219 = vpop.f32.mrf.mxu0
    %v220 = vadd.f32 %v162, %v219
    %221 = vmatmul.f32.gmra.mxu0 %v110
    %v222 = vpop.f32.mrf.mxu0
    %v223 = vadd.f32 %v162, %v222
    %224 = vdwg.mxu0
    %225 = vmatpush.msra.mxu0 %v158
    %226 = vmatpush.msra.mxu0 %v155
    %227 = vmatpush.msra.mxu0 %v152
    %228 = vmatpush.msra.mxu0 %v149
    %229 = vmatpush.msra.mxu0 %v146
    %230 = vmatpush.msra.mxu0 %v143
    %231 = vmatpush.msra.mxu0 %v140
    %232 = vmatpush.msra.mxu0 %v137
    %233 = vmatpush.msra.mxu0 %v134
    %234 = vmatpush.msra.mxu0 %v131
    %235 = vmatpush.msra.mxu0 %v128
    %236 = vmatpush.msra.mxu0 %v125
    %237 = vmatpush.msra.mxu0 %v122
    %238 = vmatpush.msra.mxu0 %v119
    %239 = vmatpush.msra.mxu0 %v116
    %240 = vmatpush.msra.mxu0 %v113
    %241 = vmatmul.f32.gmra.mxu0 %v107
    %v242 = vpop.f32.mrf.mxu0
    %v243 = vadd.f32 %v163, %v242
    %244 = vmatmul.f32.gmra.mxu0 %v108
    %v245 = vpop.f32.mrf.mxu0
    %v246 = vadd.f32 %v163, %v245
    %247 = vmatmul.f32.gmra.mxu0 %v109
    %v248 = vpop.f32.mrf.mxu0
    %v249 = vadd.f32 %v163, %v248
    %250 = vmatmul.f32.gmra.mxu0 %v110
    %v251 = vpop.f32.mrf.mxu0
    %v252 = vadd.f32 %v163, %v251
    %253 = vdwg.mxu0
    %v254 = vmul.f32 %v185, 0.25
    %v255 = vmul.f32 %v188, 0.25
    %v256 = vmul.f32 %v191, 0.25
    %v257 = vmul.f32 %v194, 0.25
    %v258 = vld [vmem:[#allocation4] sm:$0xff]
    %v259 = vld [vmem:[#allocation4 + $0x8] sm:$0xff]
    %v260 = vld [vmem:[#allocation4 + $0x10] sm:$0xff]
    %v261 = vld [vmem:[#allocation4 + $0x18] sm:$0xff]
    %v262 = vld [vmem:[#allocation4 + $0x20] sm:$0xff]
    %v263 = vld [vmem:[#allocation4 + $0x28] sm:$0xff]
    %v264 = vld [vmem:[#allocation4 + $0x30] sm:$0xff]
    %v265 = vld [vmem:[#allocation4 + $0x38] sm:$0xff]
    %v266 = vld [vmem:[#allocation4 + $0x40] sm:$0xff]
    %v267 = vld [vmem:[#allocation4 + $0x48] sm:$0xff]
    %v268 = vld [vmem:[#allocation4 + $0x50] sm:$0xff]
    %v269 = vld [vmem:[#allocation4 + $0x58] sm:$0xff]
    %v270 = vld [vmem:[#allocation4 + $0x60] sm:$0xff]
    %v271 = vld [vmem:[#allocation4 + $0x68] sm:$0xff]
    %v272 = vld [vmem:[#allocation4 + $0x70] sm:$0xff]
    %v273 = vld [vmem:[#allocation4 + $0x78] sm:$0xff]
    %vm274 = vcmask 130048
    %v276 = vsel %vm274, %v254, 0
    %v279 = vsel %vm274, %v255, 0
    %v282 = vsel %vm274, %v214, 0
    %v285 = vsel %vm274, %v217, 0
    %287 = vmatpush.xpose.msra.mxu0 0.0
    %288 = vmatpush.xpose.msra.mxu0 0.0
    %289 = vmatpush.xpose.msra.mxu0 0.0
    %290 = vmatpush.xpose.msra.mxu0 0.0
    %291 = vmatpush.xpose.msra.mxu0 0.0
    %292 = vmatpush.xpose.msra.mxu0 0.0
    %293 = vmatpush.xpose.msra.mxu0 0.0
    %294 = vmatpush.xpose.msra.mxu0 0.0
    %295 = vmatpush.xpose.msra.mxu0 0.0
    %296 = vmatpush.xpose.msra.mxu0 0.0
    %297 = vmatpush.xpose.msra.mxu0 0.0
    %298 = vmatpush.xpose.msra.mxu0 0.0
    %299 = vmatpush.xpose.msra.mxu0 0.0
    %300 = vmatpush.xpose.msra.mxu0 0.0
    %301 = vmatpush.xpose.msra.mxu0 %v285
    %302 = vmatpush.xpose.msra.mxu0 %v282
    %303 = vmatmul.f32.gmra.mxu0 %v276
    %v304 = vpop.f32.mrf.mxu0
    %v305 = vadd.f32 0.0, %v304
    %306 = vmatmul.f32.gmra.mxu0 %v279
    %v307 = vpop.f32.mrf.mxu0
    %v308 = vadd.f32 0.0, %v307
    %309 = vdwg.mxu0
    %v311 = vsel %vm274, %v256, 0
    %v314 = vsel %vm274, %v257, 0
    %v317 = vsel %vm274, %v220, 0
    %v320 = vsel %vm274, %v223, 0
    %322 = vmatpush.xpose.msra.mxu0 0.0
    %323 = vmatpush.xpose.msra.mxu0 0.0
    %324 = vmatpush.xpose.msra.mxu0 0.0
    %325 = vmatpush.xpose.msra.mxu0 0.0
    %326 = vmatpush.xpose.msra.mxu0 0.0
    %327 = vmatpush.xpose.msra.mxu0 0.0
    %328 = vmatpush.xpose.msra.mxu0 0.0
    %329 = vmatpush.xpose.msra.mxu0 0.0
    %330 = vmatpush.xpose.msra.mxu0 0.0
    %331 = vmatpush.xpose.msra.mxu0 0.0
    %332 = vmatpush.xpose.msra.mxu0 0.0
    %333 = vmatpush.xpose.msra.mxu0 0.0
    %334 = vmatpush.xpose.msra.mxu0 0.0
    %335 = vmatpush.xpose.msra.mxu0 0.0
    %336 = vmatpush.xpose.msra.mxu0 %v320
    %337 = vmatpush.xpose.msra.mxu0 %v317
    %338 = vmatmul.f32.gmra.mxu0 %v311
    %v339 = vpop.f32.mrf.mxu0
    %v340 = vadd.f32 0.0, %v339
    %341 = vmatmul.f32.gmra.mxu0 %v314
    %v342 = vpop.f32.mrf.mxu0
    %v343 = vadd.f32 0.0, %v342
    %344 = vdwg.mxu0
    %v345 = vsel %vm274, %v305, -inf
    %346 = vmax.xlane.f32.xlu0 %v345
    %v347 = vpop.xlane.xlu0 %346
    %v348 = vsel %vm274, %v308, -inf
    %349 = vmax.xlane.f32.xlu0 %v348
    %v350 = vpop.xlane.xlu0 %349
    %v351 = vsel %vm274, %v340, -inf
    %352 = vmax.xlane.f32.xlu0 %v351
    %v353 = vpop.xlane.xlu0 %352
    %v354 = vsel %vm274, %v343, -inf
    %355 = vmax.xlane.f32.xlu0 %v354
    %v356 = vpop.xlane.xlu0 %355
    %v357 = vsub.f32 %v305, %v347
    %v358 = vsub.f32 %v308, %v350
    %v359 = vsub.f32 %v340, %v353
    %v360 = vsub.f32 %v343, %v356
    %v361 = vmul.f32 %v357, 1.442695
    %v362 = vpow.pop %v361
    %v363 = vmul.f32 %v358, 1.442695
    %v364 = vpow.pop %v363
    %v365 = vmul.f32 %v359, 1.442695
    %v366 = vpow.pop %v365
    %v367 = vmul.f32 %v360, 1.442695
    %v368 = vpow.pop %v367
    %v369 = vsel %vm274, %v362, 0.0
    %370 = vadd.xlane.f32.xlu0 %v369
    %v371 = vpop.xlane.xlu0 %370
    %v372 = vsel %vm274, %v364, 0.0
    %373 = vadd.xlane.f32.xlu0 %v372
    %v374 = vpop.xlane.xlu0 %373
    %v375 = vsel %vm274, %v366, 0.0
    %376 = vadd.xlane.f32.xlu0 %v375
    %v377 = vpop.xlane.xlu0 %376
    %v378 = vsel %vm274, %v368, 0.0
    %379 = vadd.xlane.f32.xlu0 %v378
    %v380 = vpop.xlane.xlu0 %379
    %v381 = vrcp.pop %v371
    %v382 = vmul.f32 %v371, %v381
    %v383 = vsub.f32 1.0, %v382
    %v384 = vmul.f32 %v381, %v383
    %v385 = vadd.f32 %v381, %v384
    %vm386 = vweird.f32 %v371
    %vm387 = vweird.f32 %v381
    %vm388 = vmor %vm386, %vm387
    %v389 = vsel %vm388, %v381, %v385
    %v390 = vand.u32 2147483647, %v371
    %vm391 = vcmp.eq.f32.partialorder %v390, 8.507059e+37
    %v392 = vand.u32 %v371, 2147483648
    %v393 = vor.u32 1.1754944e-38, %v392
    %v394 = vsel %vm391, %v393, %v389
    %v395 = vmul.f32 %v362, %v394
    %v396 = vrcp.pop %v374
    %v397 = vmul.f32 %v374, %v396
    %v398 = vsub.f32 1.0, %v397
    %v399 = vmul.f32 %v396, %v398
    %v400 = vadd.f32 %v396, %v399
    %vm401 = vweird.f32 %v374
    %vm402 = vweird.f32 %v396
    %vm403 = vmor %vm401, %vm402
    %v404 = vsel %vm403, %v396, %v400
    %v405 = vand.u32 2147483647, %v374
    %vm406 = vcmp.eq.f32.partialorder %v405, 8.507059e+37
    %v407 = vand.u32 %v374, 2147483648
    %v408 = vor.u32 1.1754944e-38, %v407
    %v409 = vsel %vm406, %v408, %v404
    %v410 = vmul.f32 %v364, %v409
    %v411 = vrcp.pop %v377
    %v412 = vmul.f32 %v377, %v411
    %v413 = vsub.f32 1.0, %v412
    %v414 = vmul.f32 %v411, %v413
    %v415 = vadd.f32 %v411, %v414
    %vm416 = vweird.f32 %v377
    %vm417 = vweird.f32 %v411
    %vm418 = vmor %vm416, %vm417
    %v419 = vsel %vm418, %v411, %v415
    %v420 = vand.u32 2147483647, %v377
    %vm421 = vcmp.eq.f32.partialorder %v420, 8.507059e+37
    %v422 = vand.u32 %v377, 2147483648
    %v423 = vor.u32 1.1754944e-38, %v422
    %v424 = vsel %vm421, %v423, %v419
    %v425 = vmul.f32 %v366, %v424
    %v426 = vrcp.pop %v380
    %v427 = vmul.f32 %v380, %v426
    %v428 = vsub.f32 1.0, %v427
    %v429 = vmul.f32 %v426, %v428
    %v430 = vadd.f32 %v426, %v429
    %vm431 = vweird.f32 %v380
    %vm432 = vweird.f32 %v426
    %vm433 = vmor %vm431, %vm432
    %v434 = vsel %vm433, %v426, %v430
    %v435 = vand.u32 2147483647, %v380
    %vm436 = vcmp.eq.f32.partialorder %v435, 8.507059e+37
    %v437 = vand.u32 %v380, 2147483648
    %v438 = vor.u32 1.1754944e-38, %v437
    %v439 = vsel %vm436, %v438, %v434
    %v440 = vmul.f32 %v368, %v439
    %v442 = vsel %vm274, %v395, 0
    %v445 = vsel %vm274, %v410, 0
    %447 = vmatpush.msra.mxu0 0.0
    %448 = vmatpush.msra.mxu0 0.0
    %449 = vmatpush.msra.mxu0 0.0
    %450 = vmatpush.msra.mxu0 0.0
    %451 = vmatpush.msra.mxu0 0.0
    %452 = vmatpush.msra.mxu0 0.0
    %453 = vmatpush.msra.mxu0 0.0
    %454 = vmatpush.msra.mxu0 0.0
    %455 = vmatpush.msra.mxu0 0.0
    %456 = vmatpush.msra.mxu0 0.0
    %457 = vmatpush.msra.mxu0 0.0
    %458 = vmatpush.msra.mxu0 0.0
    %459 = vmatpush.msra.mxu0 0.0
    %460 = vmatpush.msra.mxu0 0.0
    %461 = vmatpush.msra.mxu0 %v246
    %462 = vmatpush.msra.mxu0 %v243
    %463 = vmatmul.f32.gmra.mxu0 %v442
    %v464 = vpop.f32.mrf.mxu0
    %v465 = vadd.f32 0.0, %v464
    %466 = vmatmul.f32.gmra.mxu0 %v445
    %v467 = vpop.f32.mrf.mxu0
    %v468 = vadd.f32 0.0, %v467
    %469 = vdwg.mxu0
    %v471 = vsel %vm274, %v425, 0
    %v474 = vsel %vm274, %v440, 0
    %476 = vmatpush.msra.mxu0 0.0
    %477 = vmatpush.msra.mxu0 0.0
    %478 = vmatpush.msra.mxu0 0.0
    %479 = vmatpush.msra.mxu0 0.0
    %480 = vmatpush.msra.mxu0 0.0
    %481 = vmatpush.msra.mxu0 0.0
    %482 = vmatpush.msra.mxu0 0.0
    %483 = vmatpush.msra.mxu0 0.0
    %484 = vmatpush.msra.mxu0 0.0
    %485 = vmatpush.msra.mxu0 0.0
    %486 = vmatpush.msra.mxu0 0.0
    %487 = vmatpush.msra.mxu0 0.0
    %488 = vmatpush.msra.mxu0 0.0
    %489 = vmatpush.msra.mxu0 0.0
    %490 = vmatpush.msra.mxu0 %v252
    %491 = vmatpush.msra.mxu0 %v249
    %492 = vmatmul.f32.gmra.mxu0 %v471
    %v493 = vpop.f32.mrf.mxu0
    %v494 = vadd.f32 0.0, %v493
    %495 = vmatmul.f32.gmra.mxu0 %v474
    %v496 = vpop.f32.mrf.mxu0
    %v497 = vadd.f32 0.0, %v496
    %498 = vdwg.mxu0
    %499 = vrot.lane.b32.xlu0 %v254, 112
    %v500 = vpop.permute.xlu0 %499
    %501 = vrot.lane.b32.xlu0 %v255, 112
    %v502 = vpop.permute.xlu0 %501
    %503 = vrot.lane.b32.xlu0 %v214, 112
    %v504 = vpop.permute.xlu0 %503
    %505 = vrot.lane.b32.xlu0 %v217, 112
    %v506 = vpop.permute.xlu0 %505
    %v507 = vsel %vm274, %v500, 0
    %v509 = vsel %vm274, %v502, 0
    %v511 = vsel %vm274, %v504, 0
    %v513 = vsel %vm274, %v506, 0
    %515 = vmatpush.xpose.msra.mxu0 0.0
    %516 = vmatpush.xpose.msra.mxu0 0.0
    %517 = vmatpush.xpose.msra.mxu0 0.0
    %518 = vmatpush.xpose.msra.mxu0 0.0
    %519 = vmatpush.xpose.msra.mxu0 0.0
    %520 = vmatpush.xpose.msra.mxu0 0.0
    %521 = vmatpush.xpose.msra.mxu0 0.0
    %522 = vmatpush.xpose.msra.mxu0 0.0
    %523 = vmatpush.xpose.msra.mxu0 0.0
    %524 = vmatpush.xpose.msra.mxu0 0.0
    %525 = vmatpush.xpose.msra.mxu0 0.0
    %526 = vmatpush.xpose.msra.mxu0 0.0
    %527 = vmatpush.xpose.msra.mxu0 0.0
    %528 = vmatpush.xpose.msra.mxu0 0.0
    %529 = vmatpush.xpose.msra.mxu0 %v513
    %530 = vmatpush.xpose.msra.mxu0 %v511
    %531 = vmatmul.f32.gmra.mxu0 %v507
    %v532 = vpop.f32.mrf.mxu0
    %v533 = vadd.f32 0.0, %v532
    %534 = vmatmul.f32.gmra.mxu0 %v509
    %v535 = vpop.f32.mrf.mxu0
    %v536 = vadd.f32 0.0, %v535
    %537 = vdwg.mxu0
    %538 = vrot.lane.b32.xlu0 %v256, 112
    %v539 = vpop.permute.xlu0 %538
    %540 = vrot.lane.b32.xlu0 %v257, 112
    %v541 = vpop.permute.xlu0 %540
    %542 = vrot.lane.b32.xlu0 %v220, 112
    %v543 = vpop.permute.xlu0 %542
    %544 = vrot.lane.b32.xlu0 %v223, 112
    %v545 = vpop.permute.xlu0 %544
    %v546 = vsel %vm274, %v539, 0
    %v548 = vsel %vm274, %v541, 0
    %v550 = vsel %vm274, %v543, 0
    %v552 = vsel %vm274, %v545, 0
    %554 = vmatpush.xpose.msra.mxu0 0.0
    %555 = vmatpush.xpose.msra.mxu0 0.0
    %556 = vmatpush.xpose.msra.mxu0 0.0
    %557 = vmatpush.xpose.msra.mxu0 0.0
    %558 = vmatpush.xpose.msra.mxu0 0.0
    %559 = vmatpush.xpose.msra.mxu0 0.0
    %560 = vmatpush.xpose.msra.mxu0 0.0
    %561 = vmatpush.xpose.msra.mxu0 0.0
    %562 = vmatpush.xpose.msra.mxu0 0.0
    %563 = vmatpush.xpose.msra.mxu0 0.0
    %564 = vmatpush.xpose.msra.mxu0 0.0
    %565 = vmatpush.xpose.msra.mxu0 0.0
    %566 = vmatpush.xpose.msra.mxu0 0.0
    %567 = vmatpush.xpose.msra.mxu0 0.0
    %568 = vmatpush.xpose.msra.mxu0 %v552
    %569 = vmatpush.xpose.msra.mxu0 %v550
    %570 = vmatmul.f32.gmra.mxu0 %v546
    %v571 = vpop.f32.mrf.mxu0
    %v572 = vadd.f32 0.0, %v571
    %573 = vmatmul.f32.gmra.mxu0 %v548
    %v574 = vpop.f32.mrf.mxu0
    %v575 = vadd.f32 0.0, %v574
    %576 = vdwg.mxu0
    %v577 = vsel %vm274, %v533, -inf
    %578 = vmax.xlane.f32.xlu0 %v577
    %v579 = vpop.xlane.xlu0 %578
    %v580 = vsel %vm274, %v536, -inf
    %581 = vmax.xlane.f32.xlu0 %v580
    %v582 = vpop.xlane.xlu0 %581
    %v583 = vsel %vm274, %v572, -inf
    %584 = vmax.xlane.f32.xlu0 %v583
    %v585 = vpop.xlane.xlu0 %584
    %v586 = vsel %vm274, %v575, -inf
    %587 = vmax.xlane.f32.xlu0 %v586
    %v588 = vpop.xlane.xlu0 %587
    %v589 = vsub.f32 %v533, %v579
    %v590 = vsub.f32 %v536, %v582
    %v591 = vsub.f32 %v572, %v585
    %v592 = vsub.f32 %v575, %v588
    %v593 = vmul.f32 %v589, 1.442695
    %v594 = vpow.pop %v593
    %v595 = vmul.f32 %v590, 1.442695
    %v596 = vpow.pop %v595
    %v597 = vmul.f32 %v591, 1.442695
    %v598 = vpow.pop %v597
    %v599 = vmul.f32 %v592, 1.442695
    %v600 = vpow.pop %v599
    %v601 = vsel %vm274, %v594, 0.0
    %602 = vadd.xlane.f32.xlu0 %v601
    %v603 = vpop.xlane.xlu0 %602
    %v604 = vsel %vm274, %v596, 0.0
    %605 = vadd.xlane.f32.xlu0 %v604
    %v606 = vpop.xlane.xlu0 %605
    %v607 = vsel %vm274, %v598, 0.0
    %608 = vadd.xlane.f32.xlu0 %v607
    %v609 = vpop.xlane.xlu0 %608
    %v610 = vsel %vm274, %v600, 0.0
    %611 = vadd.xlane.f32.xlu0 %v610
    %v612 = vpop.xlane.xlu0 %611
    %v613 = vrcp.pop %v603
    %v614 = vmul.f32 %v603, %v613
    %v615 = vsub.f32 1.0, %v614
    %v616 = vmul.f32 %v613, %v615
    %v617 = vadd.f32 %v613, %v616
    %vm618 = vweird.f32 %v603
    %vm619 = vweird.f32 %v613
    %vm620 = vmor %vm618, %vm619
    %v621 = vsel %vm620, %v613, %v617
    %v622 = vand.u32 2147483647, %v603
    %vm623 = vcmp.eq.f32.partialorder %v622, 8.507059e+37
    %v624 = vand.u32 %v603, 2147483648
    %v625 = vor.u32 1.1754944e-38, %v624
    %v626 = vsel %vm623, %v625, %v621
    %v627 = vmul.f32 %v594, %v626
    %v628 = vrcp.pop %v606
    %v629 = vmul.f32 %v606, %v628
    %v630 = vsub.f32 1.0, %v629
    %v631 = vmul.f32 %v628, %v630
    %v632 = vadd.f32 %v628, %v631
    %vm633 = vweird.f32 %v606
    %vm634 = vweird.f32 %v628
    %vm635 = vmor %vm633, %vm634
    %v636 = vsel %vm635, %v628, %v632
    %v637 = vand.u32 2147483647, %v606
    %vm638 = vcmp.eq.f32.partialorder %v637, 8.507059e+37
    %v639 = vand.u32 %v606, 2147483648
    %v640 = vor.u32 1.1754944e-38, %v639
    %v641 = vsel %vm638, %v640, %v636
    %v642 = vmul.f32 %v596, %v641
    %v643 = vrcp.pop %v609
    %v644 = vmul.f32 %v609, %v643
    %v645 = vsub.f32 1.0, %v644
    %v646 = vmul.f32 %v643, %v645
    %v647 = vadd.f32 %v643, %v646
    %vm648 = vweird.f32 %v609
    %vm649 = vweird.f32 %v643
    %vm650 = vmor %vm648, %vm649
    %v651 = vsel %vm650, %v643, %v647
    %v652 = vand.u32 2147483647, %v609
    %vm653 = vcmp.eq.f32.partialorder %v652, 8.507059e+37
    %v654 = vand.u32 %v609, 2147483648
    %v655 = vor.u32 1.1754944e-38, %v654
    %v656 = vsel %vm653, %v655, %v651
    %v657 = vmul.f32 %v598, %v656
    %v658 = vrcp.pop %v612
    %v659 = vmul.f32 %v612, %v658
    %v660 = vsub.f32 1.0, %v659
    %v661 = vmul.f32 %v658, %v660
    %v662 = vadd.f32 %v658, %v661
    %vm663 = vweird.f32 %v612
    %vm664 = vweird.f32 %v658
    %vm665 = vmor %vm663, %vm664
    %v666 = vsel %vm665, %v658, %v662
    %v667 = vand.u32 2147483647, %v612
    %vm668 = vcmp.eq.f32.partialorder %v667, 8.507059e+37
    %v669 = vand.u32 %v612, 2147483648
    %v670 = vor.u32 1.1754944e-38, %v669
    %v671 = vsel %vm668, %v670, %v666
    %v672 = vmul.f32 %v600, %v671
    %675 = vrot.lane.b32.xlu0 %v243, 112
    %v676 = vpop.permute.xlu0 %675
    %677 = vrot.lane.b32.xlu0 %v246, 112
    %v678 = vpop.permute.xlu0 %677
    %v682 = vsel %vm274, %v627, 0
    %v685 = vsel %vm274, %v642, 0
    %687 = vmatpush.msra.mxu0 0.0
    %688 = vmatpush.msra.mxu0 0.0
    %689 = vmatpush.msra.mxu0 0.0
    %690 = vmatpush.msra.mxu0 0.0
    %691 = vmatpush.msra.mxu0 0.0
    %692 = vmatpush.msra.mxu0 0.0
    %693 = vmatpush.msra.mxu0 0.0
    %694 = vmatpush.msra.mxu0 0.0
    %695 = vmatpush.msra.mxu0 0.0
    %696 = vmatpush.msra.mxu0 0.0
    %697 = vmatpush.msra.mxu0 0.0
    %698 = vmatpush.msra.mxu0 0.0
    %699 = vmatpush.msra.mxu0 0.0
    %700 = vmatpush.msra.mxu0 0.0
    %701 = vmatpush.msra.mxu0 %v678
    %702 = vmatpush.msra.mxu0 %v676
    %703 = vmatmul.f32.gmra.mxu0 %v682
    %v704 = vpop.f32.mrf.mxu0
    %v705 = vadd.f32 0.0, %v704
    %706 = vmatmul.f32.gmra.mxu0 %v685
    %v707 = vpop.f32.mrf.mxu0
    %v708 = vadd.f32 0.0, %v707
    %709 = vdwg.mxu0
    %712 = vrot.lane.b32.xlu0 %v249, 112
    %v713 = vpop.permute.xlu0 %712
    %714 = vrot.lane.b32.xlu0 %v252, 112
    %v715 = vpop.permute.xlu0 %714
    %v719 = vsel %vm274, %v657, 0
    %v722 = vsel %vm274, %v672, 0
    %724 = vmatpush.msra.mxu0 0.0
    %725 = vmatpush.msra.mxu0 0.0
    %726 = vmatpush.msra.mxu0 0.0
    %727 = vmatpush.msra.mxu0 0.0
    %728 = vmatpush.msra.mxu0 0.0
    %729 = vmatpush.msra.mxu0 0.0
    %730 = vmatpush.msra.mxu0 0.0
    %731 = vmatpush.msra.mxu0 0.0
    %732 = vmatpush.msra.mxu0 0.0
    %733 = vmatpush.msra.mxu0 0.0
    %734 = vmatpush.msra.mxu0 0.0
    %735 = vmatpush.msra.mxu0 0.0
    %736 = vmatpush.msra.mxu0 0.0
    %737 = vmatpush.msra.mxu0 0.0
    %738 = vmatpush.msra.mxu0 %v715
    %739 = vmatpush.msra.mxu0 %v713
    %740 = vmatmul.f32.gmra.mxu0 %v719
    %v741 = vpop.f32.mrf.mxu0
    %v742 = vadd.f32 0.0, %v741
    %743 = vmatmul.f32.gmra.mxu0 %v722
    %v744 = vpop.f32.mrf.mxu0
    %v745 = vadd.f32 0.0, %v744
    %746 = vdwg.mxu0
    %v748 = vsel %vm274, %v705, 0
    %v751 = vsel %vm274, %v708, 0
    %v754 = vsel %vm274, %v742, 0
    %v757 = vsel %vm274, %v745, 0
    %759 = vmatpush.msra.mxu0 0.0
    %760 = vmatpush.msra.mxu0 0.0
    %761 = vmatpush.msra.mxu0 0.0
    %762 = vmatpush.msra.mxu0 0.0
    %763 = vmatpush.msra.mxu0 0.0
    %764 = vmatpush.msra.mxu0 0.0
    %765 = vmatpush.msra.mxu0 0.0
    %766 = vmatpush.msra.mxu0 0.0
    %767 = vmatpush.msra.mxu0 0.0
    %768 = vmatpush.msra.mxu0 0.0
    %769 = vmatpush.msra.mxu0 0.0
    %770 = vmatpush.msra.mxu0 0.0
    %771 = vmatpush.msra.mxu0 0.0
    %772 = vmatpush.msra.mxu0 0.0
    %773 = vmatpush.msra.mxu0 %v261
    %774 = vmatpush.msra.mxu0 %v260
    %775 = vmatmul.f32.gmra.mxu0 %v748
    %v776 = vpop.f32.mrf.mxu0
    %v777 = vadd.f32 0.0, %v776
    %778 = vmatmul.f32.gmra.mxu0 %v751
    %v779 = vpop.f32.mrf.mxu0
    %v780 = vadd.f32 0.0, %v779
    %781 = vmatmul.f32.gmra.mxu0 %v754
    %v782 = vpop.f32.mrf.mxu0
    %v783 = vadd.f32 0.0, %v782
    %784 = vmatmul.f32.gmra.mxu0 %v757
    %v785 = vpop.f32.mrf.mxu0
    %v786 = vadd.f32 0.0, %v785
    %787 = vdwg.mxu0
    %v789 = vsel %vm274, %v465, 0
    %v792 = vsel %vm274, %v468, 0
    %v795 = vsel %vm274, %v494, 0
    %v798 = vsel %vm274, %v497, 0
    %800 = vmatpush.msra.mxu0 0.0
    %801 = vmatpush.msra.mxu0 0.0
    %802 = vmatpush.msra.mxu0 0.0
    %803 = vmatpush.msra.mxu0 0.0
    %804 = vmatpush.msra.mxu0 0.0
    %805 = vmatpush.msra.mxu0 0.0
    %806 = vmatpush.msra.mxu0 0.0
    %807 = vmatpush.msra.mxu0 0.0
    %808 = vmatpush.msra.mxu0 0.0
    %809 = vmatpush.msra.mxu0 0.0
    %810 = vmatpush.msra.mxu0 0.0
    %811 = vmatpush.msra.mxu0 0.0
    %812 = vmatpush.msra.mxu0 0.0
    %813 = vmatpush.msra.mxu0 0.0
    %814 = vmatpush.msra.mxu0 %v259
    %815 = vmatpush.msra.mxu0 %v258
    %816 = vmatmul.f32.gmra.mxu0 %v789
    %v817 = vpop.f32.mrf.mxu0
    %v818 = vadd.f32 %v777, %v817
    %819 = vmatmul.f32.gmra.mxu0 %v792
    %v820 = vpop.f32.mrf.mxu0
    %v821 = vadd.f32 %v780, %v820
    %822 = vmatmul.f32.gmra.mxu0 %v795
    %v823 = vpop.f32.mrf.mxu0
    %v824 = vadd.f32 %v783, %v823
    %825 = vmatmul.f32.gmra.mxu0 %v798
    %v826 = vpop.f32.mrf.mxu0
    %v827 = vadd.f32 %v786, %v826
    %828 = vdwg.mxu0
    %829 = vrot.lane.b32.xlu0 %v254, 96
    %v830 = vpop.permute.xlu0 %829
    %831 = vrot.lane.b32.xlu0 %v255, 96
    %v832 = vpop.permute.xlu0 %831
    %833 = vrot.lane.b32.xlu0 %v214, 96
    %v834 = vpop.permute.xlu0 %833
    %835 = vrot.lane.b32.xlu0 %v217, 96
    %v836 = vpop.permute.xlu0 %835
    %v837 = vsel %vm274, %v830, 0
    %v839 = vsel %vm274, %v832, 0
    %v841 = vsel %vm274, %v834, 0
    %v843 = vsel %vm274, %v836, 0
    %845 = vmatpush.xpose.msra.mxu0 0.0
    %846 = vmatpush.xpose.msra.mxu0 0.0
    %847 = vmatpush.xpose.msra.mxu0 0.0
    %848 = vmatpush.xpose.msra.mxu0 0.0
    %849 = vmatpush.xpose.msra.mxu0 0.0
    %850 = vmatpush.xpose.msra.mxu0 0.0
    %851 = vmatpush.xpose.msra.mxu0 0.0
    %852 = vmatpush.xpose.msra.mxu0 0.0
    %853 = vmatpush.xpose.msra.mxu0 0.0
    %854 = vmatpush.xpose.msra.mxu0 0.0
    %855 = vmatpush.xpose.msra.mxu0 0.0
    %856 = vmatpush.xpose.msra.mxu0 0.0
    %857 = vmatpush.xpose.msra.mxu0 0.0
    %858 = vmatpush.xpose.msra.mxu0 0.0
    %859 = vmatpush.xpose.msra.mxu0 %v843
    %860 = vmatpush.xpose.msra.mxu0 %v841
    %861 = vmatmul.f32.gmra.mxu0 %v837
    %v862 = vpop.f32.mrf.mxu0
    %v863 = vadd.f32 0.0, %v862
    %864 = vmatmul.f32.gmra.mxu0 %v839
    %v865 = vpop.f32.mrf.mxu0
    %v866 = vadd.f32 0.0, %v865
    %867 = vdwg.mxu0
    %868 = vrot.lane.b32.xlu0 %v256, 96
    %v869 = vpop.permute.xlu0 %868
    %870 = vrot.lane.b32.xlu0 %v257, 96
    %v871 = vpop.permute.xlu0 %870
    %872 = vrot.lane.b32.xlu0 %v220, 96
    %v873 = vpop.permute.xlu0 %872
    %874 = vrot.lane.b32.xlu0 %v223, 96
    %v875 = vpop.permute.xlu0 %874
    %v876 = vsel %vm274, %v869, 0
    %v878 = vsel %vm274, %v871, 0
    %v880 = vsel %vm274, %v873, 0
    %v882 = vsel %vm274, %v875, 0
    %884 = vmatpush.xpose.msra.mxu0 0.0
    %885 = vmatpush.xpose.msra.mxu0 0.0
    %886 = vmatpush.xpose.msra.mxu0 0.0
    %887 = vmatpush.xpose.msra.mxu0 0.0
    %888 = vmatpush.xpose.msra.mxu0 0.0
    %889 = vmatpush.xpose.msra.mxu0 0.0
    %890 = vmatpush.xpose.msra.mxu0 0.0
    %891 = vmatpush.xpose.msra.mxu0 0.0
    %892 = vmatpush.xpose.msra.mxu0 0.0
    %893 = vmatpush.xpose.msra.mxu0 0.0
    %894 = vmatpush.xpose.msra.mxu0 0.0
    %895 = vmatpush.xpose.msra.mxu0 0.0
    %896 = vmatpush.xpose.msra.mxu0 0.0
    %897 = vmatpush.xpose.msra.mxu0 0.0
    %898 = vmatpush.xpose.msra.mxu0 %v882
    %899 = vmatpush.xpose.msra.mxu0 %v880
    %900 = vmatmul.f32.gmra.mxu0 %v876
    %v901 = vpop.f32.mrf.mxu0
    %v902 = vadd.f32 0.0, %v901
    %903 = vmatmul.f32.gmra.mxu0 %v878
    %v904 = vpop.f32.mrf.mxu0
    %v905 = vadd.f32 0.0, %v904
    %906 = vdwg.mxu0
    %v907 = vsel %vm274, %v863, -inf
    %908 = vmax.xlane.f32.xlu0 %v907
    %v909 = vpop.xlane.xlu0 %908
    %v910 = vsel %vm274, %v866, -inf
    %911 = vmax.xlane.f32.xlu0 %v910
    %v912 = vpop.xlane.xlu0 %911
    %v913 = vsel %vm274, %v902, -inf
    %914 = vmax.xlane.f32.xlu0 %v913
    %v915 = vpop.xlane.xlu0 %914
    %v916 = vsel %vm274, %v905, -inf
    %917 = vmax.xlane.f32.xlu0 %v916
    %v918 = vpop.xlane.xlu0 %917
    %v919 = vsub.f32 %v863, %v909
    %v920 = vsub.f32 %v866, %v912
    %v921 = vsub.f32 %v902, %v915
    %v922 = vsub.f32 %v905, %v918
    %v923 = vmul.f32 %v919, 1.442695
    %v924 = vpow.pop %v923
    %v925 = vmul.f32 %v920, 1.442695
    %v926 = vpow.pop %v925
    %v927 = vmul.f32 %v921, 1.442695
    %v928 = vpow.pop %v927
    %v929 = vmul.f32 %v922, 1.442695
    %v930 = vpow.pop %v929
    %v931 = vsel %vm274, %v924, 0.0
    %932 = vadd.xlane.f32.xlu0 %v931
    %v933 = vpop.xlane.xlu0 %932
    %v934 = vsel %vm274, %v926, 0.0
    %935 = vadd.xlane.f32.xlu0 %v934
    %v936 = vpop.xlane.xlu0 %935
    %v937 = vsel %vm274, %v928, 0.0
    %938 = vadd.xlane.f32.xlu0 %v937
    %v939 = vpop.xlane.xlu0 %938
    %v940 = vsel %vm274, %v930, 0.0
    %941 = vadd.xlane.f32.xlu0 %v940
    %v942 = vpop.xlane.xlu0 %941
    %v943 = vrcp.pop %v933
    %v944 = vmul.f32 %v933, %v943
    %v945 = vsub.f32 1.0, %v944
    %v946 = vmul.f32 %v943, %v945
    %v947 = vadd.f32 %v943, %v946
    %vm948 = vweird.f32 %v933
    %vm949 = vweird.f32 %v943
    %vm950 = vmor %vm948, %vm949
    %v951 = vsel %vm950, %v943, %v947
    %v952 = vand.u32 2147483647, %v933
    %vm953 = vcmp.eq.f32.partialorder %v952, 8.507059e+37
    %v954 = vand.u32 %v933, 2147483648
    %v955 = vor.u32 1.1754944e-38, %v954
    %v956 = vsel %vm953, %v955, %v951
    %v957 = vmul.f32 %v924, %v956
    %v958 = vrcp.pop %v936
    %v959 = vmul.f32 %v936, %v958
    %v960 = vsub.f32 1.0, %v959
    %v961 = vmul.f32 %v958, %v960
    %v962 = vadd.f32 %v958, %v961
    %vm963 = vweird.f32 %v936
    %vm964 = vweird.f32 %v958
    %vm965 = vmor %vm963, %vm964
    %v966 = vsel %vm965, %v958, %v962
    %v967 = vand.u32 2147483647, %v936
    %vm968 = vcmp.eq.f32.partialorder %v967, 8.507059e+37
    %v969 = vand.u32 %v936, 2147483648
    %v970 = vor.u32 1.1754944e-38, %v969
    %v971 = vsel %vm968, %v970, %v966
    %v972 = vmul.f32 %v926, %v971
    %v973 = vrcp.pop %v939
    %v974 = vmul.f32 %v939, %v973
    %v975 = vsub.f32 1.0, %v974
    %v976 = vmul.f32 %v973, %v975
    %v977 = vadd.f32 %v973, %v976
    %vm978 = vweird.f32 %v939
    %vm979 = vweird.f32 %v973
    %vm980 = vmor %vm978, %vm979
    %v981 = vsel %vm980, %v973, %v977
    %v982 = vand.u32 2147483647, %v939
    %vm983 = vcmp.eq.f32.partialorder %v982, 8.507059e+37
    %v984 = vand.u32 %v939, 2147483648
    %v985 = vor.u32 1.1754944e-38, %v984
    %v986 = vsel %vm983, %v985, %v981
    %v987 = vmul.f32 %v928, %v986
    %v988 = vrcp.pop %v942
    %v989 = vmul.f32 %v942, %v988
    %v990 = vsub.f32 1.0, %v989
    %v991 = vmul.f32 %v988, %v990
    %v992 = vadd.f32 %v988, %v991
    %vm993 = vweird.f32 %v942
    %vm994 = vweird.f32 %v988
    %vm995 = vmor %vm993, %vm994
    %v996 = vsel %vm995, %v988, %v992
    %v997 = vand.u32 2147483647, %v942
    %vm998 = vcmp.eq.f32.partialorder %v997, 8.507059e+37
    %v999 = vand.u32 %v942, 2147483648
    %v1000 = vor.u32 1.1754944e-38, %v999
    %v1001 = vsel %vm998, %v1000, %v996
    %v1002 = vmul.f32 %v930, %v1001
    %1003 = vrot.lane.b32.xlu0 %v243, 96
    %v1004 = vpop.permute.xlu0 %1003
    %1005 = vrot.lane.b32.xlu0 %v246, 96
    %v1006 = vpop.permute.xlu0 %1005
    %v1010 = vsel %vm274, %v957, 0
    %v1013 = vsel %vm274, %v972, 0
    %1015 = vmatpush.msra.mxu0 0.0
    %1016 = vmatpush.msra.mxu0 0.0
    %1017 = vmatpush.msra.mxu0 0.0
    %1018 = vmatpush.msra.mxu0 0.0
    %1019 = vmatpush.msra.mxu0 0.0
    %1020 = vmatpush.msra.mxu0 0.0
    %1021 = vmatpush.msra.mxu0 0.0
    %1022 = vmatpush.msra.mxu0 0.0
    %1023 = vmatpush.msra.mxu0 0.0
    %1024 = vmatpush.msra.mxu0 0.0
    %1025 = vmatpush.msra.mxu0 0.0
    %1026 = vmatpush.msra.mxu0 0.0
    %1027 = vmatpush.msra.mxu0 0.0
    %1028 = vmatpush.msra.mxu0 0.0
    %1029 = vmatpush.msra.mxu0 %v1006
    %1030 = vmatpush.msra.mxu0 %v1004
    %1031 = vmatmul.f32.gmra.mxu0 %v1010
    %v1032 = vpop.f32.mrf.mxu0
    %v1033 = vadd.f32 0.0, %v1032
    %1034 = vmatmul.f32.gmra.mxu0 %v1013
    %v1035 = vpop.f32.mrf.mxu0
    %v1036 = vadd.f32 0.0, %v1035
    %1037 = vdwg.mxu0
    %1038 = vrot.lane.b32.xlu0 %v249, 96
    %v1039 = vpop.permute.xlu0 %1038
    %1040 = vrot.lane.b32.xlu0 %v252, 96
    %v1041 = vpop.permute.xlu0 %1040
    %v1045 = vsel %vm274, %v987, 0
    %v1048 = vsel %vm274, %v1002, 0
    %1050 = vmatpush.msra.mxu0 0.0
    %1051 = vmatpush.msra.mxu0 0.0
    %1052 = vmatpush.msra.mxu0 0.0
    %1053 = vmatpush.msra.mxu0 0.0
    %1054 = vmatpush.msra.mxu0 0.0
    %1055 = vmatpush.msra.mxu0 0.0
    %1056 = vmatpush.msra.mxu0 0.0
    %1057 = vmatpush.msra.mxu0 0.0
    %1058 = vmatpush.msra.mxu0 0.0
    %1059 = vmatpush.msra.mxu0 0.0
    %1060 = vmatpush.msra.mxu0 0.0
    %1061 = vmatpush.msra.mxu0 0.0
    %1062 = vmatpush.msra.mxu0 0.0
    %1063 = vmatpush.msra.mxu0 0.0
    %1064 = vmatpush.msra.mxu0 %v1041
    %1065 = vmatpush.msra.mxu0 %v1039
    %1066 = vmatmul.f32.gmra.mxu0 %v1045
    %v1067 = vpop.f32.mrf.mxu0
    %v1068 = vadd.f32 0.0, %v1067
    %1069 = vmatmul.f32.gmra.mxu0 %v1048
    %v1070 = vpop.f32.mrf.mxu0
    %v1071 = vadd.f32 0.0, %v1070
    %1072 = vdwg.mxu0
    %v1074 = vsel %vm274, %v1033, 0
    %v1077 = vsel %vm274, %v1036, 0
    %v1080 = vsel %vm274, %v1068, 0
    %v1083 = vsel %vm274, %v1071, 0
    %1085 = vmatpush.msra.mxu0 0.0
    %1086 = vmatpush.msra.mxu0 0.0
    %1087 = vmatpush.msra.mxu0 0.0
    %1088 = vmatpush.msra.mxu0 0.0
    %1089 = vmatpush.msra.mxu0 0.0
    %1090 = vmatpush.msra.mxu0 0.0
    %1091 = vmatpush.msra.mxu0 0.0
    %1092 = vmatpush.msra.mxu0 0.0
    %1093 = vmatpush.msra.mxu0 0.0
    %1094 = vmatpush.msra.mxu0 0.0
    %1095 = vmatpush.msra.mxu0 0.0
    %1096 = vmatpush.msra.mxu0 0.0
    %1097 = vmatpush.msra.mxu0 0.0
    %1098 = vmatpush.msra.mxu0 0.0
    %1099 = vmatpush.msra.mxu0 %v263
    %1100 = vmatpush.msra.mxu0 %v262
    %1101 = vmatmul.f32.gmra.mxu0 %v1074
    %v1102 = vpop.f32.mrf.mxu0
    %v1103 = vadd.f32 0.0, %v1102
    %1104 = vmatmul.f32.gmra.mxu0 %v1077
    %v1105 = vpop.f32.mrf.mxu0
    %v1106 = vadd.f32 0.0, %v1105
    %1107 = vmatmul.f32.gmra.mxu0 %v1080
    %v1108 = vpop.f32.mrf.mxu0
    %v1109 = vadd.f32 0.0, %v1108
    %1110 = vmatmul.f32.gmra.mxu0 %v1083
    %v1111 = vpop.f32.mrf.mxu0
    %v1112 = vadd.f32 0.0, %v1111
    %1113 = vdwg.mxu0
    %v1114 = vadd.f32 %v818, %v1103
    %v1115 = vadd.f32 %v821, %v1106
    %v1116 = vadd.f32 %v824, %v1109
    %v1117 = vadd.f32 %v827, %v1112
    %1118 = vrot.lane.b32.xlu0 %v254, 80
    %v1119 = vpop.permute.xlu0 %1118
    %1120 = vrot.lane.b32.xlu0 %v255, 80
    %v1121 = vpop.permute.xlu0 %1120
    %1122 = vrot.lane.b32.xlu0 %v214, 80
    %v1123 = vpop.permute.xlu0 %1122
    %1124 = vrot.lane.b32.xlu0 %v217, 80
    %v1125 = vpop.permute.xlu0 %1124
    %v1126 = vsel %vm274, %v1119, 0
    %v1128 = vsel %vm274, %v1121, 0
    %v1130 = vsel %vm274, %v1123, 0
    %v1132 = vsel %vm274, %v1125, 0
    %1134 = vmatpush.xpose.msra.mxu0 0.0
    %1135 = vmatpush.xpose.msra.mxu0 0.0
    %1136 = vmatpush.xpose.msra.mxu0 0.0
    %1137 = vmatpush.xpose.msra.mxu0 0.0
    %1138 = vmatpush.xpose.msra.mxu0 0.0
    %1139 = vmatpush.xpose.msra.mxu0 0.0
    %1140 = vmatpush.xpose.msra.mxu0 0.0
    %1141 = vmatpush.xpose.msra.mxu0 0.0
    %1142 = vmatpush.xpose.msra.mxu0 0.0
    %1143 = vmatpush.xpose.msra.mxu0 0.0
    %1144 = vmatpush.xpose.msra.mxu0 0.0
    %1145 = vmatpush.xpose.msra.mxu0 0.0
    %1146 = vmatpush.xpose.msra.mxu0 0.0
    %1147 = vmatpush.xpose.msra.mxu0 0.0
    %1148 = vmatpush.xpose.msra.mxu0 %v1132
    %1149 = vmatpush.xpose.msra.mxu0 %v1130
    %1150 = vmatmul.f32.gmra.mxu0 %v1126
    %v1151 = vpop.f32.mrf.mxu0
    %v1152 = vadd.f32 0.0, %v1151
    %1153 = vmatmul.f32.gmra.mxu0 %v1128
    %v1154 = vpop.f32.mrf.mxu0
    %v1155 = vadd.f32 0.0, %v1154
    %1156 = vdwg.mxu0
    %1157 = vrot.lane.b32.xlu0 %v256, 80
    %v1158 = vpop.permute.xlu0 %1157
    %1159 = vrot.lane.b32.xlu0 %v257, 80
    %v1160 = vpop.permute.xlu0 %1159
    %1161 = vrot.lane.b32.xlu0 %v220, 80
    %v1162 = vpop.permute.xlu0 %1161
    %1163 = vrot.lane.b32.xlu0 %v223, 80
    %v1164 = vpop.permute.xlu0 %1163
    %v1165 = vsel %vm274, %v1158, 0
    %v1167 = vsel %vm274, %v1160, 0
    %v1169 = vsel %vm274, %v1162, 0
    %v1171 = vsel %vm274, %v1164, 0
    %1173 = vmatpush.xpose.msra.mxu0 0.0
    %1174 = vmatpush.xpose.msra.mxu0 0.0
    %1175 = vmatpush.xpose.msra.mxu0 0.0
    %1176 = vmatpush.xpose.msra.mxu0 0.0
    %1177 = vmatpush.xpose.msra.mxu0 0.0
    %1178 = vmatpush.xpose.msra.mxu0 0.0
    %1179 = vmatpush.xpose.msra.mxu0 0.0
    %1180 = vmatpush.xpose.msra.mxu0 0.0
    %1181 = vmatpush.xpose.msra.mxu0 0.0
    %1182 = vmatpush.xpose.msra.mxu0 0.0
    %1183 = vmatpush.xpose.msra.mxu0 0.0
    %1184 = vmatpush.xpose.msra.mxu0 0.0
    %1185 = vmatpush.xpose.msra.mxu0 0.0
    %1186 = vmatpush.xpose.msra.mxu0 0.0
    %1187 = vmatpush.xpose.msra.mxu0 %v1171
    %1188 = vmatpush.xpose.msra.mxu0 %v1169
    %1189 = vmatmul.f32.gmra.mxu0 %v1165
    %v1190 = vpop.f32.mrf.mxu0
    %v1191 = vadd.f32 0.0, %v1190
    %1192 = vmatmul.f32.gmra.mxu0 %v1167
    %v1193 = vpop.f32.mrf.mxu0
    %v1194 = vadd.f32 0.0, %v1193
    %1195 = vdwg.mxu0
    %v1196 = vsel %vm274, %v1152, -inf
    %1197 = vmax.xlane.f32.xlu0 %v1196
    %v1198 = vpop.xlane.xlu0 %1197
    %v1199 = vsel %vm274, %v1155, -inf
    %1200 = vmax.xlane.f32.xlu0 %v1199
    %v1201 = vpop.xlane.xlu0 %1200
    %v1202 = vsel %vm274, %v1191, -inf
    %1203 = vmax.xlane.f32.xlu0 %v1202
    %v1204 = vpop.xlane.xlu0 %1203
    %v1205 = vsel %vm274, %v1194, -inf
    %1206 = vmax.xlane.f32.xlu0 %v1205
    %v1207 = vpop.xlane.xlu0 %1206
    %v1208 = vsub.f32 %v1152, %v1198
    %v1209 = vsub.f32 %v1155, %v1201
    %v1210 = vsub.f32 %v1191, %v1204
    %v1211 = vsub.f32 %v1194, %v1207
    %v1212 = vmul.f32 %v1208, 1.442695
    %v1213 = vpow.pop %v1212
    %v1214 = vmul.f32 %v1209, 1.442695
    %v1215 = vpow.pop %v1214
    %v1216 = vmul.f32 %v1210, 1.442695
    %v1217 = vpow.pop %v1216
    %v1218 = vmul.f32 %v1211, 1.442695
    %v1219 = vpow.pop %v1218
    %v1220 = vsel %vm274, %v1213, 0.0
    %1221 = vadd.xlane.f32.xlu0 %v1220
    %v1222 = vpop.xlane.xlu0 %1221
    %v1223 = vsel %vm274, %v1215, 0.0
    %1224 = vadd.xlane.f32.xlu0 %v1223
    %v1225 = vpop.xlane.xlu0 %1224
    %v1226 = vsel %vm274, %v1217, 0.0
    %1227 = vadd.xlane.f32.xlu0 %v1226
    %v1228 = vpop.xlane.xlu0 %1227
    %v1229 = vsel %vm274, %v1219, 0.0
    %1230 = vadd.xlane.f32.xlu0 %v1229
    %v1231 = vpop.xlane.xlu0 %1230
    %v1232 = vrcp.pop %v1222
    %v1233 = vmul.f32 %v1222, %v1232
    %v1234 = vsub.f32 1.0, %v1233
    %v1235 = vmul.f32 %v1232, %v1234
    %v1236 = vadd.f32 %v1232, %v1235
    %vm1237 = vweird.f32 %v1222
    %vm1238 = vweird.f32 %v1232
    %vm1239 = vmor %vm1237, %vm1238
    %v1240 = vsel %vm1239, %v1232, %v1236
    %v1241 = vand.u32 2147483647, %v1222
    %vm1242 = vcmp.eq.f32.partialorder %v1241, 8.507059e+37
    %v1243 = vand.u32 %v1222, 2147483648
    %v1244 = vor.u32 1.1754944e-38, %v1243
    %v1245 = vsel %vm1242, %v1244, %v1240
    %v1246 = vmul.f32 %v1213, %v1245
    %v1247 = vrcp.pop %v1225
    %v1248 = vmul.f32 %v1225, %v1247
    %v1249 = vsub.f32 1.0, %v1248
    %v1250 = vmul.f32 %v1247, %v1249
    %v1251 = vadd.f32 %v1247, %v1250
    %vm1252 = vweird.f32 %v1225
    %vm1253 = vweird.f32 %v1247
    %vm1254 = vmor %vm1252, %vm1253
    %v1255 = vsel %vm1254, %v1247, %v1251
    %v1256 = vand.u32 2147483647, %v1225
    %vm1257 = vcmp.eq.f32.partialorder %v1256, 8.507059e+37
    %v1258 = vand.u32 %v1225, 2147483648
    %v1259 = vor.u32 1.1754944e-38, %v1258
    %v1260 = vsel %vm1257, %v1259, %v1255
    %v1261 = vmul.f32 %v1215, %v1260
    %v1262 = vrcp.pop %v1228
    %v1263 = vmul.f32 %v1228, %v1262
    %v1264 = vsub.f32 1.0, %v1263
    %v1265 = vmul.f32 %v1262, %v1264
    %v1266 = vadd.f32 %v1262, %v1265
    %vm1267 = vweird.f32 %v1228
    %vm1268 = vweird.f32 %v1262
    %vm1269 = vmor %vm1267, %vm1268
    %v1270 = vsel %vm1269, %v1262, %v1266
    %v1271 = vand.u32 2147483647, %v1228
    %vm1272 = vcmp.eq.f32.partialorder %v1271, 8.507059e+37
    %v1273 = vand.u32 %v1228, 2147483648
    %v1274 = vor.u32 1.1754944e-38, %v1273
    %v1275 = vsel %vm1272, %v1274, %v1270
    %v1276 = vmul.f32 %v1217, %v1275
    %v1277 = vrcp.pop %v1231
    %v1278 = vmul.f32 %v1231, %v1277
    %v1279 = vsub.f32 1.0, %v1278
    %v1280 = vmul.f32 %v1277, %v1279
    %v1281 = vadd.f32 %v1277, %v1280
    %vm1282 = vweird.f32 %v1231
    %vm1283 = vweird.f32 %v1277
    %vm1284 = vmor %vm1282, %vm1283
    %v1285 = vsel %vm1284, %v1277, %v1281
    %v1286 = vand.u32 2147483647, %v1231
    %vm1287 = vcmp.eq.f32.partialorder %v1286, 8.507059e+37
    %v1288 = vand.u32 %v1231, 2147483648
    %v1289 = vor.u32 1.1754944e-38, %v1288
    %v1290 = vsel %vm1287, %v1289, %v1285
    %v1291 = vmul.f32 %v1219, %v1290
    %1292 = vrot.lane.b32.xlu0 %v243, 80
    %v1293 = vpop.permute.xlu0 %1292
    %1294 = vrot.lane.b32.xlu0 %v246, 80
    %v1295 = vpop.permute.xlu0 %1294
    %v1299 = vsel %vm274, %v1246, 0
    %v1302 = vsel %vm274, %v1261, 0
    %1304 = vmatpush.msra.mxu0 0.0
    %1305 = vmatpush.msra.mxu0 0.0
    %1306 = vmatpush.msra.mxu0 0.0
    %1307 = vmatpush.msra.mxu0 0.0
    %1308 = vmatpush.msra.mxu0 0.0
    %1309 = vmatpush.msra.mxu0 0.0
    %1310 = vmatpush.msra.mxu0 0.0
    %1311 = vmatpush.msra.mxu0 0.0
    %1312 = vmatpush.msra.mxu0 0.0
    %1313 = vmatpush.msra.mxu0 0.0
    %1314 = vmatpush.msra.mxu0 0.0
    %1315 = vmatpush.msra.mxu0 0.0
    %1316 = vmatpush.msra.mxu0 0.0
    %1317 = vmatpush.msra.mxu0 0.0
    %1318 = vmatpush.msra.mxu0 %v1295
    %1319 = vmatpush.msra.mxu0 %v1293
    %1320 = vmatmul.f32.gmra.mxu0 %v1299
    %v1321 = vpop.f32.mrf.mxu0
    %v1322 = vadd.f32 0.0, %v1321
    %1323 = vmatmul.f32.gmra.mxu0 %v1302
    %v1324 = vpop.f32.mrf.mxu0
    %v1325 = vadd.f32 0.0, %v1324
    %1326 = vdwg.mxu0
    %1327 = vrot.lane.b32.xlu0 %v249, 80
    %v1328 = vpop.permute.xlu0 %1327
    %1329 = vrot.lane.b32.xlu0 %v252, 80
    %v1330 = vpop.permute.xlu0 %1329
    %v1334 = vsel %vm274, %v1276, 0
    %v1337 = vsel %vm274, %v1291, 0
    %1339 = vmatpush.msra.mxu0 0.0
    %1340 = vmatpush.msra.mxu0 0.0
    %1341 = vmatpush.msra.mxu0 0.0
    %1342 = vmatpush.msra.mxu0 0.0
    %1343 = vmatpush.msra.mxu0 0.0
    %1344 = vmatpush.msra.mxu0 0.0
    %1345 = vmatpush.msra.mxu0 0.0
    %1346 = vmatpush.msra.mxu0 0.0
    %1347 = vmatpush.msra.mxu0 0.0
    %1348 = vmatpush.msra.mxu0 0.0
    %1349 = vmatpush.msra.mxu0 0.0
    %1350 = vmatpush.msra.mxu0 0.0
    %1351 = vmatpush.msra.mxu0 0.0
    %1352 = vmatpush.msra.mxu0 0.0
    %1353 = vmatpush.msra.mxu0 %v1330
    %1354 = vmatpush.msra.mxu0 %v1328
    %1355 = vmatmul.f32.gmra.mxu0 %v1334
    %v1356 = vpop.f32.mrf.mxu0
    %v1357 = vadd.f32 0.0, %v1356
    %1358 = vmatmul.f32.gmra.mxu0 %v1337
    %v1359 = vpop.f32.mrf.mxu0
    %v1360 = vadd.f32 0.0, %v1359
    %1361 = vdwg.mxu0
    %v1363 = vsel %vm274, %v1322, 0
    %v1366 = vsel %vm274, %v1325, 0
    %v1369 = vsel %vm274, %v1357, 0
    %v1372 = vsel %vm274, %v1360, 0
    %1374 = vmatpush.msra.mxu0 0.0
    %1375 = vmatpush.msra.mxu0 0.0
    %1376 = vmatpush.msra.mxu0 0.0
    %1377 = vmatpush.msra.mxu0 0.0
    %1378 = vmatpush.msra.mxu0 0.0
    %1379 = vmatpush.msra.mxu0 0.0
    %1380 = vmatpush.msra.mxu0 0.0
    %1381 = vmatpush.msra.mxu0 0.0
    %1382 = vmatpush.msra.mxu0 0.0
    %1383 = vmatpush.msra.mxu0 0.0
    %1384 = vmatpush.msra.mxu0 0.0
    %1385 = vmatpush.msra.mxu0 0.0
    %1386 = vmatpush.msra.mxu0 0.0
    %1387 = vmatpush.msra.mxu0 0.0
    %1388 = vmatpush.msra.mxu0 %v265
    %1389 = vmatpush.msra.mxu0 %v264
    %1390 = vmatmul.f32.gmra.mxu0 %v1363
    %v1391 = vpop.f32.mrf.mxu0
    %v1392 = vadd.f32 0.0, %v1391
    %1393 = vmatmul.f32.gmra.mxu0 %v1366
    %v1394 = vpop.f32.mrf.mxu0
    %v1395 = vadd.f32 0.0, %v1394
    %1396 = vmatmul.f32.gmra.mxu0 %v1369
    %v1397 = vpop.f32.mrf.mxu0
    %v1398 = vadd.f32 0.0, %v1397
    %1399 = vmatmul.f32.gmra.mxu0 %v1372
    %v1400 = vpop.f32.mrf.mxu0
    %v1401 = vadd.f32 0.0, %v1400
    %1402 = vdwg.mxu0
    %v1403 = vadd.f32 %v1114, %v1392
    %v1404 = vadd.f32 %v1115, %v1395
    %v1405 = vadd.f32 %v1116, %v1398
    %v1406 = vadd.f32 %v1117, %v1401
    %1407 = vrot.lane.b32.xlu0 %v254, 64
    %v1408 = vpop.permute.xlu0 %1407
    %1409 = vrot.lane.b32.xlu0 %v255, 64
    %v1410 = vpop.permute.xlu0 %1409
    %1411 = vrot.lane.b32.xlu0 %v214, 64
    %v1412 = vpop.permute.xlu0 %1411
    %1413 = vrot.lane.b32.xlu0 %v217, 64
    %v1414 = vpop.permute.xlu0 %1413
    %v1415 = vsel %vm274, %v1408, 0
    %v1417 = vsel %vm274, %v1410, 0
    %v1419 = vsel %vm274, %v1412, 0
    %v1421 = vsel %vm274, %v1414, 0
    %1423 = vmatpush.xpose.msra.mxu0 0.0
    %1424 = vmatpush.xpose.msra.mxu0 0.0
    %1425 = vmatpush.xpose.msra.mxu0 0.0
    %1426 = vmatpush.xpose.msra.mxu0 0.0
    %1427 = vmatpush.xpose.msra.mxu0 0.0
    %1428 = vmatpush.xpose.msra.mxu0 0.0
    %1429 = vmatpush.xpose.msra.mxu0 0.0
    %1430 = vmatpush.xpose.msra.mxu0 0.0
    %1431 = vmatpush.xpose.msra.mxu0 0.0
    %1432 = vmatpush.xpose.msra.mxu0 0.0
    %1433 = vmatpush.xpose.msra.mxu0 0.0
    %1434 = vmatpush.xpose.msra.mxu0 0.0
    %1435 = vmatpush.xpose.msra.mxu0 0.0
    %1436 = vmatpush.xpose.msra.mxu0 0.0
    %1437 = vmatpush.xpose.msra.mxu0 %v1421
    %1438 = vmatpush.xpose.msra.mxu0 %v1419
    %1439 = vmatmul.f32.gmra.mxu0 %v1415
    %v1440 = vpop.f32.mrf.mxu0
    %v1441 = vadd.f32 0.0, %v1440
    %1442 = vmatmul.f32.gmra.mxu0 %v1417
    %v1443 = vpop.f32.mrf.mxu0
    %v1444 = vadd.f32 0.0, %v1443
    %1445 = vdwg.mxu0
    %1446 = vrot.lane.b32.xlu0 %v256, 64
    %v1447 = vpop.permute.xlu0 %1446
    %1448 = vrot.lane.b32.xlu0 %v257, 64
    %v1449 = vpop.permute.xlu0 %1448
    %1450 = vrot.lane.b32.xlu0 %v220, 64
    %v1451 = vpop.permute.xlu0 %1450
    %1452 = vrot.lane.b32.xlu0 %v223, 64
    %v1453 = vpop.permute.xlu0 %1452
    %v1454 = vsel %vm274, %v1447, 0
    %v1456 = vsel %vm274, %v1449, 0
    %v1458 = vsel %vm274, %v1451, 0
    %v1460 = vsel %vm274, %v1453, 0
    %1462 = vmatpush.xpose.msra.mxu0 0.0
    %1463 = vmatpush.xpose.msra.mxu0 0.0
    %1464 = vmatpush.xpose.msra.mxu0 0.0
    %1465 = vmatpush.xpose.msra.mxu0 0.0
    %1466 = vmatpush.xpose.msra.mxu0 0.0
    %1467 = vmatpush.xpose.msra.mxu0 0.0
    %1468 = vmatpush.xpose.msra.mxu0 0.0
    %1469 = vmatpush.xpose.msra.mxu0 0.0
    %1470 = vmatpush.xpose.msra.mxu0 0.0
    %1471 = vmatpush.xpose.msra.mxu0 0.0
    %1472 = vmatpush.xpose.msra.mxu0 0.0
    %1473 = vmatpush.xpose.msra.mxu0 0.0
    %1474 = vmatpush.xpose.msra.mxu0 0.0
    %1475 = vmatpush.xpose.msra.mxu0 0.0
    %1476 = vmatpush.xpose.msra.mxu0 %v1460
    %1477 = vmatpush.xpose.msra.mxu0 %v1458
    %1478 = vmatmul.f32.gmra.mxu0 %v1454
    %v1479 = vpop.f32.mrf.mxu0
    %v1480 = vadd.f32 0.0, %v1479
    %1481 = vmatmul.f32.gmra.mxu0 %v1456
    %v1482 = vpop.f32.mrf.mxu0
    %v1483 = vadd.f32 0.0, %v1482
    %1484 = vdwg.mxu0
    %v1485 = vsel %vm274, %v1441, -inf
    %1486 = vmax.xlane.f32.xlu0 %v1485
    %v1487 = vpop.xlane.xlu0 %1486
    %v1488 = vsel %vm274, %v1444, -inf
    %1489 = vmax.xlane.f32.xlu0 %v1488
    %v1490 = vpop.xlane.xlu0 %1489
    %v1491 = vsel %vm274, %v1480, -inf
    %1492 = vmax.xlane.f32.xlu0 %v1491
    %v1493 = vpop.xlane.xlu0 %1492
    %v1494 = vsel %vm274, %v1483, -inf
    %1495 = vmax.xlane.f32.xlu0 %v1494
    %v1496 = vpop.xlane.xlu0 %1495
    %v1497 = vsub.f32 %v1441, %v1487
    %v1498 = vsub.f32 %v1444, %v1490
    %v1499 = vsub.f32 %v1480, %v1493
    %v1500 = vsub.f32 %v1483, %v1496
    %v1501 = vmul.f32 %v1497, 1.442695
    %v1502 = vpow.pop %v1501
    %v1503 = vmul.f32 %v1498, 1.442695
    %v1504 = vpow.pop %v1503
    %v1505 = vmul.f32 %v1499, 1.442695
    %v1506 = vpow.pop %v1505
    %v1507 = vmul.f32 %v1500, 1.442695
    %v1508 = vpow.pop %v1507
    %v1509 = vsel %vm274, %v1502, 0.0
    %1510 = vadd.xlane.f32.xlu0 %v1509
    %v1511 = vpop.xlane.xlu0 %1510
    %v1512 = vsel %vm274, %v1504, 0.0
    %1513 = vadd.xlane.f32.xlu0 %v1512
    %v1514 = vpop.xlane.xlu0 %1513
    %v1515 = vsel %vm274, %v1506, 0.0
    %1516 = vadd.xlane.f32.xlu0 %v1515
    %v1517 = vpop.xlane.xlu0 %1516
    %v1518 = vsel %vm274, %v1508, 0.0
    %1519 = vadd.xlane.f32.xlu0 %v1518
    %v1520 = vpop.xlane.xlu0 %1519
    %v1521 = vrcp.pop %v1511
    %v1522 = vmul.f32 %v1511, %v1521
    %v1523 = vsub.f32 1.0, %v1522
    %v1524 = vmul.f32 %v1521, %v1523
    %v1525 = vadd.f32 %v1521, %v1524
    %vm1526 = vweird.f32 %v1511
    %vm1527 = vweird.f32 %v1521
    %vm1528 = vmor %vm1526, %vm1527
    %v1529 = vsel %vm1528, %v1521, %v1525
    %v1530 = vand.u32 2147483647, %v1511
    %vm1531 = vcmp.eq.f32.partialorder %v1530, 8.507059e+37
    %v1532 = vand.u32 %v1511, 2147483648
    %v1533 = vor.u32 1.1754944e-38, %v1532
    %v1534 = vsel %vm1531, %v1533, %v1529
    %v1535 = vmul.f32 %v1502, %v1534
    %v1536 = vrcp.pop %v1514
    %v1537 = vmul.f32 %v1514, %v1536
    %v1538 = vsub.f32 1.0, %v1537
    %v1539 = vmul.f32 %v1536, %v1538
    %v1540 = vadd.f32 %v1536, %v1539
    %vm1541 = vweird.f32 %v1514
    %vm1542 = vweird.f32 %v1536
    %vm1543 = vmor %vm1541, %vm1542
    %v1544 = vsel %vm1543, %v1536, %v1540
    %v1545 = vand.u32 2147483647, %v1514
    %vm1546 = vcmp.eq.f32.partialorder %v1545, 8.507059e+37
    %v1547 = vand.u32 %v1514, 2147483648
    %v1548 = vor.u32 1.1754944e-38, %v1547
    %v1549 = vsel %vm1546, %v1548, %v1544
    %v1550 = vmul.f32 %v1504, %v1549
    %v1551 = vrcp.pop %v1517
    %v1552 = vmul.f32 %v1517, %v1551
    %v1553 = vsub.f32 1.0, %v1552
    %v1554 = vmul.f32 %v1551, %v1553
    %v1555 = vadd.f32 %v1551, %v1554
    %vm1556 = vweird.f32 %v1517
    %vm1557 = vweird.f32 %v1551
    %vm1558 = vmor %vm1556, %vm1557
    %v1559 = vsel %vm1558, %v1551, %v1555
    %v1560 = vand.u32 2147483647, %v1517
    %vm1561 = vcmp.eq.f32.partialorder %v1560, 8.507059e+37
    %v1562 = vand.u32 %v1517, 2147483648
    %v1563 = vor.u32 1.1754944e-38, %v1562
    %v1564 = vsel %vm1561, %v1563, %v1559
    %v1565 = vmul.f32 %v1506, %v1564
    %v1566 = vrcp.pop %v1520
    %v1567 = vmul.f32 %v1520, %v1566
    %v1568 = vsub.f32 1.0, %v1567
    %v1569 = vmul.f32 %v1566, %v1568
    %v1570 = vadd.f32 %v1566, %v1569
    %vm1571 = vweird.f32 %v1520
    %vm1572 = vweird.f32 %v1566
    %vm1573 = vmor %vm1571, %vm1572
    %v1574 = vsel %vm1573, %v1566, %v1570
    %v1575 = vand.u32 2147483647, %v1520
    %vm1576 = vcmp.eq.f32.partialorder %v1575, 8.507059e+37
    %v1577 = vand.u32 %v1520, 2147483648
    %v1578 = vor.u32 1.1754944e-38, %v1577
    %v1579 = vsel %vm1576, %v1578, %v1574
    %v1580 = vmul.f32 %v1508, %v1579
    %1581 = vrot.lane.b32.xlu0 %v243, 64
    %v1582 = vpop.permute.xlu0 %1581
    %1583 = vrot.lane.b32.xlu0 %v246, 64
    %v1584 = vpop.permute.xlu0 %1583
    %v1588 = vsel %vm274, %v1535, 0
    %v1591 = vsel %vm274, %v1550, 0
    %1593 = vmatpush.msra.mxu0 0.0
    %1594 = vmatpush.msra.mxu0 0.0
    %1595 = vmatpush.msra.mxu0 0.0
    %1596 = vmatpush.msra.mxu0 0.0
    %1597 = vmatpush.msra.mxu0 0.0
    %1598 = vmatpush.msra.mxu0 0.0
    %1599 = vmatpush.msra.mxu0 0.0
    %1600 = vmatpush.msra.mxu0 0.0
    %1601 = vmatpush.msra.mxu0 0.0
    %1602 = vmatpush.msra.mxu0 0.0
    %1603 = vmatpush.msra.mxu0 0.0
    %1604 = vmatpush.msra.mxu0 0.0
    %1605 = vmatpush.msra.mxu0 0.0
    %1606 = vmatpush.msra.mxu0 0.0
    %1607 = vmatpush.msra.mxu0 %v1584
    %1608 = vmatpush.msra.mxu0 %v1582
    %1609 = vmatmul.f32.gmra.mxu0 %v1588
    %v1610 = vpop.f32.mrf.mxu0
    %v1611 = vadd.f32 0.0, %v1610
    %1612 = vmatmul.f32.gmra.mxu0 %v1591
    %v1613 = vpop.f32.mrf.mxu0
    %v1614 = vadd.f32 0.0, %v1613
    %1615 = vdwg.mxu0
    %1616 = vrot.lane.b32.xlu0 %v249, 64
    %v1617 = vpop.permute.xlu0 %1616
    %1618 = vrot.lane.b32.xlu0 %v252, 64
    %v1619 = vpop.permute.xlu0 %1618
    %v1623 = vsel %vm274, %v1565, 0
    %v1626 = vsel %vm274, %v1580, 0
    %1628 = vmatpush.msra.mxu0 0.0
    %1629 = vmatpush.msra.mxu0 0.0
    %1630 = vmatpush.msra.mxu0 0.0
    %1631 = vmatpush.msra.mxu0 0.0
    %1632 = vmatpush.msra.mxu0 0.0
    %1633 = vmatpush.msra.mxu0 0.0
    %1634 = vmatpush.msra.mxu0 0.0
    %1635 = vmatpush.msra.mxu0 0.0
    %1636 = vmatpush.msra.mxu0 0.0
    %1637 = vmatpush.msra.mxu0 0.0
    %1638 = vmatpush.msra.mxu0 0.0
    %1639 = vmatpush.msra.mxu0 0.0
    %1640 = vmatpush.msra.mxu0 0.0
    %1641 = vmatpush.msra.mxu0 0.0
    %1642 = vmatpush.msra.mxu0 %v1619
    %1643 = vmatpush.msra.mxu0 %v1617
    %1644 = vmatmul.f32.gmra.mxu0 %v1623
    %v1645 = vpop.f32.mrf.mxu0
    %v1646 = vadd.f32 0.0, %v1645
    %1647 = vmatmul.f32.gmra.mxu0 %v1626
    %v1648 = vpop.f32.mrf.mxu0
    %v1649 = vadd.f32 0.0, %v1648
    %1650 = vdwg.mxu0
    %v1652 = vsel %vm274, %v1611, 0
    %v1655 = vsel %vm274, %v1614, 0
    %v1658 = vsel %vm274, %v1646, 0
    %v1661 = vsel %vm274, %v1649, 0
    %1663 = vmatpush.msra.mxu0 0.0
    %1664 = vmatpush.msra.mxu0 0.0
    %1665 = vmatpush.msra.mxu0 0.0
    %1666 = vmatpush.msra.mxu0 0.0
    %1667 = vmatpush.msra.mxu0 0.0
    %1668 = vmatpush.msra.mxu0 0.0
    %1669 = vmatpush.msra.mxu0 0.0
    %1670 = vmatpush.msra.mxu0 0.0
    %1671 = vmatpush.msra.mxu0 0.0
    %1672 = vmatpush.msra.mxu0 0.0
    %1673 = vmatpush.msra.mxu0 0.0
    %1674 = vmatpush.msra.mxu0 0.0
    %1675 = vmatpush.msra.mxu0 0.0
    %1676 = vmatpush.msra.mxu0 0.0
    %1677 = vmatpush.msra.mxu0 %v267
    %1678 = vmatpush.msra.mxu0 %v266
    %1679 = vmatmul.f32.gmra.mxu0 %v1652
    %v1680 = vpop.f32.mrf.mxu0
    %v1681 = vadd.f32 0.0, %v1680
    %1682 = vmatmul.f32.gmra.mxu0 %v1655
    %v1683 = vpop.f32.mrf.mxu0
    %v1684 = vadd.f32 0.0, %v1683
    %1685 = vmatmul.f32.gmra.mxu0 %v1658
    %v1686 = vpop.f32.mrf.mxu0
    %v1687 = vadd.f32 0.0, %v1686
    %1688 = vmatmul.f32.gmra.mxu0 %v1661
    %v1689 = vpop.f32.mrf.mxu0
    %v1690 = vadd.f32 0.0, %v1689
    %1691 = vdwg.mxu0
    %v1692 = vadd.f32 %v1403, %v1681
    %v1693 = vadd.f32 %v1404, %v1684
    %v1694 = vadd.f32 %v1405, %v1687
    %v1695 = vadd.f32 %v1406, %v1690
    %1696 = vrot.lane.b32.xlu0 %v254, 48
    %v1697 = vpop.permute.xlu0 %1696
    %1698 = vrot.lane.b32.xlu0 %v255, 48
    %v1699 = vpop.permute.xlu0 %1698
    %1700 = vrot.lane.b32.xlu0 %v214, 48
    %v1701 = vpop.permute.xlu0 %1700
    %1702 = vrot.lane.b32.xlu0 %v217, 48
    %v1703 = vpop.permute.xlu0 %1702
    %v1704 = vsel %vm274, %v1697, 0
    %v1706 = vsel %vm274, %v1699, 0
    %v1708 = vsel %vm274, %v1701, 0
    %v1710 = vsel %vm274, %v1703, 0
    %1712 = vmatpush.xpose.msra.mxu0 0.0
    %1713 = vmatpush.xpose.msra.mxu0 0.0
    %1714 = vmatpush.xpose.msra.mxu0 0.0
    %1715 = vmatpush.xpose.msra.mxu0 0.0
    %1716 = vmatpush.xpose.msra.mxu0 0.0
    %1717 = vmatpush.xpose.msra.mxu0 0.0
    %1718 = vmatpush.xpose.msra.mxu0 0.0
    %1719 = vmatpush.xpose.msra.mxu0 0.0
    %1720 = vmatpush.xpose.msra.mxu0 0.0
    %1721 = vmatpush.xpose.msra.mxu0 0.0
    %1722 = vmatpush.xpose.msra.mxu0 0.0
    %1723 = vmatpush.xpose.msra.mxu0 0.0
    %1724 = vmatpush.xpose.msra.mxu0 0.0
    %1725 = vmatpush.xpose.msra.mxu0 0.0
    %1726 = vmatpush.xpose.msra.mxu0 %v1710
    %1727 = vmatpush.xpose.msra.mxu0 %v1708
    %1728 = vmatmul.f32.gmra.mxu0 %v1704
    %v1729 = vpop.f32.mrf.mxu0
    %v1730 = vadd.f32 0.0, %v1729
    %1731 = vmatmul.f32.gmra.mxu0 %v1706
    %v1732 = vpop.f32.mrf.mxu0
    %v1733 = vadd.f32 0.0, %v1732
    %1734 = vdwg.mxu0
    %1735 = vrot.lane.b32.xlu0 %v256, 48
    %v1736 = vpop.permute.xlu0 %1735
    %1737 = vrot.lane.b32.xlu0 %v257, 48
    %v1738 = vpop.permute.xlu0 %1737
    %1739 = vrot.lane.b32.xlu0 %v220, 48
    %v1740 = vpop.permute.xlu0 %1739
    %1741 = vrot.lane.b32.xlu0 %v223, 48
    %v1742 = vpop.permute.xlu0 %1741
    %v1743 = vsel %vm274, %v1736, 0
    %v1745 = vsel %vm274, %v1738, 0
    %v1747 = vsel %vm274, %v1740, 0
    %v1749 = vsel %vm274, %v1742, 0
    %1751 = vmatpush.xpose.msra.mxu0 0.0
    %1752 = vmatpush.xpose.msra.mxu0 0.0
    %1753 = vmatpush.xpose.msra.mxu0 0.0
    %1754 = vmatpush.xpose.msra.mxu0 0.0
    %1755 = vmatpush.xpose.msra.mxu0 0.0
    %1756 = vmatpush.xpose.msra.mxu0 0.0
    %1757 = vmatpush.xpose.msra.mxu0 0.0
    %1758 = vmatpush.xpose.msra.mxu0 0.0
    %1759 = vmatpush.xpose.msra.mxu0 0.0
    %1760 = vmatpush.xpose.msra.mxu0 0.0
    %1761 = vmatpush.xpose.msra.mxu0 0.0
    %1762 = vmatpush.xpose.msra.mxu0 0.0
    %1763 = vmatpush.xpose.msra.mxu0 0.0
    %1764 = vmatpush.xpose.msra.mxu0 0.0
    %1765 = vmatpush.xpose.msra.mxu0 %v1749
    %1766 = vmatpush.xpose.msra.mxu0 %v1747
    %1767 = vmatmul.f32.gmra.mxu0 %v1743
    %v1768 = vpop.f32.mrf.mxu0
    %v1769 = vadd.f32 0.0, %v1768
    %1770 = vmatmul.f32.gmra.mxu0 %v1745
    %v1771 = vpop.f32.mrf.mxu0
    %v1772 = vadd.f32 0.0, %v1771
    %1773 = vdwg.mxu0
    %v1774 = vsel %vm274, %v1730, -inf
    %1775 = vmax.xlane.f32.xlu0 %v1774
    %v1776 = vpop.xlane.xlu0 %1775
    %v1777 = vsel %vm274, %v1733, -inf
    %1778 = vmax.xlane.f32.xlu0 %v1777
    %v1779 = vpop.xlane.xlu0 %1778
    %v1780 = vsel %vm274, %v1769, -inf
    %1781 = vmax.xlane.f32.xlu0 %v1780
    %v1782 = vpop.xlane.xlu0 %1781
    %v1783 = vsel %vm274, %v1772, -inf
    %1784 = vmax.xlane.f32.xlu0 %v1783
    %v1785 = vpop.xlane.xlu0 %1784
    %v1786 = vsub.f32 %v1730, %v1776
    %v1787 = vsub.f32 %v1733, %v1779
    %v1788 = vsub.f32 %v1769, %v1782
    %v1789 = vsub.f32 %v1772, %v1785
    %v1790 = vmul.f32 %v1786, 1.442695
    %v1791 = vpow.pop %v1790
    %v1792 = vmul.f32 %v1787, 1.442695
    %v1793 = vpow.pop %v1792
    %v1794 = vmul.f32 %v1788, 1.442695
    %v1795 = vpow.pop %v1794
    %v1796 = vmul.f32 %v1789, 1.442695
    %v1797 = vpow.pop %v1796
    %v1798 = vsel %vm274, %v1791, 0.0
    %1799 = vadd.xlane.f32.xlu0 %v1798
    %v1800 = vpop.xlane.xlu0 %1799
    %v1801 = vsel %vm274, %v1793, 0.0
    %1802 = vadd.xlane.f32.xlu0 %v1801
    %v1803 = vpop.xlane.xlu0 %1802
    %v1804 = vsel %vm274, %v1795, 0.0
    %1805 = vadd.xlane.f32.xlu0 %v1804
    %v1806 = vpop.xlane.xlu0 %1805
    %v1807 = vsel %vm274, %v1797, 0.0
    %1808 = vadd.xlane.f32.xlu0 %v1807
    %v1809 = vpop.xlane.xlu0 %1808
    %v1810 = vrcp.pop %v1800
    %v1811 = vmul.f32 %v1800, %v1810
    %v1812 = vsub.f32 1.0, %v1811
    %v1813 = vmul.f32 %v1810, %v1812
    %v1814 = vadd.f32 %v1810, %v1813
    %vm1815 = vweird.f32 %v1800
    %vm1816 = vweird.f32 %v1810
    %vm1817 = vmor %vm1815, %vm1816
    %v1818 = vsel %vm1817, %v1810, %v1814
    %v1819 = vand.u32 2147483647, %v1800
    %vm1820 = vcmp.eq.f32.partialorder %v1819, 8.507059e+37
    %v1821 = vand.u32 %v1800, 2147483648
    %v1822 = vor.u32 1.1754944e-38, %v1821
    %v1823 = vsel %vm1820, %v1822, %v1818
    %v1824 = vmul.f32 %v1791, %v1823
    %v1825 = vrcp.pop %v1803
    %v1826 = vmul.f32 %v1803, %v1825
    %v1827 = vsub.f32 1.0, %v1826
    %v1828 = vmul.f32 %v1825, %v1827
    %v1829 = vadd.f32 %v1825, %v1828
    %vm1830 = vweird.f32 %v1803
    %vm1831 = vweird.f32 %v1825
    %vm1832 = vmor %vm1830, %vm1831
    %v1833 = vsel %vm1832, %v1825, %v1829
    %v1834 = vand.u32 2147483647, %v1803
    %vm1835 = vcmp.eq.f32.partialorder %v1834, 8.507059e+37
    %v1836 = vand.u32 %v1803, 2147483648
    %v1837 = vor.u32 1.1754944e-38, %v1836
    %v1838 = vsel %vm1835, %v1837, %v1833
    %v1839 = vmul.f32 %v1793, %v1838
    %v1840 = vrcp.pop %v1806
    %v1841 = vmul.f32 %v1806, %v1840
    %v1842 = vsub.f32 1.0, %v1841
    %v1843 = vmul.f32 %v1840, %v1842
    %v1844 = vadd.f32 %v1840, %v1843
    %vm1845 = vweird.f32 %v1806
    %vm1846 = vweird.f32 %v1840
    %vm1847 = vmor %vm1845, %vm1846
    %v1848 = vsel %vm1847, %v1840, %v1844
    %v1849 = vand.u32 2147483647, %v1806
    %vm1850 = vcmp.eq.f32.partialorder %v1849, 8.507059e+37
    %v1851 = vand.u32 %v1806, 2147483648
    %v1852 = vor.u32 1.1754944e-38, %v1851
    %v1853 = vsel %vm1850, %v1852, %v1848
    %v1854 = vmul.f32 %v1795, %v1853
    %v1855 = vrcp.pop %v1809
    %v1856 = vmul.f32 %v1809, %v1855
    %v1857 = vsub.f32 1.0, %v1856
    %v1858 = vmul.f32 %v1855, %v1857
    %v1859 = vadd.f32 %v1855, %v1858
    %vm1860 = vweird.f32 %v1809
    %vm1861 = vweird.f32 %v1855
    %vm1862 = vmor %vm1860, %vm1861
    %v1863 = vsel %vm1862, %v1855, %v1859
    %v1864 = vand.u32 2147483647, %v1809
    %vm1865 = vcmp.eq.f32.partialorder %v1864, 8.507059e+37
    %v1866 = vand.u32 %v1809, 2147483648
    %v1867 = vor.u32 1.1754944e-38, %v1866
    %v1868 = vsel %vm1865, %v1867, %v1863
    %v1869 = vmul.f32 %v1797, %v1868
    %1870 = vrot.lane.b32.xlu0 %v243, 48
    %v1871 = vpop.permute.xlu0 %1870
    %1872 = vrot.lane.b32.xlu0 %v246, 48
    %v1873 = vpop.permute.xlu0 %1872
    %v1877 = vsel %vm274, %v1824, 0
    %v1880 = vsel %vm274, %v1839, 0
    %1882 = vmatpush.msra.mxu0 0.0
    %1883 = vmatpush.msra.mxu0 0.0
    %1884 = vmatpush.msra.mxu0 0.0
    %1885 = vmatpush.msra.mxu0 0.0
    %1886 = vmatpush.msra.mxu0 0.0
    %1887 = vmatpush.msra.mxu0 0.0
    %1888 = vmatpush.msra.mxu0 0.0
    %1889 = vmatpush.msra.mxu0 0.0
    %1890 = vmatpush.msra.mxu0 0.0
    %1891 = vmatpush.msra.mxu0 0.0
    %1892 = vmatpush.msra.mxu0 0.0
    %1893 = vmatpush.msra.mxu0 0.0
    %1894 = vmatpush.msra.mxu0 0.0
    %1895 = vmatpush.msra.mxu0 0.0
    %1896 = vmatpush.msra.mxu0 %v1873
    %1897 = vmatpush.msra.mxu0 %v1871
    %1898 = vmatmul.f32.gmra.mxu0 %v1877
    %v1899 = vpop.f32.mrf.mxu0
    %v1900 = vadd.f32 0.0, %v1899
    %1901 = vmatmul.f32.gmra.mxu0 %v1880
    %v1902 = vpop.f32.mrf.mxu0
    %v1903 = vadd.f32 0.0, %v1902
    %1904 = vdwg.mxu0
    %1905 = vrot.lane.b32.xlu0 %v249, 48
    %v1906 = vpop.permute.xlu0 %1905
    %1907 = vrot.lane.b32.xlu0 %v252, 48
    %v1908 = vpop.permute.xlu0 %1907
    %v1912 = vsel %vm274, %v1854, 0
    %v1915 = vsel %vm274, %v1869, 0
    %1917 = vmatpush.msra.mxu0 0.0
    %1918 = vmatpush.msra.mxu0 0.0
    %1919 = vmatpush.msra.mxu0 0.0
    %1920 = vmatpush.msra.mxu0 0.0
    %1921 = vmatpush.msra.mxu0 0.0
    %1922 = vmatpush.msra.mxu0 0.0
    %1923 = vmatpush.msra.mxu0 0.0
    %1924 = vmatpush.msra.mxu0 0.0
    %1925 = vmatpush.msra.mxu0 0.0
    %1926 = vmatpush.msra.mxu0 0.0
    %1927 = vmatpush.msra.mxu0 0.0
    %1928 = vmatpush.msra.mxu0 0.0
    %1929 = vmatpush.msra.mxu0 0.0
    %1930 = vmatpush.msra.mxu0 0.0
    %1931 = vmatpush.msra.mxu0 %v1908
    %1932 = vmatpush.msra.mxu0 %v1906
    %1933 = vmatmul.f32.gmra.mxu0 %v1912
    %v1934 = vpop.f32.mrf.mxu0
    %v1935 = vadd.f32 0.0, %v1934
    %1936 = vmatmul.f32.gmra.mxu0 %v1915
    %v1937 = vpop.f32.mrf.mxu0
    %v1938 = vadd.f32 0.0, %v1937
    %1939 = vdwg.mxu0
    %v1941 = vsel %vm274, %v1900, 0
    %v1944 = vsel %vm274, %v1903, 0
    %v1947 = vsel %vm274, %v1935, 0
    %v1950 = vsel %vm274, %v1938, 0
    %1952 = vmatpush.msra.mxu0 0.0
    %1953 = vmatpush.msra.mxu0 0.0
    %1954 = vmatpush.msra.mxu0 0.0
    %1955 = vmatpush.msra.mxu0 0.0
    %1956 = vmatpush.msra.mxu0 0.0
    %1957 = vmatpush.msra.mxu0 0.0
    %1958 = vmatpush.msra.mxu0 0.0
    %1959 = vmatpush.msra.mxu0 0.0
    %1960 = vmatpush.msra.mxu0 0.0
    %1961 = vmatpush.msra.mxu0 0.0
    %1962 = vmatpush.msra.mxu0 0.0
    %1963 = vmatpush.msra.mxu0 0.0
    %1964 = vmatpush.msra.mxu0 0.0
    %1965 = vmatpush.msra.mxu0 0.0
    %1966 = vmatpush.msra.mxu0 %v269
    %1967 = vmatpush.msra.mxu0 %v268
    %1968 = vmatmul.f32.gmra.mxu0 %v1941
    %v1969 = vpop.f32.mrf.mxu0
    %v1970 = vadd.f32 0.0, %v1969
    %1971 = vmatmul.f32.gmra.mxu0 %v1944
    %v1972 = vpop.f32.mrf.mxu0
    %v1973 = vadd.f32 0.0, %v1972
    %1974 = vmatmul.f32.gmra.mxu0 %v1947
    %v1975 = vpop.f32.mrf.mxu0
    %v1976 = vadd.f32 0.0, %v1975
    %1977 = vmatmul.f32.gmra.mxu0 %v1950
    %v1978 = vpop.f32.mrf.mxu0
    %v1979 = vadd.f32 0.0, %v1978
    %1980 = vdwg.mxu0
    %v1981 = vadd.f32 %v1692, %v1970
    %v1982 = vadd.f32 %v1693, %v1973
    %v1983 = vadd.f32 %v1694, %v1976
    %v1984 = vadd.f32 %v1695, %v1979
    %1985 = vrot.lane.b32.xlu0 %v254, 32
    %v1986 = vpop.permute.xlu0 %1985
    %1987 = vrot.lane.b32.xlu0 %v255, 32
    %v1988 = vpop.permute.xlu0 %1987
    %1989 = vrot.lane.b32.xlu0 %v214, 32
    %v1990 = vpop.permute.xlu0 %1989
    %1991 = vrot.lane.b32.xlu0 %v217, 32
    %v1992 = vpop.permute.xlu0 %1991
    %v1993 = vsel %vm274, %v1986, 0
    %v1995 = vsel %vm274, %v1988, 0
    %v1997 = vsel %vm274, %v1990, 0
    %v1999 = vsel %vm274, %v1992, 0
    %2001 = vmatpush.xpose.msra.mxu0 0.0
    %2002 = vmatpush.xpose.msra.mxu0 0.0
    %2003 = vmatpush.xpose.msra.mxu0 0.0
    %2004 = vmatpush.xpose.msra.mxu0 0.0
    %2005 = vmatpush.xpose.msra.mxu0 0.0
    %2006 = vmatpush.xpose.msra.mxu0 0.0
    %2007 = vmatpush.xpose.msra.mxu0 0.0
    %2008 = vmatpush.xpose.msra.mxu0 0.0
    %2009 = vmatpush.xpose.msra.mxu0 0.0
    %2010 = vmatpush.xpose.msra.mxu0 0.0
    %2011 = vmatpush.xpose.msra.mxu0 0.0
    %2012 = vmatpush.xpose.msra.mxu0 0.0
    %2013 = vmatpush.xpose.msra.mxu0 0.0
    %2014 = vmatpush.xpose.msra.mxu0 0.0
    %2015 = vmatpush.xpose.msra.mxu0 %v1999
    %2016 = vmatpush.xpose.msra.mxu0 %v1997
    %2017 = vmatmul.f32.gmra.mxu0 %v1993
    %v2018 = vpop.f32.mrf.mxu0
    %v2019 = vadd.f32 0.0, %v2018
    %2020 = vmatmul.f32.gmra.mxu0 %v1995
    %v2021 = vpop.f32.mrf.mxu0
    %v2022 = vadd.f32 0.0, %v2021
    %2023 = vdwg.mxu0
    %2024 = vrot.lane.b32.xlu0 %v256, 32
    %v2025 = vpop.permute.xlu0 %2024
    %2026 = vrot.lane.b32.xlu0 %v257, 32
    %v2027 = vpop.permute.xlu0 %2026
    %2028 = vrot.lane.b32.xlu0 %v220, 32
    %v2029 = vpop.permute.xlu0 %2028
    %2030 = vrot.lane.b32.xlu0 %v223, 32
    %v2031 = vpop.permute.xlu0 %2030
    %v2032 = vsel %vm274, %v2025, 0
    %v2034 = vsel %vm274, %v2027, 0
    %v2036 = vsel %vm274, %v2029, 0
    %v2038 = vsel %vm274, %v2031, 0
    %2040 = vmatpush.xpose.msra.mxu0 0.0
    %2041 = vmatpush.xpose.msra.mxu0 0.0
    %2042 = vmatpush.xpose.msra.mxu0 0.0
    %2043 = vmatpush.xpose.msra.mxu0 0.0
    %2044 = vmatpush.xpose.msra.mxu0 0.0
    %2045 = vmatpush.xpose.msra.mxu0 0.0
    %2046 = vmatpush.xpose.msra.mxu0 0.0
    %2047 = vmatpush.xpose.msra.mxu0 0.0
    %2048 = vmatpush.xpose.msra.mxu0 0.0
    %2049 = vmatpush.xpose.msra.mxu0 0.0
    %2050 = vmatpush.xpose.msra.mxu0 0.0
    %2051 = vmatpush.xpose.msra.mxu0 0.0
    %2052 = vmatpush.xpose.msra.mxu0 0.0
    %2053 = vmatpush.xpose.msra.mxu0 0.0
    %2054 = vmatpush.xpose.msra.mxu0 %v2038
    %2055 = vmatpush.xpose.msra.mxu0 %v2036
    %2056 = vmatmul.f32.gmra.mxu0 %v2032
    %v2057 = vpop.f32.mrf.mxu0
    %v2058 = vadd.f32 0.0, %v2057
    %2059 = vmatmul.f32.gmra.mxu0 %v2034
    %v2060 = vpop.f32.mrf.mxu0
    %v2061 = vadd.f32 0.0, %v2060
    %2062 = vdwg.mxu0
    %v2063 = vsel %vm274, %v2019, -inf
    %2064 = vmax.xlane.f32.xlu0 %v2063
    %v2065 = vpop.xlane.xlu0 %2064
    %v2066 = vsel %vm274, %v2022, -inf
    %2067 = vmax.xlane.f32.xlu0 %v2066
    %v2068 = vpop.xlane.xlu0 %2067
    %v2069 = vsel %vm274, %v2058, -inf
    %2070 = vmax.xlane.f32.xlu0 %v2069
    %v2071 = vpop.xlane.xlu0 %2070
    %v2072 = vsel %vm274, %v2061, -inf
    %2073 = vmax.xlane.f32.xlu0 %v2072
    %v2074 = vpop.xlane.xlu0 %2073
    %v2075 = vsub.f32 %v2019, %v2065
    %v2076 = vsub.f32 %v2022, %v2068
    %v2077 = vsub.f32 %v2058, %v2071
    %v2078 = vsub.f32 %v2061, %v2074
    %v2079 = vmul.f32 %v2075, 1.442695
    %v2080 = vpow.pop %v2079
    %v2081 = vmul.f32 %v2076, 1.442695
    %v2082 = vpow.pop %v2081
    %v2083 = vmul.f32 %v2077, 1.442695
    %v2084 = vpow.pop %v2083
    %v2085 = vmul.f32 %v2078, 1.442695
    %v2086 = vpow.pop %v2085
    %v2087 = vsel %vm274, %v2080, 0.0
    %2088 = vadd.xlane.f32.xlu0 %v2087
    %v2089 = vpop.xlane.xlu0 %2088
    %v2090 = vsel %vm274, %v2082, 0.0
    %2091 = vadd.xlane.f32.xlu0 %v2090
    %v2092 = vpop.xlane.xlu0 %2091
    %v2093 = vsel %vm274, %v2084, 0.0
    %2094 = vadd.xlane.f32.xlu0 %v2093
    %v2095 = vpop.xlane.xlu0 %2094
    %v2096 = vsel %vm274, %v2086, 0.0
    %2097 = vadd.xlane.f32.xlu0 %v2096
    %v2098 = vpop.xlane.xlu0 %2097
    %v2099 = vrcp.pop %v2089
    %v2100 = vmul.f32 %v2089, %v2099
    %v2101 = vsub.f32 1.0, %v2100
    %v2102 = vmul.f32 %v2099, %v2101
    %v2103 = vadd.f32 %v2099, %v2102
    %vm2104 = vweird.f32 %v2089
    %vm2105 = vweird.f32 %v2099
    %vm2106 = vmor %vm2104, %vm2105
    %v2107 = vsel %vm2106, %v2099, %v2103
    %v2108 = vand.u32 2147483647, %v2089
    %vm2109 = vcmp.eq.f32.partialorder %v2108, 8.507059e+37
    %v2110 = vand.u32 %v2089, 2147483648
    %v2111 = vor.u32 1.1754944e-38, %v2110
    %v2112 = vsel %vm2109, %v2111, %v2107
    %v2113 = vmul.f32 %v2080, %v2112
    %v2114 = vrcp.pop %v2092
    %v2115 = vmul.f32 %v2092, %v2114
    %v2116 = vsub.f32 1.0, %v2115
    %v2117 = vmul.f32 %v2114, %v2116
    %v2118 = vadd.f32 %v2114, %v2117
    %vm2119 = vweird.f32 %v2092
    %vm2120 = vweird.f32 %v2114
    %vm2121 = vmor %vm2119, %vm2120
    %v2122 = vsel %vm2121, %v2114, %v2118
    %v2123 = vand.u32 2147483647, %v2092
    %vm2124 = vcmp.eq.f32.partialorder %v2123, 8.507059e+37
    %v2125 = vand.u32 %v2092, 2147483648
    %v2126 = vor.u32 1.1754944e-38, %v2125
    %v2127 = vsel %vm2124, %v2126, %v2122
    %v2128 = vmul.f32 %v2082, %v2127
    %v2129 = vrcp.pop %v2095
    %v2130 = vmul.f32 %v2095, %v2129
    %v2131 = vsub.f32 1.0, %v2130
    %v2132 = vmul.f32 %v2129, %v2131
    %v2133 = vadd.f32 %v2129, %v2132
    %vm2134 = vweird.f32 %v2095
    %vm2135 = vweird.f32 %v2129
    %vm2136 = vmor %vm2134, %vm2135
    %v2137 = vsel %vm2136, %v2129, %v2133
    %v2138 = vand.u32 2147483647, %v2095
    %vm2139 = vcmp.eq.f32.partialorder %v2138, 8.507059e+37
    %v2140 = vand.u32 %v2095, 2147483648
    %v2141 = vor.u32 1.1754944e-38, %v2140
    %v2142 = vsel %vm2139, %v2141, %v2137
    %v2143 = vmul.f32 %v2084, %v2142
    %v2144 = vrcp.pop %v2098
    %v2145 = vmul.f32 %v2098, %v2144
    %v2146 = vsub.f32 1.0, %v2145
    %v2147 = vmul.f32 %v2144, %v2146
    %v2148 = vadd.f32 %v2144, %v2147
    %vm2149 = vweird.f32 %v2098
    %vm2150 = vweird.f32 %v2144
    %vm2151 = vmor %vm2149, %vm2150
    %v2152 = vsel %vm2151, %v2144, %v2148
    %v2153 = vand.u32 2147483647, %v2098
    %vm2154 = vcmp.eq.f32.partialorder %v2153, 8.507059e+37
    %v2155 = vand.u32 %v2098, 2147483648
    %v2156 = vor.u32 1.1754944e-38, %v2155
    %v2157 = vsel %vm2154, %v2156, %v2152
    %v2158 = vmul.f32 %v2086, %v2157
    %2159 = vrot.lane.b32.xlu0 %v243, 32
    %v2160 = vpop.permute.xlu0 %2159
    %2161 = vrot.lane.b32.xlu0 %v246, 32
    %v2162 = vpop.permute.xlu0 %2161
    %v2166 = vsel %vm274, %v2113, 0
    %v2169 = vsel %vm274, %v2128, 0
    %2171 = vmatpush.msra.mxu0 0.0
    %2172 = vmatpush.msra.mxu0 0.0
    %2173 = vmatpush.msra.mxu0 0.0
    %2174 = vmatpush.msra.mxu0 0.0
    %2175 = vmatpush.msra.mxu0 0.0
    %2176 = vmatpush.msra.mxu0 0.0
    %2177 = vmatpush.msra.mxu0 0.0
    %2178 = vmatpush.msra.mxu0 0.0
    %2179 = vmatpush.msra.mxu0 0.0
    %2180 = vmatpush.msra.mxu0 0.0
    %2181 = vmatpush.msra.mxu0 0.0
    %2182 = vmatpush.msra.mxu0 0.0
    %2183 = vmatpush.msra.mxu0 0.0
    %2184 = vmatpush.msra.mxu0 0.0
    %2185 = vmatpush.msra.mxu0 %v2162
    %2186 = vmatpush.msra.mxu0 %v2160
    %2187 = vmatmul.f32.gmra.mxu0 %v2166
    %v2188 = vpop.f32.mrf.mxu0
    %v2189 = vadd.f32 0.0, %v2188
    %2190 = vmatmul.f32.gmra.mxu0 %v2169
    %v2191 = vpop.f32.mrf.mxu0
    %v2192 = vadd.f32 0.0, %v2191
    %2193 = vdwg.mxu0
    %2194 = vrot.lane.b32.xlu0 %v249, 32
    %v2195 = vpop.permute.xlu0 %2194
    %2196 = vrot.lane.b32.xlu0 %v252, 32
    %v2197 = vpop.permute.xlu0 %2196
    %v2201 = vsel %vm274, %v2143, 0
    %v2204 = vsel %vm274, %v2158, 0
    %2206 = vmatpush.msra.mxu0 0.0
    %2207 = vmatpush.msra.mxu0 0.0
    %2208 = vmatpush.msra.mxu0 0.0
    %2209 = vmatpush.msra.mxu0 0.0
    %2210 = vmatpush.msra.mxu0 0.0
    %2211 = vmatpush.msra.mxu0 0.0
    %2212 = vmatpush.msra.mxu0 0.0
    %2213 = vmatpush.msra.mxu0 0.0
    %2214 = vmatpush.msra.mxu0 0.0
    %2215 = vmatpush.msra.mxu0 0.0
    %2216 = vmatpush.msra.mxu0 0.0
    %2217 = vmatpush.msra.mxu0 0.0
    %2218 = vmatpush.msra.mxu0 0.0
    %2219 = vmatpush.msra.mxu0 0.0
    %2220 = vmatpush.msra.mxu0 %v2197
    %2221 = vmatpush.msra.mxu0 %v2195
    %2222 = vmatmul.f32.gmra.mxu0 %v2201
    %v2223 = vpop.f32.mrf.mxu0
    %v2224 = vadd.f32 0.0, %v2223
    %2225 = vmatmul.f32.gmra.mxu0 %v2204
    %v2226 = vpop.f32.mrf.mxu0
    %v2227 = vadd.f32 0.0, %v2226
    %2228 = vdwg.mxu0
    %v2230 = vsel %vm274, %v2189, 0
    %v2233 = vsel %vm274, %v2192, 0
    %v2236 = vsel %vm274, %v2224, 0
    %v2239 = vsel %vm274, %v2227, 0
    %2241 = vmatpush.msra.mxu0 0.0
    %2242 = vmatpush.msra.mxu0 0.0
    %2243 = vmatpush.msra.mxu0 0.0
    %2244 = vmatpush.msra.mxu0 0.0
    %2245 = vmatpush.msra.mxu0 0.0
    %2246 = vmatpush.msra.mxu0 0.0
    %2247 = vmatpush.msra.mxu0 0.0
    %2248 = vmatpush.msra.mxu0 0.0
    %2249 = vmatpush.msra.mxu0 0.0
    %2250 = vmatpush.msra.mxu0 0.0
    %2251 = vmatpush.msra.mxu0 0.0
    %2252 = vmatpush.msra.mxu0 0.0
    %2253 = vmatpush.msra.mxu0 0.0
    %2254 = vmatpush.msra.mxu0 0.0
    %2255 = vmatpush.msra.mxu0 %v271
    %2256 = vmatpush.msra.mxu0 %v270
    %2257 = vmatmul.f32.gmra.mxu0 %v2230
    %v2258 = vpop.f32.mrf.mxu0
    %v2259 = vadd.f32 0.0, %v2258
    %2260 = vmatmul.f32.gmra.mxu0 %v2233
    %v2261 = vpop.f32.mrf.mxu0
    %v2262 = vadd.f32 0.0, %v2261
    %2263 = vmatmul.f32.gmra.mxu0 %v2236
    %v2264 = vpop.f32.mrf.mxu0
    %v2265 = vadd.f32 0.0, %v2264
    %2266 = vmatmul.f32.gmra.mxu0 %v2239
    %v2267 = vpop.f32.mrf.mxu0
    %v2268 = vadd.f32 0.0, %v2267
    %2269 = vdwg.mxu0
    %v2270 = vadd.f32 %v1981, %v2259
    %v2271 = vadd.f32 %v1982, %v2262
    %v2272 = vadd.f32 %v1983, %v2265
    %v2273 = vadd.f32 %v1984, %v2268
    %2274 = vrot.lane.b32.xlu0 %v254, 16
    %v2275 = vpop.permute.xlu0 %2274
    %2276 = vrot.lane.b32.xlu0 %v255, 16
    %v2277 = vpop.permute.xlu0 %2276
    %2278 = vrot.lane.b32.xlu0 %v214, 16
    %v2279 = vpop.permute.xlu0 %2278
    %2280 = vrot.lane.b32.xlu0 %v217, 16
    %v2281 = vpop.permute.xlu0 %2280
    %v2282 = vsel %vm274, %v2275, 0
    %v2284 = vsel %vm274, %v2277, 0
    %v2286 = vsel %vm274, %v2279, 0
    %v2288 = vsel %vm274, %v2281, 0
    %2290 = vmatpush.xpose.msra.mxu0 0.0
    %2291 = vmatpush.xpose.msra.mxu0 0.0
    %2292 = vmatpush.xpose.msra.mxu0 0.0
    %2293 = vmatpush.xpose.msra.mxu0 0.0
    %2294 = vmatpush.xpose.msra.mxu0 0.0
    %2295 = vmatpush.xpose.msra.mxu0 0.0
    %2296 = vmatpush.xpose.msra.mxu0 0.0
    %2297 = vmatpush.xpose.msra.mxu0 0.0
    %2298 = vmatpush.xpose.msra.mxu0 0.0
    %2299 = vmatpush.xpose.msra.mxu0 0.0
    %2300 = vmatpush.xpose.msra.mxu0 0.0
    %2301 = vmatpush.xpose.msra.mxu0 0.0
    %2302 = vmatpush.xpose.msra.mxu0 0.0
    %2303 = vmatpush.xpose.msra.mxu0 0.0
    %2304 = vmatpush.xpose.msra.mxu0 %v2288
    %2305 = vmatpush.xpose.msra.mxu0 %v2286
    %2306 = vmatmul.f32.gmra.mxu0 %v2282
    %v2307 = vpop.f32.mrf.mxu0
    %v2308 = vadd.f32 0.0, %v2307
    %2309 = vmatmul.f32.gmra.mxu0 %v2284
    %v2310 = vpop.f32.mrf.mxu0
    %v2311 = vadd.f32 0.0, %v2310
    %2312 = vdwg.mxu0
    %2313 = vrot.lane.b32.xlu0 %v256, 16
    %v2314 = vpop.permute.xlu0 %2313
    %2315 = vrot.lane.b32.xlu0 %v257, 16
    %v2316 = vpop.permute.xlu0 %2315
    %2317 = vrot.lane.b32.xlu0 %v220, 16
    %v2318 = vpop.permute.xlu0 %2317
    %2319 = vrot.lane.b32.xlu0 %v223, 16
    %v2320 = vpop.permute.xlu0 %2319
    %v2321 = vsel %vm274, %v2314, 0
    %v2323 = vsel %vm274, %v2316, 0
    %v2325 = vsel %vm274, %v2318, 0
    %v2327 = vsel %vm274, %v2320, 0
    %2329 = vmatpush.xpose.msra.mxu0 0.0
    %2330 = vmatpush.xpose.msra.mxu0 0.0
    %2331 = vmatpush.xpose.msra.mxu0 0.0
    %2332 = vmatpush.xpose.msra.mxu0 0.0
    %2333 = vmatpush.xpose.msra.mxu0 0.0
    %2334 = vmatpush.xpose.msra.mxu0 0.0
    %2335 = vmatpush.xpose.msra.mxu0 0.0
    %2336 = vmatpush.xpose.msra.mxu0 0.0
    %2337 = vmatpush.xpose.msra.mxu0 0.0
    %2338 = vmatpush.xpose.msra.mxu0 0.0
    %2339 = vmatpush.xpose.msra.mxu0 0.0
    %2340 = vmatpush.xpose.msra.mxu0 0.0
    %2341 = vmatpush.xpose.msra.mxu0 0.0
    %2342 = vmatpush.xpose.msra.mxu0 0.0
    %2343 = vmatpush.xpose.msra.mxu0 %v2327
    %2344 = vmatpush.xpose.msra.mxu0 %v2325
    %2345 = vmatmul.f32.gmra.mxu0 %v2321
    %v2346 = vpop.f32.mrf.mxu0
    %v2347 = vadd.f32 0.0, %v2346
    %2348 = vmatmul.f32.gmra.mxu0 %v2323
    %v2349 = vpop.f32.mrf.mxu0
    %v2350 = vadd.f32 0.0, %v2349
    %2351 = vdwg.mxu0
    %v2352 = vsel %vm274, %v2308, -inf
    %2353 = vmax.xlane.f32.xlu0 %v2352
    %v2354 = vpop.xlane.xlu0 %2353
    %v2355 = vsel %vm274, %v2311, -inf
    %2356 = vmax.xlane.f32.xlu0 %v2355
    %v2357 = vpop.xlane.xlu0 %2356
    %v2358 = vsel %vm274, %v2347, -inf
    %2359 = vmax.xlane.f32.xlu0 %v2358
    %v2360 = vpop.xlane.xlu0 %2359
    %v2361 = vsel %vm274, %v2350, -inf
    %2362 = vmax.xlane.f32.xlu0 %v2361
    %v2363 = vpop.xlane.xlu0 %2362
    %v2364 = vsub.f32 %v2308, %v2354
    %v2365 = vsub.f32 %v2311, %v2357
    %v2366 = vsub.f32 %v2347, %v2360
    %v2367 = vsub.f32 %v2350, %v2363
    %v2368 = vmul.f32 %v2364, 1.442695
    %v2369 = vpow.pop %v2368
    %v2370 = vmul.f32 %v2365, 1.442695
    %v2371 = vpow.pop %v2370
    %v2372 = vmul.f32 %v2366, 1.442695
    %v2373 = vpow.pop %v2372
    %v2374 = vmul.f32 %v2367, 1.442695
    %v2375 = vpow.pop %v2374
    %v2376 = vsel %vm274, %v2369, 0.0
    %2377 = vadd.xlane.f32.xlu0 %v2376
    %v2378 = vpop.xlane.xlu0 %2377
    %v2379 = vsel %vm274, %v2371, 0.0
    %2380 = vadd.xlane.f32.xlu0 %v2379
    %v2381 = vpop.xlane.xlu0 %2380
    %v2382 = vsel %vm274, %v2373, 0.0
    %2383 = vadd.xlane.f32.xlu0 %v2382
    %v2384 = vpop.xlane.xlu0 %2383
    %v2385 = vsel %vm274, %v2375, 0.0
    %2386 = vadd.xlane.f32.xlu0 %v2385
    %v2387 = vpop.xlane.xlu0 %2386
    %v2388 = vrcp.pop %v2378
    %v2389 = vmul.f32 %v2378, %v2388
    %v2390 = vsub.f32 1.0, %v2389
    %v2391 = vmul.f32 %v2388, %v2390
    %v2392 = vadd.f32 %v2388, %v2391
    %vm2393 = vweird.f32 %v2378
    %vm2394 = vweird.f32 %v2388
    %vm2395 = vmor %vm2393, %vm2394
    %v2396 = vsel %vm2395, %v2388, %v2392
    %v2397 = vand.u32 2147483647, %v2378
    %vm2398 = vcmp.eq.f32.partialorder %v2397, 8.507059e+37
    %v2399 = vand.u32 %v2378, 2147483648
    %v2400 = vor.u32 1.1754944e-38, %v2399
    %v2401 = vsel %vm2398, %v2400, %v2396
    %v2402 = vmul.f32 %v2369, %v2401
    %v2403 = vrcp.pop %v2381
    %v2404 = vmul.f32 %v2381, %v2403
    %v2405 = vsub.f32 1.0, %v2404
    %v2406 = vmul.f32 %v2403, %v2405
    %v2407 = vadd.f32 %v2403, %v2406
    %vm2408 = vweird.f32 %v2381
    %vm2409 = vweird.f32 %v2403
    %vm2410 = vmor %vm2408, %vm2409
    %v2411 = vsel %vm2410, %v2403, %v2407
    %v2412 = vand.u32 2147483647, %v2381
    %vm2413 = vcmp.eq.f32.partialorder %v2412, 8.507059e+37
    %v2414 = vand.u32 %v2381, 2147483648
    %v2415 = vor.u32 1.1754944e-38, %v2414
    %v2416 = vsel %vm2413, %v2415, %v2411
    %v2417 = vmul.f32 %v2371, %v2416
    %v2418 = vrcp.pop %v2384
    %v2419 = vmul.f32 %v2384, %v2418
    %v2420 = vsub.f32 1.0, %v2419
    %v2421 = vmul.f32 %v2418, %v2420
    %v2422 = vadd.f32 %v2418, %v2421
    %vm2423 = vweird.f32 %v2384
    %vm2424 = vweird.f32 %v2418
    %vm2425 = vmor %vm2423, %vm2424
    %v2426 = vsel %vm2425, %v2418, %v2422
    %v2427 = vand.u32 2147483647, %v2384
    %vm2428 = vcmp.eq.f32.partialorder %v2427, 8.507059e+37
    %v2429 = vand.u32 %v2384, 2147483648
    %v2430 = vor.u32 1.1754944e-38, %v2429
    %v2431 = vsel %vm2428, %v2430, %v2426
    %v2432 = vmul.f32 %v2373, %v2431
    %v2433 = vrcp.pop %v2387
    %v2434 = vmul.f32 %v2387, %v2433
    %v2435 = vsub.f32 1.0, %v2434
    %v2436 = vmul.f32 %v2433, %v2435
    %v2437 = vadd.f32 %v2433, %v2436
    %vm2438 = vweird.f32 %v2387
    %vm2439 = vweird.f32 %v2433
    %vm2440 = vmor %vm2438, %vm2439
    %v2441 = vsel %vm2440, %v2433, %v2437
    %v2442 = vand.u32 2147483647, %v2387
    %vm2443 = vcmp.eq.f32.partialorder %v2442, 8.507059e+37
    %v2444 = vand.u32 %v2387, 2147483648
    %v2445 = vor.u32 1.1754944e-38, %v2444
    %v2446 = vsel %vm2443, %v2445, %v2441
    %v2447 = vmul.f32 %v2375, %v2446
    %2448 = vrot.lane.b32.xlu0 %v243, 16
    %v2449 = vpop.permute.xlu0 %2448
    %2450 = vrot.lane.b32.xlu0 %v246, 16
    %v2451 = vpop.permute.xlu0 %2450
    %v2455 = vsel %vm274, %v2402, 0
    %v2458 = vsel %vm274, %v2417, 0
    %2460 = vmatpush.msra.mxu0 0.0
    %2461 = vmatpush.msra.mxu0 0.0
    %2462 = vmatpush.msra.mxu0 0.0
    %2463 = vmatpush.msra.mxu0 0.0
    %2464 = vmatpush.msra.mxu0 0.0
    %2465 = vmatpush.msra.mxu0 0.0
    %2466 = vmatpush.msra.mxu0 0.0
    %2467 = vmatpush.msra.mxu0 0.0
    %2468 = vmatpush.msra.mxu0 0.0
    %2469 = vmatpush.msra.mxu0 0.0
    %2470 = vmatpush.msra.mxu0 0.0
    %2471 = vmatpush.msra.mxu0 0.0
    %2472 = vmatpush.msra.mxu0 0.0
    %2473 = vmatpush.msra.mxu0 0.0
    %2474 = vmatpush.msra.mxu0 %v2451
    %2475 = vmatpush.msra.mxu0 %v2449
    %2476 = vmatmul.f32.gmra.mxu0 %v2455
    %v2477 = vpop.f32.mrf.mxu0
    %v2478 = vadd.f32 0.0, %v2477
    %2479 = vmatmul.f32.gmra.mxu0 %v2458
    %v2480 = vpop.f32.mrf.mxu0
    %v2481 = vadd.f32 0.0, %v2480
    %2482 = vdwg.mxu0
    %2483 = vrot.lane.b32.xlu0 %v249, 16
    %v2484 = vpop.permute.xlu0 %2483
    %2485 = vrot.lane.b32.xlu0 %v252, 16
    %v2486 = vpop.permute.xlu0 %2485
    %v2490 = vsel %vm274, %v2432, 0
    %v2493 = vsel %vm274, %v2447, 0
    %2495 = vmatpush.msra.mxu0 0.0
    %2496 = vmatpush.msra.mxu0 0.0
    %2497 = vmatpush.msra.mxu0 0.0
    %2498 = vmatpush.msra.mxu0 0.0
    %2499 = vmatpush.msra.mxu0 0.0
    %2500 = vmatpush.msra.mxu0 0.0
    %2501 = vmatpush.msra.mxu0 0.0
    %2502 = vmatpush.msra.mxu0 0.0
    %2503 = vmatpush.msra.mxu0 0.0
    %2504 = vmatpush.msra.mxu0 0.0
    %2505 = vmatpush.msra.mxu0 0.0
    %2506 = vmatpush.msra.mxu0 0.0
    %2507 = vmatpush.msra.mxu0 0.0
    %2508 = vmatpush.msra.mxu0 0.0
    %2509 = vmatpush.msra.mxu0 %v2486
    %2510 = vmatpush.msra.mxu0 %v2484
    %2511 = vmatmul.f32.gmra.mxu0 %v2490
    %v2512 = vpop.f32.mrf.mxu0
    %v2513 = vadd.f32 0.0, %v2512
    %2514 = vmatmul.f32.gmra.mxu0 %v2493
    %v2515 = vpop.f32.mrf.mxu0
    %v2516 = vadd.f32 0.0, %v2515
    %2517 = vdwg.mxu0
    %v2519 = vsel %vm274, %v2478, 0
    %v2522 = vsel %vm274, %v2481, 0
    %v2525 = vsel %vm274, %v2513, 0
    %v2528 = vsel %vm274, %v2516, 0
    %2530 = vmatpush.msra.mxu0 0.0
    %2531 = vmatpush.msra.mxu0 0.0
    %2532 = vmatpush.msra.mxu0 0.0
    %2533 = vmatpush.msra.mxu0 0.0
    %2534 = vmatpush.msra.mxu0 0.0
    %2535 = vmatpush.msra.mxu0 0.0
    %2536 = vmatpush.msra.mxu0 0.0
    %2537 = vmatpush.msra.mxu0 0.0
    %2538 = vmatpush.msra.mxu0 0.0
    %2539 = vmatpush.msra.mxu0 0.0
    %2540 = vmatpush.msra.mxu0 0.0
    %2541 = vmatpush.msra.mxu0 0.0
    %2542 = vmatpush.msra.mxu0 0.0
    %2543 = vmatpush.msra.mxu0 0.0
    %2544 = vmatpush.msra.mxu0 %v273
    %2545 = vmatpush.msra.mxu0 %v272
    %2546 = vmatmul.f32.gmra.mxu0 %v2519
    %v2547 = vpop.f32.mrf.mxu0
    %v2548 = vadd.f32 0.0, %v2547
    %2549 = vmatmul.f32.gmra.mxu0 %v2522
    %v2550 = vpop.f32.mrf.mxu0
    %v2551 = vadd.f32 0.0, %v2550
    %2552 = vmatmul.f32.gmra.mxu0 %v2525
    %v2553 = vpop.f32.mrf.mxu0
    %v2554 = vadd.f32 0.0, %v2553
    %2555 = vmatmul.f32.gmra.mxu0 %v2528
    %v2556 = vpop.f32.mrf.mxu0
    %v2557 = vadd.f32 0.0, %v2556
    %2558 = vdwg.mxu0
    %v2559 = vadd.f32 %v2270, %v2548
    %v2560 = vadd.f32 %v2271, %v2551
    %v2561 = vadd.f32 %v2272, %v2554
    %v2562 = vadd.f32 %v2273, %v2557
    %v2563 = vld [vmem:[%s4] sm:$0x1]
    %v2564 = vperm.slane %v2563, 0
    %v2565 = vadd.f32 %v2559, %v2564
    %v2566 = vadd.f32 %v2560, %v2564
    %v2567 = vadd.f32 %v2561, %v2564
    %v2568 = vadd.f32 %v2562, %v2564
    %v2569 = vadd.f32 %v107, %v2565
    %v2570 = vadd.f32 %v108, %v2566
    %v2571 = vadd.f32 %v109, %v2567
    %v2572 = vadd.f32 %v110, %v2568
    %v2573 = vld [vmem:[%s5] sm:$0x1]
    %v2574 = vld [vmem:[%s6] sm:$0x1]
    %2575 = vadd.xlane.f32.xlu0 %v2569
    %v2576 = vpop.xlane.xlu0 %2575
    %2577 = vadd.xlane.f32.xlu0 %v2570
    %v2578 = vpop.xlane.xlu0 %2577
    %2579 = vadd.xlane.f32.xlu0 %v2571
    %v2580 = vpop.xlane.xlu0 %2579
    %2581 = vadd.xlane.f32.xlu0 %v2572
    %v2582 = vpop.xlane.xlu0 %2581
    %v2583 = vrcp.pop 128.0
    %v2584 = vmul.f32 128.0, %v2583
    %v2585 = vsub.f32 1.0, %v2584
    %v2586 = vmul.f32 %v2583, %v2585
    %v2587 = vadd.f32 %v2583, %v2586
    %vm2588 = vweird.f32 %v2583
    %v2589 = vsel %vm2588, %v2583, %v2587
    %v2590 = vmul.f32 %v2576, %v2589
    %v2591 = vmul.f32 %v2578, %v2589
    %v2592 = vmul.f32 %v2580, %v2589
    %v2593 = vmul.f32 %v2582, %v2589
    %v2594 = vsub.f32 %v2569, %v2590
    %v2595 = vsub.f32 %v2570, %v2591
    %v2596 = vsub.f32 %v2571, %v2592
    %v2597 = vsub.f32 %v2572, %v2593
    %v2598 = vmul.f32 %v2594, %v2594
    %v2599 = vmul.f32 %v2595, %v2595
    %v2600 = vmul.f32 %v2596, %v2596
    %v2601 = vmul.f32 %v2597, %v2597
    %2602 = vadd.xlane.f32.xlu0 %v2598
    %v2603 = vpop.xlane.xlu0 %2602
    %2604 = vadd.xlane.f32.xlu0 %v2599
    %v2605 = vpop.xlane.xlu0 %2604
    %2606 = vadd.xlane.f32.xlu0 %v2600
    %v2607 = vpop.xlane.xlu0 %2606
    %2608 = vadd.xlane.f32.xlu0 %v2601
    %v2609 = vpop.xlane.xlu0 %2608
    %v2610 = vmul.f32 %v2603, %v2589
    %v2611 = vmul.f32 %v2605, %v2589
    %v2612 = vmul.f32 %v2607, %v2589
    %v2613 = vmul.f32 %v2609, %v2589
    %v2614 = vadd.f32 %v2610, 1e-05
    %v2615 = vadd.f32 %v2611, 1e-05
    %v2616 = vadd.f32 %v2612, 1e-05
    %v2617 = vadd.f32 %v2613, 1e-05
    %v2618 = vrsqrt.pop %v2614
    %v2619 = vmul.f32 %v2618, %v2614
    %v2620 = vmul.f32 %v2619, %v2618
    %v2621 = vmul.f32 0.5, %v2620
    %v2622 = vsub.f32 1.5, %v2621
    %v2623 = vmul.f32 %v2618, %v2622
    %vm2624 = vweird.f32 %v2614
    %vm2625 = vweird.f32 %v2618
    %vm2626 = vmor %vm2624, %vm2625
    %v2627 = vsel %vm2626, %v2618, %v2623
    %v2628 = vrsqrt.pop %v2615
    %v2629 = vmul.f32 %v2628, %v2615
    %v2630 = vmul.f32 %v2629, %v2628
    %v2631 = vmul.f32 0.5, %v2630
    %v2632 = vsub.f32 1.5, %v2631
    %v2633 = vmul.f32 %v2628, %v2632
    %vm2634 = vweird.f32 %v2615
    %vm2635 = vweird.f32 %v2628
    %vm2636 = vmor %vm2634, %vm2635
    %v2637 = vsel %vm2636, %v2628, %v2633
    %v2638 = vrsqrt.pop %v2616
    %v2639 = vmul.f32 %v2638, %v2616
    %v2640 = vmul.f32 %v2639, %v2638
    %v2641 = vmul.f32 0.5, %v2640
    %v2642 = vsub.f32 1.5, %v2641
    %v2643 = vmul.f32 %v2638, %v2642
    %vm2644 = vweird.f32 %v2616
    %vm2645 = vweird.f32 %v2638
    %vm2646 = vmor %vm2644, %vm2645
    %v2647 = vsel %vm2646, %v2638, %v2643
    %v2648 = vrsqrt.pop %v2617
    %v2649 = vmul.f32 %v2648, %v2617
    %v2650 = vmul.f32 %v2649, %v2648
    %v2651 = vmul.f32 0.5, %v2650
    %v2652 = vsub.f32 1.5, %v2651
    %v2653 = vmul.f32 %v2648, %v2652
    %vm2654 = vweird.f32 %v2617
    %vm2655 = vweird.f32 %v2648
    %vm2656 = vmor %vm2654, %vm2655
    %v2657 = vsel %vm2656, %v2648, %v2653
    %v2658 = vmul.f32 %v2594, %v2627
    %v2659 = vmul.f32 %v2595, %v2637
    %v2660 = vmul.f32 %v2596, %v2647
    %v2661 = vmul.f32 %v2597, %v2657
    %v2662 = vperm.slane %v2573, 0
    %v2663 = vmul.f32 %v2658, %v2662
    %v2664 = vmul.f32 %v2659, %v2662
    %v2665 = vmul.f32 %v2660, %v2662
    %v2666 = vmul.f32 %v2661, %v2662
    %v2667 = vperm.slane %v2574, 0
    %v2668 = vadd.f32 %v2663, %v2667
    %v2669 = vadd.f32 %v2664, %v2667
    %v2670 = vadd.f32 %v2665, %v2667
    %v2671 = vadd.f32 %v2666, %v2667
    %v2672 = vld [vmem:[#allocation6] sm:$0xff]
    %v2673 = vld [vmem:[#allocation6 + $0x8] sm:$0xff]
    %v2674 = vld [vmem:[#allocation6 + $0x10] sm:$0xff]
    %v2675 = vld [vmem:[#allocation6 + $0x18] sm:$0xff]
    %v2676 = vld [vmem:[#allocation6 + $0x20] sm:$0xff]
    %v2677 = vld [vmem:[#allocation6 + $0x28] sm:$0xff]
    %v2678 = vld [vmem:[#allocation6 + $0x30] sm:$0xff]
    %v2679 = vld [vmem:[#allocation6 + $0x38] sm:$0xff]
    %v2680 = vld [vmem:[#allocation6 + $0x40] sm:$0xff]
    %v2681 = vld [vmem:[#allocation6 + $0x48] sm:$0xff]
    %v2682 = vld [vmem:[#allocation6 + $0x50] sm:$0xff]
    %v2683 = vld [vmem:[#allocation6 + $0x58] sm:$0xff]
    %v2684 = vld [vmem:[#allocation6 + $0x60] sm:$0xff]
    %v2685 = vld [vmem:[#allocation6 + $0x68] sm:$0xff]
    %v2686 = vld [vmem:[#allocation6 + $0x70] sm:$0xff]
    %v2687 = vld [vmem:[#allocation6 + $0x78] sm:$0xff]
    %v2688 = vld [vmem:[%s8] sm:$0x1]
    %v2689 = vperm.slane %v2688, 0
    %2690 = vmatpush.msra.mxu0 %v2687
    %2691 = vmatpush.msra.mxu0 %v2686
    %2692 = vmatpush.msra.mxu0 %v2685
    %2693 = vmatpush.msra.mxu0 %v2684
    %2694 = vmatpush.msra.mxu0 %v2683
    %2695 = vmatpush.msra.mxu0 %v2682
    %2696 = vmatpush.msra.mxu0 %v2681
    %2697 = vmatpush.msra.mxu0 %v2680
    %2698 = vmatpush.msra.mxu0 %v2679
    %2699 = vmatpush.msra.mxu0 %v2678
    %2700 = vmatpush.msra.mxu0 %v2677
    %2701 = vmatpush.msra.mxu0 %v2676
    %2702 = vmatpush.msra.mxu0 %v2675
    %2703 = vmatpush.msra.mxu0 %v2674
    %2704 = vmatpush.msra.mxu0 %v2673
    %2705 = vmatpush.msra.mxu0 %v2672
    %2706 = vmatmul.f32.gmra.mxu0 %v2668
    %v2707 = vpop.f32.mrf.mxu0
    %v2708 = vadd.f32 %v2689, %v2707
    %2709 = vmatmul.f32.gmra.mxu0 %v2669
    %v2710 = vpop.f32.mrf.mxu0
    %v2711 = vadd.f32 %v2689, %v2710
    %2712 = vmatmul.f32.gmra.mxu0 %v2670
    %v2713 = vpop.f32.mrf.mxu0
    %v2714 = vadd.f32 %v2689, %v2713
    %2715 = vmatmul.f32.gmra.mxu0 %v2671
    %v2716 = vpop.f32.mrf.mxu0
    %v2717 = vadd.f32 %v2689, %v2716
    %2718 = vdwg.mxu0
    %v2719 = vmax.f32 %v2708, 0.0
    %v2720 = vmax.f32 %v2711, 0.0
    %v2721 = vmax.f32 %v2714, 0.0
    %v2722 = vmax.f32 %v2717, 0.0
    %v2723 = vld [vmem:[#allocation7] sm:$0xff]
    %v2724 = vld [vmem:[#allocation7 + $0x8] sm:$0xff]
    %v2725 = vld [vmem:[#allocation7 + $0x10] sm:$0xff]
    %v2726 = vld [vmem:[#allocation7 + $0x18] sm:$0xff]
    %v2727 = vld [vmem:[#allocation7 + $0x20] sm:$0xff]
    %v2728 = vld [vmem:[#allocation7 + $0x28] sm:$0xff]
    %v2729 = vld [vmem:[#allocation7 + $0x30] sm:$0xff]
    %v2730 = vld [vmem:[#allocation7 + $0x38] sm:$0xff]
    %v2731 = vld [vmem:[#allocation7 + $0x40] sm:$0xff]
    %v2732 = vld [vmem:[#allocation7 + $0x48] sm:$0xff]
    %v2733 = vld [vmem:[#allocation7 + $0x50] sm:$0xff]
    %v2734 = vld [vmem:[#allocation7 + $0x58] sm:$0xff]
    %v2735 = vld [vmem:[#allocation7 + $0x60] sm:$0xff]
    %v2736 = vld [vmem:[#allocation7 + $0x68] sm:$0xff]
    %v2737 = vld [vmem:[#allocation7 + $0x70] sm:$0xff]
    %v2738 = vld [vmem:[#allocation7 + $0x78] sm:$0xff]
    %v2739 = vld [vmem:[%s10] sm:$0x1]
    %v2740 = vperm.slane %v2739, 0
    %2741 = vmatpush.msra.mxu0 %v2738
    %2742 = vmatpush.msra.mxu0 %v2737
    %2743 = vmatpush.msra.mxu0 %v2736
    %2744 = vmatpush.msra.mxu0 %v2735
    %2745 = vmatpush.msra.mxu0 %v2734
    %2746 = vmatpush.msra.mxu0 %v2733
    %2747 = vmatpush.msra.mxu0 %v2732
    %2748 = vmatpush.msra.mxu0 %v2731
    %2749 = vmatpush.msra.mxu0 %v2730
    %2750 = vmatpush.msra.mxu0 %v2729
    %2751 = vmatpush.msra.mxu0 %v2728
    %2752 = vmatpush.msra.mxu0 %v2727
    %2753 = vmatpush.msra.mxu0 %v2726
    %2754 = vmatpush.msra.mxu0 %v2725
    %2755 = vmatpush.msra.mxu0 %v2724
    %2756 = vmatpush.msra.mxu0 %v2723
    %2757 = vmatmul.f32.gmra.mxu0 %v2719
    %v2758 = vpop.f32.mrf.mxu0
    %v2759 = vadd.f32 %v2740, %v2758
    %2760 = vmatmul.f32.gmra.mxu0 %v2720
    %v2761 = vpop.f32.mrf.mxu0
    %v2762 = vadd.f32 %v2740, %v2761
    %2763 = vmatmul.f32.gmra.mxu0 %v2721
    %v2764 = vpop.f32.mrf.mxu0
    %v2765 = vadd.f32 %v2740, %v2764
    %2766 = vmatmul.f32.gmra.mxu0 %v2722
    %v2767 = vpop.f32.mrf.mxu0
    %v2768 = vadd.f32 %v2740, %v2767
    %2769 = vdwg.mxu0
    %v2770 = vadd.f32 %v2668, %v2759
    %v2771 = vadd.f32 %v2669, %v2762
    %v2772 = vadd.f32 %v2670, %v2765
    %v2773 = vadd.f32 %v2671, %v2768
    %v2774 = vld [vmem:[%s11] sm:$0x1]
    %v2775 = vld [vmem:[%s12] sm:$0x1]
    %2776 = vadd.xlane.f32.xlu0 %v2770
    %v2777 = vpop.xlane.xlu0 %2776
    %2778 = vadd.xlane.f32.xlu0 %v2771
    %v2779 = vpop.xlane.xlu0 %2778
    %2780 = vadd.xlane.f32.xlu0 %v2772
    %v2781 = vpop.xlane.xlu0 %2780
    %2782 = vadd.xlane.f32.xlu0 %v2773
    %v2783 = vpop.xlane.xlu0 %2782
    %v2784 = vmul.f32 %v2777, %v2589
    %v2785 = vmul.f32 %v2779, %v2589
    %v2786 = vmul.f32 %v2781, %v2589
    %v2787 = vmul.f32 %v2783, %v2589
    %v2788 = vsub.f32 %v2770, %v2784
    %v2789 = vsub.f32 %v2771, %v2785
    %v2790 = vsub.f32 %v2772, %v2786
    %v2791 = vsub.f32 %v2773, %v2787
    %v2792 = vmul.f32 %v2788, %v2788
    %v2793 = vmul.f32 %v2789, %v2789
    %v2794 = vmul.f32 %v2790, %v2790
    %v2795 = vmul.f32 %v2791, %v2791
    %2796 = vadd.xlane.f32.xlu0 %v2792
    %v2797 = vpop.xlane.xlu0 %2796
    %2798 = vadd.xlane.f32.xlu0 %v2793
    %v2799 = vpop.xlane.xlu0 %2798
    %2800 = vadd.xlane.f32.xlu0 %v2794
    %v2801 = vpop.xlane.xlu0 %2800
    %2802 = vadd.xlane.f32.xlu0 %v2795
    %v2803 = vpop.xlane.xlu0 %2802
    %v2804 = vmul.f32 %v2797, %v2589
    %v2805 = vmul.f32 %v2799, %v2589
    %v2806 = vmul.f32 %v2801, %v2589
    %v2807 = vmul.f32 %v2803, %v2589
    %v2808 = vadd.f32 %v2804, 1e-05
    %v2809 = vadd.f32 %v2805, 1e-05
    %v2810 = vadd.f32 %v2806, 1e-05
    %v2811 = vadd.f32 %v2807, 1e-05
    %v2812 = vrsqrt.pop %v2808
    %v2813 = vmul.f32 %v2812, %v2808
    %v2814 = vmul.f32 %v2813, %v2812
    %v2815 = vmul.f32 0.5, %v2814
    %v2816 = vsub.f32 1.5, %v2815
    %v2817 = vmul.f32 %v2812, %v2816
    %vm2818 = vweird.f32 %v2808
    %vm2819 = vweird.f32 %v2812
    %vm2820 = vmor %vm2818, %vm2819
    %v2821 = vsel %vm2820, %v2812, %v2817
    %v2822 = vrsqrt.pop %v2809
    %v2823 = vmul.f32 %v2822, %v2809
    %v2824 = vmul.f32 %v2823, %v2822
    %v2825 = vmul.f32 0.5, %v2824
    %v2826 = vsub.f32 1.5, %v2825
    %v2827 = vmul.f32 %v2822, %v2826
    %vm2828 = vweird.f32 %v2809
    %vm2829 = vweird.f32 %v2822
    %vm2830 = vmor %vm2828, %vm2829
    %v2831 = vsel %vm2830, %v2822, %v2827
    %v2832 = vrsqrt.pop %v2810
    %v2833 = vmul.f32 %v2832, %v2810
    %v2834 = vmul.f32 %v2833, %v2832
    %v2835 = vmul.f32 0.5, %v2834
    %v2836 = vsub.f32 1.5, %v2835
    %v2837 = vmul.f32 %v2832, %v2836
    %vm2838 = vweird.f32 %v2810
    %vm2839 = vweird.f32 %v2832
    %vm2840 = vmor %vm2838, %vm2839
    %v2841 = vsel %vm2840, %v2832, %v2837
    %v2842 = vrsqrt.pop %v2811
    %v2843 = vmul.f32 %v2842, %v2811
    %v2844 = vmul.f32 %v2843, %v2842
    %v2845 = vmul.f32 0.5, %v2844
    %v2846 = vsub.f32 1.5, %v2845
    %v2847 = vmul.f32 %v2842, %v2846
    %vm2848 = vweird.f32 %v2811
    %vm2849 = vweird.f32 %v2842
    %vm2850 = vmor %vm2848, %vm2849
    %v2851 = vsel %vm2850, %v2842, %v2847
    %v2852 = vmul.f32 %v2788, %v2821
    %v2853 = vmul.f32 %v2789, %v2831
    %v2854 = vmul.f32 %v2790, %v2841
    %v2855 = vmul.f32 %v2791, %v2851
    %v2856 = vperm.slane %v2774, 0
    %v2857 = vmul.f32 %v2852, %v2856
    %v2858 = vmul.f32 %v2853, %v2856
    %v2859 = vmul.f32 %v2854, %v2856
    %v2860 = vmul.f32 %v2855, %v2856
    %v2861 = vperm.slane %v2775, 0
    %v2862 = vadd.f32 %v2857, %v2861
    %v2863 = vadd.f32 %v2858, %v2861
    %v2864 = vadd.f32 %v2859, %v2861
    %v2865 = vadd.f32 %v2860, %v2861
    %s2866 = scalar_lea.vmem [#allocation2], 384
    %v2867 = vld [vmem:[%s2866] sm:$0xff]
    %v2868 = vld [vmem:[%s2866 + $0x8] sm:$0xff]
    %v2869 = vld [vmem:[%s2866 + $0x10] sm:$0xff]
    %v2870 = vld [vmem:[%s2866 + $0x18] sm:$0xff]
    %v2871 = vld [vmem:[%s2866 + $0x20] sm:$0xff]
    %v2872 = vld [vmem:[%s2866 + $0x28] sm:$0xff]
    %v2873 = vld [vmem:[%s2866 + $0x30] sm:$0xff]
    %v2874 = vld [vmem:[%s2866 + $0x38] sm:$0xff]
    %v2875 = vld [vmem:[%s2866 + $0x40] sm:$0xff]
    %v2876 = vld [vmem:[%s2866 + $0x48] sm:$0xff]
    %v2877 = vld [vmem:[%s2866 + $0x50] sm:$0xff]
    %v2878 = vld [vmem:[%s2866 + $0x58] sm:$0xff]
    %v2879 = vld [vmem:[%s2866 + $0x60] sm:$0xff]
    %v2880 = vld [vmem:[%s2866 + $0x68] sm:$0xff]
    %v2881 = vld [vmem:[%s2866 + $0x70] sm:$0xff]
    %v2882 = vld [vmem:[%s2866 + $0x78] sm:$0xff]
    %v2883 = vld [vmem:[%s2866 + $0x80] sm:$0xff]
    %v2884 = vld [vmem:[%s2866 + $0x88] sm:$0xff]
    %v2885 = vld [vmem:[%s2866 + $0x90] sm:$0xff]
    %v2886 = vld [vmem:[%s2866 + $0x98] sm:$0xff]
    %v2887 = vld [vmem:[%s2866 + $0xa0] sm:$0xff]
    %v2888 = vld [vmem:[%s2866 + $0xa8] sm:$0xff]
    %v2889 = vld [vmem:[%s2866 + $0xb0] sm:$0xff]
    %v2890 = vld [vmem:[%s2866 + $0xb8] sm:$0xff]
    %v2891 = vld [vmem:[%s2866 + $0xc0] sm:$0xff]
    %v2892 = vld [vmem:[%s2866 + $0xc8] sm:$0xff]
    %v2893 = vld [vmem:[%s2866 + $0xd0] sm:$0xff]
    %v2894 = vld [vmem:[%s2866 + $0xd8] sm:$0xff]
    %v2895 = vld [vmem:[%s2866 + $0xe0] sm:$0xff]
    %v2896 = vld [vmem:[%s2866 + $0xe8] sm:$0xff]
    %v2897 = vld [vmem:[%s2866 + $0xf0] sm:$0xff]
    %v2898 = vld [vmem:[%s2866 + $0xf8] sm:$0xff]
    %v2899 = vld [vmem:[%s2866 + $0x100] sm:$0xff]
    %v2900 = vld [vmem:[%s2866 + $0x108] sm:$0xff]
    %v2901 = vld [vmem:[%s2866 + $0x110] sm:$0xff]
    %v2902 = vld [vmem:[%s2866 + $0x118] sm:$0xff]
    %v2903 = vld [vmem:[%s2866 + $0x120] sm:$0xff]
    %v2904 = vld [vmem:[%s2866 + $0x128] sm:$0xff]
    %v2905 = vld [vmem:[%s2866 + $0x130] sm:$0xff]
    %v2906 = vld [vmem:[%s2866 + $0x138] sm:$0xff]
    %v2907 = vld [vmem:[%s2866 + $0x140] sm:$0xff]
    %v2908 = vld [vmem:[%s2866 + $0x148] sm:$0xff]
    %v2909 = vld [vmem:[%s2866 + $0x150] sm:$0xff]
    %v2910 = vld [vmem:[%s2866 + $0x158] sm:$0xff]
    %v2911 = vld [vmem:[%s2866 + $0x160] sm:$0xff]
    %v2912 = vld [vmem:[%s2866 + $0x168] sm:$0xff]
    %v2913 = vld [vmem:[%s2866 + $0x170] sm:$0xff]
    %v2914 = vld [vmem:[%s2866 + $0x178] sm:$0xff]
    %s2915 = scalar_lea.vmem %s2, 1
    %v2916 = vld [vmem:[%s2915] ss:$4 sm:$0x7]
    %v2918 = vperm.slane %v2916, 0
    %v2919 = vperm.slane %v2916, 1
    %v2920 = vperm.slane %v2916, 2
    %2924 = vmatpush.msra.mxu0 %v2912
    %2925 = vmatpush.msra.mxu0 %v2909
    %2926 = vmatpush.msra.mxu0 %v2906
    %2927 = vmatpush.msra.mxu0 %v2903
    %2928 = vmatpush.msra.mxu0 %v2900
    %2929 = vmatpush.msra.mxu0 %v2897
    %2930 = vmatpush.msra.mxu0 %v2894
    %2931 = vmatpush.msra.mxu0 %v2891
    %2932 = vmatpush.msra.mxu0 %v2888
    %2933 = vmatpush.msra.mxu0 %v2885
    %2934 = vmatpush.msra.mxu0 %v2882
    %2935 = vmatpush.msra.mxu0 %v2879
    %2936 = vmatpush.msra.mxu0 %v2876
    %2937 = vmatpush.msra.mxu0 %v2873
    %2938 = vmatpush.msra.mxu0 %v2870
    %2939 = vmatpush.msra.mxu0 %v2867
    %2940 = vmatmul.f32.gmra.mxu0 %v2862
    %v2941 = vpop.f32.mrf.mxu0
    %v2942 = vadd.f32 %v2918, %v2941
    %2943 = vmatmul.f32.gmra.mxu0 %v2863
    %v2944 = vpop.f32.mrf.mxu0
    %v2945 = vadd.f32 %v2918, %v2944
    %2946 = vmatmul.f32.gmra.mxu0 %v2864
    %v2947 = vpop.f32.mrf.mxu0
    %v2948 = vadd.f32 %v2918, %v2947
    %2949 = vmatmul.f32.gmra.mxu0 %v2865
    %v2950 = vpop.f32.mrf.mxu0
    %v2951 = vadd.f32 %v2918, %v2950
    %2952 = vdwg.mxu0
    %2953 = vmatpush.msra.mxu0 %v2913
    %2954 = vmatpush.msra.mxu0 %v2910
    %2955 = vmatpush.msra.mxu0 %v2907
    %2956 = vmatpush.msra.mxu0 %v2904
    %2957 = vmatpush.msra.mxu0 %v2901
    %2958 = vmatpush.msra.mxu0 %v2898
    %2959 = vmatpush.msra.mxu0 %v2895
    %2960 = vmatpush.msra.mxu0 %v2892
    %2961 = vmatpush.msra.mxu0 %v2889
    %2962 = vmatpush.msra.mxu0 %v2886
    %2963 = vmatpush.msra.mxu0 %v2883
    %2964 = vmatpush.msra.mxu0 %v2880
    %2965 = vmatpush.msra.mxu0 %v2877
    %2966 = vmatpush.msra.mxu0 %v2874
    %2967 = vmatpush.msra.mxu0 %v2871
    %2968 = vmatpush.msra.mxu0 %v2868
    %2969 = vmatmul.f32.gmra.mxu0 %v2862
    %v2970 = vpop.f32.mrf.mxu0
    %v2971 = vadd.f32 %v2919, %v2970
    %2972 = vmatmul.f32.gmra.mxu0 %v2863
    %v2973 = vpop.f32.mrf.mxu0
    %v2974 = vadd.f32 %v2919, %v2973
    %2975 = vmatmul.f32.gmra.mxu0 %v2864
    %v2976 = vpop.f32.mrf.mxu0
    %v2977 = vadd.f32 %v2919, %v2976
    %2978 = vmatmul.f32.gmra.mxu0 %v2865
    %v2979 = vpop.f32.mrf.mxu0
    %v2980 = vadd.f32 %v2919, %v2979
    %2981 = vdwg.mxu0
    %2982 = vmatpush.msra.mxu0 %v2914
    %2983 = vmatpush.msra.mxu0 %v2911
    %2984 = vmatpush.msra.mxu0 %v2908
    %2985 = vmatpush.msra.mxu0 %v2905
    %2986 = vmatpush.msra.mxu0 %v2902
    %2987 = vmatpush.msra.mxu0 %v2899
    %2988 = vmatpush.msra.mxu0 %v2896
    %2989 = vmatpush.msra.mxu0 %v2893
    %2990 = vmatpush.msra.mxu0 %v2890
    %2991 = vmatpush.msra.mxu0 %v2887
    %2992 = vmatpush.msra.mxu0 %v2884
    %2993 = vmatpush.msra.mxu0 %v2881
    %2994 = vmatpush.msra.mxu0 %v2878
    %2995 = vmatpush.msra.mxu0 %v2875
    %2996 = vmatpush.msra.mxu0 %v2872
    %2997 = vmatpush.msra.mxu0 %v2869
    %2998 = vmatmul.f32.gmra.mxu0 %v2862
    %v2999 = vpop.f32.mrf.mxu0
    %v3000 = vadd.f32 %v2920, %v2999
    %3001 = vmatmul.f32.gmra.mxu0 %v2863
    %v3002 = vpop.f32.mrf.mxu0
    %v3003 = vadd.f32 %v2920, %v3002
    %3004 = vmatmul.f32.gmra.mxu0 %v2864
    %v3005 = vpop.f32.mrf.mxu0
    %v3006 = vadd.f32 %v2920, %v3005
    %3007 = vmatmul.f32.gmra.mxu0 %v2865
    %v3008 = vpop.f32.mrf.mxu0
    %v3009 = vadd.f32 %v2920, %v3008
    %3010 = vdwg.mxu0
    %v3011 = vmul.f32 %v2942, 0.25
    %v3012 = vmul.f32 %v2945, 0.25
    %v3013 = vmul.f32 %v2948, 0.25
    %v3014 = vmul.f32 %v2951, 0.25
    %s3015 = scalar_lea.vmem [#allocation4], 128
    %v3016 = vld [vmem:[%s3015] sm:$0xff]
    %v3017 = vld [vmem:[%s3015 + $0x8] sm:$0xff]
    %v3018 = vld [vmem:[%s3015 + $0x10] sm:$0xff]
    %v3019 = vld [vmem:[%s3015 + $0x18] sm:$0xff]
    %v3020 = vld [vmem:[%s3015 + $0x20] sm:$0xff]
    %v3021 = vld [vmem:[%s3015 + $0x28] sm:$0xff]
    %v3022 = vld [vmem:[%s3015 + $0x30] sm:$0xff]
    %v3023 = vld [vmem:[%s3015 + $0x38] sm:$0xff]
    %v3024 = vld [vmem:[%s3015 + $0x40] sm:$0xff]
    %v3025 = vld [vmem:[%s3015 + $0x48] sm:$0xff]
    %v3026 = vld [vmem:[%s3015 + $0x50] sm:$0xff]
    %v3027 = vld [vmem:[%s3015 + $0x58] sm:$0xff]
    %v3028 = vld [vmem:[%s3015 + $0x60] sm:$0xff]
    %v3029 = vld [vmem:[%s3015 + $0x68] sm:$0xff]
    %v3030 = vld [vmem:[%s3015 + $0x70] sm:$0xff]
    %v3031 = vld [vmem:[%s3015 + $0x78] sm:$0xff]
    %v3033 = vsel %vm274, %v3011, 0
    %v3036 = vsel %vm274, %v3012, 0
    %v3039 = vsel %vm274, %v2971, 0
    %v3042 = vsel %vm274, %v2974, 0
    %3044 = vmatpush.xpose.msra.mxu0 0.0
    %3045 = vmatpush.xpose.msra.mxu0 0.0
    %3046 = vmatpush.xpose.msra.mxu0 0.0
    %3047 = vmatpush.xpose.msra.mxu0 0.0
    %3048 = vmatpush.xpose.msra.mxu0 0.0
    %3049 = vmatpush.xpose.msra.mxu0 0.0
    %3050 = vmatpush.xpose.msra.mxu0 0.0
    %3051 = vmatpush.xpose.msra.mxu0 0.0
    %3052 = vmatpush.xpose.msra.mxu0 0.0
    %3053 = vmatpush.xpose.msra.mxu0 0.0
    %3054 = vmatpush.xpose.msra.mxu0 0.0
    %3055 = vmatpush.xpose.msra.mxu0 0.0
    %3056 = vmatpush.xpose.msra.mxu0 0.0
    %3057 = vmatpush.xpose.msra.mxu0 0.0
    %3058 = vmatpush.xpose.msra.mxu0 %v3042
    %3059 = vmatpush.xpose.msra.mxu0 %v3039
    %3060 = vmatmul.f32.gmra.mxu0 %v3033
    %v3061 = vpop.f32.mrf.mxu0
    %v3062 = vadd.f32 0.0, %v3061
    %3063 = vmatmul.f32.gmra.mxu0 %v3036
    %v3064 = vpop.f32.mrf.mxu0
    %v3065 = vadd.f32 0.0, %v3064
    %3066 = vdwg.mxu0
    %v3068 = vsel %vm274, %v3013, 0
    %v3071 = vsel %vm274, %v3014, 0
    %v3074 = vsel %vm274, %v2977, 0
    %v3077 = vsel %vm274, %v2980, 0
    %3079 = vmatpush.xpose.msra.mxu0 0.0
    %3080 = vmatpush.xpose.msra.mxu0 0.0
    %3081 = vmatpush.xpose.msra.mxu0 0.0
    %3082 = vmatpush.xpose.msra.mxu0 0.0
    %3083 = vmatpush.xpose.msra.mxu0 0.0
    %3084 = vmatpush.xpose.msra.mxu0 0.0
    %3085 = vmatpush.xpose.msra.mxu0 0.0
    %3086 = vmatpush.xpose.msra.mxu0 0.0
    %3087 = vmatpush.xpose.msra.mxu0 0.0
    %3088 = vmatpush.xpose.msra.mxu0 0.0
    %3089 = vmatpush.xpose.msra.mxu0 0.0
    %3090 = vmatpush.xpose.msra.mxu0 0.0
    %3091 = vmatpush.xpose.msra.mxu0 0.0
    %3092 = vmatpush.xpose.msra.mxu0 0.0
    %3093 = vmatpush.xpose.msra.mxu0 %v3077
    %3094 = vmatpush.xpose.msra.mxu0 %v3074
    %3095 = vmatmul.f32.gmra.mxu0 %v3068
    %v3096 = vpop.f32.mrf.mxu0
    %v3097 = vadd.f32 0.0, %v3096
    %3098 = vmatmul.f32.gmra.mxu0 %v3071
    %v3099 = vpop.f32.mrf.mxu0
    %v3100 = vadd.f32 0.0, %v3099
    %3101 = vdwg.mxu0
    %v3102 = vsel %vm274, %v3062, -inf
    %3103 = vmax.xlane.f32.xlu0 %v3102
    %v3104 = vpop.xlane.xlu0 %3103
    %v3105 = vsel %vm274, %v3065, -inf
    %3106 = vmax.xlane.f32.xlu0 %v3105
    %v3107 = vpop.xlane.xlu0 %3106
    %v3108 = vsel %vm274, %v3097, -inf
    %3109 = vmax.xlane.f32.xlu0 %v3108
    %v3110 = vpop.xlane.xlu0 %3109
    %v3111 = vsel %vm274, %v3100, -inf
    %3112 = vmax.xlane.f32.xlu0 %v3111
    %v3113 = vpop.xlane.xlu0 %3112
    %v3114 = vsub.f32 %v3062, %v3104
    %v3115 = vsub.f32 %v3065, %v3107
    %v3116 = vsub.f32 %v3097, %v3110
    %v3117 = vsub.f32 %v3100, %v3113
    %v3118 = vmul.f32 %v3114, 1.442695
    %v3119 = vpow.pop %v3118
    %v3120 = vmul.f32 %v3115, 1.442695
    %v3121 = vpow.pop %v3120
    %v3122 = vmul.f32 %v3116, 1.442695
    %v3123 = vpow.pop %v3122
    %v3124 = vmul.f32 %v3117, 1.442695
    %v3125 = vpow.pop %v3124
    %v3126 = vsel %vm274, %v3119, 0.0
    %3127 = vadd.xlane.f32.xlu0 %v3126
    %v3128 = vpop.xlane.xlu0 %3127
    %v3129 = vsel %vm274, %v3121, 0.0
    %3130 = vadd.xlane.f32.xlu0 %v3129
    %v3131 = vpop.xlane.xlu0 %3130
    %v3132 = vsel %vm274, %v3123, 0.0
    %3133 = vadd.xlane.f32.xlu0 %v3132
    %v3134 = vpop.xlane.xlu0 %3133
    %v3135 = vsel %vm274, %v3125, 0.0
    %3136 = vadd.xlane.f32.xlu0 %v3135
    %v3137 = vpop.xlane.xlu0 %3136
    %v3138 = vrcp.pop %v3128
    %v3139 = vmul.f32 %v3128, %v3138
    %v3140 = vsub.f32 1.0, %v3139
    %v3141 = vmul.f32 %v3138, %v3140
    %v3142 = vadd.f32 %v3138, %v3141
    %vm3143 = vweird.f32 %v3128
    %vm3144 = vweird.f32 %v3138
    %vm3145 = vmor %vm3143, %vm3144
    %v3146 = vsel %vm3145, %v3138, %v3142
    %v3147 = vand.u32 2147483647, %v3128
    %vm3148 = vcmp.eq.f32.partialorder %v3147, 8.507059e+37
    %v3149 = vand.u32 %v3128, 2147483648
    %v3150 = vor.u32 1.1754944e-38, %v3149
    %v3151 = vsel %vm3148, %v3150, %v3146
    %v3152 = vmul.f32 %v3119, %v3151
    %v3153 = vrcp.pop %v3131
    %v3154 = vmul.f32 %v3131, %v3153
    %v3155 = vsub.f32 1.0, %v3154
    %v3156 = vmul.f32 %v3153, %v3155
    %v3157 = vadd.f32 %v3153, %v3156
    %vm3158 = vweird.f32 %v3131
    %vm3159 = vweird.f32 %v3153
    %vm3160 = vmor %vm3158, %vm3159
    %v3161 = vsel %vm3160, %v3153, %v3157
    %v3162 = vand.u32 2147483647, %v3131
    %vm3163 = vcmp.eq.f32.partialorder %v3162, 8.507059e+37
    %v3164 = vand.u32 %v3131, 2147483648
    %v3165 = vor.u32 1.1754944e-38, %v3164
    %v3166 = vsel %vm3163, %v3165, %v3161
    %v3167 = vmul.f32 %v3121, %v3166
    %v3168 = vrcp.pop %v3134
    %v3169 = vmul.f32 %v3134, %v3168
    %v3170 = vsub.f32 1.0, %v3169
    %v3171 = vmul.f32 %v3168, %v3170
    %v3172 = vadd.f32 %v3168, %v3171
    %vm3173 = vweird.f32 %v3134
    %vm3174 = vweird.f32 %v3168
    %vm3175 = vmor %vm3173, %vm3174
    %v3176 = vsel %vm3175, %v3168, %v3172
    %v3177 = vand.u32 2147483647, %v3134
    %vm3178 = vcmp.eq.f32.partialorder %v3177, 8.507059e+37
    %v3179 = vand.u32 %v3134, 2147483648
    %v3180 = vor.u32 1.1754944e-38, %v3179
    %v3181 = vsel %vm3178, %v3180, %v3176
    %v3182 = vmul.f32 %v3123, %v3181
    %v3183 = vrcp.pop %v3137
    %v3184 = vmul.f32 %v3137, %v3183
    %v3185 = vsub.f32 1.0, %v3184
    %v3186 = vmul.f32 %v3183, %v3185
    %v3187 = vadd.f32 %v3183, %v3186
    %vm3188 = vweird.f32 %v3137
    %vm3189 = vweird.f32 %v3183
    %vm3190 = vmor %vm3188, %vm3189
    %v3191 = vsel %vm3190, %v3183, %v3187
    %v3192 = vand.u32 2147483647, %v3137
    %vm3193 = vcmp.eq.f32.partialorder %v3192, 8.507059e+37
    %v3194 = vand.u32 %v3137, 2147483648
    %v3195 = vor.u32 1.1754944e-38, %v3194
    %v3196 = vsel %vm3193, %v3195, %v3191
    %v3197 = vmul.f32 %v3125, %v3196
    %v3199 = vsel %vm274, %v3152, 0
    %v3202 = vsel %vm274, %v3167, 0
    %3204 = vmatpush.msra.mxu0 0.0
    %3205 = vmatpush.msra.mxu0 0.0
    %3206 = vmatpush.msra.mxu0 0.0
    %3207 = vmatpush.msra.mxu0 0.0
    %3208 = vmatpush.msra.mxu0 0.0
    %3209 = vmatpush.msra.mxu0 0.0
    %3210 = vmatpush.msra.mxu0 0.0
    %3211 = vmatpush.msra.mxu0 0.0
    %3212 = vmatpush.msra.mxu0 0.0
    %3213 = vmatpush.msra.mxu0 0.0
    %3214 = vmatpush.msra.mxu0 0.0
    %3215 = vmatpush.msra.mxu0 0.0
    %3216 = vmatpush.msra.mxu0 0.0
    %3217 = vmatpush.msra.mxu0 0.0
    %3218 = vmatpush.msra.mxu0 %v3003
    %3219 = vmatpush.msra.mxu0 %v3000
    %3220 = vmatmul.f32.gmra.mxu0 %v3199
    %v3221 = vpop.f32.mrf.mxu0
    %v3222 = vadd.f32 0.0, %v3221
    %3223 = vmatmul.f32.gmra.mxu0 %v3202
    %v3224 = vpop.f32.mrf.mxu0
    %v3225 = vadd.f32 0.0, %v3224
    %3226 = vdwg.mxu0
    %v3228 = vsel %vm274, %v3182, 0
    %v3231 = vsel %vm274, %v3197, 0
    %3233 = vmatpush.msra.mxu0 0.0
    %3234 = vmatpush.msra.mxu0 0.0
    %3235 = vmatpush.msra.mxu0 0.0
    %3236 = vmatpush.msra.mxu0 0.0
    %3237 = vmatpush.msra.mxu0 0.0
    %3238 = vmatpush.msra.mxu0 0.0
    %3239 = vmatpush.msra.mxu0 0.0
    %3240 = vmatpush.msra.mxu0 0.0
    %3241 = vmatpush.msra.mxu0 0.0
    %3242 = vmatpush.msra.mxu0 0.0
    %3243 = vmatpush.msra.mxu0 0.0
    %3244 = vmatpush.msra.mxu0 0.0
    %3245 = vmatpush.msra.mxu0 0.0
    %3246 = vmatpush.msra.mxu0 0.0
    %3247 = vmatpush.msra.mxu0 %v3009
    %3248 = vmatpush.msra.mxu0 %v3006
    %3249 = vmatmul.f32.gmra.mxu0 %v3228
    %v3250 = vpop.f32.mrf.mxu0
    %v3251 = vadd.f32 0.0, %v3250
    %3252 = vmatmul.f32.gmra.mxu0 %v3231
    %v3253 = vpop.f32.mrf.mxu0
    %v3254 = vadd.f32 0.0, %v3253
    %3255 = vdwg.mxu0
    %3256 = vrot.lane.b32.xlu0 %v3011, 112
    %v3257 = vpop.permute.xlu0 %3256
    %3258 = vrot.lane.b32.xlu0 %v3012, 112
    %v3259 = vpop.permute.xlu0 %3258
    %3260 = vrot.lane.b32.xlu0 %v2971, 112
    %v3261 = vpop.permute.xlu0 %3260
    %3262 = vrot.lane.b32.xlu0 %v2974, 112
    %v3263 = vpop.permute.xlu0 %3262
    %v3264 = vsel %vm274, %v3257, 0
    %v3266 = vsel %vm274, %v3259, 0
    %v3268 = vsel %vm274, %v3261, 0
    %v3270 = vsel %vm274, %v3263, 0
    %3272 = vmatpush.xpose.msra.mxu0 0.0
    %3273 = vmatpush.xpose.msra.mxu0 0.0
    %3274 = vmatpush.xpose.msra.mxu0 0.0
    %3275 = vmatpush.xpose.msra.mxu0 0.0
    %3276 = vmatpush.xpose.msra.mxu0 0.0
    %3277 = vmatpush.xpose.msra.mxu0 0.0
    %3278 = vmatpush.xpose.msra.mxu0 0.0
    %3279 = vmatpush.xpose.msra.mxu0 0.0
    %3280 = vmatpush.xpose.msra.mxu0 0.0
    %3281 = vmatpush.xpose.msra.mxu0 0.0
    %3282 = vmatpush.xpose.msra.mxu0 0.0
    %3283 = vmatpush.xpose.msra.mxu0 0.0
    %3284 = vmatpush.xpose.msra.mxu0 0.0
    %3285 = vmatpush.xpose.msra.mxu0 0.0
    %3286 = vmatpush.xpose.msra.mxu0 %v3270
    %3287 = vmatpush.xpose.msra.mxu0 %v3268
    %3288 = vmatmul.f32.gmra.mxu0 %v3264
    %v3289 = vpop.f32.mrf.mxu0
    %v3290 = vadd.f32 0.0, %v3289
    %3291 = vmatmul.f32.gmra.mxu0 %v3266
    %v3292 = vpop.f32.mrf.mxu0
    %v3293 = vadd.f32 0.0, %v3292
    %3294 = vdwg.mxu0
    %3295 = vrot.lane.b32.xlu0 %v3013, 112
    %v3296 = vpop.permute.xlu0 %3295
    %3297 = vrot.lane.b32.xlu0 %v3014, 112
    %v3298 = vpop.permute.xlu0 %3297
    %3299 = vrot.lane.b32.xlu0 %v2977, 112
    %v3300 = vpop.permute.xlu0 %3299
    %3301 = vrot.lane.b32.xlu0 %v2980, 112
    %v3302 = vpop.permute.xlu0 %3301
    %v3303 = vsel %vm274, %v3296, 0
    %v3305 = vsel %vm274, %v3298, 0
    %v3307 = vsel %vm274, %v3300, 0
    %v3309 = vsel %vm274, %v3302, 0
    %3311 = vmatpush.xpose.msra.mxu0 0.0
    %3312 = vmatpush.xpose.msra.mxu0 0.0
    %3313 = vmatpush.xpose.msra.mxu0 0.0
    %3314 = vmatpush.xpose.msra.mxu0 0.0
    %3315 = vmatpush.xpose.msra.mxu0 0.0
    %3316 = vmatpush.xpose.msra.mxu0 0.0
    %3317 = vmatpush.xpose.msra.mxu0 0.0
    %3318 = vmatpush.xpose.msra.mxu0 0.0
    %3319 = vmatpush.xpose.msra.mxu0 0.0
    %3320 = vmatpush.xpose.msra.mxu0 0.0
    %3321 = vmatpush.xpose.msra.mxu0 0.0
    %3322 = vmatpush.xpose.msra.mxu0 0.0
    %3323 = vmatpush.xpose.msra.mxu0 0.0
    %3324 = vmatpush.xpose.msra.mxu0 0.0
    %3325 = vmatpush.xpose.msra.mxu0 %v3309
    %3326 = vmatpush.xpose.msra.mxu0 %v3307
    %3327 = vmatmul.f32.gmra.mxu0 %v3303
    %v3328 = vpop.f32.mrf.mxu0
    %v3329 = vadd.f32 0.0, %v3328
    %3330 = vmatmul.f32.gmra.mxu0 %v3305
    %v3331 = vpop.f32.mrf.mxu0
    %v3332 = vadd.f32 0.0, %v3331
    %3333 = vdwg.mxu0
    %v3334 = vsel %vm274, %v3290, -inf
    %3335 = vmax.xlane.f32.xlu0 %v3334
    %v3336 = vpop.xlane.xlu0 %3335
    %v3337 = vsel %vm274, %v3293, -inf
    %3338 = vmax.xlane.f32.xlu0 %v3337
    %v3339 = vpop.xlane.xlu0 %3338
    %v3340 = vsel %vm274, %v3329, -inf
    %3341 = vmax.xlane.f32.xlu0 %v3340
    %v3342 = vpop.xlane.xlu0 %3341
    %v3343 = vsel %vm274, %v3332, -inf
    %3344 = vmax.xlane.f32.xlu0 %v3343
    %v3345 = vpop.xlane.xlu0 %3344
    %v3346 = vsub.f32 %v3290, %v3336
    %v3347 = vsub.f32 %v3293, %v3339
    %v3348 = vsub.f32 %v3329, %v3342
    %v3349 = vsub.f32 %v3332, %v3345
    %v3350 = vmul.f32 %v3346, 1.442695
    %v3351 = vpow.pop %v3350
    %v3352 = vmul.f32 %v3347, 1.442695
    %v3353 = vpow.pop %v3352
    %v3354 = vmul.f32 %v3348, 1.442695
    %v3355 = vpow.pop %v3354
    %v3356 = vmul.f32 %v3349, 1.442695
    %v3357 = vpow.pop %v3356
    %v3358 = vsel %vm274, %v3351, 0.0
    %3359 = vadd.xlane.f32.xlu0 %v3358
    %v3360 = vpop.xlane.xlu0 %3359
    %v3361 = vsel %vm274, %v3353, 0.0
    %3362 = vadd.xlane.f32.xlu0 %v3361
    %v3363 = vpop.xlane.xlu0 %3362
    %v3364 = vsel %vm274, %v3355, 0.0
    %3365 = vadd.xlane.f32.xlu0 %v3364
    %v3366 = vpop.xlane.xlu0 %3365
    %v3367 = vsel %vm274, %v3357, 0.0
    %3368 = vadd.xlane.f32.xlu0 %v3367
    %v3369 = vpop.xlane.xlu0 %3368
    %v3370 = vrcp.pop %v3360
    %v3371 = vmul.f32 %v3360, %v3370
    %v3372 = vsub.f32 1.0, %v3371
    %v3373 = vmul.f32 %v3370, %v3372
    %v3374 = vadd.f32 %v3370, %v3373
    %vm3375 = vweird.f32 %v3360
    %vm3376 = vweird.f32 %v3370
    %vm3377 = vmor %vm3375, %vm3376
    %v3378 = vsel %vm3377, %v3370, %v3374
    %v3379 = vand.u32 2147483647, %v3360
    %vm3380 = vcmp.eq.f32.partialorder %v3379, 8.507059e+37
    %v3381 = vand.u32 %v3360, 2147483648
    %v3382 = vor.u32 1.1754944e-38, %v3381
    %v3383 = vsel %vm3380, %v3382, %v3378
    %v3384 = vmul.f32 %v3351, %v3383
    %v3385 = vrcp.pop %v3363
    %v3386 = vmul.f32 %v3363, %v3385
    %v3387 = vsub.f32 1.0, %v3386
    %v3388 = vmul.f32 %v3385, %v3387
    %v3389 = vadd.f32 %v3385, %v3388
    %vm3390 = vweird.f32 %v3363
    %vm3391 = vweird.f32 %v3385
    %vm3392 = vmor %vm3390, %vm3391
    %v3393 = vsel %vm3392, %v3385, %v3389
    %v3394 = vand.u32 2147483647, %v3363
    %vm3395 = vcmp.eq.f32.partialorder %v3394, 8.507059e+37
    %v3396 = vand.u32 %v3363, 2147483648
    %v3397 = vor.u32 1.1754944e-38, %v3396
    %v3398 = vsel %vm3395, %v3397, %v3393
    %v3399 = vmul.f32 %v3353, %v3398
    %v3400 = vrcp.pop %v3366
    %v3401 = vmul.f32 %v3366, %v3400
    %v3402 = vsub.f32 1.0, %v3401
    %v3403 = vmul.f32 %v3400, %v3402
    %v3404 = vadd.f32 %v3400, %v3403
    %vm3405 = vweird.f32 %v3366
    %vm3406 = vweird.f32 %v3400
    %vm3407 = vmor %vm3405, %vm3406
    %v3408 = vsel %vm3407, %v3400, %v3404
    %v3409 = vand.u32 2147483647, %v3366
    %vm3410 = vcmp.eq.f32.partialorder %v3409, 8.507059e+37
    %v3411 = vand.u32 %v3366, 2147483648
    %v3412 = vor.u32 1.1754944e-38, %v3411
    %v3413 = vsel %vm3410, %v3412, %v3408
    %v3414 = vmul.f32 %v3355, %v3413
    %v3415 = vrcp.pop %v3369
    %v3416 = vmul.f32 %v3369, %v3415
    %v3417 = vsub.f32 1.0, %v3416
    %v3418 = vmul.f32 %v3415, %v3417
    %v3419 = vadd.f32 %v3415, %v3418
    %vm3420 = vweird.f32 %v3369
    %vm3421 = vweird.f32 %v3415
    %vm3422 = vmor %vm3420, %vm3421
    %v3423 = vsel %vm3422, %v3415, %v3419
    %v3424 = vand.u32 2147483647, %v3369
    %vm3425 = vcmp.eq.f32.partialorder %v3424, 8.507059e+37
    %v3426 = vand.u32 %v3369, 2147483648
    %v3427 = vor.u32 1.1754944e-38, %v3426
    %v3428 = vsel %vm3425, %v3427, %v3423
    %v3429 = vmul.f32 %v3357, %v3428
    %3432 = vrot.lane.b32.xlu0 %v3000, 112
    %v3433 = vpop.permute.xlu0 %3432
    %3434 = vrot.lane.b32.xlu0 %v3003, 112
    %v3435 = vpop.permute.xlu0 %3434
    %v3439 = vsel %vm274, %v3384, 0
    %v3442 = vsel %vm274, %v3399, 0
    %3444 = vmatpush.msra.mxu0 0.0
    %3445 = vmatpush.msra.mxu0 0.0
    %3446 = vmatpush.msra.mxu0 0.0
    %3447 = vmatpush.msra.mxu0 0.0
    %3448 = vmatpush.msra.mxu0 0.0
    %3449 = vmatpush.msra.mxu0 0.0
    %3450 = vmatpush.msra.mxu0 0.0
    %3451 = vmatpush.msra.mxu0 0.0
    %3452 = vmatpush.msra.mxu0 0.0
    %3453 = vmatpush.msra.mxu0 0.0
    %3454 = vmatpush.msra.mxu0 0.0
    %3455 = vmatpush.msra.mxu0 0.0
    %3456 = vmatpush.msra.mxu0 0.0
    %3457 = vmatpush.msra.mxu0 0.0
    %3458 = vmatpush.msra.mxu0 %v3435
    %3459 = vmatpush.msra.mxu0 %v3433
    %3460 = vmatmul.f32.gmra.mxu0 %v3439
    %v3461 = vpop.f32.mrf.mxu0
    %v3462 = vadd.f32 0.0, %v3461
    %3463 = vmatmul.f32.gmra.mxu0 %v3442
    %v3464 = vpop.f32.mrf.mxu0
    %v3465 = vadd.f32 0.0, %v3464
    %3466 = vdwg.mxu0
    %3469 = vrot.lane.b32.xlu0 %v3006, 112
    %v3470 = vpop.permute.xlu0 %3469
    %3471 = vrot.lane.b32.xlu0 %v3009, 112
    %v3472 = vpop.permute.xlu0 %3471
    %v3476 = vsel %vm274, %v3414, 0
    %v3479 = vsel %vm274, %v3429, 0
    %3481 = vmatpush.msra.mxu0 0.0
    %3482 = vmatpush.msra.mxu0 0.0
    %3483 = vmatpush.msra.mxu0 0.0
    %3484 = vmatpush.msra.mxu0 0.0
    %3485 = vmatpush.msra.mxu0 0.0
    %3486 = vmatpush.msra.mxu0 0.0
    %3487 = vmatpush.msra.mxu0 0.0
    %3488 = vmatpush.msra.mxu0 0.0
    %3489 = vmatpush.msra.mxu0 0.0
    %3490 = vmatpush.msra.mxu0 0.0
    %3491 = vmatpush.msra.mxu0 0.0
    %3492 = vmatpush.msra.mxu0 0.0
    %3493 = vmatpush.msra.mxu0 0.0
    %3494 = vmatpush.msra.mxu0 0.0
    %3495 = vmatpush.msra.mxu0 %v3472
    %3496 = vmatpush.msra.mxu0 %v3470
    %3497 = vmatmul.f32.gmra.mxu0 %v3476
    %v3498 = vpop.f32.mrf.mxu0
    %v3499 = vadd.f32 0.0, %v3498
    %3500 = vmatmul.f32.gmra.mxu0 %v3479
    %v3501 = vpop.f32.mrf.mxu0
    %v3502 = vadd.f32 0.0, %v3501
    %3503 = vdwg.mxu0
    %v3505 = vsel %vm274, %v3462, 0
    %v3508 = vsel %vm274, %v3465, 0
    %v3511 = vsel %vm274, %v3499, 0
    %v3514 = vsel %vm274, %v3502, 0
    %3516 = vmatpush.msra.mxu0 0.0
    %3517 = vmatpush.msra.mxu0 0.0
    %3518 = vmatpush.msra.mxu0 0.0
    %3519 = vmatpush.msra.mxu0 0.0
    %3520 = vmatpush.msra.mxu0 0.0
    %3521 = vmatpush.msra.mxu0 0.0
    %3522 = vmatpush.msra.mxu0 0.0
    %3523 = vmatpush.msra.mxu0 0.0
    %3524 = vmatpush.msra.mxu0 0.0
    %3525 = vmatpush.msra.mxu0 0.0
    %3526 = vmatpush.msra.mxu0 0.0
    %3527 = vmatpush.msra.mxu0 0.0
    %3528 = vmatpush.msra.mxu0 0.0
    %3529 = vmatpush.msra.mxu0 0.0
    %3530 = vmatpush.msra.mxu0 %v3019
    %3531 = vmatpush.msra.mxu0 %v3018
    %3532 = vmatmul.f32.gmra.mxu0 %v3505
    %v3533 = vpop.f32.mrf.mxu0
    %v3534 = vadd.f32 0.0, %v3533
    %3535 = vmatmul.f32.gmra.mxu0 %v3508
    %v3536 = vpop.f32.mrf.mxu0
    %v3537 = vadd.f32 0.0, %v3536
    %3538 = vmatmul.f32.gmra.mxu0 %v3511
    %v3539 = vpop.f32.mrf.mxu0
    %v3540 = vadd.f32 0.0, %v3539
    %3541 = vmatmul.f32.gmra.mxu0 %v3514
    %v3542 = vpop.f32.mrf.mxu0
    %v3543 = vadd.f32 0.0, %v3542
    %3544 = vdwg.mxu0
    %v3546 = vsel %vm274, %v3222, 0
    %v3549 = vsel %vm274, %v3225, 0
    %v3552 = vsel %vm274, %v3251, 0
    %v3555 = vsel %vm274, %v3254, 0
    %3557 = vmatpush.msra.mxu0 0.0
    %3558 = vmatpush.msra.mxu0 0.0
    %3559 = vmatpush.msra.mxu0 0.0
    %3560 = vmatpush.msra.mxu0 0.0
    %3561 = vmatpush.msra.mxu0 0.0
    %3562 = vmatpush.msra.mxu0 0.0
    %3563 = vmatpush.msra.mxu0 0.0
    %3564 = vmatpush.msra.mxu0 0.0
    %3565 = vmatpush.msra.mxu0 0.0
    %3566 = vmatpush.msra.mxu0 0.0
    %3567 = vmatpush.msra.mxu0 0.0
    %3568 = vmatpush.msra.mxu0 0.0
    %3569 = vmatpush.msra.mxu0 0.0
    %3570 = vmatpush.msra.mxu0 0.0
    %3571 = vmatpush.msra.mxu0 %v3017
    %3572 = vmatpush.msra.mxu0 %v3016
    %3573 = vmatmul.f32.gmra.mxu0 %v3546
    %v3574 = vpop.f32.mrf.mxu0
    %v3575 = vadd.f32 %v3534, %v3574
    %3576 = vmatmul.f32.gmra.mxu0 %v3549
    %v3577 = vpop.f32.mrf.mxu0
    %v3578 = vadd.f32 %v3537, %v3577
    %3579 = vmatmul.f32.gmra.mxu0 %v3552
    %v3580 = vpop.f32.mrf.mxu0
    %v3581 = vadd.f32 %v3540, %v3580
    %3582 = vmatmul.f32.gmra.mxu0 %v3555
    %v3583 = vpop.f32.mrf.mxu0
    %v3584 = vadd.f32 %v3543, %v3583
    %3585 = vdwg.mxu0
    %3586 = vrot.lane.b32.xlu0 %v3011, 96
    %v3587 = vpop.permute.xlu0 %3586
    %3588 = vrot.lane.b32.xlu0 %v3012, 96
    %v3589 = vpop.permute.xlu0 %3588
    %3590 = vrot.lane.b32.xlu0 %v2971, 96
    %v3591 = vpop.permute.xlu0 %3590
    %3592 = vrot.lane.b32.xlu0 %v2974, 96
    %v3593 = vpop.permute.xlu0 %3592
    %v3594 = vsel %vm274, %v3587, 0
    %v3596 = vsel %vm274, %v3589, 0
    %v3598 = vsel %vm274, %v3591, 0
    %v3600 = vsel %vm274, %v3593, 0
    %3602 = vmatpush.xpose.msra.mxu0 0.0
    %3603 = vmatpush.xpose.msra.mxu0 0.0
    %3604 = vmatpush.xpose.msra.mxu0 0.0
    %3605 = vmatpush.xpose.msra.mxu0 0.0
    %3606 = vmatpush.xpose.msra.mxu0 0.0
    %3607 = vmatpush.xpose.msra.mxu0 0.0
    %3608 = vmatpush.xpose.msra.mxu0 0.0
    %3609 = vmatpush.xpose.msra.mxu0 0.0
    %3610 = vmatpush.xpose.msra.mxu0 0.0
    %3611 = vmatpush.xpose.msra.mxu0 0.0
    %3612 = vmatpush.xpose.msra.mxu0 0.0
    %3613 = vmatpush.xpose.msra.mxu0 0.0
    %3614 = vmatpush.xpose.msra.mxu0 0.0
    %3615 = vmatpush.xpose.msra.mxu0 0.0
    %3616 = vmatpush.xpose.msra.mxu0 %v3600
    %3617 = vmatpush.xpose.msra.mxu0 %v3598
    %3618 = vmatmul.f32.gmra.mxu0 %v3594
    %v3619 = vpop.f32.mrf.mxu0
    %v3620 = vadd.f32 0.0, %v3619
    %3621 = vmatmul.f32.gmra.mxu0 %v3596
    %v3622 = vpop.f32.mrf.mxu0
    %v3623 = vadd.f32 0.0, %v3622
    %3624 = vdwg.mxu0
    %3625 = vrot.lane.b32.xlu0 %v3013, 96
    %v3626 = vpop.permute.xlu0 %3625
    %3627 = vrot.lane.b32.xlu0 %v3014, 96
    %v3628 = vpop.permute.xlu0 %3627
    %3629 = vrot.lane.b32.xlu0 %v2977, 96
    %v3630 = vpop.permute.xlu0 %3629
    %3631 = vrot.lane.b32.xlu0 %v2980, 96
    %v3632 = vpop.permute.xlu0 %3631
    %v3633 = vsel %vm274, %v3626, 0
    %v3635 = vsel %vm274, %v3628, 0
    %v3637 = vsel %vm274, %v3630, 0
    %v3639 = vsel %vm274, %v3632, 0
    %3641 = vmatpush.xpose.msra.mxu0 0.0
    %3642 = vmatpush.xpose.msra.mxu0 0.0
    %3643 = vmatpush.xpose.msra.mxu0 0.0
    %3644 = vmatpush.xpose.msra.mxu0 0.0
    %3645 = vmatpush.xpose.msra.mxu0 0.0
    %3646 = vmatpush.xpose.msra.mxu0 0.0
    %3647 = vmatpush.xpose.msra.mxu0 0.0
    %3648 = vmatpush.xpose.msra.mxu0 0.0
    %3649 = vmatpush.xpose.msra.mxu0 0.0
    %3650 = vmatpush.xpose.msra.mxu0 0.0
    %3651 = vmatpush.xpose.msra.mxu0 0.0
    %3652 = vmatpush.xpose.msra.mxu0 0.0
    %3653 = vmatpush.xpose.msra.mxu0 0.0
    %3654 = vmatpush.xpose.msra.mxu0 0.0
    %3655 = vmatpush.xpose.msra.mxu0 %v3639
    %3656 = vmatpush.xpose.msra.mxu0 %v3637
    %3657 = vmatmul.f32.gmra.mxu0 %v3633
    %v3658 = vpop.f32.mrf.mxu0
    %v3659 = vadd.f32 0.0, %v3658
    %3660 = vmatmul.f32.gmra.mxu0 %v3635
    %v3661 = vpop.f32.mrf.mxu0
    %v3662 = vadd.f32 0.0, %v3661
    %3663 = vdwg.mxu0
    %v3664 = vsel %vm274, %v3620, -inf
    %3665 = vmax.xlane.f32.xlu0 %v3664
    %v3666 = vpop.xlane.xlu0 %3665
    %v3667 = vsel %vm274, %v3623, -inf
    %3668 = vmax.xlane.f32.xlu0 %v3667
    %v3669 = vpop.xlane.xlu0 %3668
    %v3670 = vsel %vm274, %v3659, -inf
    %3671 = vmax.xlane.f32.xlu0 %v3670
    %v3672 = vpop.xlane.xlu0 %3671
    %v3673 = vsel %vm274, %v3662, -inf
    %3674 = vmax.xlane.f32.xlu0 %v3673
    %v3675 = vpop.xlane.xlu0 %3674
    %v3676 = vsub.f32 %v3620, %v3666
    %v3677 = vsub.f32 %v3623, %v3669
    %v3678 = vsub.f32 %v3659, %v3672
    %v3679 = vsub.f32 %v3662, %v3675
    %v3680 = vmul.f32 %v3676, 1.442695
    %v3681 = vpow.pop %v3680
    %v3682 = vmul.f32 %v3677, 1.442695
    %v3683 = vpow.pop %v3682
    %v3684 = vmul.f32 %v3678, 1.442695
    %v3685 = vpow.pop %v3684
    %v3686 = vmul.f32 %v3679, 1.442695
    %v3687 = vpow.pop %v3686
    %v3688 = vsel %vm274, %v3681, 0.0
    %3689 = vadd.xlane.f32.xlu0 %v3688
    %v3690 = vpop.xlane.xlu0 %3689
    %v3691 = vsel %vm274, %v3683, 0.0
    %3692 = vadd.xlane.f32.xlu0 %v3691
    %v3693 = vpop.xlane.xlu0 %3692
    %v3694 = vsel %vm274, %v3685, 0.0
    %3695 = vadd.xlane.f32.xlu0 %v3694
    %v3696 = vpop.xlane.xlu0 %3695
    %v3697 = vsel %vm274, %v3687, 0.0
    %3698 = vadd.xlane.f32.xlu0 %v3697
    %v3699 = vpop.xlane.xlu0 %3698
    %v3700 = vrcp.pop %v3690
    %v3701 = vmul.f32 %v3690, %v3700
    %v3702 = vsub.f32 1.0, %v3701
    %v3703 = vmul.f32 %v3700, %v3702
    %v3704 = vadd.f32 %v3700, %v3703
    %vm3705 = vweird.f32 %v3690
    %vm3706 = vweird.f32 %v3700
    %vm3707 = vmor %vm3705, %vm3706
    %v3708 = vsel %vm3707, %v3700, %v3704
    %v3709 = vand.u32 2147483647, %v3690
    %vm3710 = vcmp.eq.f32.partialorder %v3709, 8.507059e+37
    %v3711 = vand.u32 %v3690, 2147483648
    %v3712 = vor.u32 1.1754944e-38, %v3711
    %v3713 = vsel %vm3710, %v3712, %v3708
    %v3714 = vmul.f32 %v3681, %v3713
    %v3715 = vrcp.pop %v3693
    %v3716 = vmul.f32 %v3693, %v3715
    %v3717 = vsub.f32 1.0, %v3716
    %v3718 = vmul.f32 %v3715, %v3717
    %v3719 = vadd.f32 %v3715, %v3718
    %vm3720 = vweird.f32 %v3693
    %vm3721 = vweird.f32 %v3715
    %vm3722 = vmor %vm3720, %vm3721
    %v3723 = vsel %vm3722, %v3715, %v3719
    %v3724 = vand.u32 2147483647, %v3693
    %vm3725 = vcmp.eq.f32.partialorder %v3724, 8.507059e+37
    %v3726 = vand.u32 %v3693, 2147483648
    %v3727 = vor.u32 1.1754944e-38, %v3726
    %v3728 = vsel %vm3725, %v3727, %v3723
    %v3729 = vmul.f32 %v3683, %v3728
    %v3730 = vrcp.pop %v3696
    %v3731 = vmul.f32 %v3696, %v3730
    %v3732 = vsub.f32 1.0, %v3731
    %v3733 = vmul.f32 %v3730, %v3732
    %v3734 = vadd.f32 %v3730, %v3733
    %vm3735 = vweird.f32 %v3696
    %vm3736 = vweird.f32 %v3730
    %vm3737 = vmor %vm3735, %vm3736
    %v3738 = vsel %vm3737, %v3730, %v3734
    %v3739 = vand.u32 2147483647, %v3696
    %vm3740 = vcmp.eq.f32.partialorder %v3739, 8.507059e+37
    %v3741 = vand.u32 %v3696, 2147483648
    %v3742 = vor.u32 1.1754944e-38, %v3741
    %v3743 = vsel %vm3740, %v3742, %v3738
    %v3744 = vmul.f32 %v3685, %v3743
    %v3745 = vrcp.pop %v3699
    %v3746 = vmul.f32 %v3699, %v3745
    %v3747 = vsub.f32 1.0, %v3746
    %v3748 = vmul.f32 %v3745, %v3747
    %v3749 = vadd.f32 %v3745, %v3748
    %vm3750 = vweird.f32 %v3699
    %vm3751 = vweird.f32 %v3745
    %vm3752 = vmor %vm3750, %vm3751
    %v3753 = vsel %vm3752, %v3745, %v3749
    %v3754 = vand.u32 2147483647, %v3699
    %vm3755 = vcmp.eq.f32.partialorder %v3754, 8.507059e+37
    %v3756 = vand.u32 %v3699, 2147483648
    %v3757 = vor.u32 1.1754944e-38, %v3756
    %v3758 = vsel %vm3755, %v3757, %v3753
    %v3759 = vmul.f32 %v3687, %v3758
    %3760 = vrot.lane.b32.xlu0 %v3000, 96
    %v3761 = vpop.permute.xlu0 %3760
    %3762 = vrot.lane.b32.xlu0 %v3003, 96
    %v3763 = vpop.permute.xlu0 %3762
    %v3767 = vsel %vm274, %v3714, 0
    %v3770 = vsel %vm274, %v3729, 0
    %3772 = vmatpush.msra.mxu0 0.0
    %3773 = vmatpush.msra.mxu0 0.0
    %3774 = vmatpush.msra.mxu0 0.0
    %3775 = vmatpush.msra.mxu0 0.0
    %3776 = vmatpush.msra.mxu0 0.0
    %3777 = vmatpush.msra.mxu0 0.0
    %3778 = vmatpush.msra.mxu0 0.0
    %3779 = vmatpush.msra.mxu0 0.0
    %3780 = vmatpush.msra.mxu0 0.0
    %3781 = vmatpush.msra.mxu0 0.0
    %3782 = vmatpush.msra.mxu0 0.0
    %3783 = vmatpush.msra.mxu0 0.0
    %3784 = vmatpush.msra.mxu0 0.0
    %3785 = vmatpush.msra.mxu0 0.0
    %3786 = vmatpush.msra.mxu0 %v3763
    %3787 = vmatpush.msra.mxu0 %v3761
    %3788 = vmatmul.f32.gmra.mxu0 %v3767
    %v3789 = vpop.f32.mrf.mxu0
    %v3790 = vadd.f32 0.0, %v3789
    %3791 = vmatmul.f32.gmra.mxu0 %v3770
    %v3792 = vpop.f32.mrf.mxu0
    %v3793 = vadd.f32 0.0, %v3792
    %3794 = vdwg.mxu0
    %3795 = vrot.lane.b32.xlu0 %v3006, 96
    %v3796 = vpop.permute.xlu0 %3795
    %3797 = vrot.lane.b32.xlu0 %v3009, 96
    %v3798 = vpop.permute.xlu0 %3797
    %v3802 = vsel %vm274, %v3744, 0
    %v3805 = vsel %vm274, %v3759, 0
    %3807 = vmatpush.msra.mxu0 0.0
    %3808 = vmatpush.msra.mxu0 0.0
    %3809 = vmatpush.msra.mxu0 0.0
    %3810 = vmatpush.msra.mxu0 0.0
    %3811 = vmatpush.msra.mxu0 0.0
    %3812 = vmatpush.msra.mxu0 0.0
    %3813 = vmatpush.msra.mxu0 0.0
    %3814 = vmatpush.msra.mxu0 0.0
    %3815 = vmatpush.msra.mxu0 0.0
    %3816 = vmatpush.msra.mxu0 0.0
    %3817 = vmatpush.msra.mxu0 0.0
    %3818 = vmatpush.msra.mxu0 0.0
    %3819 = vmatpush.msra.mxu0 0.0
    %3820 = vmatpush.msra.mxu0 0.0
    %3821 = vmatpush.msra.mxu0 %v3798
    %3822 = vmatpush.msra.mxu0 %v3796
    %3823 = vmatmul.f32.gmra.mxu0 %v3802
    %v3824 = vpop.f32.mrf.mxu0
    %v3825 = vadd.f32 0.0, %v3824
    %3826 = vmatmul.f32.gmra.mxu0 %v3805
    %v3827 = vpop.f32.mrf.mxu0
    %v3828 = vadd.f32 0.0, %v3827
    %3829 = vdwg.mxu0
    %v3831 = vsel %vm274, %v3790, 0
    %v3834 = vsel %vm274, %v3793, 0
    %v3837 = vsel %vm274, %v3825, 0
    %v3840 = vsel %vm274, %v3828, 0
    %3842 = vmatpush.msra.mxu0 0.0
    %3843 = vmatpush.msra.mxu0 0.0
    %3844 = vmatpush.msra.mxu0 0.0
    %3845 = vmatpush.msra.mxu0 0.0
    %3846 = vmatpush.msra.mxu0 0.0
    %3847 = vmatpush.msra.mxu0 0.0
    %3848 = vmatpush.msra.mxu0 0.0
    %3849 = vmatpush.msra.mxu0 0.0
    %3850 = vmatpush.msra.mxu0 0.0
    %3851 = vmatpush.msra.mxu0 0.0
    %3852 = vmatpush.msra.mxu0 0.0
    %3853 = vmatpush.msra.mxu0 0.0
    %3854 = vmatpush.msra.mxu0 0.0
    %3855 = vmatpush.msra.mxu0 0.0
    %3856 = vmatpush.msra.mxu0 %v3021
    %3857 = vmatpush.msra.mxu0 %v3020
    %3858 = vmatmul.f32.gmra.mxu0 %v3831
    %v3859 = vpop.f32.mrf.mxu0
    %v3860 = vadd.f32 0.0, %v3859
    %3861 = vmatmul.f32.gmra.mxu0 %v3834
    %v3862 = vpop.f32.mrf.mxu0
    %v3863 = vadd.f32 0.0, %v3862
    %3864 = vmatmul.f32.gmra.mxu0 %v3837
    %v3865 = vpop.f32.mrf.mxu0
    %v3866 = vadd.f32 0.0, %v3865
    %3867 = vmatmul.f32.gmra.mxu0 %v3840
    %v3868 = vpop.f32.mrf.mxu0
    %v3869 = vadd.f32 0.0, %v3868
    %3870 = vdwg.mxu0
    %v3871 = vadd.f32 %v3575, %v3860
    %v3872 = vadd.f32 %v3578, %v3863
    %v3873 = vadd.f32 %v3581, %v3866
    %v3874 = vadd.f32 %v3584, %v3869
    %3875 = vrot.lane.b32.xlu0 %v3011, 80
    %v3876 = vpop.permute.xlu0 %3875
    %3877 = vrot.lane.b32.xlu0 %v3012, 80
    %v3878 = vpop.permute.xlu0 %3877
    %3879 = vrot.lane.b32.xlu0 %v2971, 80
    %v3880 = vpop.permute.xlu0 %3879
    %3881 = vrot.lane.b32.xlu0 %v2974, 80
    %v3882 = vpop.permute.xlu0 %3881
    %v3883 = vsel %vm274, %v3876, 0
    %v3885 = vsel %vm274, %v3878, 0
    %v3887 = vsel %vm274, %v3880, 0
    %v3889 = vsel %vm274, %v3882, 0
    %3891 = vmatpush.xpose.msra.mxu0 0.0
    %3892 = vmatpush.xpose.msra.mxu0 0.0
    %3893 = vmatpush.xpose.msra.mxu0 0.0
    %3894 = vmatpush.xpose.msra.mxu0 0.0
    %3895 = vmatpush.xpose.msra.mxu0 0.0
    %3896 = vmatpush.xpose.msra.mxu0 0.0
    %3897 = vmatpush.xpose.msra.mxu0 0.0
    %3898 = vmatpush.xpose.msra.mxu0 0.0
    %3899 = vmatpush.xpose.msra.mxu0 0.0
    %3900 = vmatpush.xpose.msra.mxu0 0.0
    %3901 = vmatpush.xpose.msra.mxu0 0.0
    %3902 = vmatpush.xpose.msra.mxu0 0.0
    %3903 = vmatpush.xpose.msra.mxu0 0.0
    %3904 = vmatpush.xpose.msra.mxu0 0.0
    %3905 = vmatpush.xpose.msra.mxu0 %v3889
    %3906 = vmatpush.xpose.msra.mxu0 %v3887
    %3907 = vmatmul.f32.gmra.mxu0 %v3883
    %v3908 = vpop.f32.mrf.mxu0
    %v3909 = vadd.f32 0.0, %v3908
    %3910 = vmatmul.f32.gmra.mxu0 %v3885
    %v3911 = vpop.f32.mrf.mxu0
    %v3912 = vadd.f32 0.0, %v3911
    %3913 = vdwg.mxu0
    %3914 = vrot.lane.b32.xlu0 %v3013, 80
    %v3915 = vpop.permute.xlu0 %3914
    %3916 = vrot.lane.b32.xlu0 %v3014, 80
    %v3917 = vpop.permute.xlu0 %3916
    %3918 = vrot.lane.b32.xlu0 %v2977, 80
    %v3919 = vpop.permute.xlu0 %3918
    %3920 = vrot.lane.b32.xlu0 %v2980, 80
    %v3921 = vpop.permute.xlu0 %3920
    %v3922 = vsel %vm274, %v3915, 0
    %v3924 = vsel %vm274, %v3917, 0
    %v3926 = vsel %vm274, %v3919, 0
    %v3928 = vsel %vm274, %v3921, 0
    %3930 = vmatpush.xpose.msra.mxu0 0.0
    %3931 = vmatpush.xpose.msra.mxu0 0.0
    %3932 = vmatpush.xpose.msra.mxu0 0.0
    %3933 = vmatpush.xpose.msra.mxu0 0.0
    %3934 = vmatpush.xpose.msra.mxu0 0.0
    %3935 = vmatpush.xpose.msra.mxu0 0.0
    %3936 = vmatpush.xpose.msra.mxu0 0.0
    %3937 = vmatpush.xpose.msra.mxu0 0.0
    %3938 = vmatpush.xpose.msra.mxu0 0.0
    %3939 = vmatpush.xpose.msra.mxu0 0.0
    %3940 = vmatpush.xpose.msra.mxu0 0.0
    %3941 = vmatpush.xpose.msra.mxu0 0.0
    %3942 = vmatpush.xpose.msra.mxu0 0.0
    %3943 = vmatpush.xpose.msra.mxu0 0.0
    %3944 = vmatpush.xpose.msra.mxu0 %v3928
    %3945 = vmatpush.xpose.msra.mxu0 %v3926
    %3946 = vmatmul.f32.gmra.mxu0 %v3922
    %v3947 = vpop.f32.mrf.mxu0
    %v3948 = vadd.f32 0.0, %v3947
    %3949 = vmatmul.f32.gmra.mxu0 %v3924
    %v3950 = vpop.f32.mrf.mxu0
    %v3951 = vadd.f32 0.0, %v3950
    %3952 = vdwg.mxu0
    %v3953 = vsel %vm274, %v3909, -inf
    %3954 = vmax.xlane.f32.xlu0 %v3953
    %v3955 = vpop.xlane.xlu0 %3954
    %v3956 = vsel %vm274, %v3912, -inf
    %3957 = vmax.xlane.f32.xlu0 %v3956
    %v3958 = vpop.xlane.xlu0 %3957
    %v3959 = vsel %vm274, %v3948, -inf
    %3960 = vmax.xlane.f32.xlu0 %v3959
    %v3961 = vpop.xlane.xlu0 %3960
    %v3962 = vsel %vm274, %v3951, -inf
    %3963 = vmax.xlane.f32.xlu0 %v3962
    %v3964 = vpop.xlane.xlu0 %3963
    %v3965 = vsub.f32 %v3909, %v3955
    %v3966 = vsub.f32 %v3912, %v3958
    %v3967 = vsub.f32 %v3948, %v3961
    %v3968 = vsub.f32 %v3951, %v3964
    %v3969 = vmul.f32 %v3965, 1.442695
    %v3970 = vpow.pop %v3969
    %v3971 = vmul.f32 %v3966, 1.442695
    %v3972 = vpow.pop %v3971
    %v3973 = vmul.f32 %v3967, 1.442695
    %v3974 = vpow.pop %v3973
    %v3975 = vmul.f32 %v3968, 1.442695
    %v3976 = vpow.pop %v3975
    %v3977 = vsel %vm274, %v3970, 0.0
    %3978 = vadd.xlane.f32.xlu0 %v3977
    %v3979 = vpop.xlane.xlu0 %3978
    %v3980 = vsel %vm274, %v3972, 0.0
    %3981 = vadd.xlane.f32.xlu0 %v3980
    %v3982 = vpop.xlane.xlu0 %3981
    %v3983 = vsel %vm274, %v3974, 0.0
    %3984 = vadd.xlane.f32.xlu0 %v3983
    %v3985 = vpop.xlane.xlu0 %3984
    %v3986 = vsel %vm274, %v3976, 0.0
    %3987 = vadd.xlane.f32.xlu0 %v3986
    %v3988 = vpop.xlane.xlu0 %3987
    %v3989 = vrcp.pop %v3979
    %v3990 = vmul.f32 %v3979, %v3989
    %v3991 = vsub.f32 1.0, %v3990
    %v3992 = vmul.f32 %v3989, %v3991
    %v3993 = vadd.f32 %v3989, %v3992
    %vm3994 = vweird.f32 %v3979
    %vm3995 = vweird.f32 %v3989
    %vm3996 = vmor %vm3994, %vm3995
    %v3997 = vsel %vm3996, %v3989, %v3993
    %v3998 = vand.u32 2147483647, %v3979
    %vm3999 = vcmp.eq.f32.partialorder %v3998, 8.507059e+37
    %v4000 = vand.u32 %v3979, 2147483648
    %v4001 = vor.u32 1.1754944e-38, %v4000
    %v4002 = vsel %vm3999, %v4001, %v3997
    %v4003 = vmul.f32 %v3970, %v4002
    %v4004 = vrcp.pop %v3982
    %v4005 = vmul.f32 %v3982, %v4004
    %v4006 = vsub.f32 1.0, %v4005
    %v4007 = vmul.f32 %v4004, %v4006
    %v4008 = vadd.f32 %v4004, %v4007
    %vm4009 = vweird.f32 %v3982
    %vm4010 = vweird.f32 %v4004
    %vm4011 = vmor %vm4009, %vm4010
    %v4012 = vsel %vm4011, %v4004, %v4008
    %v4013 = vand.u32 2147483647, %v3982
    %vm4014 = vcmp.eq.f32.partialorder %v4013, 8.507059e+37
    %v4015 = vand.u32 %v3982, 2147483648
    %v4016 = vor.u32 1.1754944e-38, %v4015
    %v4017 = vsel %vm4014, %v4016, %v4012
    %v4018 = vmul.f32 %v3972, %v4017
    %v4019 = vrcp.pop %v3985
    %v4020 = vmul.f32 %v3985, %v4019
    %v4021 = vsub.f32 1.0, %v4020
    %v4022 = vmul.f32 %v4019, %v4021
    %v4023 = vadd.f32 %v4019, %v4022
    %vm4024 = vweird.f32 %v3985
    %vm4025 = vweird.f32 %v4019
    %vm4026 = vmor %vm4024, %vm4025
    %v4027 = vsel %vm4026, %v4019, %v4023
    %v4028 = vand.u32 2147483647, %v3985
    %vm4029 = vcmp.eq.f32.partialorder %v4028, 8.507059e+37
    %v4030 = vand.u32 %v3985, 2147483648
    %v4031 = vor.u32 1.1754944e-38, %v4030
    %v4032 = vsel %vm4029, %v4031, %v4027
    %v4033 = vmul.f32 %v3974, %v4032
    %v4034 = vrcp.pop %v3988
    %v4035 = vmul.f32 %v3988, %v4034
    %v4036 = vsub.f32 1.0, %v4035
    %v4037 = vmul.f32 %v4034, %v4036
    %v4038 = vadd.f32 %v4034, %v4037
    %vm4039 = vweird.f32 %v3988
    %vm4040 = vweird.f32 %v4034
    %vm4041 = vmor %vm4039, %vm4040
    %v4042 = vsel %vm4041, %v4034, %v4038
    %v4043 = vand.u32 2147483647, %v3988
    %vm4044 = vcmp.eq.f32.partialorder %v4043, 8.507059e+37
    %v4045 = vand.u32 %v3988, 2147483648
    %v4046 = vor.u32 1.1754944e-38, %v4045
    %v4047 = vsel %vm4044, %v4046, %v4042
    %v4048 = vmul.f32 %v3976, %v4047
    %4049 = vrot.lane.b32.xlu0 %v3000, 80
    %v4050 = vpop.permute.xlu0 %4049
    %4051 = vrot.lane.b32.xlu0 %v3003, 80
    %v4052 = vpop.permute.xlu0 %4051
    %v4056 = vsel %vm274, %v4003, 0
    %v4059 = vsel %vm274, %v4018, 0
    %4061 = vmatpush.msra.mxu0 0.0
    %4062 = vmatpush.msra.mxu0 0.0
    %4063 = vmatpush.msra.mxu0 0.0
    %4064 = vmatpush.msra.mxu0 0.0
    %4065 = vmatpush.msra.mxu0 0.0
    %4066 = vmatpush.msra.mxu0 0.0
    %4067 = vmatpush.msra.mxu0 0.0
    %4068 = vmatpush.msra.mxu0 0.0
    %4069 = vmatpush.msra.mxu0 0.0
    %4070 = vmatpush.msra.mxu0 0.0
    %4071 = vmatpush.msra.mxu0 0.0
    %4072 = vmatpush.msra.mxu0 0.0
    %4073 = vmatpush.msra.mxu0 0.0
    %4074 = vmatpush.msra.mxu0 0.0
    %4075 = vmatpush.msra.mxu0 %v4052
    %4076 = vmatpush.msra.mxu0 %v4050
    %4077 = vmatmul.f32.gmra.mxu0 %v4056
    %v4078 = vpop.f32.mrf.mxu0
    %v4079 = vadd.f32 0.0, %v4078
    %4080 = vmatmul.f32.gmra.mxu0 %v4059
    %v4081 = vpop.f32.mrf.mxu0
    %v4082 = vadd.f32 0.0, %v4081
    %4083 = vdwg.mxu0
    %4084 = vrot.lane.b32.xlu0 %v3006, 80
    %v4085 = vpop.permute.xlu0 %4084
    %4086 = vrot.lane.b32.xlu0 %v3009, 80
    %v4087 = vpop.permute.xlu0 %4086
    %v4091 = vsel %vm274, %v4033, 0
    %v4094 = vsel %vm274, %v4048, 0
    %4096 = vmatpush.msra.mxu0 0.0
    %4097 = vmatpush.msra.mxu0 0.0
    %4098 = vmatpush.msra.mxu0 0.0
    %4099 = vmatpush.msra.mxu0 0.0
    %4100 = vmatpush.msra.mxu0 0.0
    %4101 = vmatpush.msra.mxu0 0.0
    %4102 = vmatpush.msra.mxu0 0.0
    %4103 = vmatpush.msra.mxu0 0.0
    %4104 = vmatpush.msra.mxu0 0.0
    %4105 = vmatpush.msra.mxu0 0.0
    %4106 = vmatpush.msra.mxu0 0.0
    %4107 = vmatpush.msra.mxu0 0.0
    %4108 = vmatpush.msra.mxu0 0.0
    %4109 = vmatpush.msra.mxu0 0.0
    %4110 = vmatpush.msra.mxu0 %v4087
    %4111 = vmatpush.msra.mxu0 %v4085
    %4112 = vmatmul.f32.gmra.mxu0 %v4091
    %v4113 = vpop.f32.mrf.mxu0
    %v4114 = vadd.f32 0.0, %v4113
    %4115 = vmatmul.f32.gmra.mxu0 %v4094
    %v4116 = vpop.f32.mrf.mxu0
    %v4117 = vadd.f32 0.0, %v4116
    %4118 = vdwg.mxu0
    %v4120 = vsel %vm274, %v4079, 0
    %v4123 = vsel %vm274, %v4082, 0
    %v4126 = vsel %vm274, %v4114, 0
    %v4129 = vsel %vm274, %v4117, 0
    %4131 = vmatpush.msra.mxu0 0.0
    %4132 = vmatpush.msra.mxu0 0.0
    %4133 = vmatpush.msra.mxu0 0.0
    %4134 = vmatpush.msra.mxu0 0.0
    %4135 = vmatpush.msra.mxu0 0.0
    %4136 = vmatpush.msra.mxu0 0.0
    %4137 = vmatpush.msra.mxu0 0.0
    %4138 = vmatpush.msra.mxu0 0.0
    %4139 = vmatpush.msra.mxu0 0.0
    %4140 = vmatpush.msra.mxu0 0.0
    %4141 = vmatpush.msra.mxu0 0.0
    %4142 = vmatpush.msra.mxu0 0.0
    %4143 = vmatpush.msra.mxu0 0.0
    %4144 = vmatpush.msra.mxu0 0.0
    %4145 = vmatpush.msra.mxu0 %v3023
    %4146 = vmatpush.msra.mxu0 %v3022
    %4147 = vmatmul.f32.gmra.mxu0 %v4120
    %v4148 = vpop.f32.mrf.mxu0
    %v4149 = vadd.f32 0.0, %v4148
    %4150 = vmatmul.f32.gmra.mxu0 %v4123
    %v4151 = vpop.f32.mrf.mxu0
    %v4152 = vadd.f32 0.0, %v4151
    %4153 = vmatmul.f32.gmra.mxu0 %v4126
    %v4154 = vpop.f32.mrf.mxu0
    %v4155 = vadd.f32 0.0, %v4154
    %4156 = vmatmul.f32.gmra.mxu0 %v4129
    %v4157 = vpop.f32.mrf.mxu0
    %v4158 = vadd.f32 0.0, %v4157
    %4159 = vdwg.mxu0
    %v4160 = vadd.f32 %v3871, %v4149
    %v4161 = vadd.f32 %v3872, %v4152
    %v4162 = vadd.f32 %v3873, %v4155
    %v4163 = vadd.f32 %v3874, %v4158
    %4164 = vrot.lane.b32.xlu0 %v3011, 64
    %v4165 = vpop.permute.xlu0 %4164
    %4166 = vrot.lane.b32.xlu0 %v3012, 64
    %v4167 = vpop.permute.xlu0 %4166
    %4168 = vrot.lane.b32.xlu0 %v2971, 64
    %v4169 = vpop.permute.xlu0 %4168
    %4170 = vrot.lane.b32.xlu0 %v2974, 64
    %v4171 = vpop.permute.xlu0 %4170
    %v4172 = vsel %vm274, %v4165, 0
    %v4174 = vsel %vm274, %v4167, 0
    %v4176 = vsel %vm274, %v4169, 0
    %v4178 = vsel %vm274, %v4171, 0
    %4180 = vmatpush.xpose.msra.mxu0 0.0
    %4181 = vmatpush.xpose.msra.mxu0 0.0
    %4182 = vmatpush.xpose.msra.mxu0 0.0
    %4183 = vmatpush.xpose.msra.mxu0 0.0
    %4184 = vmatpush.xpose.msra.mxu0 0.0
    %4185 = vmatpush.xpose.msra.mxu0 0.0
    %4186 = vmatpush.xpose.msra.mxu0 0.0
    %4187 = vmatpush.xpose.msra.mxu0 0.0
    %4188 = vmatpush.xpose.msra.mxu0 0.0
    %4189 = vmatpush.xpose.msra.mxu0 0.0
    %4190 = vmatpush.xpose.msra.mxu0 0.0
    %4191 = vmatpush.xpose.msra.mxu0 0.0
    %4192 = vmatpush.xpose.msra.mxu0 0.0
    %4193 = vmatpush.xpose.msra.mxu0 0.0
    %4194 = vmatpush.xpose.msra.mxu0 %v4178
    %4195 = vmatpush.xpose.msra.mxu0 %v4176
    %4196 = vmatmul.f32.gmra.mxu0 %v4172
    %v4197 = vpop.f32.mrf.mxu0
    %v4198 = vadd.f32 0.0, %v4197
    %4199 = vmatmul.f32.gmra.mxu0 %v4174
    %v4200 = vpop.f32.mrf.mxu0
    %v4201 = vadd.f32 0.0, %v4200
    %4202 = vdwg.mxu0
    %4203 = vrot.lane.b32.xlu0 %v3013, 64
    %v4204 = vpop.permute.xlu0 %4203
    %4205 = vrot.lane.b32.xlu0 %v3014, 64
    %v4206 = vpop.permute.xlu0 %4205
    %4207 = vrot.lane.b32.xlu0 %v2977, 64
    %v4208 = vpop.permute.xlu0 %4207
    %4209 = vrot.lane.b32.xlu0 %v2980, 64
    %v4210 = vpop.permute.xlu0 %4209
    %v4211 = vsel %vm274, %v4204, 0
    %v4213 = vsel %vm274, %v4206, 0
    %v4215 = vsel %vm274, %v4208, 0
    %v4217 = vsel %vm274, %v4210, 0
    %4219 = vmatpush.xpose.msra.mxu0 0.0
    %4220 = vmatpush.xpose.msra.mxu0 0.0
    %4221 = vmatpush.xpose.msra.mxu0 0.0
    %4222 = vmatpush.xpose.msra.mxu0 0.0
    %4223 = vmatpush.xpose.msra.mxu0 0.0
    %4224 = vmatpush.xpose.msra.mxu0 0.0
    %4225 = vmatpush.xpose.msra.mxu0 0.0
    %4226 = vmatpush.xpose.msra.mxu0 0.0
    %4227 = vmatpush.xpose.msra.mxu0 0.0
    %4228 = vmatpush.xpose.msra.mxu0 0.0
    %4229 = vmatpush.xpose.msra.mxu0 0.0
    %4230 = vmatpush.xpose.msra.mxu0 0.0
    %4231 = vmatpush.xpose.msra.mxu0 0.0
    %4232 = vmatpush.xpose.msra.mxu0 0.0
    %4233 = vmatpush.xpose.msra.mxu0 %v4217
    %4234 = vmatpush.xpose.msra.mxu0 %v4215
    %4235 = vmatmul.f32.gmra.mxu0 %v4211
    %v4236 = vpop.f32.mrf.mxu0
    %v4237 = vadd.f32 0.0, %v4236
    %4238 = vmatmul.f32.gmra.mxu0 %v4213
    %v4239 = vpop.f32.mrf.mxu0
    %v4240 = vadd.f32 0.0, %v4239
    %4241 = vdwg.mxu0
    %v4242 = vsel %vm274, %v4198, -inf
    %4243 = vmax.xlane.f32.xlu0 %v4242
    %v4244 = vpop.xlane.xlu0 %4243
    %v4245 = vsel %vm274, %v4201, -inf
    %4246 = vmax.xlane.f32.xlu0 %v4245
    %v4247 = vpop.xlane.xlu0 %4246
    %v4248 = vsel %vm274, %v4237, -inf
    %4249 = vmax.xlane.f32.xlu0 %v4248
    %v4250 = vpop.xlane.xlu0 %4249
    %v4251 = vsel %vm274, %v4240, -inf
    %4252 = vmax.xlane.f32.xlu0 %v4251
    %v4253 = vpop.xlane.xlu0 %4252
    %v4254 = vsub.f32 %v4198, %v4244
    %v4255 = vsub.f32 %v4201, %v4247
    %v4256 = vsub.f32 %v4237, %v4250
    %v4257 = vsub.f32 %v4240, %v4253
    %v4258 = vmul.f32 %v4254, 1.442695
    %v4259 = vpow.pop %v4258
    %v4260 = vmul.f32 %v4255, 1.442695
    %v4261 = vpow.pop %v4260
    %v4262 = vmul.f32 %v4256, 1.442695
    %v4263 = vpow.pop %v4262
    %v4264 = vmul.f32 %v4257, 1.442695
    %v4265 = vpow.pop %v4264
    %v4266 = vsel %vm274, %v4259, 0.0
    %4267 = vadd.xlane.f32.xlu0 %v4266
    %v4268 = vpop.xlane.xlu0 %4267
    %v4269 = vsel %vm274, %v4261, 0.0
    %4270 = vadd.xlane.f32.xlu0 %v4269
    %v4271 = vpop.xlane.xlu0 %4270
    %v4272 = vsel %vm274, %v4263, 0.0
    %4273 = vadd.xlane.f32.xlu0 %v4272
    %v4274 = vpop.xlane.xlu0 %4273
    %v4275 = vsel %vm274, %v4265, 0.0
    %4276 = vadd.xlane.f32.xlu0 %v4275
    %v4277 = vpop.xlane.xlu0 %4276
    %v4278 = vrcp.pop %v4268
    %v4279 = vmul.f32 %v4268, %v4278
    %v4280 = vsub.f32 1.0, %v4279
    %v4281 = vmul.f32 %v4278, %v4280
    %v4282 = vadd.f32 %v4278, %v4281
    %vm4283 = vweird.f32 %v4268
    %vm4284 = vweird.f32 %v4278
    %vm4285 = vmor %vm4283, %vm4284
    %v4286 = vsel %vm4285, %v4278, %v4282
    %v4287 = vand.u32 2147483647, %v4268
    %vm4288 = vcmp.eq.f32.partialorder %v4287, 8.507059e+37
    %v4289 = vand.u32 %v4268, 2147483648
    %v4290 = vor.u32 1.1754944e-38, %v4289
    %v4291 = vsel %vm4288, %v4290, %v4286
    %v4292 = vmul.f32 %v4259, %v4291
    %v4293 = vrcp.pop %v4271
    %v4294 = vmul.f32 %v4271, %v4293
    %v4295 = vsub.f32 1.0, %v4294
    %v4296 = vmul.f32 %v4293, %v4295
    %v4297 = vadd.f32 %v4293, %v4296
    %vm4298 = vweird.f32 %v4271
    %vm4299 = vweird.f32 %v4293
    %vm4300 = vmor %vm4298, %vm4299
    %v4301 = vsel %vm4300, %v4293, %v4297
    %v4302 = vand.u32 2147483647, %v4271
    %vm4303 = vcmp.eq.f32.partialorder %v4302, 8.507059e+37
    %v4304 = vand.u32 %v4271, 2147483648
    %v4305 = vor.u32 1.1754944e-38, %v4304
    %v4306 = vsel %vm4303, %v4305, %v4301
    %v4307 = vmul.f32 %v4261, %v4306
    %v4308 = vrcp.pop %v4274
    %v4309 = vmul.f32 %v4274, %v4308
    %v4310 = vsub.f32 1.0, %v4309
    %v4311 = vmul.f32 %v4308, %v4310
    %v4312 = vadd.f32 %v4308, %v4311
    %vm4313 = vweird.f32 %v4274
    %vm4314 = vweird.f32 %v4308
    %vm4315 = vmor %vm4313, %vm4314
    %v4316 = vsel %vm4315, %v4308, %v4312
    %v4317 = vand.u32 2147483647, %v4274
    %vm4318 = vcmp.eq.f32.partialorder %v4317, 8.507059e+37
    %v4319 = vand.u32 %v4274, 2147483648
    %v4320 = vor.u32 1.1754944e-38, %v4319
    %v4321 = vsel %vm4318, %v4320, %v4316
    %v4322 = vmul.f32 %v4263, %v4321
    %v4323 = vrcp.pop %v4277
    %v4324 = vmul.f32 %v4277, %v4323
    %v4325 = vsub.f32 1.0, %v4324
    %v4326 = vmul.f32 %v4323, %v4325
    %v4327 = vadd.f32 %v4323, %v4326
    %vm4328 = vweird.f32 %v4277
    %vm4329 = vweird.f32 %v4323
    %vm4330 = vmor %vm4328, %vm4329
    %v4331 = vsel %vm4330, %v4323, %v4327
    %v4332 = vand.u32 2147483647, %v4277
    %vm4333 = vcmp.eq.f32.partialorder %v4332, 8.507059e+37
    %v4334 = vand.u32 %v4277, 2147483648
    %v4335 = vor.u32 1.1754944e-38, %v4334
    %v4336 = vsel %vm4333, %v4335, %v4331
    %v4337 = vmul.f32 %v4265, %v4336
    %4338 = vrot.lane.b32.xlu0 %v3000, 64
    %v4339 = vpop.permute.xlu0 %4338
    %4340 = vrot.lane.b32.xlu0 %v3003, 64
    %v4341 = vpop.permute.xlu0 %4340
    %v4345 = vsel %vm274, %v4292, 0
    %v4348 = vsel %vm274, %v4307, 0
    %4350 = vmatpush.msra.mxu0 0.0
    %4351 = vmatpush.msra.mxu0 0.0
    %4352 = vmatpush.msra.mxu0 0.0
    %4353 = vmatpush.msra.mxu0 0.0
    %4354 = vmatpush.msra.mxu0 0.0
    %4355 = vmatpush.msra.mxu0 0.0
    %4356 = vmatpush.msra.mxu0 0.0
    %4357 = vmatpush.msra.mxu0 0.0
    %4358 = vmatpush.msra.mxu0 0.0
    %4359 = vmatpush.msra.mxu0 0.0
    %4360 = vmatpush.msra.mxu0 0.0
    %4361 = vmatpush.msra.mxu0 0.0
    %4362 = vmatpush.msra.mxu0 0.0
    %4363 = vmatpush.msra.mxu0 0.0
    %4364 = vmatpush.msra.mxu0 %v4341
    %4365 = vmatpush.msra.mxu0 %v4339
    %4366 = vmatmul.f32.gmra.mxu0 %v4345
    %v4367 = vpop.f32.mrf.mxu0
    %v4368 = vadd.f32 0.0, %v4367
    %4369 = vmatmul.f32.gmra.mxu0 %v4348
    %v4370 = vpop.f32.mrf.mxu0
    %v4371 = vadd.f32 0.0, %v4370
    %4372 = vdwg.mxu0
    %4373 = vrot.lane.b32.xlu0 %v3006, 64
    %v4374 = vpop.permute.xlu0 %4373
    %4375 = vrot.lane.b32.xlu0 %v3009, 64
    %v4376 = vpop.permute.xlu0 %4375
    %v4380 = vsel %vm274, %v4322, 0
    %v4383 = vsel %vm274, %v4337, 0
    %4385 = vmatpush.msra.mxu0 0.0
    %4386 = vmatpush.msra.mxu0 0.0
    %4387 = vmatpush.msra.mxu0 0.0
    %4388 = vmatpush.msra.mxu0 0.0
    %4389 = vmatpush.msra.mxu0 0.0
    %4390 = vmatpush.msra.mxu0 0.0
    %4391 = vmatpush.msra.mxu0 0.0
    %4392 = vmatpush.msra.mxu0 0.0
    %4393 = vmatpush.msra.mxu0 0.0
    %4394 = vmatpush.msra.mxu0 0.0
    %4395 = vmatpush.msra.mxu0 0.0
    %4396 = vmatpush.msra.mxu0 0.0
    %4397 = vmatpush.msra.mxu0 0.0
    %4398 = vmatpush.msra.mxu0 0.0
    %4399 = vmatpush.msra.mxu0 %v4376
    %4400 = vmatpush.msra.mxu0 %v4374
    %4401 = vmatmul.f32.gmra.mxu0 %v4380
    %v4402 = vpop.f32.mrf.mxu0
    %v4403 = vadd.f32 0.0, %v4402
    %4404 = vmatmul.f32.gmra.mxu0 %v4383
    %v4405 = vpop.f32.mrf.mxu0
    %v4406 = vadd.f32 0.0, %v4405
    %4407 = vdwg.mxu0
    %v4409 = vsel %vm274, %v4368, 0
    %v4412 = vsel %vm274, %v4371, 0
    %v4415 = vsel %vm274, %v4403, 0
    %v4418 = vsel %vm274, %v4406, 0
    %4420 = vmatpush.msra.mxu0 0.0
    %4421 = vmatpush.msra.mxu0 0.0
    %4422 = vmatpush.msra.mxu0 0.0
    %4423 = vmatpush.msra.mxu0 0.0
    %4424 = vmatpush.msra.mxu0 0.0
    %4425 = vmatpush.msra.mxu0 0.0
    %4426 = vmatpush.msra.mxu0 0.0
    %4427 = vmatpush.msra.mxu0 0.0
    %4428 = vmatpush.msra.mxu0 0.0
    %4429 = vmatpush.msra.mxu0 0.0
    %4430 = vmatpush.msra.mxu0 0.0
    %4431 = vmatpush.msra.mxu0 0.0
    %4432 = vmatpush.msra.mxu0 0.0
    %4433 = vmatpush.msra.mxu0 0.0
    %4434 = vmatpush.msra.mxu0 %v3025
    %4435 = vmatpush.msra.mxu0 %v3024
    %4436 = vmatmul.f32.gmra.mxu0 %v4409
    %v4437 = vpop.f32.mrf.mxu0
    %v4438 = vadd.f32 0.0, %v4437
    %4439 = vmatmul.f32.gmra.mxu0 %v4412
    %v4440 = vpop.f32.mrf.mxu0
    %v4441 = vadd.f32 0.0, %v4440
    %4442 = vmatmul.f32.gmra.mxu0 %v4415
    %v4443 = vpop.f32.mrf.mxu0
    %v4444 = vadd.f32 0.0, %v4443
    %4445 = vmatmul.f32.gmra.mxu0 %v4418
    %v4446 = vpop.f32.mrf.mxu0
    %v4447 = vadd.f32 0.0, %v4446
    %4448 = vdwg.mxu0
    %v4449 = vadd.f32 %v4160, %v4438
    %v4450 = vadd.f32 %v4161, %v4441
    %v4451 = vadd.f32 %v4162, %v4444
    %v4452 = vadd.f32 %v4163, %v4447
    %4453 = vrot.lane.b32.xlu0 %v3011, 48
    %v4454 = vpop.permute.xlu0 %4453
    %4455 = vrot.lane.b32.xlu0 %v3012, 48
    %v4456 = vpop.permute.xlu0 %4455
    %4457 = vrot.lane.b32.xlu0 %v2971, 48
    %v4458 = vpop.permute.xlu0 %4457
    %4459 = vrot.lane.b32.xlu0 %v2974, 48
    %v4460 = vpop.permute.xlu0 %4459
    %v4461 = vsel %vm274, %v4454, 0
    %v4463 = vsel %vm274, %v4456, 0
    %v4465 = vsel %vm274, %v4458, 0
    %v4467 = vsel %vm274, %v4460, 0
    %4469 = vmatpush.xpose.msra.mxu0 0.0
    %4470 = vmatpush.xpose.msra.mxu0 0.0
    %4471 = vmatpush.xpose.msra.mxu0 0.0
    %4472 = vmatpush.xpose.msra.mxu0 0.0
    %4473 = vmatpush.xpose.msra.mxu0 0.0
    %4474 = vmatpush.xpose.msra.mxu0 0.0
    %4475 = vmatpush.xpose.msra.mxu0 0.0
    %4476 = vmatpush.xpose.msra.mxu0 0.0
    %4477 = vmatpush.xpose.msra.mxu0 0.0
    %4478 = vmatpush.xpose.msra.mxu0 0.0
    %4479 = vmatpush.xpose.msra.mxu0 0.0
    %4480 = vmatpush.xpose.msra.mxu0 0.0
    %4481 = vmatpush.xpose.msra.mxu0 0.0
    %4482 = vmatpush.xpose.msra.mxu0 0.0
    %4483 = vmatpush.xpose.msra.mxu0 %v4467
    %4484 = vmatpush.xpose.msra.mxu0 %v4465
    %4485 = vmatmul.f32.gmra.mxu0 %v4461
    %v4486 = vpop.f32.mrf.mxu0
    %v4487 = vadd.f32 0.0, %v4486
    %4488 = vmatmul.f32.gmra.mxu0 %v4463
    %v4489 = vpop.f32.mrf.mxu0
    %v4490 = vadd.f32 0.0, %v4489
    %4491 = vdwg.mxu0
    %4492 = vrot.lane.b32.xlu0 %v3013, 48
    %v4493 = vpop.permute.xlu0 %4492
    %4494 = vrot.lane.b32.xlu0 %v3014, 48
    %v4495 = vpop.permute.xlu0 %4494
    %4496 = vrot.lane.b32.xlu0 %v2977, 48
    %v4497 = vpop.permute.xlu0 %4496
    %4498 = vrot.lane.b32.xlu0 %v2980, 48
    %v4499 = vpop.permute.xlu0 %4498
    %v4500 = vsel %vm274, %v4493, 0
    %v4502 = vsel %vm274, %v4495, 0
    %v4504 = vsel %vm274, %v4497, 0
    %v4506 = vsel %vm274, %v4499, 0
    %4508 = vmatpush.xpose.msra.mxu0 0.0
    %4509 = vmatpush.xpose.msra.mxu0 0.0
    %4510 = vmatpush.xpose.msra.mxu0 0.0
    %4511 = vmatpush.xpose.msra.mxu0 0.0
    %4512 = vmatpush.xpose.msra.mxu0 0.0
    %4513 = vmatpush.xpose.msra.mxu0 0.0
    %4514 = vmatpush.xpose.msra.mxu0 0.0
    %4515 = vmatpush.xpose.msra.mxu0 0.0
    %4516 = vmatpush.xpose.msra.mxu0 0.0
    %4517 = vmatpush.xpose.msra.mxu0 0.0
    %4518 = vmatpush.xpose.msra.mxu0 0.0
    %4519 = vmatpush.xpose.msra.mxu0 0.0
    %4520 = vmatpush.xpose.msra.mxu0 0.0
    %4521 = vmatpush.xpose.msra.mxu0 0.0
    %4522 = vmatpush.xpose.msra.mxu0 %v4506
    %4523 = vmatpush.xpose.msra.mxu0 %v4504
    %4524 = vmatmul.f32.gmra.mxu0 %v4500
    %v4525 = vpop.f32.mrf.mxu0
    %v4526 = vadd.f32 0.0, %v4525
    %4527 = vmatmul.f32.gmra.mxu0 %v4502
    %v4528 = vpop.f32.mrf.mxu0
    %v4529 = vadd.f32 0.0, %v4528
    %4530 = vdwg.mxu0
    %v4531 = vsel %vm274, %v4487, -inf
    %4532 = vmax.xlane.f32.xlu0 %v4531
    %v4533 = vpop.xlane.xlu0 %4532
    %v4534 = vsel %vm274, %v4490, -inf
    %4535 = vmax.xlane.f32.xlu0 %v4534
    %v4536 = vpop.xlane.xlu0 %4535
    %v4537 = vsel %vm274, %v4526, -inf
    %4538 = vmax.xlane.f32.xlu0 %v4537
    %v4539 = vpop.xlane.xlu0 %4538
    %v4540 = vsel %vm274, %v4529, -inf
    %4541 = vmax.xlane.f32.xlu0 %v4540
    %v4542 = vpop.xlane.xlu0 %4541
    %v4543 = vsub.f32 %v4487, %v4533
    %v4544 = vsub.f32 %v4490, %v4536
    %v4545 = vsub.f32 %v4526, %v4539
    %v4546 = vsub.f32 %v4529, %v4542
    %v4547 = vmul.f32 %v4543, 1.442695
    %v4548 = vpow.pop %v4547
    %v4549 = vmul.f32 %v4544, 1.442695
    %v4550 = vpow.pop %v4549
    %v4551 = vmul.f32 %v4545, 1.442695
    %v4552 = vpow.pop %v4551
    %v4553 = vmul.f32 %v4546, 1.442695
    %v4554 = vpow.pop %v4553
    %v4555 = vsel %vm274, %v4548, 0.0
    %4556 = vadd.xlane.f32.xlu0 %v4555
    %v4557 = vpop.xlane.xlu0 %4556
    %v4558 = vsel %vm274, %v4550, 0.0
    %4559 = vadd.xlane.f32.xlu0 %v4558
    %v4560 = vpop.xlane.xlu0 %4559
    %v4561 = vsel %vm274, %v4552, 0.0
    %4562 = vadd.xlane.f32.xlu0 %v4561
    %v4563 = vpop.xlane.xlu0 %4562
    %v4564 = vsel %vm274, %v4554, 0.0
    %4565 = vadd.xlane.f32.xlu0 %v4564
    %v4566 = vpop.xlane.xlu0 %4565
    %v4567 = vrcp.pop %v4557
    %v4568 = vmul.f32 %v4557, %v4567
    %v4569 = vsub.f32 1.0, %v4568
    %v4570 = vmul.f32 %v4567, %v4569
    %v4571 = vadd.f32 %v4567, %v4570
    %vm4572 = vweird.f32 %v4557
    %vm4573 = vweird.f32 %v4567
    %vm4574 = vmor %vm4572, %vm4573
    %v4575 = vsel %vm4574, %v4567, %v4571
    %v4576 = vand.u32 2147483647, %v4557
    %vm4577 = vcmp.eq.f32.partialorder %v4576, 8.507059e+37
    %v4578 = vand.u32 %v4557, 2147483648
    %v4579 = vor.u32 1.1754944e-38, %v4578
    %v4580 = vsel %vm4577, %v4579, %v4575
    %v4581 = vmul.f32 %v4548, %v4580
    %v4582 = vrcp.pop %v4560
    %v4583 = vmul.f32 %v4560, %v4582
    %v4584 = vsub.f32 1.0, %v4583
    %v4585 = vmul.f32 %v4582, %v4584
    %v4586 = vadd.f32 %v4582, %v4585
    %vm4587 = vweird.f32 %v4560
    %vm4588 = vweird.f32 %v4582
    %vm4589 = vmor %vm4587, %vm4588
    %v4590 = vsel %vm4589, %v4582, %v4586
    %v4591 = vand.u32 2147483647, %v4560
    %vm4592 = vcmp.eq.f32.partialorder %v4591, 8.507059e+37
    %v4593 = vand.u32 %v4560, 2147483648
    %v4594 = vor.u32 1.1754944e-38, %v4593
    %v4595 = vsel %vm4592, %v4594, %v4590
    %v4596 = vmul.f32 %v4550, %v4595
    %v4597 = vrcp.pop %v4563
    %v4598 = vmul.f32 %v4563, %v4597
    %v4599 = vsub.f32 1.0, %v4598
    %v4600 = vmul.f32 %v4597, %v4599
    %v4601 = vadd.f32 %v4597, %v4600
    %vm4602 = vweird.f32 %v4563
    %vm4603 = vweird.f32 %v4597
    %vm4604 = vmor %vm4602, %vm4603
    %v4605 = vsel %vm4604, %v4597, %v4601
    %v4606 = vand.u32 2147483647, %v4563
    %vm4607 = vcmp.eq.f32.partialorder %v4606, 8.507059e+37
    %v4608 = vand.u32 %v4563, 2147483648
    %v4609 = vor.u32 1.1754944e-38, %v4608
    %v4610 = vsel %vm4607, %v4609, %v4605
    %v4611 = vmul.f32 %v4552, %v4610
    %v4612 = vrcp.pop %v4566
    %v4613 = vmul.f32 %v4566, %v4612
    %v4614 = vsub.f32 1.0, %v4613
    %v4615 = vmul.f32 %v4612, %v4614
    %v4616 = vadd.f32 %v4612, %v4615
    %vm4617 = vweird.f32 %v4566
    %vm4618 = vweird.f32 %v4612
    %vm4619 = vmor %vm4617, %vm4618
    %v4620 = vsel %vm4619, %v4612, %v4616
    %v4621 = vand.u32 2147483647, %v4566
    %vm4622 = vcmp.eq.f32.partialorder %v4621, 8.507059e+37
    %v4623 = vand.u32 %v4566, 2147483648
    %v4624 = vor.u32 1.1754944e-38, %v4623
    %v4625 = vsel %vm4622, %v4624, %v4620
    %v4626 = vmul.f32 %v4554, %v4625
    %4627 = vrot.lane.b32.xlu0 %v3000, 48
    %v4628 = vpop.permute.xlu0 %4627
    %4629 = vrot.lane.b32.xlu0 %v3003, 48
    %v4630 = vpop.permute.xlu0 %4629
    %v4634 = vsel %vm274, %v4581, 0
    %v4637 = vsel %vm274, %v4596, 0
    %4639 = vmatpush.msra.mxu0 0.0
    %4640 = vmatpush.msra.mxu0 0.0
    %4641 = vmatpush.msra.mxu0 0.0
    %4642 = vmatpush.msra.mxu0 0.0
    %4643 = vmatpush.msra.mxu0 0.0
    %4644 = vmatpush.msra.mxu0 0.0
    %4645 = vmatpush.msra.mxu0 0.0
    %4646 = vmatpush.msra.mxu0 0.0
    %4647 = vmatpush.msra.mxu0 0.0
    %4648 = vmatpush.msra.mxu0 0.0
    %4649 = vmatpush.msra.mxu0 0.0
    %4650 = vmatpush.msra.mxu0 0.0
    %4651 = vmatpush.msra.mxu0 0.0
    %4652 = vmatpush.msra.mxu0 0.0
    %4653 = vmatpush.msra.mxu0 %v4630
    %4654 = vmatpush.msra.mxu0 %v4628
    %4655 = vmatmul.f32.gmra.mxu0 %v4634
    %v4656 = vpop.f32.mrf.mxu0
    %v4657 = vadd.f32 0.0, %v4656
    %4658 = vmatmul.f32.gmra.mxu0 %v4637
    %v4659 = vpop.f32.mrf.mxu0
    %v4660 = vadd.f32 0.0, %v4659
    %4661 = vdwg.mxu0
    %4662 = vrot.lane.b32.xlu0 %v3006, 48
    %v4663 = vpop.permute.xlu0 %4662
    %4664 = vrot.lane.b32.xlu0 %v3009, 48
    %v4665 = vpop.permute.xlu0 %4664
    %v4669 = vsel %vm274, %v4611, 0
    %v4672 = vsel %vm274, %v4626, 0
    %4674 = vmatpush.msra.mxu0 0.0
    %4675 = vmatpush.msra.mxu0 0.0
    %4676 = vmatpush.msra.mxu0 0.0
    %4677 = vmatpush.msra.mxu0 0.0
    %4678 = vmatpush.msra.mxu0 0.0
    %4679 = vmatpush.msra.mxu0 0.0
    %4680 = vmatpush.msra.mxu0 0.0
    %4681 = vmatpush.msra.mxu0 0.0
    %4682 = vmatpush.msra.mxu0 0.0
    %4683 = vmatpush.msra.mxu0 0.0
    %4684 = vmatpush.msra.mxu0 0.0
    %4685 = vmatpush.msra.mxu0 0.0
    %4686 = vmatpush.msra.mxu0 0.0
    %4687 = vmatpush.msra.mxu0 0.0
    %4688 = vmatpush.msra.mxu0 %v4665
    %4689 = vmatpush.msra.mxu0 %v4663
    %4690 = vmatmul.f32.gmra.mxu0 %v4669
    %v4691 = vpop.f32.mrf.mxu0
    %v4692 = vadd.f32 0.0, %v4691
    %4693 = vmatmul.f32.gmra.mxu0 %v4672
    %v4694 = vpop.f32.mrf.mxu0
    %v4695 = vadd.f32 0.0, %v4694
    %4696 = vdwg.mxu0
    %v4698 = vsel %vm274, %v4657, 0
    %v4701 = vsel %vm274, %v4660, 0
    %v4704 = vsel %vm274, %v4692, 0
    %v4707 = vsel %vm274, %v4695, 0
    %4709 = vmatpush.msra.mxu0 0.0
    %4710 = vmatpush.msra.mxu0 0.0
    %4711 = vmatpush.msra.mxu0 0.0
    %4712 = vmatpush.msra.mxu0 0.0
    %4713 = vmatpush.msra.mxu0 0.0
    %4714 = vmatpush.msra.mxu0 0.0
    %4715 = vmatpush.msra.mxu0 0.0
    %4716 = vmatpush.msra.mxu0 0.0
    %4717 = vmatpush.msra.mxu0 0.0
    %4718 = vmatpush.msra.mxu0 0.0
    %4719 = vmatpush.msra.mxu0 0.0
    %4720 = vmatpush.msra.mxu0 0.0
    %4721 = vmatpush.msra.mxu0 0.0
    %4722 = vmatpush.msra.mxu0 0.0
    %4723 = vmatpush.msra.mxu0 %v3027
    %4724 = vmatpush.msra.mxu0 %v3026
    %4725 = vmatmul.f32.gmra.mxu0 %v4698
    %v4726 = vpop.f32.mrf.mxu0
    %v4727 = vadd.f32 0.0, %v4726
    %4728 = vmatmul.f32.gmra.mxu0 %v4701
    %v4729 = vpop.f32.mrf.mxu0
    %v4730 = vadd.f32 0.0, %v4729
    %4731 = vmatmul.f32.gmra.mxu0 %v4704
    %v4732 = vpop.f32.mrf.mxu0
    %v4733 = vadd.f32 0.0, %v4732
    %4734 = vmatmul.f32.gmra.mxu0 %v4707
    %v4735 = vpop.f32.mrf.mxu0
    %v4736 = vadd.f32 0.0, %v4735
    %4737 = vdwg.mxu0
    %v4738 = vadd.f32 %v4449, %v4727
    %v4739 = vadd.f32 %v4450, %v4730
    %v4740 = vadd.f32 %v4451, %v4733
    %v4741 = vadd.f32 %v4452, %v4736
    %4742 = vrot.lane.b32.xlu0 %v3011, 32
    %v4743 = vpop.permute.xlu0 %4742
    %4744 = vrot.lane.b32.xlu0 %v3012, 32
    %v4745 = vpop.permute.xlu0 %4744
    %4746 = vrot.lane.b32.xlu0 %v2971, 32
    %v4747 = vpop.permute.xlu0 %4746
    %4748 = vrot.lane.b32.xlu0 %v2974, 32
    %v4749 = vpop.permute.xlu0 %4748
    %v4750 = vsel %vm274, %v4743, 0
    %v4752 = vsel %vm274, %v4745, 0
    %v4754 = vsel %vm274, %v4747, 0
    %v4756 = vsel %vm274, %v4749, 0
    %4758 = vmatpush.xpose.msra.mxu0 0.0
    %4759 = vmatpush.xpose.msra.mxu0 0.0
    %4760 = vmatpush.xpose.msra.mxu0 0.0
    %4761 = vmatpush.xpose.msra.mxu0 0.0
    %4762 = vmatpush.xpose.msra.mxu0 0.0
    %4763 = vmatpush.xpose.msra.mxu0 0.0
    %4764 = vmatpush.xpose.msra.mxu0 0.0
    %4765 = vmatpush.xpose.msra.mxu0 0.0
    %4766 = vmatpush.xpose.msra.mxu0 0.0
    %4767 = vmatpush.xpose.msra.mxu0 0.0
    %4768 = vmatpush.xpose.msra.mxu0 0.0
    %4769 = vmatpush.xpose.msra.mxu0 0.0
    %4770 = vmatpush.xpose.msra.mxu0 0.0
    %4771 = vmatpush.xpose.msra.mxu0 0.0
    %4772 = vmatpush.xpose.msra.mxu0 %v4756
    %4773 = vmatpush.xpose.msra.mxu0 %v4754
    %4774 = vmatmul.f32.gmra.mxu0 %v4750
    %v4775 = vpop.f32.mrf.mxu0
    %v4776 = vadd.f32 0.0, %v4775
    %4777 = vmatmul.f32.gmra.mxu0 %v4752
    %v4778 = vpop.f32.mrf.mxu0
    %v4779 = vadd.f32 0.0, %v4778
    %4780 = vdwg.mxu0
    %4781 = vrot.lane.b32.xlu0 %v3013, 32
    %v4782 = vpop.permute.xlu0 %4781
    %4783 = vrot.lane.b32.xlu0 %v3014, 32
    %v4784 = vpop.permute.xlu0 %4783
    %4785 = vrot.lane.b32.xlu0 %v2977, 32
    %v4786 = vpop.permute.xlu0 %4785
    %4787 = vrot.lane.b32.xlu0 %v2980, 32
    %v4788 = vpop.permute.xlu0 %4787
    %v4789 = vsel %vm274, %v4782, 0
    %v4791 = vsel %vm274, %v4784, 0
    %v4793 = vsel %vm274, %v4786, 0
    %v4795 = vsel %vm274, %v4788, 0
    %4797 = vmatpush.xpose.msra.mxu0 0.0
    %4798 = vmatpush.xpose.msra.mxu0 0.0
    %4799 = vmatpush.xpose.msra.mxu0 0.0
    %4800 = vmatpush.xpose.msra.mxu0 0.0
    %4801 = vmatpush.xpose.msra.mxu0 0.0
    %4802 = vmatpush.xpose.msra.mxu0 0.0
    %4803 = vmatpush.xpose.msra.mxu0 0.0
    %4804 = vmatpush.xpose.msra.mxu0 0.0
    %4805 = vmatpush.xpose.msra.mxu0 0.0
    %4806 = vmatpush.xpose.msra.mxu0 0.0
    %4807 = vmatpush.xpose.msra.mxu0 0.0
    %4808 = vmatpush.xpose.msra.mxu0 0.0
    %4809 = vmatpush.xpose.msra.mxu0 0.0
    %4810 = vmatpush.xpose.msra.mxu0 0.0
    %4811 = vmatpush.xpose.msra.mxu0 %v4795
    %4812 = vmatpush.xpose.msra.mxu0 %v4793
    %4813 = vmatmul.f32.gmra.mxu0 %v4789
    %v4814 = vpop.f32.mrf.mxu0
    %v4815 = vadd.f32 0.0, %v4814
    %4816 = vmatmul.f32.gmra.mxu0 %v4791
    %v4817 = vpop.f32.mrf.mxu0
    %v4818 = vadd.f32 0.0, %v4817
    %4819 = vdwg.mxu0
    %v4820 = vsel %vm274, %v4776, -inf
    %4821 = vmax.xlane.f32.xlu0 %v4820
    %v4822 = vpop.xlane.xlu0 %4821
    %v4823 = vsel %vm274, %v4779, -inf
    %4824 = vmax.xlane.f32.xlu0 %v4823
    %v4825 = vpop.xlane.xlu0 %4824
    %v4826 = vsel %vm274, %v4815, -inf
    %4827 = vmax.xlane.f32.xlu0 %v4826
    %v4828 = vpop.xlane.xlu0 %4827
    %v4829 = vsel %vm274, %v4818, -inf
    %4830 = vmax.xlane.f32.xlu0 %v4829
    %v4831 = vpop.xlane.xlu0 %4830
    %v4832 = vsub.f32 %v4776, %v4822
    %v4833 = vsub.f32 %v4779, %v4825
    %v4834 = vsub.f32 %v4815, %v4828
    %v4835 = vsub.f32 %v4818, %v4831
    %v4836 = vmul.f32 %v4832, 1.442695
    %v4837 = vpow.pop %v4836
    %v4838 = vmul.f32 %v4833, 1.442695
    %v4839 = vpow.pop %v4838
    %v4840 = vmul.f32 %v4834, 1.442695
    %v4841 = vpow.pop %v4840
    %v4842 = vmul.f32 %v4835, 1.442695
    %v4843 = vpow.pop %v4842
    %v4844 = vsel %vm274, %v4837, 0.0
    %4845 = vadd.xlane.f32.xlu0 %v4844
    %v4846 = vpop.xlane.xlu0 %4845
    %v4847 = vsel %vm274, %v4839, 0.0
    %4848 = vadd.xlane.f32.xlu0 %v4847
    %v4849 = vpop.xlane.xlu0 %4848
    %v4850 = vsel %vm274, %v4841, 0.0
    %4851 = vadd.xlane.f32.xlu0 %v4850
    %v4852 = vpop.xlane.xlu0 %4851
    %v4853 = vsel %vm274, %v4843, 0.0
    %4854 = vadd.xlane.f32.xlu0 %v4853
    %v4855 = vpop.xlane.xlu0 %4854
    %v4856 = vrcp.pop %v4846
    %v4857 = vmul.f32 %v4846, %v4856
    %v4858 = vsub.f32 1.0, %v4857
    %v4859 = vmul.f32 %v4856, %v4858
    %v4860 = vadd.f32 %v4856, %v4859
    %vm4861 = vweird.f32 %v4846
    %vm4862 = vweird.f32 %v4856
    %vm4863 = vmor %vm4861, %vm4862
    %v4864 = vsel %vm4863, %v4856, %v4860
    %v4865 = vand.u32 2147483647, %v4846
    %vm4866 = vcmp.eq.f32.partialorder %v4865, 8.507059e+37
    %v4867 = vand.u32 %v4846, 2147483648
    %v4868 = vor.u32 1.1754944e-38, %v4867
    %v4869 = vsel %vm4866, %v4868, %v4864
    %v4870 = vmul.f32 %v4837, %v4869
    %v4871 = vrcp.pop %v4849
    %v4872 = vmul.f32 %v4849, %v4871
    %v4873 = vsub.f32 1.0, %v4872
    %v4874 = vmul.f32 %v4871, %v4873
    %v4875 = vadd.f32 %v4871, %v4874
    %vm4876 = vweird.f32 %v4849
    %vm4877 = vweird.f32 %v4871
    %vm4878 = vmor %vm4876, %vm4877
    %v4879 = vsel %vm4878, %v4871, %v4875
    %v4880 = vand.u32 2147483647, %v4849
    %vm4881 = vcmp.eq.f32.partialorder %v4880, 8.507059e+37
    %v4882 = vand.u32 %v4849, 2147483648
    %v4883 = vor.u32 1.1754944e-38, %v4882
    %v4884 = vsel %vm4881, %v4883, %v4879
    %v4885 = vmul.f32 %v4839, %v4884
    %v4886 = vrcp.pop %v4852
    %v4887 = vmul.f32 %v4852, %v4886
    %v4888 = vsub.f32 1.0, %v4887
    %v4889 = vmul.f32 %v4886, %v4888
    %v4890 = vadd.f32 %v4886, %v4889
    %vm4891 = vweird.f32 %v4852
    %vm4892 = vweird.f32 %v4886
    %vm4893 = vmor %vm4891, %vm4892
    %v4894 = vsel %vm4893, %v4886, %v4890
    %v4895 = vand.u32 2147483647, %v4852
    %vm4896 = vcmp.eq.f32.partialorder %v4895, 8.507059e+37
    %v4897 = vand.u32 %v4852, 2147483648
    %v4898 = vor.u32 1.1754944e-38, %v4897
    %v4899 = vsel %vm4896, %v4898, %v4894
    %v4900 = vmul.f32 %v4841, %v4899
    %v4901 = vrcp.pop %v4855
    %v4902 = vmul.f32 %v4855, %v4901
    %v4903 = vsub.f32 1.0, %v4902
    %v4904 = vmul.f32 %v4901, %v4903
    %v4905 = vadd.f32 %v4901, %v4904
    %vm4906 = vweird.f32 %v4855
    %vm4907 = vweird.f32 %v4901
    %vm4908 = vmor %vm4906, %vm4907
    %v4909 = vsel %vm4908, %v4901, %v4905
    %v4910 = vand.u32 2147483647, %v4855
    %vm4911 = vcmp.eq.f32.partialorder %v4910, 8.507059e+37
    %v4912 = vand.u32 %v4855, 2147483648
    %v4913 = vor.u32 1.1754944e-38, %v4912
    %v4914 = vsel %vm4911, %v4913, %v4909
    %v4915 = vmul.f32 %v4843, %v4914
    %4916 = vrot.lane.b32.xlu0 %v3000, 32
    %v4917 = vpop.permute.xlu0 %4916
    %4918 = vrot.lane.b32.xlu0 %v3003, 32
    %v4919 = vpop.permute.xlu0 %4918
    %v4923 = vsel %vm274, %v4870, 0
    %v4926 = vsel %vm274, %v4885, 0
    %4928 = vmatpush.msra.mxu0 0.0
    %4929 = vmatpush.msra.mxu0 0.0
    %4930 = vmatpush.msra.mxu0 0.0
    %4931 = vmatpush.msra.mxu0 0.0
    %4932 = vmatpush.msra.mxu0 0.0
    %4933 = vmatpush.msra.mxu0 0.0
    %4934 = vmatpush.msra.mxu0 0.0
    %4935 = vmatpush.msra.mxu0 0.0
    %4936 = vmatpush.msra.mxu0 0.0
    %4937 = vmatpush.msra.mxu0 0.0
    %4938 = vmatpush.msra.mxu0 0.0
    %4939 = vmatpush.msra.mxu0 0.0
    %4940 = vmatpush.msra.mxu0 0.0
    %4941 = vmatpush.msra.mxu0 0.0
    %4942 = vmatpush.msra.mxu0 %v4919
    %4943 = vmatpush.msra.mxu0 %v4917
    %4944 = vmatmul.f32.gmra.mxu0 %v4923
    %v4945 = vpop.f32.mrf.mxu0
    %v4946 = vadd.f32 0.0, %v4945
    %4947 = vmatmul.f32.gmra.mxu0 %v4926
    %v4948 = vpop.f32.mrf.mxu0
    %v4949 = vadd.f32 0.0, %v4948
    %4950 = vdwg.mxu0
    %4951 = vrot.lane.b32.xlu0 %v3006, 32
    %v4952 = vpop.permute.xlu0 %4951
    %4953 = vrot.lane.b32.xlu0 %v3009, 32
    %v4954 = vpop.permute.xlu0 %4953
    %v4958 = vsel %vm274, %v4900, 0
    %v4961 = vsel %vm274, %v4915, 0
    %4963 = vmatpush.msra.mxu0 0.0
    %4964 = vmatpush.msra.mxu0 0.0
    %4965 = vmatpush.msra.mxu0 0.0
    %4966 = vmatpush.msra.mxu0 0.0
    %4967 = vmatpush.msra.mxu0 0.0
    %4968 = vmatpush.msra.mxu0 0.0
    %4969 = vmatpush.msra.mxu0 0.0
    %4970 = vmatpush.msra.mxu0 0.0
    %4971 = vmatpush.msra.mxu0 0.0
    %4972 = vmatpush.msra.mxu0 0.0
    %4973 = vmatpush.msra.mxu0 0.0
    %4974 = vmatpush.msra.mxu0 0.0
    %4975 = vmatpush.msra.mxu0 0.0
    %4976 = vmatpush.msra.mxu0 0.0
    %4977 = vmatpush.msra.mxu0 %v4954
    %4978 = vmatpush.msra.mxu0 %v4952
    %4979 = vmatmul.f32.gmra.mxu0 %v4958
    %v4980 = vpop.f32.mrf.mxu0
    %v4981 = vadd.f32 0.0, %v4980
    %4982 = vmatmul.f32.gmra.mxu0 %v4961
    %v4983 = vpop.f32.mrf.mxu0
    %v4984 = vadd.f32 0.0, %v4983
    %4985 = vdwg.mxu0
    %v4987 = vsel %vm274, %v4946, 0
    %v4990 = vsel %vm274, %v4949, 0
    %v4993 = vsel %vm274, %v4981, 0
    %v4996 = vsel %vm274, %v4984, 0
    %4998 = vmatpush.msra.mxu0 0.0
    %4999 = vmatpush.msra.mxu0 0.0
    %5000 = vmatpush.msra.mxu0 0.0
    %5001 = vmatpush.msra.mxu0 0.0
    %5002 = vmatpush.msra.mxu0 0.0
    %5003 = vmatpush.msra.mxu0 0.0
    %5004 = vmatpush.msra.mxu0 0.0
    %5005 = vmatpush.msra.mxu0 0.0
    %5006 = vmatpush.msra.mxu0 0.0
    %5007 = vmatpush.msra.mxu0 0.0
    %5008 = vmatpush.msra.mxu0 0.0
    %5009 = vmatpush.msra.mxu0 0.0
    %5010 = vmatpush.msra.mxu0 0.0
    %5011 = vmatpush.msra.mxu0 0.0
    %5012 = vmatpush.msra.mxu0 %v3029
    %5013 = vmatpush.msra.mxu0 %v3028
    %5014 = vmatmul.f32.gmra.mxu0 %v4987
    %v5015 = vpop.f32.mrf.mxu0
    %v5016 = vadd.f32 0.0, %v5015
    %5017 = vmatmul.f32.gmra.mxu0 %v4990
    %v5018 = vpop.f32.mrf.mxu0
    %v5019 = vadd.f32 0.0, %v5018
    %5020 = vmatmul.f32.gmra.mxu0 %v4993
    %v5021 = vpop.f32.mrf.mxu0
    %v5022 = vadd.f32 0.0, %v5021
    %5023 = vmatmul.f32.gmra.mxu0 %v4996
    %v5024 = vpop.f32.mrf.mxu0
    %v5025 = vadd.f32 0.0, %v5024
    %5026 = vdwg.mxu0
    %v5027 = vadd.f32 %v4738, %v5016
    %v5028 = vadd.f32 %v4739, %v5019
    %v5029 = vadd.f32 %v4740, %v5022
    %v5030 = vadd.f32 %v4741, %v5025
    %5031 = vrot.lane.b32.xlu0 %v3011, 16
    %v5032 = vpop.permute.xlu0 %5031
    %5033 = vrot.lane.b32.xlu0 %v3012, 16
    %v5034 = vpop.permute.xlu0 %5033
    %5035 = vrot.lane.b32.xlu0 %v2971, 16
    %v5036 = vpop.permute.xlu0 %5035
    %5037 = vrot.lane.b32.xlu0 %v2974, 16
    %v5038 = vpop.permute.xlu0 %5037
    %v5039 = vsel %vm274, %v5032, 0
    %v5041 = vsel %vm274, %v5034, 0
    %v5043 = vsel %vm274, %v5036, 0
    %v5045 = vsel %vm274, %v5038, 0
    %5047 = vmatpush.xpose.msra.mxu0 0.0
    %5048 = vmatpush.xpose.msra.mxu0 0.0
    %5049 = vmatpush.xpose.msra.mxu0 0.0
    %5050 = vmatpush.xpose.msra.mxu0 0.0
    %5051 = vmatpush.xpose.msra.mxu0 0.0
    %5052 = vmatpush.xpose.msra.mxu0 0.0
    %5053 = vmatpush.xpose.msra.mxu0 0.0
    %5054 = vmatpush.xpose.msra.mxu0 0.0
    %5055 = vmatpush.xpose.msra.mxu0 0.0
    %5056 = vmatpush.xpose.msra.mxu0 0.0
    %5057 = vmatpush.xpose.msra.mxu0 0.0
    %5058 = vmatpush.xpose.msra.mxu0 0.0
    %5059 = vmatpush.xpose.msra.mxu0 0.0
    %5060 = vmatpush.xpose.msra.mxu0 0.0
    %5061 = vmatpush.xpose.msra.mxu0 %v5045
    %5062 = vmatpush.xpose.msra.mxu0 %v5043
    %5063 = vmatmul.f32.gmra.mxu0 %v5039
    %v5064 = vpop.f32.mrf.mxu0
    %v5065 = vadd.f32 0.0, %v5064
    %5066 = vmatmul.f32.gmra.mxu0 %v5041
    %v5067 = vpop.f32.mrf.mxu0
    %v5068 = vadd.f32 0.0, %v5067
    %5069 = vdwg.mxu0
    %5070 = vrot.lane.b32.xlu0 %v3013, 16
    %v5071 = vpop.permute.xlu0 %5070
    %5072 = vrot.lane.b32.xlu0 %v3014, 16
    %v5073 = vpop.permute.xlu0 %5072
    %5074 = vrot.lane.b32.xlu0 %v2977, 16
    %v5075 = vpop.permute.xlu0 %5074
    %5076 = vrot.lane.b32.xlu0 %v2980, 16
    %v5077 = vpop.permute.xlu0 %5076
    %v5078 = vsel %vm274, %v5071, 0
    %v5080 = vsel %vm274, %v5073, 0
    %v5082 = vsel %vm274, %v5075, 0
    %v5084 = vsel %vm274, %v5077, 0
    %5086 = vmatpush.xpose.msra.mxu0 0.0
    %5087 = vmatpush.xpose.msra.mxu0 0.0
    %5088 = vmatpush.xpose.msra.mxu0 0.0
    %5089 = vmatpush.xpose.msra.mxu0 0.0
    %5090 = vmatpush.xpose.msra.mxu0 0.0
    %5091 = vmatpush.xpose.msra.mxu0 0.0
    %5092 = vmatpush.xpose.msra.mxu0 0.0
    %5093 = vmatpush.xpose.msra.mxu0 0.0
    %5094 = vmatpush.xpose.msra.mxu0 0.0
    %5095 = vmatpush.xpose.msra.mxu0 0.0
    %5096 = vmatpush.xpose.msra.mxu0 0.0
    %5097 = vmatpush.xpose.msra.mxu0 0.0
    %5098 = vmatpush.xpose.msra.mxu0 0.0
    %5099 = vmatpush.xpose.msra.mxu0 0.0
    %5100 = vmatpush.xpose.msra.mxu0 %v5084
    %5101 = vmatpush.xpose.msra.mxu0 %v5082
    %5102 = vmatmul.f32.gmra.mxu0 %v5078
    %v5103 = vpop.f32.mrf.mxu0
    %v5104 = vadd.f32 0.0, %v5103
    %5105 = vmatmul.f32.gmra.mxu0 %v5080
    %v5106 = vpop.f32.mrf.mxu0
    %v5107 = vadd.f32 0.0, %v5106
    %5108 = vdwg.mxu0
    %v5109 = vsel %vm274, %v5065, -inf
    %5110 = vmax.xlane.f32.xlu0 %v5109
    %v5111 = vpop.xlane.xlu0 %5110
    %v5112 = vsel %vm274, %v5068, -inf
    %5113 = vmax.xlane.f32.xlu0 %v5112
    %v5114 = vpop.xlane.xlu0 %5113
    %v5115 = vsel %vm274, %v5104, -inf
    %5116 = vmax.xlane.f32.xlu0 %v5115
    %v5117 = vpop.xlane.xlu0 %5116
    %v5118 = vsel %vm274, %v5107, -inf
    %5119 = vmax.xlane.f32.xlu0 %v5118
    %v5120 = vpop.xlane.xlu0 %5119
    %v5121 = vsub.f32 %v5065, %v5111
    %v5122 = vsub.f32 %v5068, %v5114
    %v5123 = vsub.f32 %v5104, %v5117
    %v5124 = vsub.f32 %v5107, %v5120
    %v5125 = vmul.f32 %v5121, 1.442695
    %v5126 = vpow.pop %v5125
    %v5127 = vmul.f32 %v5122, 1.442695
    %v5128 = vpow.pop %v5127
    %v5129 = vmul.f32 %v5123, 1.442695
    %v5130 = vpow.pop %v5129
    %v5131 = vmul.f32 %v5124, 1.442695
    %v5132 = vpow.pop %v5131
    %v5133 = vsel %vm274, %v5126, 0.0
    %5134 = vadd.xlane.f32.xlu0 %v5133
    %v5135 = vpop.xlane.xlu0 %5134
    %v5136 = vsel %vm274, %v5128, 0.0
    %5137 = vadd.xlane.f32.xlu0 %v5136
    %v5138 = vpop.xlane.xlu0 %5137
    %v5139 = vsel %vm274, %v5130, 0.0
    %5140 = vadd.xlane.f32.xlu0 %v5139
    %v5141 = vpop.xlane.xlu0 %5140
    %v5142 = vsel %vm274, %v5132, 0.0
    %5143 = vadd.xlane.f32.xlu0 %v5142
    %v5144 = vpop.xlane.xlu0 %5143
    %v5145 = vrcp.pop %v5135
    %v5146 = vmul.f32 %v5135, %v5145
    %v5147 = vsub.f32 1.0, %v5146
    %v5148 = vmul.f32 %v5145, %v5147
    %v5149 = vadd.f32 %v5145, %v5148
    %vm5150 = vweird.f32 %v5135
    %vm5151 = vweird.f32 %v5145
    %vm5152 = vmor %vm5150, %vm5151
    %v5153 = vsel %vm5152, %v5145, %v5149
    %v5154 = vand.u32 2147483647, %v5135
    %vm5155 = vcmp.eq.f32.partialorder %v5154, 8.507059e+37
    %v5156 = vand.u32 %v5135, 2147483648
    %v5157 = vor.u32 1.1754944e-38, %v5156
    %v5158 = vsel %vm5155, %v5157, %v5153
    %v5159 = vmul.f32 %v5126, %v5158
    %v5160 = vrcp.pop %v5138
    %v5161 = vmul.f32 %v5138, %v5160
    %v5162 = vsub.f32 1.0, %v5161
    %v5163 = vmul.f32 %v5160, %v5162
    %v5164 = vadd.f32 %v5160, %v5163
    %vm5165 = vweird.f32 %v5138
    %vm5166 = vweird.f32 %v5160
    %vm5167 = vmor %vm5165, %vm5166
    %v5168 = vsel %vm5167, %v5160, %v5164
    %v5169 = vand.u32 2147483647, %v5138
    %vm5170 = vcmp.eq.f32.partialorder %v5169, 8.507059e+37
    %v5171 = vand.u32 %v5138, 2147483648
    %v5172 = vor.u32 1.1754944e-38, %v5171
    %v5173 = vsel %vm5170, %v5172, %v5168
    %v5174 = vmul.f32 %v5128, %v5173
    %v5175 = vrcp.pop %v5141
    %v5176 = vmul.f32 %v5141, %v5175
    %v5177 = vsub.f32 1.0, %v5176
    %v5178 = vmul.f32 %v5175, %v5177
    %v5179 = vadd.f32 %v5175, %v5178
    %vm5180 = vweird.f32 %v5141
    %vm5181 = vweird.f32 %v5175
    %vm5182 = vmor %vm5180, %vm5181
    %v5183 = vsel %vm5182, %v5175, %v5179
    %v5184 = vand.u32 2147483647, %v5141
    %vm5185 = vcmp.eq.f32.partialorder %v5184, 8.507059e+37
    %v5186 = vand.u32 %v5141, 2147483648
    %v5187 = vor.u32 1.1754944e-38, %v5186
    %v5188 = vsel %vm5185, %v5187, %v5183
    %v5189 = vmul.f32 %v5130, %v5188
    %v5190 = vrcp.pop %v5144
    %v5191 = vmul.f32 %v5144, %v5190
    %v5192 = vsub.f32 1.0, %v5191
    %v5193 = vmul.f32 %v5190, %v5192
    %v5194 = vadd.f32 %v5190, %v5193
    %vm5195 = vweird.f32 %v5144
    %vm5196 = vweird.f32 %v5190
    %vm5197 = vmor %vm5195, %vm5196
    %v5198 = vsel %vm5197, %v5190, %v5194
    %v5199 = vand.u32 2147483647, %v5144
    %vm5200 = vcmp.eq.f32.partialorder %v5199, 8.507059e+37
    %v5201 = vand.u32 %v5144, 2147483648
    %v5202 = vor.u32 1.1754944e-38, %v5201
    %v5203 = vsel %vm5200, %v5202, %v5198
    %v5204 = vmul.f32 %v5132, %v5203
    %5205 = vrot.lane.b32.xlu0 %v3000, 16
    %v5206 = vpop.permute.xlu0 %5205
    %5207 = vrot.lane.b32.xlu0 %v3003, 16
    %v5208 = vpop.permute.xlu0 %5207
    %v5212 = vsel %vm274, %v5159, 0
    %v5215 = vsel %vm274, %v5174, 0
    %5217 = vmatpush.msra.mxu0 0.0
    %5218 = vmatpush.msra.mxu0 0.0
    %5219 = vmatpush.msra.mxu0 0.0
    %5220 = vmatpush.msra.mxu0 0.0
    %5221 = vmatpush.msra.mxu0 0.0
    %5222 = vmatpush.msra.mxu0 0.0
    %5223 = vmatpush.msra.mxu0 0.0
    %5224 = vmatpush.msra.mxu0 0.0
    %5225 = vmatpush.msra.mxu0 0.0
    %5226 = vmatpush.msra.mxu0 0.0
    %5227 = vmatpush.msra.mxu0 0.0
    %5228 = vmatpush.msra.mxu0 0.0
    %5229 = vmatpush.msra.mxu0 0.0
    %5230 = vmatpush.msra.mxu0 0.0
    %5231 = vmatpush.msra.mxu0 %v5208
    %5232 = vmatpush.msra.mxu0 %v5206
    %5233 = vmatmul.f32.gmra.mxu0 %v5212
    %v5234 = vpop.f32.mrf.mxu0
    %v5235 = vadd.f32 0.0, %v5234
    %5236 = vmatmul.f32.gmra.mxu0 %v5215
    %v5237 = vpop.f32.mrf.mxu0
    %v5238 = vadd.f32 0.0, %v5237
    %5239 = vdwg.mxu0
    %5240 = vrot.lane.b32.xlu0 %v3006, 16
    %v5241 = vpop.permute.xlu0 %5240
    %5242 = vrot.lane.b32.xlu0 %v3009, 16
    %v5243 = vpop.permute.xlu0 %5242
    %v5247 = vsel %vm274, %v5189, 0
    %v5250 = vsel %vm274, %v5204, 0
    %5252 = vmatpush.msra.mxu0 0.0
    %5253 = vmatpush.msra.mxu0 0.0
    %5254 = vmatpush.msra.mxu0 0.0
    %5255 = vmatpush.msra.mxu0 0.0
    %5256 = vmatpush.msra.mxu0 0.0
    %5257 = vmatpush.msra.mxu0 0.0
    %5258 = vmatpush.msra.mxu0 0.0
    %5259 = vmatpush.msra.mxu0 0.0
    %5260 = vmatpush.msra.mxu0 0.0
    %5261 = vmatpush.msra.mxu0 0.0
    %5262 = vmatpush.msra.mxu0 0.0
    %5263 = vmatpush.msra.mxu0 0.0
    %5264 = vmatpush.msra.mxu0 0.0
    %5265 = vmatpush.msra.mxu0 0.0
    %5266 = vmatpush.msra.mxu0 %v5243
    %5267 = vmatpush.msra.mxu0 %v5241
    %5268 = vmatmul.f32.gmra.mxu0 %v5247
    %v5269 = vpop.f32.mrf.mxu0
    %v5270 = vadd.f32 0.0, %v5269
    %5271 = vmatmul.f32.gmra.mxu0 %v5250
    %v5272 = vpop.f32.mrf.mxu0
    %v5273 = vadd.f32 0.0, %v5272
    %5274 = vdwg.mxu0
    %v5276 = vsel %vm274, %v5235, 0
    %v5279 = vsel %vm274, %v5238, 0
    %v5282 = vsel %vm274, %v5270, 0
    %v5285 = vsel %vm274, %v5273, 0
    %5287 = vmatpush.msra.mxu0 0.0
    %5288 = vmatpush.msra.mxu0 0.0
    %5289 = vmatpush.msra.mxu0 0.0
    %5290 = vmatpush.msra.mxu0 0.0
    %5291 = vmatpush.msra.mxu0 0.0
    %5292 = vmatpush.msra.mxu0 0.0
    %5293 = vmatpush.msra.mxu0 0.0
    %5294 = vmatpush.msra.mxu0 0.0
    %5295 = vmatpush.msra.mxu0 0.0
    %5296 = vmatpush.msra.mxu0 0.0
    %5297 = vmatpush.msra.mxu0 0.0
    %5298 = vmatpush.msra.mxu0 0.0
    %5299 = vmatpush.msra.mxu0 0.0
    %5300 = vmatpush.msra.mxu0 0.0
    %5301 = vmatpush.msra.mxu0 %v3031
    %5302 = vmatpush.msra.mxu0 %v3030
    %5303 = vmatmul.f32.gmra.mxu0 %v5276
    %v5304 = vpop.f32.mrf.mxu0
    %v5305 = vadd.f32 0.0, %v5304
    %5306 = vmatmul.f32.gmra.mxu0 %v5279
    %v5307 = vpop.f32.mrf.mxu0
    %v5308 = vadd.f32 0.0, %v5307
    %5309 = vmatmul.f32.gmra.mxu0 %v5282
    %v5310 = vpop.f32.mrf.mxu0
    %v5311 = vadd.f32 0.0, %v5310
    %5312 = vmatmul.f32.gmra.mxu0 %v5285
    %v5313 = vpop.f32.mrf.mxu0
    %v5314 = vadd.f32 0.0, %v5313
    %5315 = vdwg.mxu0
    %v5316 = vadd.f32 %v5027, %v5305
    %v5317 = vadd.f32 %v5028, %v5308
    %v5318 = vadd.f32 %v5029, %v5311
    %v5319 = vadd.f32 %v5030, %v5314
    %v5320 = vld [vmem:[%s4 + $0x1] sm:$0x1]
    %v5321 = vperm.slane %v5320, 0
    %v5322 = vadd.f32 %v5316, %v5321
    %v5323 = vadd.f32 %v5317, %v5321
    %v5324 = vadd.f32 %v5318, %v5321
    %v5325 = vadd.f32 %v5319, %v5321
    %v5326 = vadd.f32 %v2862, %v5322
    %v5327 = vadd.f32 %v2863, %v5323
    %v5328 = vadd.f32 %v2864, %v5324
    %v5329 = vadd.f32 %v2865, %v5325
    %v5330 = vld [vmem:[%s5 + $0x1] sm:$0x1]
    %v5331 = vld [vmem:[%s6 + $0x1] sm:$0x1]
    %5332 = vadd.xlane.f32.xlu0 %v5326
    %v5333 = vpop.xlane.xlu0 %5332
    %5334 = vadd.xlane.f32.xlu0 %v5327
    %v5335 = vpop.xlane.xlu0 %5334
    %5336 = vadd.xlane.f32.xlu0 %v5328
    %v5337 = vpop.xlane.xlu0 %5336
    %5338 = vadd.xlane.f32.xlu0 %v5329
    %v5339 = vpop.xlane.xlu0 %5338
    %v5340 = vmul.f32 %v5333, %v2589
    %v5341 = vmul.f32 %v5335, %v2589
    %v5342 = vmul.f32 %v5337, %v2589
    %v5343 = vmul.f32 %v5339, %v2589
    %v5344 = vsub.f32 %v5326, %v5340
    %v5345 = vsub.f32 %v5327, %v5341
    %v5346 = vsub.f32 %v5328, %v5342
    %v5347 = vsub.f32 %v5329, %v5343
    %v5348 = vmul.f32 %v5344, %v5344
    %v5349 = vmul.f32 %v5345, %v5345
    %v5350 = vmul.f32 %v5346, %v5346
    %v5351 = vmul.f32 %v5347, %v5347
    %5352 = vadd.xlane.f32.xlu0 %v5348
    %v5353 = vpop.xlane.xlu0 %5352
    %5354 = vadd.xlane.f32.xlu0 %v5349
    %v5355 = vpop.xlane.xlu0 %5354
    %5356 = vadd.xlane.f32.xlu0 %v5350
    %v5357 = vpop.xlane.xlu0 %5356
    %5358 = vadd.xlane.f32.xlu0 %v5351
    %v5359 = vpop.xlane.xlu0 %5358
    %v5360 = vmul.f32 %v5353, %v2589
    %v5361 = vmul.f32 %v5355, %v2589
    %v5362 = vmul.f32 %v5357, %v2589
    %v5363 = vmul.f32 %v5359, %v2589
    %v5364 = vadd.f32 %v5360, 1e-05
    %v5365 = vadd.f32 %v5361, 1e-05
    %v5366 = vadd.f32 %v5362, 1e-05
    %v5367 = vadd.f32 %v5363, 1e-05
    %v5368 = vrsqrt.pop %v5364
    %v5369 = vmul.f32 %v5368, %v5364
    %v5370 = vmul.f32 %v5369, %v5368
    %v5371 = vmul.f32 0.5, %v5370
    %v5372 = vsub.f32 1.5, %v5371
    %v5373 = vmul.f32 %v5368, %v5372
    %vm5374 = vweird.f32 %v5364
    %vm5375 = vweird.f32 %v5368
    %vm5376 = vmor %vm5374, %vm5375
    %v5377 = vsel %vm5376, %v5368, %v5373
    %v5378 = vrsqrt.pop %v5365
    %v5379 = vmul.f32 %v5378, %v5365
    %v5380 = vmul.f32 %v5379, %v5378
    %v5381 = vmul.f32 0.5, %v5380
    %v5382 = vsub.f32 1.5, %v5381
    %v5383 = vmul.f32 %v5378, %v5382
    %vm5384 = vweird.f32 %v5365
    %vm5385 = vweird.f32 %v5378
    %vm5386 = vmor %vm5384, %vm5385
    %v5387 = vsel %vm5386, %v5378, %v5383
    %v5388 = vrsqrt.pop %v5366
    %v5389 = vmul.f32 %v5388, %v5366
    %v5390 = vmul.f32 %v5389, %v5388
    %v5391 = vmul.f32 0.5, %v5390
    %v5392 = vsub.f32 1.5, %v5391
    %v5393 = vmul.f32 %v5388, %v5392
    %vm5394 = vweird.f32 %v5366
    %vm5395 = vweird.f32 %v5388
    %vm5396 = vmor %vm5394, %vm5395
    %v5397 = vsel %vm5396, %v5388, %v5393
    %v5398 = vrsqrt.pop %v5367
    %v5399 = vmul.f32 %v5398, %v5367
    %v5400 = vmul.f32 %v5399, %v5398
    %v5401 = vmul.f32 0.5, %v5400
    %v5402 = vsub.f32 1.5, %v5401
    %v5403 = vmul.f32 %v5398, %v5402
    %vm5404 = vweird.f32 %v5367
    %vm5405 = vweird.f32 %v5398
    %vm5406 = vmor %vm5404, %vm5405
    %v5407 = vsel %vm5406, %v5398, %v5403
    %v5408 = vmul.f32 %v5344, %v5377
    %v5409 = vmul.f32 %v5345, %v5387
    %v5410 = vmul.f32 %v5346, %v5397
    %v5411 = vmul.f32 %v5347, %v5407
    %v5412 = vperm.slane %v5330, 0
    %v5413 = vmul.f32 %v5408, %v5412
    %v5414 = vmul.f32 %v5409, %v5412
    %v5415 = vmul.f32 %v5410, %v5412
    %v5416 = vmul.f32 %v5411, %v5412
    %v5417 = vperm.slane %v5331, 0
    %v5418 = vadd.f32 %v5413, %v5417
    %v5419 = vadd.f32 %v5414, %v5417
    %v5420 = vadd.f32 %v5415, %v5417
    %v5421 = vadd.f32 %v5416, %v5417
    %s5422 = scalar_lea.vmem [#allocation6], 128
    %v5423 = vld [vmem:[%s5422] sm:$0xff]
    %v5424 = vld [vmem:[%s5422 + $0x8] sm:$0xff]
    %v5425 = vld [vmem:[%s5422 + $0x10] sm:$0xff]
    %v5426 = vld [vmem:[%s5422 + $0x18] sm:$0xff]
    %v5427 = vld [vmem:[%s5422 + $0x20] sm:$0xff]
    %v5428 = vld [vmem:[%s5422 + $0x28] sm:$0xff]
    %v5429 = vld [vmem:[%s5422 + $0x30] sm:$0xff]
    %v5430 = vld [vmem:[%s5422 + $0x38] sm:$0xff]
    %v5431 = vld [vmem:[%s5422 + $0x40] sm:$0xff]
    %v5432 = vld [vmem:[%s5422 + $0x48] sm:$0xff]
    %v5433 = vld [vmem:[%s5422 + $0x50] sm:$0xff]
    %v5434 = vld [vmem:[%s5422 + $0x58] sm:$0xff]
    %v5435 = vld [vmem:[%s5422 + $0x60] sm:$0xff]
    %v5436 = vld [vmem:[%s5422 + $0x68] sm:$0xff]
    %v5437 = vld [vmem:[%s5422 + $0x70] sm:$0xff]
    %v5438 = vld [vmem:[%s5422 + $0x78] sm:$0xff]
    %v5439 = vld [vmem:[%s8 + $0x1] sm:$0x1]
    %v5440 = vperm.slane %v5439, 0
    %5441 = vmatpush.msra.mxu0 %v5438
    %5442 = vmatpush.msra.mxu0 %v5437
    %5443 = vmatpush.msra.mxu0 %v5436
    %5444 = vmatpush.msra.mxu0 %v5435
    %5445 = vmatpush.msra.mxu0 %v5434
    %5446 = vmatpush.msra.mxu0 %v5433
    %5447 = vmatpush.msra.mxu0 %v5432
    %5448 = vmatpush.msra.mxu0 %v5431
    %5449 = vmatpush.msra.mxu0 %v5430
    %5450 = vmatpush.msra.mxu0 %v5429
    %5451 = vmatpush.msra.mxu0 %v5428
    %5452 = vmatpush.msra.mxu0 %v5427
    %5453 = vmatpush.msra.mxu0 %v5426
    %5454 = vmatpush.msra.mxu0 %v5425
    %5455 = vmatpush.msra.mxu0 %v5424
    %5456 = vmatpush.msra.mxu0 %v5423
    %5457 = vmatmul.f32.gmra.mxu0 %v5418
    %v5458 = vpop.f32.mrf.mxu0
    %v5459 = vadd.f32 %v5440, %v5458
    %5460 = vmatmul.f32.gmra.mxu0 %v5419
    %v5461 = vpop.f32.mrf.mxu0
    %v5462 = vadd.f32 %v5440, %v5461
    %5463 = vmatmul.f32.gmra.mxu0 %v5420
    %v5464 = vpop.f32.mrf.mxu0
    %v5465 = vadd.f32 %v5440, %v5464
    %5466 = vmatmul.f32.gmra.mxu0 %v5421
    %v5467 = vpop.f32.mrf.mxu0
    %v5468 = vadd.f32 %v5440, %v5467
    %5469 = vdwg.mxu0
    %v5470 = vmax.f32 %v5459, 0.0
    %v5471 = vmax.f32 %v5462, 0.0
    %v5472 = vmax.f32 %v5465, 0.0
    %v5473 = vmax.f32 %v5468, 0.0
    %s5474 = scalar_lea.vmem [#allocation7], 128
    %v5475 = vld [vmem:[%s5474] sm:$0xff]
    %v5476 = vld [vmem:[%s5474 + $0x8] sm:$0xff]
    %v5477 = vld [vmem:[%s5474 + $0x10] sm:$0xff]
    %v5478 = vld [vmem:[%s5474 + $0x18] sm:$0xff]
    %v5479 = vld [vmem:[%s5474 + $0x20] sm:$0xff]
    %v5480 = vld [vmem:[%s5474 + $0x28] sm:$0xff]
    %v5481 = vld [vmem:[%s5474 + $0x30] sm:$0xff]
    %v5482 = vld [vmem:[%s5474 + $0x38] sm:$0xff]
    %v5483 = vld [vmem:[%s5474 + $0x40] sm:$0xff]
    %v5484 = vld [vmem:[%s5474 + $0x48] sm:$0xff]
    %v5485 = vld [vmem:[%s5474 + $0x50] sm:$0xff]
    %v5486 = vld [vmem:[%s5474 + $0x58] sm:$0xff]
    %v5487 = vld [vmem:[%s5474 + $0x60] sm:$0xff]
    %v5488 = vld [vmem:[%s5474 + $0x68] sm:$0xff]
    %v5489 = vld [vmem:[%s5474 + $0x70] sm:$0xff]
    %v5490 = vld [vmem:[%s5474 + $0x78] sm:$0xff]
    %v5491 = vld [vmem:[%s10 + $0x1] sm:$0x1]
    %v5492 = vperm.slane %v5491, 0
    %5493 = vmatpush.msra.mxu0 %v5490
    %5494 = vmatpush.msra.mxu0 %v5489
    %5495 = vmatpush.msra.mxu0 %v5488
    %5496 = vmatpush.msra.mxu0 %v5487
    %5497 = vmatpush.msra.mxu0 %v5486
    %5498 = vmatpush.msra.mxu0 %v5485
    %5499 = vmatpush.msra.mxu0 %v5484
    %5500 = vmatpush.msra.mxu0 %v5483
    %5501 = vmatpush.msra.mxu0 %v5482
    %5502 = vmatpush.msra.mxu0 %v5481
    %5503 = vmatpush.msra.mxu0 %v5480
    %5504 = vmatpush.msra.mxu0 %v5479
    %5505 = vmatpush.msra.mxu0 %v5478
    %5506 = vmatpush.msra.mxu0 %v5477
    %5507 = vmatpush.msra.mxu0 %v5476
    %5508 = vmatpush.msra.mxu0 %v5475
    %5509 = vmatmul.f32.gmra.mxu0 %v5470
    %v5510 = vpop.f32.mrf.mxu0
    %v5511 = vadd.f32 %v5492, %v5510
    %5512 = vmatmul.f32.gmra.mxu0 %v5471
    %v5513 = vpop.f32.mrf.mxu0
    %v5514 = vadd.f32 %v5492, %v5513
    %5515 = vmatmul.f32.gmra.mxu0 %v5472
    %v5516 = vpop.f32.mrf.mxu0
    %v5517 = vadd.f32 %v5492, %v5516
    %5518 = vmatmul.f32.gmra.mxu0 %v5473
    %v5519 = vpop.f32.mrf.mxu0
    %v5520 = vadd.f32 %v5492, %v5519
    %5521 = vdwg.mxu0
    %v5522 = vadd.f32 %v5418, %v5511
    %v5523 = vadd.f32 %v5419, %v5514
    %v5524 = vadd.f32 %v5420, %v5517
    %v5525 = vadd.f32 %v5421, %v5520
    %v5526 = vld [vmem:[%s11 + $0x1] sm:$0x1]
    %v5527 = vld [vmem:[%s12 + $0x1] sm:$0x1]
    %5528 = vadd.xlane.f32.xlu0 %v5522
    %v5529 = vpop.xlane.xlu0 %5528
    %5530 = vadd.xlane.f32.xlu0 %v5523
    %v5531 = vpop.xlane.xlu0 %5530
    %5532 = vadd.xlane.f32.xlu0 %v5524
    %v5533 = vpop.xlane.xlu0 %5532
    %5534 = vadd.xlane.f32.xlu0 %v5525
    %v5535 = vpop.xlane.xlu0 %5534
    %v5536 = vmul.f32 %v5529, %v2589
    %v5537 = vmul.f32 %v5531, %v2589
    %v5538 = vmul.f32 %v5533, %v2589
    %v5539 = vmul.f32 %v5535, %v2589
    %v5540 = vsub.f32 %v5522, %v5536
    %v5541 = vsub.f32 %v5523, %v5537
    %v5542 = vsub.f32 %v5524, %v5538
    %v5543 = vsub.f32 %v5525, %v5539
    %v5544 = vmul.f32 %v5540, %v5540
    %v5545 = vmul.f32 %v5541, %v5541
    %v5546 = vmul.f32 %v5542, %v5542
    %v5547 = vmul.f32 %v5543, %v5543
    %5548 = vadd.xlane.f32.xlu0 %v5544
    %v5549 = vpop.xlane.xlu0 %5548
    %5550 = vadd.xlane.f32.xlu0 %v5545
    %v5551 = vpop.xlane.xlu0 %5550
    %5552 = vadd.xlane.f32.xlu0 %v5546
    %v5553 = vpop.xlane.xlu0 %5552
    %5554 = vadd.xlane.f32.xlu0 %v5547
    %v5555 = vpop.xlane.xlu0 %5554
    %v5556 = vmul.f32 %v5549, %v2589
    %v5557 = vmul.f32 %v5551, %v2589
    %v5558 = vmul.f32 %v5553, %v2589
    %v5559 = vmul.f32 %v5555, %v2589
    %v5560 = vadd.f32 %v5556, 1e-05
    %v5561 = vadd.f32 %v5557, 1e-05
    %v5562 = vadd.f32 %v5558, 1e-05
    %v5563 = vadd.f32 %v5559, 1e-05
    %v5564 = vrsqrt.pop %v5560
    %v5565 = vmul.f32 %v5564, %v5560
    %v5566 = vmul.f32 %v5565, %v5564
    %v5567 = vmul.f32 0.5, %v5566
    %v5568 = vsub.f32 1.5, %v5567
    %v5569 = vmul.f32 %v5564, %v5568
    %vm5570 = vweird.f32 %v5560
    %vm5571 = vweird.f32 %v5564
    %vm5572 = vmor %vm5570, %vm5571
    %v5573 = vsel %vm5572, %v5564, %v5569
    %v5574 = vrsqrt.pop %v5561
    %v5575 = vmul.f32 %v5574, %v5561
    %v5576 = vmul.f32 %v5575, %v5574
    %v5577 = vmul.f32 0.5, %v5576
    %v5578 = vsub.f32 1.5, %v5577
    %v5579 = vmul.f32 %v5574, %v5578
    %vm5580 = vweird.f32 %v5561
    %vm5581 = vweird.f32 %v5574
    %vm5582 = vmor %vm5580, %vm5581
    %v5583 = vsel %vm5582, %v5574, %v5579
    %v5584 = vrsqrt.pop %v5562
    %v5585 = vmul.f32 %v5584, %v5562
    %v5586 = vmul.f32 %v5585, %v5584
    %v5587 = vmul.f32 0.5, %v5586
    %v5588 = vsub.f32 1.5, %v5587
    %v5589 = vmul.f32 %v5584, %v5588
    %vm5590 = vweird.f32 %v5562
    %vm5591 = vweird.f32 %v5584
    %vm5592 = vmor %vm5590, %vm5591
    %v5593 = vsel %vm5592, %v5584, %v5589
    %v5594 = vrsqrt.pop %v5563
    %v5595 = vmul.f32 %v5594, %v5563
    %v5596 = vmul.f32 %v5595, %v5594
    %v5597 = vmul.f32 0.5, %v5596
    %v5598 = vsub.f32 1.5, %v5597
    %v5599 = vmul.f32 %v5594, %v5598
    %vm5600 = vweird.f32 %v5563
    %vm5601 = vweird.f32 %v5594
    %vm5602 = vmor %vm5600, %vm5601
    %v5603 = vsel %vm5602, %v5594, %v5599
    %v5604 = vmul.f32 %v5540, %v5573
    %v5605 = vmul.f32 %v5541, %v5583
    %v5606 = vmul.f32 %v5542, %v5593
    %v5607 = vmul.f32 %v5543, %v5603
    %v5608 = vperm.slane %v5526, 0
    %v5609 = vmul.f32 %v5604, %v5608
    %v5610 = vmul.f32 %v5605, %v5608
    %v5611 = vmul.f32 %v5606, %v5608
    %v5612 = vmul.f32 %v5607, %v5608
    %v5613 = vperm.slane %v5527, 0
    %v5614 = vadd.f32 %v5609, %v5613
    %v5615 = vadd.f32 %v5610, %v5613
    %v5616 = vadd.f32 %v5611, %v5613
    %v5617 = vadd.f32 %v5612, %v5613
    %s5618 = scalar_lea.vmem [#allocation2], 768
    %v5619 = vld [vmem:[%s5618] sm:$0xff]
    %v5620 = vld [vmem:[%s5618 + $0x8] sm:$0xff]
    %v5621 = vld [vmem:[%s5618 + $0x10] sm:$0xff]
    %v5622 = vld [vmem:[%s5618 + $0x18] sm:$0xff]
    %v5623 = vld [vmem:[%s5618 + $0x20] sm:$0xff]
    %v5624 = vld [vmem:[%s5618 + $0x28] sm:$0xff]
    %v5625 = vld [vmem:[%s5618 + $0x30] sm:$0xff]
    %v5626 = vld [vmem:[%s5618 + $0x38] sm:$0xff]
    %v5627 = vld [vmem:[%s5618 + $0x40] sm:$0xff]
    %v5628 = vld [vmem:[%s5618 + $0x48] sm:$0xff]
    %v5629 = vld [vmem:[%s5618 + $0x50] sm:$0xff]
    %v5630 = vld [vmem:[%s5618 + $0x58] sm:$0xff]
    %v5631 = vld [vmem:[%s5618 + $0x60] sm:$0xff]
    %v5632 = vld [vmem:[%s5618 + $0x68] sm:$0xff]
    %v5633 = vld [vmem:[%s5618 + $0x70] sm:$0xff]
    %v5634 = vld [vmem:[%s5618 + $0x78] sm:$0xff]
    %v5635 = vld [vmem:[%s5618 + $0x80] sm:$0xff]
    %v5636 = vld [vmem:[%s5618 + $0x88] sm:$0xff]
    %v5637 = vld [vmem:[%s5618 + $0x90] sm:$0xff]
    %v5638 = vld [vmem:[%s5618 + $0x98] sm:$0xff]
    %v5639 = vld [vmem:[%s5618 + $0xa0] sm:$0xff]
    %v5640 = vld [vmem:[%s5618 + $0xa8] sm:$0xff]
    %v5641 = vld [vmem:[%s5618 + $0xb0] sm:$0xff]
    %v5642 = vld [vmem:[%s5618 + $0xb8] sm:$0xff]
    %v5643 = vld [vmem:[%s5618 + $0xc0] sm:$0xff]
    %v5644 = vld [vmem:[%s5618 + $0xc8] sm:$0xff]
    %v5645 = vld [vmem:[%s5618 + $0xd0] sm:$0xff]
    %v5646 = vld [vmem:[%s5618 + $0xd8] sm:$0xff]
    %v5647 = vld [vmem:[%s5618 + $0xe0] sm:$0xff]
    %v5648 = vld [vmem:[%s5618 + $0xe8] sm:$0xff]
    %v5649 = vld [vmem:[%s5618 + $0xf0] sm:$0xff]
    %v5650 = vld [vmem:[%s5618 + $0xf8] sm:$0xff]
    %v5651 = vld [vmem:[%s5618 + $0x100] sm:$0xff]
    %v5652 = vld [vmem:[%s5618 + $0x108] sm:$0xff]
    %v5653 = vld [vmem:[%s5618 + $0x110] sm:$0xff]
    %v5654 = vld [vmem:[%s5618 + $0x118] sm:$0xff]
    %v5655 = vld [vmem:[%s5618 + $0x120] sm:$0xff]
    %v5656 = vld [vmem:[%s5618 + $0x128] sm:$0xff]
    %v5657 = vld [vmem:[%s5618 + $0x130] sm:$0xff]
    %v5658 = vld [vmem:[%s5618 + $0x138] sm:$0xff]
    %v5659 = vld [vmem:[%s5618 + $0x140] sm:$0xff]
    %v5660 = vld [vmem:[%s5618 + $0x148] sm:$0xff]
    %v5661 = vld [vmem:[%s5618 + $0x150] sm:$0xff]
    %v5662 = vld [vmem:[%s5618 + $0x158] sm:$0xff]
    %v5663 = vld [vmem:[%s5618 + $0x160] sm:$0xff]
    %v5664 = vld [vmem:[%s5618 + $0x168] sm:$0xff]
    %v5665 = vld [vmem:[%s5618 + $0x170] sm:$0xff]
    %v5666 = vld [vmem:[%s5618 + $0x178] sm:$0xff]
    %s5667 = scalar_lea.vmem %s2, 2
    %v5668 = vld [vmem:[%s5667] ss:$4 sm:$0x7]
    %v5670 = vperm.slane %v5668, 0
    %v5671 = vperm.slane %v5668, 1
    %v5672 = vperm.slane %v5668, 2
    %5676 = vmatpush.msra.mxu0 %v5664
    %5677 = vmatpush.msra.mxu0 %v5661
    %5678 = vmatpush.msra.mxu0 %v5658
    %5679 = vmatpush.msra.mxu0 %v5655
    %5680 = vmatpush.msra.mxu0 %v5652
    %5681 = vmatpush.msra.mxu0 %v5649
    %5682 = vmatpush.msra.mxu0 %v5646
    %5683 = vmatpush.msra.mxu0 %v5643
    %5684 = vmatpush.msra.mxu0 %v5640
    %5685 = vmatpush.msra.mxu0 %v5637
    %5686 = vmatpush.msra.mxu0 %v5634
    %5687 = vmatpush.msra.mxu0 %v5631
    %5688 = vmatpush.msra.mxu0 %v5628
    %5689 = vmatpush.msra.mxu0 %v5625
    %5690 = vmatpush.msra.mxu0 %v5622
    %5691 = vmatpush.msra.mxu0 %v5619
    %5692 = vmatmul.f32.gmra.mxu0 %v5614
    %v5693 = vpop.f32.mrf.mxu0
    %v5694 = vadd.f32 %v5670, %v5693
    %5695 = vmatmul.f32.gmra.mxu0 %v5615
    %v5696 = vpop.f32.mrf.mxu0
    %v5697 = vadd.f32 %v5670, %v5696
    %5698 = vmatmul.f32.gmra.mxu0 %v5616
    %v5699 = vpop.f32.mrf.mxu0
    %v5700 = vadd.f32 %v5670, %v5699
    %5701 = vmatmul.f32.gmra.mxu0 %v5617
    %v5702 = vpop.f32.mrf.mxu0
    %v5703 = vadd.f32 %v5670, %v5702
    %5704 = vdwg.mxu0
    %5705 = vmatpush.msra.mxu0 %v5665
    %5706 = vmatpush.msra.mxu0 %v5662
    %5707 = vmatpush.msra.mxu0 %v5659
    %5708 = vmatpush.msra.mxu0 %v5656
    %5709 = vmatpush.msra.mxu0 %v5653
    %5710 = vmatpush.msra.mxu0 %v5650
    %5711 = vmatpush.msra.mxu0 %v5647
    %5712 = vmatpush.msra.mxu0 %v5644
    %5713 = vmatpush.msra.mxu0 %v5641
    %5714 = vmatpush.msra.mxu0 %v5638
    %5715 = vmatpush.msra.mxu0 %v5635
    %5716 = vmatpush.msra.mxu0 %v5632
    %5717 = vmatpush.msra.mxu0 %v5629
    %5718 = vmatpush.msra.mxu0 %v5626
    %5719 = vmatpush.msra.mxu0 %v5623
    %5720 = vmatpush.msra.mxu0 %v5620
    %5721 = vmatmul.f32.gmra.mxu0 %v5614
    %v5722 = vpop.f32.mrf.mxu0
    %v5723 = vadd.f32 %v5671, %v5722
    %5724 = vmatmul.f32.gmra.mxu0 %v5615
    %v5725 = vpop.f32.mrf.mxu0
    %v5726 = vadd.f32 %v5671, %v5725
    %5727 = vmatmul.f32.gmra.mxu0 %v5616
    %v5728 = vpop.f32.mrf.mxu0
    %v5729 = vadd.f32 %v5671, %v5728
    %5730 = vmatmul.f32.gmra.mxu0 %v5617
    %v5731 = vpop.f32.mrf.mxu0
    %v5732 = vadd.f32 %v5671, %v5731
    %5733 = vdwg.mxu0
    %5734 = vmatpush.msra.mxu0 %v5666
    %5735 = vmatpush.msra.mxu0 %v5663
    %5736 = vmatpush.msra.mxu0 %v5660
    %5737 = vmatpush.msra.mxu0 %v5657
    %5738 = vmatpush.msra.mxu0 %v5654
    %5739 = vmatpush.msra.mxu0 %v5651
    %5740 = vmatpush.msra.mxu0 %v5648
    %5741 = vmatpush.msra.mxu0 %v5645
    %5742 = vmatpush.msra.mxu0 %v5642
    %5743 = vmatpush.msra.mxu0 %v5639
    %5744 = vmatpush.msra.mxu0 %v5636
    %5745 = vmatpush.msra.mxu0 %v5633
    %5746 = vmatpush.msra.mxu0 %v5630
    %5747 = vmatpush.msra.mxu0 %v5627
    %5748 = vmatpush.msra.mxu0 %v5624
    %5749 = vmatpush.msra.mxu0 %v5621
    %5750 = vmatmul.f32.gmra.mxu0 %v5614
    %v5751 = vpop.f32.mrf.mxu0
    %v5752 = vadd.f32 %v5672, %v5751
    %5753 = vmatmul.f32.gmra.mxu0 %v5615
    %v5754 = vpop.f32.mrf.mxu0
    %v5755 = vadd.f32 %v5672, %v5754
    %5756 = vmatmul.f32.gmra.mxu0 %v5616
    %v5757 = vpop.f32.mrf.mxu0
    %v5758 = vadd.f32 %v5672, %v5757
    %5759 = vmatmul.f32.gmra.mxu0 %v5617
    %v5760 = vpop.f32.mrf.mxu0
    %v5761 = vadd.f32 %v5672, %v5760
    %5762 = vdwg.mxu0
    %v5763 = vmul.f32 %v5694, 0.25
    %v5764 = vmul.f32 %v5697, 0.25
    %v5765 = vmul.f32 %v5700, 0.25
    %v5766 = vmul.f32 %v5703, 0.25
    %s5767 = scalar_lea.vmem [#allocation4], 256
    %v5768 = vld [vmem:[%s5767] sm:$0xff]
    %v5769 = vld [vmem:[%s5767 + $0x8] sm:$0xff]
    %v5770 = vld [vmem:[%s5767 + $0x10] sm:$0xff]
    %v5771 = vld [vmem:[%s5767 + $0x18] sm:$0xff]
    %v5772 = vld [vmem:[%s5767 + $0x20] sm:$0xff]
    %v5773 = vld [vmem:[%s5767 + $0x28] sm:$0xff]
    %v5774 = vld [vmem:[%s5767 + $0x30] sm:$0xff]
    %v5775 = vld [vmem:[%s5767 + $0x38] sm:$0xff]
    %v5776 = vld [vmem:[%s5767 + $0x40] sm:$0xff]
    %v5777 = vld [vmem:[%s5767 + $0x48] sm:$0xff]
    %v5778 = vld [vmem:[%s5767 + $0x50] sm:$0xff]
    %v5779 = vld [vmem:[%s5767 + $0x58] sm:$0xff]
    %v5780 = vld [vmem:[%s5767 + $0x60] sm:$0xff]
    %v5781 = vld [vmem:[%s5767 + $0x68] sm:$0xff]
    %v5782 = vld [vmem:[%s5767 + $0x70] sm:$0xff]
    %v5783 = vld [vmem:[%s5767 + $0x78] sm:$0xff]
    %v5785 = vsel %vm274, %v5763, 0
    %v5788 = vsel %vm274, %v5764, 0
    %v5791 = vsel %vm274, %v5723, 0
    %v5794 = vsel %vm274, %v5726, 0
    %5796 = vmatpush.xpose.msra.mxu0 0.0
    %5797 = vmatpush.xpose.msra.mxu0 0.0
    %5798 = vmatpush.xpose.msra.mxu0 0.0
    %5799 = vmatpush.xpose.msra.mxu0 0.0
    %5800 = vmatpush.xpose.msra.mxu0 0.0
    %5801 = vmatpush.xpose.msra.mxu0 0.0
    %5802 = vmatpush.xpose.msra.mxu0 0.0
    %5803 = vmatpush.xpose.msra.mxu0 0.0
    %5804 = vmatpush.xpose.msra.mxu0 0.0
    %5805 = vmatpush.xpose.msra.mxu0 0.0
    %5806 = vmatpush.xpose.msra.mxu0 0.0
    %5807 = vmatpush.xpose.msra.mxu0 0.0
    %5808 = vmatpush.xpose.msra.mxu0 0.0
    %5809 = vmatpush.xpose.msra.mxu0 0.0
    %5810 = vmatpush.xpose.msra.mxu0 %v5794
    %5811 = vmatpush.xpose.msra.mxu0 %v5791
    %5812 = vmatmul.f32.gmra.mxu0 %v5785
    %v5813 = vpop.f32.mrf.mxu0
    %v5814 = vadd.f32 0.0, %v5813
    %5815 = vmatmul.f32.gmra.mxu0 %v5788
    %v5816 = vpop.f32.mrf.mxu0
    %v5817 = vadd.f32 0.0, %v5816
    %5818 = vdwg.mxu0
    %v5820 = vsel %vm274, %v5765, 0
    %v5823 = vsel %vm274, %v5766, 0
    %v5826 = vsel %vm274, %v5729, 0
    %v5829 = vsel %vm274, %v5732, 0
    %5831 = vmatpush.xpose.msra.mxu0 0.0
    %5832 = vmatpush.xpose.msra.mxu0 0.0
    %5833 = vmatpush.xpose.msra.mxu0 0.0
    %5834 = vmatpush.xpose.msra.mxu0 0.0
    %5835 = vmatpush.xpose.msra.mxu0 0.0
    %5836 = vmatpush.xpose.msra.mxu0 0.0
    %5837 = vmatpush.xpose.msra.mxu0 0.0
    %5838 = vmatpush.xpose.msra.mxu0 0.0
    %5839 = vmatpush.xpose.msra.mxu0 0.0
    %5840 = vmatpush.xpose.msra.mxu0 0.0
    %5841 = vmatpush.xpose.msra.mxu0 0.0
    %5842 = vmatpush.xpose.msra.mxu0 0.0
    %5843 = vmatpush.xpose.msra.mxu0 0.0
    %5844 = vmatpush.xpose.msra.mxu0 0.0
    %5845 = vmatpush.xpose.msra.mxu0 %v5829
    %5846 = vmatpush.xpose.msra.mxu0 %v5826
    %5847 = vmatmul.f32.gmra.mxu0 %v5820
    %v5848 = vpop.f32.mrf.mxu0
    %v5849 = vadd.f32 0.0, %v5848
    %5850 = vmatmul.f32.gmra.mxu0 %v5823
    %v5851 = vpop.f32.mrf.mxu0
    %v5852 = vadd.f32 0.0, %v5851
    %5853 = vdwg.mxu0
    %v5854 = vsel %vm274, %v5814, -inf
    %5855 = vmax.xlane.f32.xlu0 %v5854
    %v5856 = vpop.xlane.xlu0 %5855
    %v5857 = vsel %vm274, %v5817, -inf
    %5858 = vmax.xlane.f32.xlu0 %v5857
    %v5859 = vpop.xlane.xlu0 %5858
    %v5860 = vsel %vm274, %v5849, -inf
    %5861 = vmax.xlane.f32.xlu0 %v5860
    %v5862 = vpop.xlane.xlu0 %5861
    %v5863 = vsel %vm274, %v5852, -inf
    %5864 = vmax.xlane.f32.xlu0 %v5863
    %v5865 = vpop.xlane.xlu0 %5864
    %v5866 = vsub.f32 %v5814, %v5856
    %v5867 = vsub.f32 %v5817, %v5859
    %v5868 = vsub.f32 %v5849, %v5862
    %v5869 = vsub.f32 %v5852, %v5865
    %v5870 = vmul.f32 %v5866, 1.442695
    %v5871 = vpow.pop %v5870
    %v5872 = vmul.f32 %v5867, 1.442695
    %v5873 = vpow.pop %v5872
    %v5874 = vmul.f32 %v5868, 1.442695
    %v5875 = vpow.pop %v5874
    %v5876 = vmul.f32 %v5869, 1.442695
    %v5877 = vpow.pop %v5876
    %v5878 = vsel %vm274, %v5871, 0.0
    %5879 = vadd.xlane.f32.xlu0 %v5878
    %v5880 = vpop.xlane.xlu0 %5879
    %v5881 = vsel %vm274, %v5873, 0.0
    %5882 = vadd.xlane.f32.xlu0 %v5881
    %v5883 = vpop.xlane.xlu0 %5882
    %v5884 = vsel %vm274, %v5875, 0.0
    %5885 = vadd.xlane.f32.xlu0 %v5884
    %v5886 = vpop.xlane.xlu0 %5885
    %v5887 = vsel %vm274, %v5877, 0.0
    %5888 = vadd.xlane.f32.xlu0 %v5887
    %v5889 = vpop.xlane.xlu0 %5888
    %v5890 = vrcp.pop %v5880
    %v5891 = vmul.f32 %v5880, %v5890
    %v5892 = vsub.f32 1.0, %v5891
    %v5893 = vmul.f32 %v5890, %v5892
    %v5894 = vadd.f32 %v5890, %v5893
    %vm5895 = vweird.f32 %v5880
    %vm5896 = vweird.f32 %v5890
    %vm5897 = vmor %vm5895, %vm5896
    %v5898 = vsel %vm5897, %v5890, %v5894
    %v5899 = vand.u32 2147483647, %v5880
    %vm5900 = vcmp.eq.f32.partialorder %v5899, 8.507059e+37
    %v5901 = vand.u32 %v5880, 2147483648
    %v5902 = vor.u32 1.1754944e-38, %v5901
    %v5903 = vsel %vm5900, %v5902, %v5898
    %v5904 = vmul.f32 %v5871, %v5903
    %v5905 = vrcp.pop %v5883
    %v5906 = vmul.f32 %v5883, %v5905
    %v5907 = vsub.f32 1.0, %v5906
    %v5908 = vmul.f32 %v5905, %v5907
    %v5909 = vadd.f32 %v5905, %v5908
    %vm5910 = vweird.f32 %v5883
    %vm5911 = vweird.f32 %v5905
    %vm5912 = vmor %vm5910, %vm5911
    %v5913 = vsel %vm5912, %v5905, %v5909
    %v5914 = vand.u32 2147483647, %v5883
    %vm5915 = vcmp.eq.f32.partialorder %v5914, 8.507059e+37
    %v5916 = vand.u32 %v5883, 2147483648
    %v5917 = vor.u32 1.1754944e-38, %v5916
    %v5918 = vsel %vm5915, %v5917, %v5913
    %v5919 = vmul.f32 %v5873, %v5918
    %v5920 = vrcp.pop %v5886
    %v5921 = vmul.f32 %v5886, %v5920
    %v5922 = vsub.f32 1.0, %v5921
    %v5923 = vmul.f32 %v5920, %v5922
    %v5924 = vadd.f32 %v5920, %v5923
    %vm5925 = vweird.f32 %v5886
    %vm5926 = vweird.f32 %v5920
    %vm5927 = vmor %vm5925, %vm5926
    %v5928 = vsel %vm5927, %v5920, %v5924
    %v5929 = vand.u32 2147483647, %v5886
    %vm5930 = vcmp.eq.f32.partialorder %v5929, 8.507059e+37
    %v5931 = vand.u32 %v5886, 2147483648
    %v5932 = vor.u32 1.1754944e-38, %v5931
    %v5933 = vsel %vm5930, %v5932, %v5928
    %v5934 = vmul.f32 %v5875, %v5933
    %v5935 = vrcp.pop %v5889
    %v5936 = vmul.f32 %v5889, %v5935
    %v5937 = vsub.f32 1.0, %v5936
    %v5938 = vmul.f32 %v5935, %v5937
    %v5939 = vadd.f32 %v5935, %v5938
    %vm5940 = vweird.f32 %v5889
    %vm5941 = vweird.f32 %v5935
    %vm5942 = vmor %vm5940, %vm5941
    %v5943 = vsel %vm5942, %v5935, %v5939
    %v5944 = vand.u32 2147483647, %v5889
    %vm5945 = vcmp.eq.f32.partialorder %v5944, 8.507059e+37
    %v5946 = vand.u32 %v5889, 2147483648
    %v5947 = vor.u32 1.1754944e-38, %v5946
    %v5948 = vsel %vm5945, %v5947, %v5943
    %v5949 = vmul.f32 %v5877, %v5948
    %v5951 = vsel %vm274, %v5904, 0
    %v5954 = vsel %vm274, %v5919, 0
    %5956 = vmatpush.msra.mxu0 0.0
    %5957 = vmatpush.msra.mxu0 0.0
    %5958 = vmatpush.msra.mxu0 0.0
    %5959 = vmatpush.msra.mxu0 0.0
    %5960 = vmatpush.msra.mxu0 0.0
    %5961 = vmatpush.msra.mxu0 0.0
    %5962 = vmatpush.msra.mxu0 0.0
    %5963 = vmatpush.msra.mxu0 0.0
    %5964 = vmatpush.msra.mxu0 0.0
    %5965 = vmatpush.msra.mxu0 0.0
    %5966 = vmatpush.msra.mxu0 0.0
    %5967 = vmatpush.msra.mxu0 0.0
    %5968 = vmatpush.msra.mxu0 0.0
    %5969 = vmatpush.msra.mxu0 0.0
    %5970 = vmatpush.msra.mxu0 %v5755
    %5971 = vmatpush.msra.mxu0 %v5752
    %5972 = vmatmul.f32.gmra.mxu0 %v5951
    %v5973 = vpop.f32.mrf.mxu0
    %v5974 = vadd.f32 0.0, %v5973
    %5975 = vmatmul.f32.gmra.mxu0 %v5954
    %v5976 = vpop.f32.mrf.mxu0
    %v5977 = vadd.f32 0.0, %v5976
    %5978 = vdwg.mxu0
    %v5980 = vsel %vm274, %v5934, 0
    %v5983 = vsel %vm274, %v5949, 0
    %5985 = vmatpush.msra.mxu0 0.0
    %5986 = vmatpush.msra.mxu0 0.0
    %5987 = vmatpush.msra.mxu0 0.0
    %5988 = vmatpush.msra.mxu0 0.0
    %5989 = vmatpush.msra.mxu0 0.0
    %5990 = vmatpush.msra.mxu0 0.0
    %5991 = vmatpush.msra.mxu0 0.0
    %5992 = vmatpush.msra.mxu0 0.0
    %5993 = vmatpush.msra.mxu0 0.0
    %5994 = vmatpush.msra.mxu0 0.0
    %5995 = vmatpush.msra.mxu0 0.0
    %5996 = vmatpush.msra.mxu0 0.0
    %5997 = vmatpush.msra.mxu0 0.0
    %5998 = vmatpush.msra.mxu0 0.0
    %5999 = vmatpush.msra.mxu0 %v5761
    %6000 = vmatpush.msra.mxu0 %v5758
    %6001 = vmatmul.f32.gmra.mxu0 %v5980
    %v6002 = vpop.f32.mrf.mxu0
    %v6003 = vadd.f32 0.0, %v6002
    %6004 = vmatmul.f32.gmra.mxu0 %v5983
    %v6005 = vpop.f32.mrf.mxu0
    %v6006 = vadd.f32 0.0, %v6005
    %6007 = vdwg.mxu0
    %6008 = vrot.lane.b32.xlu0 %v5763, 112
    %v6009 = vpop.permute.xlu0 %6008
    %6010 = vrot.lane.b32.xlu0 %v5764, 112
    %v6011 = vpop.permute.xlu0 %6010
    %6012 = vrot.lane.b32.xlu0 %v5723, 112
    %v6013 = vpop.permute.xlu0 %6012
    %6014 = vrot.lane.b32.xlu0 %v5726, 112
    %v6015 = vpop.permute.xlu0 %6014
    %v6016 = vsel %vm274, %v6009, 0
    %v6018 = vsel %vm274, %v6011, 0
    %v6020 = vsel %vm274, %v6013, 0
    %v6022 = vsel %vm274, %v6015, 0
    %6024 = vmatpush.xpose.msra.mxu0 0.0
    %6025 = vmatpush.xpose.msra.mxu0 0.0
    %6026 = vmatpush.xpose.msra.mxu0 0.0
    %6027 = vmatpush.xpose.msra.mxu0 0.0
    %6028 = vmatpush.xpose.msra.mxu0 0.0
    %6029 = vmatpush.xpose.msra.mxu0 0.0
    %6030 = vmatpush.xpose.msra.mxu0 0.0
    %6031 = vmatpush.xpose.msra.mxu0 0.0
    %6032 = vmatpush.xpose.msra.mxu0 0.0
    %6033 = vmatpush.xpose.msra.mxu0 0.0
    %6034 = vmatpush.xpose.msra.mxu0 0.0
    %6035 = vmatpush.xpose.msra.mxu0 0.0
    %6036 = vmatpush.xpose.msra.mxu0 0.0
    %6037 = vmatpush.xpose.msra.mxu0 0.0
    %6038 = vmatpush.xpose.msra.mxu0 %v6022
    %6039 = vmatpush.xpose.msra.mxu0 %v6020
    %6040 = vmatmul.f32.gmra.mxu0 %v6016
    %v6041 = vpop.f32.mrf.mxu0
    %v6042 = vadd.f32 0.0, %v6041
    %6043 = vmatmul.f32.gmra.mxu0 %v6018
    %v6044 = vpop.f32.mrf.mxu0
    %v6045 = vadd.f32 0.0, %v6044
    %6046 = vdwg.mxu0
    %6047 = vrot.lane.b32.xlu0 %v5765, 112
    %v6048 = vpop.permute.xlu0 %6047
    %6049 = vrot.lane.b32.xlu0 %v5766, 112
    %v6050 = vpop.permute.xlu0 %6049
    %6051 = vrot.lane.b32.xlu0 %v5729, 112
    %v6052 = vpop.permute.xlu0 %6051
    %6053 = vrot.lane.b32.xlu0 %v5732, 112
    %v6054 = vpop.permute.xlu0 %6053
    %v6055 = vsel %vm274, %v6048, 0
    %v6057 = vsel %vm274, %v6050, 0
    %v6059 = vsel %vm274, %v6052, 0
    %v6061 = vsel %vm274, %v6054, 0
    %6063 = vmatpush.xpose.msra.mxu0 0.0
    %6064 = vmatpush.xpose.msra.mxu0 0.0
    %6065 = vmatpush.xpose.msra.mxu0 0.0
    %6066 = vmatpush.xpose.msra.mxu0 0.0
    %6067 = vmatpush.xpose.msra.mxu0 0.0
    %6068 = vmatpush.xpose.msra.mxu0 0.0
    %6069 = vmatpush.xpose.msra.mxu0 0.0
    %6070 = vmatpush.xpose.msra.mxu0 0.0
    %6071 = vmatpush.xpose.msra.mxu0 0.0
    %6072 = vmatpush.xpose.msra.mxu0 0.0
    %6073 = vmatpush.xpose.msra.mxu0 0.0
    %6074 = vmatpush.xpose.msra.mxu0 0.0
    %6075 = vmatpush.xpose.msra.mxu0 0.0
    %6076 = vmatpush.xpose.msra.mxu0 0.0
    %6077 = vmatpush.xpose.msra.mxu0 %v6061
    %6078 = vmatpush.xpose.msra.mxu0 %v6059
    %6079 = vmatmul.f32.gmra.mxu0 %v6055
    %v6080 = vpop.f32.mrf.mxu0
    %v6081 = vadd.f32 0.0, %v6080
    %6082 = vmatmul.f32.gmra.mxu0 %v6057
    %v6083 = vpop.f32.mrf.mxu0
    %v6084 = vadd.f32 0.0, %v6083
    %6085 = vdwg.mxu0
    %v6086 = vsel %vm274, %v6042, -inf
    %6087 = vmax.xlane.f32.xlu0 %v6086
    %v6088 = vpop.xlane.xlu0 %6087
    %v6089 = vsel %vm274, %v6045, -inf
    %6090 = vmax.xlane.f32.xlu0 %v6089
    %v6091 = vpop.xlane.xlu0 %6090
    %v6092 = vsel %vm274, %v6081, -inf
    %6093 = vmax.xlane.f32.xlu0 %v6092
    %v6094 = vpop.xlane.xlu0 %6093
    %v6095 = vsel %vm274, %v6084, -inf
    %6096 = vmax.xlane.f32.xlu0 %v6095
    %v6097 = vpop.xlane.xlu0 %6096
    %v6098 = vsub.f32 %v6042, %v6088
    %v6099 = vsub.f32 %v6045, %v6091
    %v6100 = vsub.f32 %v6081, %v6094
    %v6101 = vsub.f32 %v6084, %v6097
    %v6102 = vmul.f32 %v6098, 1.442695
    %v6103 = vpow.pop %v6102
    %v6104 = vmul.f32 %v6099, 1.442695
    %v6105 = vpow.pop %v6104
    %v6106 = vmul.f32 %v6100, 1.442695
    %v6107 = vpow.pop %v6106
    %v6108 = vmul.f32 %v6101, 1.442695
    %v6109 = vpow.pop %v6108
    %v6110 = vsel %vm274, %v6103, 0.0
    %6111 = vadd.xlane.f32.xlu0 %v6110
    %v6112 = vpop.xlane.xlu0 %6111
    %v6113 = vsel %vm274, %v6105, 0.0
    %6114 = vadd.xlane.f32.xlu0 %v6113
    %v6115 = vpop.xlane.xlu0 %6114
    %v6116 = vsel %vm274, %v6107, 0.0
    %6117 = vadd.xlane.f32.xlu0 %v6116
    %v6118 = vpop.xlane.xlu0 %6117
    %v6119 = vsel %vm274, %v6109, 0.0
    %6120 = vadd.xlane.f32.xlu0 %v6119
    %v6121 = vpop.xlane.xlu0 %6120
    %v6122 = vrcp.pop %v6112
    %v6123 = vmul.f32 %v6112, %v6122
    %v6124 = vsub.f32 1.0, %v6123
    %v6125 = vmul.f32 %v6122, %v6124
    %v6126 = vadd.f32 %v6122, %v6125
    %vm6127 = vweird.f32 %v6112
    %vm6128 = vweird.f32 %v6122
    %vm6129 = vmor %vm6127, %vm6128
    %v6130 = vsel %vm6129, %v6122, %v6126
    %v6131 = vand.u32 2147483647, %v6112
    %vm6132 = vcmp.eq.f32.partialorder %v6131, 8.507059e+37
    %v6133 = vand.u32 %v6112, 2147483648
    %v6134 = vor.u32 1.1754944e-38, %v6133
    %v6135 = vsel %vm6132, %v6134, %v6130
    %v6136 = vmul.f32 %v6103, %v6135
    %v6137 = vrcp.pop %v6115
    %v6138 = vmul.f32 %v6115, %v6137
    %v6139 = vsub.f32 1.0, %v6138
    %v6140 = vmul.f32 %v6137, %v6139
    %v6141 = vadd.f32 %v6137, %v6140
    %vm6142 = vweird.f32 %v6115
    %vm6143 = vweird.f32 %v6137
    %vm6144 = vmor %vm6142, %vm6143
    %v6145 = vsel %vm6144, %v6137, %v6141
    %v6146 = vand.u32 2147483647, %v6115
    %vm6147 = vcmp.eq.f32.partialorder %v6146, 8.507059e+37
    %v6148 = vand.u32 %v6115, 2147483648
    %v6149 = vor.u32 1.1754944e-38, %v6148
    %v6150 = vsel %vm6147, %v6149, %v6145
    %v6151 = vmul.f32 %v6105, %v6150
    %v6152 = vrcp.pop %v6118
    %v6153 = vmul.f32 %v6118, %v6152
    %v6154 = vsub.f32 1.0, %v6153
    %v6155 = vmul.f32 %v6152, %v6154
    %v6156 = vadd.f32 %v6152, %v6155
    %vm6157 = vweird.f32 %v6118
    %vm6158 = vweird.f32 %v6152
    %vm6159 = vmor %vm6157, %vm6158
    %v6160 = vsel %vm6159, %v6152, %v6156
    %v6161 = vand.u32 2147483647, %v6118
    %vm6162 = vcmp.eq.f32.partialorder %v6161, 8.507059e+37
    %v6163 = vand.u32 %v6118, 2147483648
    %v6164 = vor.u32 1.1754944e-38, %v6163
    %v6165 = vsel %vm6162, %v6164, %v6160
    %v6166 = vmul.f32 %v6107, %v6165
    %v6167 = vrcp.pop %v6121
    %v6168 = vmul.f32 %v6121, %v6167
    %v6169 = vsub.f32 1.0, %v6168
    %v6170 = vmul.f32 %v6167, %v6169
    %v6171 = vadd.f32 %v6167, %v6170
    %vm6172 = vweird.f32 %v6121
    %vm6173 = vweird.f32 %v6167
    %vm6174 = vmor %vm6172, %vm6173
    %v6175 = vsel %vm6174, %v6167, %v6171
    %v6176 = vand.u32 2147483647, %v6121
    %vm6177 = vcmp.eq.f32.partialorder %v6176, 8.507059e+37
    %v6178 = vand.u32 %v6121, 2147483648
    %v6179 = vor.u32 1.1754944e-38, %v6178
    %v6180 = vsel %vm6177, %v6179, %v6175
    %v6181 = vmul.f32 %v6109, %v6180
    %6184 = vrot.lane.b32.xlu0 %v5752, 112
    %v6185 = vpop.permute.xlu0 %6184
    %6186 = vrot.lane.b32.xlu0 %v5755, 112
    %v6187 = vpop.permute.xlu0 %6186
    %v6191 = vsel %vm274, %v6136, 0
    %v6194 = vsel %vm274, %v6151, 0
    %6196 = vmatpush.msra.mxu0 0.0
    %6197 = vmatpush.msra.mxu0 0.0
    %6198 = vmatpush.msra.mxu0 0.0
    %6199 = vmatpush.msra.mxu0 0.0
    %6200 = vmatpush.msra.mxu0 0.0
    %6201 = vmatpush.msra.mxu0 0.0
    %6202 = vmatpush.msra.mxu0 0.0
    %6203 = vmatpush.msra.mxu0 0.0
    %6204 = vmatpush.msra.mxu0 0.0
    %6205 = vmatpush.msra.mxu0 0.0
    %6206 = vmatpush.msra.mxu0 0.0
    %6207 = vmatpush.msra.mxu0 0.0
    %6208 = vmatpush.msra.mxu0 0.0
    %6209 = vmatpush.msra.mxu0 0.0
    %6210 = vmatpush.msra.mxu0 %v6187
    %6211 = vmatpush.msra.mxu0 %v6185
    %6212 = vmatmul.f32.gmra.mxu0 %v6191
    %v6213 = vpop.f32.mrf.mxu0
    %v6214 = vadd.f32 0.0, %v6213
    %6215 = vmatmul.f32.gmra.mxu0 %v6194
    %v6216 = vpop.f32.mrf.mxu0
    %v6217 = vadd.f32 0.0, %v6216
    %6218 = vdwg.mxu0
    %6221 = vrot.lane.b32.xlu0 %v5758, 112
    %v6222 = vpop.permute.xlu0 %6221
    %6223 = vrot.lane.b32.xlu0 %v5761, 112
    %v6224 = vpop.permute.xlu0 %6223
    %v6228 = vsel %vm274, %v6166, 0
    %v6231 = vsel %vm274, %v6181, 0
    %6233 = vmatpush.msra.mxu0 0.0
    %6234 = vmatpush.msra.mxu0 0.0
    %6235 = vmatpush.msra.mxu0 0.0
    %6236 = vmatpush.msra.mxu0 0.0
    %6237 = vmatpush.msra.mxu0 0.0
    %6238 = vmatpush.msra.mxu0 0.0
    %6239 = vmatpush.msra.mxu0 0.0
    %6240 = vmatpush.msra.mxu0 0.0
    %6241 = vmatpush.msra.mxu0 0.0
    %6242 = vmatpush.msra.mxu0 0.0
    %6243 = vmatpush.msra.mxu0 0.0
    %6244 = vmatpush.msra.mxu0 0.0
    %6245 = vmatpush.msra.mxu0 0.0
    %6246 = vmatpush.msra.mxu0 0.0
    %6247 = vmatpush.msra.mxu0 %v6224
    %6248 = vmatpush.msra.mxu0 %v6222
    %6249 = vmatmul.f32.gmra.mxu0 %v6228
    %v6250 = vpop.f32.mrf.mxu0
    %v6251 = vadd.f32 0.0, %v6250
    %6252 = vmatmul.f32.gmra.mxu0 %v6231
    %v6253 = vpop.f32.mrf.mxu0
    %v6254 = vadd.f32 0.0, %v6253
    %6255 = vdwg.mxu0
    %v6257 = vsel %vm274, %v6214, 0
    %v6260 = vsel %vm274, %v6217, 0
    %v6263 = vsel %vm274, %v6251, 0
    %v6266 = vsel %vm274, %v6254, 0
    %6268 = vmatpush.msra.mxu0 0.0
    %6269 = vmatpush.msra.mxu0 0.0
    %6270 = vmatpush.msra.mxu0 0.0
    %6271 = vmatpush.msra.mxu0 0.0
    %6272 = vmatpush.msra.mxu0 0.0
    %6273 = vmatpush.msra.mxu0 0.0
    %6274 = vmatpush.msra.mxu0 0.0
    %6275 = vmatpush.msra.mxu0 0.0
    %6276 = vmatpush.msra.mxu0 0.0
    %6277 = vmatpush.msra.mxu0 0.0
    %6278 = vmatpush.msra.mxu0 0.0
    %6279 = vmatpush.msra.mxu0 0.0
    %6280 = vmatpush.msra.mxu0 0.0
    %6281 = vmatpush.msra.mxu0 0.0
    %6282 = vmatpush.msra.mxu0 %v5771
    %6283 = vmatpush.msra.mxu0 %v5770
    %6284 = vmatmul.f32.gmra.mxu0 %v6257
    %v6285 = vpop.f32.mrf.mxu0
    %v6286 = vadd.f32 0.0, %v6285
    %6287 = vmatmul.f32.gmra.mxu0 %v6260
    %v6288 = vpop.f32.mrf.mxu0
    %v6289 = vadd.f32 0.0, %v6288
    %6290 = vmatmul.f32.gmra.mxu0 %v6263
    %v6291 = vpop.f32.mrf.mxu0
    %v6292 = vadd.f32 0.0, %v6291
    %6293 = vmatmul.f32.gmra.mxu0 %v6266
    %v6294 = vpop.f32.mrf.mxu0
    %v6295 = vadd.f32 0.0, %v6294
    %6296 = vdwg.mxu0
    %v6298 = vsel %vm274, %v5974, 0
    %v6301 = vsel %vm274, %v5977, 0
    %v6304 = vsel %vm274, %v6003, 0
    %v6307 = vsel %vm274, %v6006, 0
    %6309 = vmatpush.msra.mxu0 0.0
    %6310 = vmatpush.msra.mxu0 0.0
    %6311 = vmatpush.msra.mxu0 0.0
    %6312 = vmatpush.msra.mxu0 0.0
    %6313 = vmatpush.msra.mxu0 0.0
    %6314 = vmatpush.msra.mxu0 0.0
    %6315 = vmatpush.msra.mxu0 0.0
    %6316 = vmatpush.msra.mxu0 0.0
    %6317 = vmatpush.msra.mxu0 0.0
    %6318 = vmatpush.msra.mxu0 0.0
    %6319 = vmatpush.msra.mxu0 0.0
    %6320 = vmatpush.msra.mxu0 0.0
    %6321 = vmatpush.msra.mxu0 0.0
    %6322 = vmatpush.msra.mxu0 0.0
    %6323 = vmatpush.msra.mxu0 %v5769
    %6324 = vmatpush.msra.mxu0 %v5768
    %6325 = vmatmul.f32.gmra.mxu0 %v6298
    %v6326 = vpop.f32.mrf.mxu0
    %v6327 = vadd.f32 %v6286, %v6326
    %6328 = vmatmul.f32.gmra.mxu0 %v6301
    %v6329 = vpop.f32.mrf.mxu0
    %v6330 = vadd.f32 %v6289, %v6329
    %6331 = vmatmul.f32.gmra.mxu0 %v6304
    %v6332 = vpop.f32.mrf.mxu0
    %v6333 = vadd.f32 %v6292, %v6332
    %6334 = vmatmul.f32.gmra.mxu0 %v6307
    %v6335 = vpop.f32.mrf.mxu0
    %v6336 = vadd.f32 %v6295, %v6335
    %6337 = vdwg.mxu0
    %6338 = vrot.lane.b32.xlu0 %v5763, 96
    %v6339 = vpop.permute.xlu0 %6338
    %6340 = vrot.lane.b32.xlu0 %v5764, 96
    %v6341 = vpop.permute.xlu0 %6340
    %6342 = vrot.lane.b32.xlu0 %v5723, 96
    %v6343 = vpop.permute.xlu0 %6342
    %6344 = vrot.lane.b32.xlu0 %v5726, 96
    %v6345 = vpop.permute.xlu0 %6344
    %v6346 = vsel %vm274, %v6339, 0
    %v6348 = vsel %vm274, %v6341, 0
    %v6350 = vsel %vm274, %v6343, 0
    %v6352 = vsel %vm274, %v6345, 0
    %6354 = vmatpush.xpose.msra.mxu0 0.0
    %6355 = vmatpush.xpose.msra.mxu0 0.0
    %6356 = vmatpush.xpose.msra.mxu0 0.0
    %6357 = vmatpush.xpose.msra.mxu0 0.0
    %6358 = vmatpush.xpose.msra.mxu0 0.0
    %6359 = vmatpush.xpose.msra.mxu0 0.0
    %6360 = vmatpush.xpose.msra.mxu0 0.0
    %6361 = vmatpush.xpose.msra.mxu0 0.0
    %6362 = vmatpush.xpose.msra.mxu0 0.0
    %6363 = vmatpush.xpose.msra.mxu0 0.0
    %6364 = vmatpush.xpose.msra.mxu0 0.0
    %6365 = vmatpush.xpose.msra.mxu0 0.0
    %6366 = vmatpush.xpose.msra.mxu0 0.0
    %6367 = vmatpush.xpose.msra.mxu0 0.0
    %6368 = vmatpush.xpose.msra.mxu0 %v6352
    %6369 = vmatpush.xpose.msra.mxu0 %v6350
    %6370 = vmatmul.f32.gmra.mxu0 %v6346
    %v6371 = vpop.f32.mrf.mxu0
    %v6372 = vadd.f32 0.0, %v6371
    %6373 = vmatmul.f32.gmra.mxu0 %v6348
    %v6374 = vpop.f32.mrf.mxu0
    %v6375 = vadd.f32 0.0, %v6374
    %6376 = vdwg.mxu0
    %6377 = vrot.lane.b32.xlu0 %v5765, 96
    %v6378 = vpop.permute.xlu0 %6377
    %6379 = vrot.lane.b32.xlu0 %v5766, 96
    %v6380 = vpop.permute.xlu0 %6379
    %6381 = vrot.lane.b32.xlu0 %v5729, 96
    %v6382 = vpop.permute.xlu0 %6381
    %6383 = vrot.lane.b32.xlu0 %v5732, 96
    %v6384 = vpop.permute.xlu0 %6383
    %v6385 = vsel %vm274, %v6378, 0
    %v6387 = vsel %vm274, %v6380, 0
    %v6389 = vsel %vm274, %v6382, 0
    %v6391 = vsel %vm274, %v6384, 0
    %6393 = vmatpush.xpose.msra.mxu0 0.0
    %6394 = vmatpush.xpose.msra.mxu0 0.0
    %6395 = vmatpush.xpose.msra.mxu0 0.0
    %6396 = vmatpush.xpose.msra.mxu0 0.0
    %6397 = vmatpush.xpose.msra.mxu0 0.0
    %6398 = vmatpush.xpose.msra.mxu0 0.0
    %6399 = vmatpush.xpose.msra.mxu0 0.0
    %6400 = vmatpush.xpose.msra.mxu0 0.0
    %6401 = vmatpush.xpose.msra.mxu0 0.0
    %6402 = vmatpush.xpose.msra.mxu0 0.0
    %6403 = vmatpush.xpose.msra.mxu0 0.0
    %6404 = vmatpush.xpose.msra.mxu0 0.0
    %6405 = vmatpush.xpose.msra.mxu0 0.0
    %6406 = vmatpush.xpose.msra.mxu0 0.0
    %6407 = vmatpush.xpose.msra.mxu0 %v6391
    %6408 = vmatpush.xpose.msra.mxu0 %v6389
    %6409 = vmatmul.f32.gmra.mxu0 %v6385
    %v6410 = vpop.f32.mrf.mxu0
    %v6411 = vadd.f32 0.0, %v6410
    %6412 = vmatmul.f32.gmra.mxu0 %v6387
    %v6413 = vpop.f32.mrf.mxu0
    %v6414 = vadd.f32 0.0, %v6413
    %6415 = vdwg.mxu0
    %v6416 = vsel %vm274, %v6372, -inf
    %6417 = vmax.xlane.f32.xlu0 %v6416
    %v6418 = vpop.xlane.xlu0 %6417
    %v6419 = vsel %vm274, %v6375, -inf
    %6420 = vmax.xlane.f32.xlu0 %v6419
    %v6421 = vpop.xlane.xlu0 %6420
    %v6422 = vsel %vm274, %v6411, -inf
    %6423 = vmax.xlane.f32.xlu0 %v6422
    %v6424 = vpop.xlane.xlu0 %6423
    %v6425 = vsel %vm274, %v6414, -inf
    %6426 = vmax.xlane.f32.xlu0 %v6425
    %v6427 = vpop.xlane.xlu0 %6426
    %v6428 = vsub.f32 %v6372, %v6418
    %v6429 = vsub.f32 %v6375, %v6421
    %v6430 = vsub.f32 %v6411, %v6424
    %v6431 = vsub.f32 %v6414, %v6427
    %v6432 = vmul.f32 %v6428, 1.442695
    %v6433 = vpow.pop %v6432
    %v6434 = vmul.f32 %v6429, 1.442695
    %v6435 = vpow.pop %v6434
    %v6436 = vmul.f32 %v6430, 1.442695
    %v6437 = vpow.pop %v6436
    %v6438 = vmul.f32 %v6431, 1.442695
    %v6439 = vpow.pop %v6438
    %v6440 = vsel %vm274, %v6433, 0.0
    %6441 = vadd.xlane.f32.xlu0 %v6440
    %v6442 = vpop.xlane.xlu0 %6441
    %v6443 = vsel %vm274, %v6435, 0.0
    %6444 = vadd.xlane.f32.xlu0 %v6443
    %v6445 = vpop.xlane.xlu0 %6444
    %v6446 = vsel %vm274, %v6437, 0.0
    %6447 = vadd.xlane.f32.xlu0 %v6446
    %v6448 = vpop.xlane.xlu0 %6447
    %v6449 = vsel %vm274, %v6439, 0.0
    %6450 = vadd.xlane.f32.xlu0 %v6449
    %v6451 = vpop.xlane.xlu0 %6450
    %v6452 = vrcp.pop %v6442
    %v6453 = vmul.f32 %v6442, %v6452
    %v6454 = vsub.f32 1.0, %v6453
    %v6455 = vmul.f32 %v6452, %v6454
    %v6456 = vadd.f32 %v6452, %v6455
    %vm6457 = vweird.f32 %v6442
    %vm6458 = vweird.f32 %v6452
    %vm6459 = vmor %vm6457, %vm6458
    %v6460 = vsel %vm6459, %v6452, %v6456
    %v6461 = vand.u32 2147483647, %v6442
    %vm6462 = vcmp.eq.f32.partialorder %v6461, 8.507059e+37
    %v6463 = vand.u32 %v6442, 2147483648
    %v6464 = vor.u32 1.1754944e-38, %v6463
    %v6465 = vsel %vm6462, %v6464, %v6460
    %v6466 = vmul.f32 %v6433, %v6465
    %v6467 = vrcp.pop %v6445
    %v6468 = vmul.f32 %v6445, %v6467
    %v6469 = vsub.f32 1.0, %v6468
    %v6470 = vmul.f32 %v6467, %v6469
    %v6471 = vadd.f32 %v6467, %v6470
    %vm6472 = vweird.f32 %v6445
    %vm6473 = vweird.f32 %v6467
    %vm6474 = vmor %vm6472, %vm6473
    %v6475 = vsel %vm6474, %v6467, %v6471
    %v6476 = vand.u32 2147483647, %v6445
    %vm6477 = vcmp.eq.f32.partialorder %v6476, 8.507059e+37
    %v6478 = vand.u32 %v6445, 2147483648
    %v6479 = vor.u32 1.1754944e-38, %v6478
    %v6480 = vsel %vm6477, %v6479, %v6475
    %v6481 = vmul.f32 %v6435, %v6480
    %v6482 = vrcp.pop %v6448
    %v6483 = vmul.f32 %v6448, %v6482
    %v6484 = vsub.f32 1.0, %v6483
    %v6485 = vmul.f32 %v6482, %v6484
    %v6486 = vadd.f32 %v6482, %v6485
    %vm6487 = vweird.f32 %v6448
    %vm6488 = vweird.f32 %v6482
    %vm6489 = vmor %vm6487, %vm6488
    %v6490 = vsel %vm6489, %v6482, %v6486
    %v6491 = vand.u32 2147483647, %v6448
    %vm6492 = vcmp.eq.f32.partialorder %v6491, 8.507059e+37
    %v6493 = vand.u32 %v6448, 2147483648
    %v6494 = vor.u32 1.1754944e-38, %v6493
    %v6495 = vsel %vm6492, %v6494, %v6490
    %v6496 = vmul.f32 %v6437, %v6495
    %v6497 = vrcp.pop %v6451
    %v6498 = vmul.f32 %v6451, %v6497
    %v6499 = vsub.f32 1.0, %v6498
    %v6500 = vmul.f32 %v6497, %v6499
    %v6501 = vadd.f32 %v6497, %v6500
    %vm6502 = vweird.f32 %v6451
    %vm6503 = vweird.f32 %v6497
    %vm6504 = vmor %vm6502, %vm6503
    %v6505 = vsel %vm6504, %v6497, %v6501
    %v6506 = vand.u32 2147483647, %v6451
    %vm6507 = vcmp.eq.f32.partialorder %v6506, 8.507059e+37
    %v6508 = vand.u32 %v6451, 2147483648
    %v6509 = vor.u32 1.1754944e-38, %v6508
    %v6510 = vsel %vm6507, %v6509, %v6505
    %v6511 = vmul.f32 %v6439, %v6510
    %6512 = vrot.lane.b32.xlu0 %v5752, 96
    %v6513 = vpop.permute.xlu0 %6512
    %6514 = vrot.lane.b32.xlu0 %v5755, 96
    %v6515 = vpop.permute.xlu0 %6514
    %v6519 = vsel %vm274, %v6466, 0
    %v6522 = vsel %vm274, %v6481, 0
    %6524 = vmatpush.msra.mxu0 0.0
    %6525 = vmatpush.msra.mxu0 0.0
    %6526 = vmatpush.msra.mxu0 0.0
    %6527 = vmatpush.msra.mxu0 0.0
    %6528 = vmatpush.msra.mxu0 0.0
    %6529 = vmatpush.msra.mxu0 0.0
    %6530 = vmatpush.msra.mxu0 0.0
    %6531 = vmatpush.msra.mxu0 0.0
    %6532 = vmatpush.msra.mxu0 0.0
    %6533 = vmatpush.msra.mxu0 0.0
    %6534 = vmatpush.msra.mxu0 0.0
    %6535 = vmatpush.msra.mxu0 0.0
    %6536 = vmatpush.msra.mxu0 0.0
    %6537 = vmatpush.msra.mxu0 0.0
    %6538 = vmatpush.msra.mxu0 %v6515
    %6539 = vmatpush.msra.mxu0 %v6513
    %6540 = vmatmul.f32.gmra.mxu0 %v6519
    %v6541 = vpop.f32.mrf.mxu0
    %v6542 = vadd.f32 0.0, %v6541
    %6543 = vmatmul.f32.gmra.mxu0 %v6522
    %v6544 = vpop.f32.mrf.mxu0
    %v6545 = vadd.f32 0.0, %v6544
    %6546 = vdwg.mxu0
    %6547 = vrot.lane.b32.xlu0 %v5758, 96
    %v6548 = vpop.permute.xlu0 %6547
    %6549 = vrot.lane.b32.xlu0 %v5761, 96
    %v6550 = vpop.permute.xlu0 %6549
    %v6554 = vsel %vm274, %v6496, 0
    %v6557 = vsel %vm274, %v6511, 0
    %6559 = vmatpush.msra.mxu0 0.0
    %6560 = vmatpush.msra.mxu0 0.0
    %6561 = vmatpush.msra.mxu0 0.0
    %6562 = vmatpush.msra.mxu0 0.0
    %6563 = vmatpush.msra.mxu0 0.0
    %6564 = vmatpush.msra.mxu0 0.0
    %6565 = vmatpush.msra.mxu0 0.0
    %6566 = vmatpush.msra.mxu0 0.0
    %6567 = vmatpush.msra.mxu0 0.0
    %6568 = vmatpush.msra.mxu0 0.0
    %6569 = vmatpush.msra.mxu0 0.0
    %6570 = vmatpush.msra.mxu0 0.0
    %6571 = vmatpush.msra.mxu0 0.0
    %6572 = vmatpush.msra.mxu0 0.0
    %6573 = vmatpush.msra.mxu0 %v6550
    %6574 = vmatpush.msra.mxu0 %v6548
    %6575 = vmatmul.f32.gmra.mxu0 %v6554
    %v6576 = vpop.f32.mrf.mxu0
    %v6577 = vadd.f32 0.0, %v6576
    %6578 = vmatmul.f32.gmra.mxu0 %v6557
    %v6579 = vpop.f32.mrf.mxu0
    %v6580 = vadd.f32 0.0, %v6579
    %6581 = vdwg.mxu0
    %v6583 = vsel %vm274, %v6542, 0
    %v6586 = vsel %vm274, %v6545, 0
    %v6589 = vsel %vm274, %v6577, 0
    %v6592 = vsel %vm274, %v6580, 0
    %6594 = vmatpush.msra.mxu0 0.0
    %6595 = vmatpush.msra.mxu0 0.0
    %6596 = vmatpush.msra.mxu0 0.0
    %6597 = vmatpush.msra.mxu0 0.0
    %6598 = vmatpush.msra.mxu0 0.0
    %6599 = vmatpush.msra.mxu0 0.0
    %6600 = vmatpush.msra.mxu0 0.0
    %6601 = vmatpush.msra.mxu0 0.0
    %6602 = vmatpush.msra.mxu0 0.0
    %6603 = vmatpush.msra.mxu0 0.0
    %6604 = vmatpush.msra.mxu0 0.0
    %6605 = vmatpush.msra.mxu0 0.0
    %6606 = vmatpush.msra.mxu0 0.0
    %6607 = vmatpush.msra.mxu0 0.0
    %6608 = vmatpush.msra.mxu0 %v5773
    %6609 = vmatpush.msra.mxu0 %v5772
    %6610 = vmatmul.f32.gmra.mxu0 %v6583
    %v6611 = vpop.f32.mrf.mxu0
    %v6612 = vadd.f32 0.0, %v6611
    %6613 = vmatmul.f32.gmra.mxu0 %v6586
    %v6614 = vpop.f32.mrf.mxu0
    %v6615 = vadd.f32 0.0, %v6614
    %6616 = vmatmul.f32.gmra.mxu0 %v6589
    %v6617 = vpop.f32.mrf.mxu0
    %v6618 = vadd.f32 0.0, %v6617
    %6619 = vmatmul.f32.gmra.mxu0 %v6592
    %v6620 = vpop.f32.mrf.mxu0
    %v6621 = vadd.f32 0.0, %v6620
    %6622 = vdwg.mxu0
    %v6623 = vadd.f32 %v6327, %v6612
    %v6624 = vadd.f32 %v6330, %v6615
    %v6625 = vadd.f32 %v6333, %v6618
    %v6626 = vadd.f32 %v6336, %v6621
    %6627 = vrot.lane.b32.xlu0 %v5763, 80
    %v6628 = vpop.permute.xlu0 %6627
    %6629 = vrot.lane.b32.xlu0 %v5764, 80
    %v6630 = vpop.permute.xlu0 %6629
    %6631 = vrot.lane.b32.xlu0 %v5723, 80
    %v6632 = vpop.permute.xlu0 %6631
    %6633 = vrot.lane.b32.xlu0 %v5726, 80
    %v6634 = vpop.permute.xlu0 %6633
    %v6635 = vsel %vm274, %v6628, 0
    %v6637 = vsel %vm274, %v6630, 0
    %v6639 = vsel %vm274, %v6632, 0
    %v6641 = vsel %vm274, %v6634, 0
    %6643 = vmatpush.xpose.msra.mxu0 0.0
    %6644 = vmatpush.xpose.msra.mxu0 0.0
    %6645 = vmatpush.xpose.msra.mxu0 0.0
    %6646 = vmatpush.xpose.msra.mxu0 0.0
    %6647 = vmatpush.xpose.msra.mxu0 0.0
    %6648 = vmatpush.xpose.msra.mxu0 0.0
    %6649 = vmatpush.xpose.msra.mxu0 0.0
    %6650 = vmatpush.xpose.msra.mxu0 0.0
    %6651 = vmatpush.xpose.msra.mxu0 0.0
    %6652 = vmatpush.xpose.msra.mxu0 0.0
    %6653 = vmatpush.xpose.msra.mxu0 0.0
    %6654 = vmatpush.xpose.msra.mxu0 0.0
    %6655 = vmatpush.xpose.msra.mxu0 0.0
    %6656 = vmatpush.xpose.msra.mxu0 0.0
    %6657 = vmatpush.xpose.msra.mxu0 %v6641
    %6658 = vmatpush.xpose.msra.mxu0 %v6639
    %6659 = vmatmul.f32.gmra.mxu0 %v6635
    %v6660 = vpop.f32.mrf.mxu0
    %v6661 = vadd.f32 0.0, %v6660
    %6662 = vmatmul.f32.gmra.mxu0 %v6637
    %v6663 = vpop.f32.mrf.mxu0
    %v6664 = vadd.f32 0.0, %v6663
    %6665 = vdwg.mxu0
    %6666 = vrot.lane.b32.xlu0 %v5765, 80
    %v6667 = vpop.permute.xlu0 %6666
    %6668 = vrot.lane.b32.xlu0 %v5766, 80
    %v6669 = vpop.permute.xlu0 %6668
    %6670 = vrot.lane.b32.xlu0 %v5729, 80
    %v6671 = vpop.permute.xlu0 %6670
    %6672 = vrot.lane.b32.xlu0 %v5732, 80
    %v6673 = vpop.permute.xlu0 %6672
    %v6674 = vsel %vm274, %v6667, 0
    %v6676 = vsel %vm274, %v6669, 0
    %v6678 = vsel %vm274, %v6671, 0
    %v6680 = vsel %vm274, %v6673, 0
    %6682 = vmatpush.xpose.msra.mxu0 0.0
    %6683 = vmatpush.xpose.msra.mxu0 0.0
    %6684 = vmatpush.xpose.msra.mxu0 0.0
    %6685 = vmatpush.xpose.msra.mxu0 0.0
    %6686 = vmatpush.xpose.msra.mxu0 0.0
    %6687 = vmatpush.xpose.msra.mxu0 0.0
    %6688 = vmatpush.xpose.msra.mxu0 0.0
    %6689 = vmatpush.xpose.msra.mxu0 0.0
    %6690 = vmatpush.xpose.msra.mxu0 0.0
    %6691 = vmatpush.xpose.msra.mxu0 0.0
    %6692 = vmatpush.xpose.msra.mxu0 0.0
    %6693 = vmatpush.xpose.msra.mxu0 0.0
    %6694 = vmatpush.xpose.msra.mxu0 0.0
    %6695 = vmatpush.xpose.msra.mxu0 0.0
    %6696 = vmatpush.xpose.msra.mxu0 %v6680
    %6697 = vmatpush.xpose.msra.mxu0 %v6678
    %6698 = vmatmul.f32.gmra.mxu0 %v6674
    %v6699 = vpop.f32.mrf.mxu0
    %v6700 = vadd.f32 0.0, %v6699
    %6701 = vmatmul.f32.gmra.mxu0 %v6676
    %v6702 = vpop.f32.mrf.mxu0
    %v6703 = vadd.f32 0.0, %v6702
    %6704 = vdwg.mxu0
    %v6705 = vsel %vm274, %v6661, -inf
    %6706 = vmax.xlane.f32.xlu0 %v6705
    %v6707 = vpop.xlane.xlu0 %6706
    %v6708 = vsel %vm274, %v6664, -inf
    %6709 = vmax.xlane.f32.xlu0 %v6708
    %v6710 = vpop.xlane.xlu0 %6709
    %v6711 = vsel %vm274, %v6700, -inf
    %6712 = vmax.xlane.f32.xlu0 %v6711
    %v6713 = vpop.xlane.xlu0 %6712
    %v6714 = vsel %vm274, %v6703, -inf
    %6715 = vmax.xlane.f32.xlu0 %v6714
    %v6716 = vpop.xlane.xlu0 %6715
    %v6717 = vsub.f32 %v6661, %v6707
    %v6718 = vsub.f32 %v6664, %v6710
    %v6719 = vsub.f32 %v6700, %v6713
    %v6720 = vsub.f32 %v6703, %v6716
    %v6721 = vmul.f32 %v6717, 1.442695
    %v6722 = vpow.pop %v6721
    %v6723 = vmul.f32 %v6718, 1.442695
    %v6724 = vpow.pop %v6723
    %v6725 = vmul.f32 %v6719, 1.442695
    %v6726 = vpow.pop %v6725
    %v6727 = vmul.f32 %v6720, 1.442695
    %v6728 = vpow.pop %v6727
    %v6729 = vsel %vm274, %v6722, 0.0
    %6730 = vadd.xlane.f32.xlu0 %v6729
    %v6731 = vpop.xlane.xlu0 %6730
    %v6732 = vsel %vm274, %v6724, 0.0
    %6733 = vadd.xlane.f32.xlu0 %v6732
    %v6734 = vpop.xlane.xlu0 %6733
    %v6735 = vsel %vm274, %v6726, 0.0
    %6736 = vadd.xlane.f32.xlu0 %v6735
    %v6737 = vpop.xlane.xlu0 %6736
    %v6738 = vsel %vm274, %v6728, 0.0
    %6739 = vadd.xlane.f32.xlu0 %v6738
    %v6740 = vpop.xlane.xlu0 %6739
    %v6741 = vrcp.pop %v6731
    %v6742 = vmul.f32 %v6731, %v6741
    %v6743 = vsub.f32 1.0, %v6742
    %v6744 = vmul.f32 %v6741, %v6743
    %v6745 = vadd.f32 %v6741, %v6744
    %vm6746 = vweird.f32 %v6731
    %vm6747 = vweird.f32 %v6741
    %vm6748 = vmor %vm6746, %vm6747
    %v6749 = vsel %vm6748, %v6741, %v6745
    %v6750 = vand.u32 2147483647, %v6731
    %vm6751 = vcmp.eq.f32.partialorder %v6750, 8.507059e+37
    %v6752 = vand.u32 %v6731, 2147483648
    %v6753 = vor.u32 1.1754944e-38, %v6752
    %v6754 = vsel %vm6751, %v6753, %v6749
    %v6755 = vmul.f32 %v6722, %v6754
    %v6756 = vrcp.pop %v6734
    %v6757 = vmul.f32 %v6734, %v6756
    %v6758 = vsub.f32 1.0, %v6757
    %v6759 = vmul.f32 %v6756, %v6758
    %v6760 = vadd.f32 %v6756, %v6759
    %vm6761 = vweird.f32 %v6734
    %vm6762 = vweird.f32 %v6756
    %vm6763 = vmor %vm6761, %vm6762
    %v6764 = vsel %vm6763, %v6756, %v6760
    %v6765 = vand.u32 2147483647, %v6734
    %vm6766 = vcmp.eq.f32.partialorder %v6765, 8.507059e+37
    %v6767 = vand.u32 %v6734, 2147483648
    %v6768 = vor.u32 1.1754944e-38, %v6767
    %v6769 = vsel %vm6766, %v6768, %v6764
    %v6770 = vmul.f32 %v6724, %v6769
    %v6771 = vrcp.pop %v6737
    %v6772 = vmul.f32 %v6737, %v6771
    %v6773 = vsub.f32 1.0, %v6772
    %v6774 = vmul.f32 %v6771, %v6773
    %v6775 = vadd.f32 %v6771, %v6774
    %vm6776 = vweird.f32 %v6737
    %vm6777 = vweird.f32 %v6771
    %vm6778 = vmor %vm6776, %vm6777
    %v6779 = vsel %vm6778, %v6771, %v6775
    %v6780 = vand.u32 2147483647, %v6737
    %vm6781 = vcmp.eq.f32.partialorder %v6780, 8.507059e+37
    %v6782 = vand.u32 %v6737, 2147483648
    %v6783 = vor.u32 1.1754944e-38, %v6782
    %v6784 = vsel %vm6781, %v6783, %v6779
    %v6785 = vmul.f32 %v6726, %v6784
    %v6786 = vrcp.pop %v6740
    %v6787 = vmul.f32 %v6740, %v6786
    %v6788 = vsub.f32 1.0, %v6787
    %v6789 = vmul.f32 %v6786, %v6788
    %v6790 = vadd.f32 %v6786, %v6789
    %vm6791 = vweird.f32 %v6740
    %vm6792 = vweird.f32 %v6786
    %vm6793 = vmor %vm6791, %vm6792
    %v6794 = vsel %vm6793, %v6786, %v6790
    %v6795 = vand.u32 2147483647, %v6740
    %vm6796 = vcmp.eq.f32.partialorder %v6795, 8.507059e+37
    %v6797 = vand.u32 %v6740, 2147483648
    %v6798 = vor.u32 1.1754944e-38, %v6797
    %v6799 = vsel %vm6796, %v6798, %v6794
    %v6800 = vmul.f32 %v6728, %v6799
    %6801 = vrot.lane.b32.xlu0 %v5752, 80
    %v6802 = vpop.permute.xlu0 %6801
    %6803 = vrot.lane.b32.xlu0 %v5755, 80
    %v6804 = vpop.permute.xlu0 %6803
    %v6808 = vsel %vm274, %v6755, 0
    %v6811 = vsel %vm274, %v6770, 0
    %6813 = vmatpush.msra.mxu0 0.0
    %6814 = vmatpush.msra.mxu0 0.0
    %6815 = vmatpush.msra.mxu0 0.0
    %6816 = vmatpush.msra.mxu0 0.0
    %6817 = vmatpush.msra.mxu0 0.0
    %6818 = vmatpush.msra.mxu0 0.0
    %6819 = vmatpush.msra.mxu0 0.0
    %6820 = vmatpush.msra.mxu0 0.0
    %6821 = vmatpush.msra.mxu0 0.0
    %6822 = vmatpush.msra.mxu0 0.0
    %6823 = vmatpush.msra.mxu0 0.0
    %6824 = vmatpush.msra.mxu0 0.0
    %6825 = vmatpush.msra.mxu0 0.0
    %6826 = vmatpush.msra.mxu0 0.0
    %6827 = vmatpush.msra.mxu0 %v6804
    %6828 = vmatpush.msra.mxu0 %v6802
    %6829 = vmatmul.f32.gmra.mxu0 %v6808
    %v6830 = vpop.f32.mrf.mxu0
    %v6831 = vadd.f32 0.0, %v6830
    %6832 = vmatmul.f32.gmra.mxu0 %v6811
    %v6833 = vpop.f32.mrf.mxu0
    %v6834 = vadd.f32 0.0, %v6833
    %6835 = vdwg.mxu0
    %6836 = vrot.lane.b32.xlu0 %v5758, 80
    %v6837 = vpop.permute.xlu0 %6836
    %6838 = vrot.lane.b32.xlu0 %v5761, 80
    %v6839 = vpop.permute.xlu0 %6838
    %v6843 = vsel %vm274, %v6785, 0
    %v6846 = vsel %vm274, %v6800, 0
    %6848 = vmatpush.msra.mxu0 0.0
    %6849 = vmatpush.msra.mxu0 0.0
    %6850 = vmatpush.msra.mxu0 0.0
    %6851 = vmatpush.msra.mxu0 0.0
    %6852 = vmatpush.msra.mxu0 0.0
    %6853 = vmatpush.msra.mxu0 0.0
    %6854 = vmatpush.msra.mxu0 0.0
    %6855 = vmatpush.msra.mxu0 0.0
    %6856 = vmatpush.msra.mxu0 0.0
    %6857 = vmatpush.msra.mxu0 0.0
    %6858 = vmatpush.msra.mxu0 0.0
    %6859 = vmatpush.msra.mxu0 0.0
    %6860 = vmatpush.msra.mxu0 0.0
    %6861 = vmatpush.msra.mxu0 0.0
    %6862 = vmatpush.msra.mxu0 %v6839
    %6863 = vmatpush.msra.mxu0 %v6837
    %6864 = vmatmul.f32.gmra.mxu0 %v6843
    %v6865 = vpop.f32.mrf.mxu0
    %v6866 = vadd.f32 0.0, %v6865
    %6867 = vmatmul.f32.gmra.mxu0 %v6846
    %v6868 = vpop.f32.mrf.mxu0
    %v6869 = vadd.f32 0.0, %v6868
    %6870 = vdwg.mxu0
    %v6872 = vsel %vm274, %v6831, 0
    %v6875 = vsel %vm274, %v6834, 0
    %v6878 = vsel %vm274, %v6866, 0
    %v6881 = vsel %vm274, %v6869, 0
    %6883 = vmatpush.msra.mxu0 0.0
    %6884 = vmatpush.msra.mxu0 0.0
    %6885 = vmatpush.msra.mxu0 0.0
    %6886 = vmatpush.msra.mxu0 0.0
    %6887 = vmatpush.msra.mxu0 0.0
    %6888 = vmatpush.msra.mxu0 0.0
    %6889 = vmatpush.msra.mxu0 0.0
    %6890 = vmatpush.msra.mxu0 0.0
    %6891 = vmatpush.msra.mxu0 0.0
    %6892 = vmatpush.msra.mxu0 0.0
    %6893 = vmatpush.msra.mxu0 0.0
    %6894 = vmatpush.msra.mxu0 0.0
    %6895 = vmatpush.msra.mxu0 0.0
    %6896 = vmatpush.msra.mxu0 0.0
    %6897 = vmatpush.msra.mxu0 %v5775
    %6898 = vmatpush.msra.mxu0 %v5774
    %6899 = vmatmul.f32.gmra.mxu0 %v6872
    %v6900 = vpop.f32.mrf.mxu0
    %v6901 = vadd.f32 0.0, %v6900
    %6902 = vmatmul.f32.gmra.mxu0 %v6875
    %v6903 = vpop.f32.mrf.mxu0
    %v6904 = vadd.f32 0.0, %v6903
    %6905 = vmatmul.f32.gmra.mxu0 %v6878
    %v6906 = vpop.f32.mrf.mxu0
    %v6907 = vadd.f32 0.0, %v6906
    %6908 = vmatmul.f32.gmra.mxu0 %v6881
    %v6909 = vpop.f32.mrf.mxu0
    %v6910 = vadd.f32 0.0, %v6909
    %6911 = vdwg.mxu0
    %v6912 = vadd.f32 %v6623, %v6901
    %v6913 = vadd.f32 %v6624, %v6904
    %v6914 = vadd.f32 %v6625, %v6907
    %v6915 = vadd.f32 %v6626, %v6910
    %6916 = vrot.lane.b32.xlu0 %v5763, 64
    %v6917 = vpop.permute.xlu0 %6916
    %6918 = vrot.lane.b32.xlu0 %v5764, 64
    %v6919 = vpop.permute.xlu0 %6918
    %6920 = vrot.lane.b32.xlu0 %v5723, 64
    %v6921 = vpop.permute.xlu0 %6920
    %6922 = vrot.lane.b32.xlu0 %v5726, 64
    %v6923 = vpop.permute.xlu0 %6922
    %v6924 = vsel %vm274, %v6917, 0
    %v6926 = vsel %vm274, %v6919, 0
    %v6928 = vsel %vm274, %v6921, 0
    %v6930 = vsel %vm274, %v6923, 0
    %6932 = vmatpush.xpose.msra.mxu0 0.0
    %6933 = vmatpush.xpose.msra.mxu0 0.0
    %6934 = vmatpush.xpose.msra.mxu0 0.0
    %6935 = vmatpush.xpose.msra.mxu0 0.0
    %6936 = vmatpush.xpose.msra.mxu0 0.0
    %6937 = vmatpush.xpose.msra.mxu0 0.0
    %6938 = vmatpush.xpose.msra.mxu0 0.0
    %6939 = vmatpush.xpose.msra.mxu0 0.0
    %6940 = vmatpush.xpose.msra.mxu0 0.0
    %6941 = vmatpush.xpose.msra.mxu0 0.0
    %6942 = vmatpush.xpose.msra.mxu0 0.0
    %6943 = vmatpush.xpose.msra.mxu0 0.0
    %6944 = vmatpush.xpose.msra.mxu0 0.0
    %6945 = vmatpush.xpose.msra.mxu0 0.0
    %6946 = vmatpush.xpose.msra.mxu0 %v6930
    %6947 = vmatpush.xpose.msra.mxu0 %v6928
    %6948 = vmatmul.f32.gmra.mxu0 %v6924
    %v6949 = vpop.f32.mrf.mxu0
    %v6950 = vadd.f32 0.0, %v6949
    %6951 = vmatmul.f32.gmra.mxu0 %v6926
    %v6952 = vpop.f32.mrf.mxu0
    %v6953 = vadd.f32 0.0, %v6952
    %6954 = vdwg.mxu0
    %6955 = vrot.lane.b32.xlu0 %v5765, 64
    %v6956 = vpop.permute.xlu0 %6955
    %6957 = vrot.lane.b32.xlu0 %v5766, 64
    %v6958 = vpop.permute.xlu0 %6957
    %6959 = vrot.lane.b32.xlu0 %v5729, 64
    %v6960 = vpop.permute.xlu0 %6959
    %6961 = vrot.lane.b32.xlu0 %v5732, 64
    %v6962 = vpop.permute.xlu0 %6961
    %v6963 = vsel %vm274, %v6956, 0
    %v6965 = vsel %vm274, %v6958, 0
    %v6967 = vsel %vm274, %v6960, 0
    %v6969 = vsel %vm274, %v6962, 0
    %6971 = vmatpush.xpose.msra.mxu0 0.0
    %6972 = vmatpush.xpose.msra.mxu0 0.0
    %6973 = vmatpush.xpose.msra.mxu0 0.0
    %6974 = vmatpush.xpose.msra.mxu0 0.0
    %6975 = vmatpush.xpose.msra.mxu0 0.0
    %6976 = vmatpush.xpose.msra.mxu0 0.0
    %6977 = vmatpush.xpose.msra.mxu0 0.0
    %6978 = vmatpush.xpose.msra.mxu0 0.0
    %6979 = vmatpush.xpose.msra.mxu0 0.0
    %6980 = vmatpush.xpose.msra.mxu0 0.0
    %6981 = vmatpush.xpose.msra.mxu0 0.0
    %6982 = vmatpush.xpose.msra.mxu0 0.0
    %6983 = vmatpush.xpose.msra.mxu0 0.0
    %6984 = vmatpush.xpose.msra.mxu0 0.0
    %6985 = vmatpush.xpose.msra.mxu0 %v6969
    %6986 = vmatpush.xpose.msra.mxu0 %v6967
    %6987 = vmatmul.f32.gmra.mxu0 %v6963
    %v6988 = vpop.f32.mrf.mxu0
    %v6989 = vadd.f32 0.0, %v6988
    %6990 = vmatmul.f32.gmra.mxu0 %v6965
    %v6991 = vpop.f32.mrf.mxu0
    %v6992 = vadd.f32 0.0, %v6991
    %6993 = vdwg.mxu0
    %v6994 = vsel %vm274, %v6950, -inf
    %6995 = vmax.xlane.f32.xlu0 %v6994
    %v6996 = vpop.xlane.xlu0 %6995
    %v6997 = vsel %vm274, %v6953, -inf
    %6998 = vmax.xlane.f32.xlu0 %v6997
    %v6999 = vpop.xlane.xlu0 %6998
    %v7000 = vsel %vm274, %v6989, -inf
    %7001 = vmax.xlane.f32.xlu0 %v7000
    %v7002 = vpop.xlane.xlu0 %7001
    %v7003 = vsel %vm274, %v6992, -inf
    %7004 = vmax.xlane.f32.xlu0 %v7003
    %v7005 = vpop.xlane.xlu0 %7004
    %v7006 = vsub.f32 %v6950, %v6996
    %v7007 = vsub.f32 %v6953, %v6999
    %v7008 = vsub.f32 %v6989, %v7002
    %v7009 = vsub.f32 %v6992, %v7005
    %v7010 = vmul.f32 %v7006, 1.442695
    %v7011 = vpow.pop %v7010
    %v7012 = vmul.f32 %v7007, 1.442695
    %v7013 = vpow.pop %v7012
    %v7014 = vmul.f32 %v7008, 1.442695
    %v7015 = vpow.pop %v7014
    %v7016 = vmul.f32 %v7009, 1.442695
    %v7017 = vpow.pop %v7016
    %v7018 = vsel %vm274, %v7011, 0.0
    %7019 = vadd.xlane.f32.xlu0 %v7018
    %v7020 = vpop.xlane.xlu0 %7019
    %v7021 = vsel %vm274, %v7013, 0.0
    %7022 = vadd.xlane.f32.xlu0 %v7021
    %v7023 = vpop.xlane.xlu0 %7022
    %v7024 = vsel %vm274, %v7015, 0.0
    %7025 = vadd.xlane.f32.xlu0 %v7024
    %v7026 = vpop.xlane.xlu0 %7025
    %v7027 = vsel %vm274, %v7017, 0.0
    %7028 = vadd.xlane.f32.xlu0 %v7027
    %v7029 = vpop.xlane.xlu0 %7028
    %v7030 = vrcp.pop %v7020
    %v7031 = vmul.f32 %v7020, %v7030
    %v7032 = vsub.f32 1.0, %v7031
    %v7033 = vmul.f32 %v7030, %v7032
    %v7034 = vadd.f32 %v7030, %v7033
    %vm7035 = vweird.f32 %v7020
    %vm7036 = vweird.f32 %v7030
    %vm7037 = vmor %vm7035, %vm7036
    %v7038 = vsel %vm7037, %v7030, %v7034
    %v7039 = vand.u32 2147483647, %v7020
    %vm7040 = vcmp.eq.f32.partialorder %v7039, 8.507059e+37
    %v7041 = vand.u32 %v7020, 2147483648
    %v7042 = vor.u32 1.1754944e-38, %v7041
    %v7043 = vsel %vm7040, %v7042, %v7038
    %v7044 = vmul.f32 %v7011, %v7043
    %v7045 = vrcp.pop %v7023
    %v7046 = vmul.f32 %v7023, %v7045
    %v7047 = vsub.f32 1.0, %v7046
    %v7048 = vmul.f32 %v7045, %v7047
    %v7049 = vadd.f32 %v7045, %v7048
    %vm7050 = vweird.f32 %v7023
    %vm7051 = vweird.f32 %v7045
    %vm7052 = vmor %vm7050, %vm7051
    %v7053 = vsel %vm7052, %v7045, %v7049
    %v7054 = vand.u32 2147483647, %v7023
    %vm7055 = vcmp.eq.f32.partialorder %v7054, 8.507059e+37
    %v7056 = vand.u32 %v7023, 2147483648
    %v7057 = vor.u32 1.1754944e-38, %v7056
    %v7058 = vsel %vm7055, %v7057, %v7053
    %v7059 = vmul.f32 %v7013, %v7058
    %v7060 = vrcp.pop %v7026
    %v7061 = vmul.f32 %v7026, %v7060
    %v7062 = vsub.f32 1.0, %v7061
    %v7063 = vmul.f32 %v7060, %v7062
    %v7064 = vadd.f32 %v7060, %v7063
    %vm7065 = vweird.f32 %v7026
    %vm7066 = vweird.f32 %v7060
    %vm7067 = vmor %vm7065, %vm7066
    %v7068 = vsel %vm7067, %v7060, %v7064
    %v7069 = vand.u32 2147483647, %v7026
    %vm7070 = vcmp.eq.f32.partialorder %v7069, 8.507059e+37
    %v7071 = vand.u32 %v7026, 2147483648
    %v7072 = vor.u32 1.1754944e-38, %v7071
    %v7073 = vsel %vm7070, %v7072, %v7068
    %v7074 = vmul.f32 %v7015, %v7073
    %v7075 = vrcp.pop %v7029
    %v7076 = vmul.f32 %v7029, %v7075
    %v7077 = vsub.f32 1.0, %v7076
    %v7078 = vmul.f32 %v7075, %v7077
    %v7079 = vadd.f32 %v7075, %v7078
    %vm7080 = vweird.f32 %v7029
    %vm7081 = vweird.f32 %v7075
    %vm7082 = vmor %vm7080, %vm7081
    %v7083 = vsel %vm7082, %v7075, %v7079
    %v7084 = vand.u32 2147483647, %v7029
    %vm7085 = vcmp.eq.f32.partialorder %v7084, 8.507059e+37
    %v7086 = vand.u32 %v7029, 2147483648
    %v7087 = vor.u32 1.1754944e-38, %v7086
    %v7088 = vsel %vm7085, %v7087, %v7083
    %v7089 = vmul.f32 %v7017, %v7088
    %7090 = vrot.lane.b32.xlu0 %v5752, 64
    %v7091 = vpop.permute.xlu0 %7090
    %7092 = vrot.lane.b32.xlu0 %v5755, 64
    %v7093 = vpop.permute.xlu0 %7092
    %v7097 = vsel %vm274, %v7044, 0
    %v7100 = vsel %vm274, %v7059, 0
    %7102 = vmatpush.msra.mxu0 0.0
    %7103 = vmatpush.msra.mxu0 0.0
    %7104 = vmatpush.msra.mxu0 0.0
    %7105 = vmatpush.msra.mxu0 0.0
    %7106 = vmatpush.msra.mxu0 0.0
    %7107 = vmatpush.msra.mxu0 0.0
    %7108 = vmatpush.msra.mxu0 0.0
    %7109 = vmatpush.msra.mxu0 0.0
    %7110 = vmatpush.msra.mxu0 0.0
    %7111 = vmatpush.msra.mxu0 0.0
    %7112 = vmatpush.msra.mxu0 0.0
    %7113 = vmatpush.msra.mxu0 0.0
    %7114 = vmatpush.msra.mxu0 0.0
    %7115 = vmatpush.msra.mxu0 0.0
    %7116 = vmatpush.msra.mxu0 %v7093
    %7117 = vmatpush.msra.mxu0 %v7091
    %7118 = vmatmul.f32.gmra.mxu0 %v7097
    %v7119 = vpop.f32.mrf.mxu0
    %v7120 = vadd.f32 0.0, %v7119
    %7121 = vmatmul.f32.gmra.mxu0 %v7100
    %v7122 = vpop.f32.mrf.mxu0
    %v7123 = vadd.f32 0.0, %v7122
    %7124 = vdwg.mxu0
    %7125 = vrot.lane.b32.xlu0 %v5758, 64
    %v7126 = vpop.permute.xlu0 %7125
    %7127 = vrot.lane.b32.xlu0 %v5761, 64
    %v7128 = vpop.permute.xlu0 %7127
    %v7132 = vsel %vm274, %v7074, 0
    %v7135 = vsel %vm274, %v7089, 0
    %7137 = vmatpush.msra.mxu0 0.0
    %7138 = vmatpush.msra.mxu0 0.0
    %7139 = vmatpush.msra.mxu0 0.0
    %7140 = vmatpush.msra.mxu0 0.0
    %7141 = vmatpush.msra.mxu0 0.0
    %7142 = vmatpush.msra.mxu0 0.0
    %7143 = vmatpush.msra.mxu0 0.0
    %7144 = vmatpush.msra.mxu0 0.0
    %7145 = vmatpush.msra.mxu0 0.0
    %7146 = vmatpush.msra.mxu0 0.0
    %7147 = vmatpush.msra.mxu0 0.0
    %7148 = vmatpush.msra.mxu0 0.0
    %7149 = vmatpush.msra.mxu0 0.0
    %7150 = vmatpush.msra.mxu0 0.0
    %7151 = vmatpush.msra.mxu0 %v7128
    %7152 = vmatpush.msra.mxu0 %v7126
    %7153 = vmatmul.f32.gmra.mxu0 %v7132
    %v7154 = vpop.f32.mrf.mxu0
    %v7155 = vadd.f32 0.0, %v7154
    %7156 = vmatmul.f32.gmra.mxu0 %v7135
    %v7157 = vpop.f32.mrf.mxu0
    %v7158 = vadd.f32 0.0, %v7157
    %7159 = vdwg.mxu0
    %v7161 = vsel %vm274, %v7120, 0
    %v7164 = vsel %vm274, %v7123, 0
    %v7167 = vsel %vm274, %v7155, 0
    %v7170 = vsel %vm274, %v7158, 0
    %7172 = vmatpush.msra.mxu0 0.0
    %7173 = vmatpush.msra.mxu0 0.0
    %7174 = vmatpush.msra.mxu0 0.0
    %7175 = vmatpush.msra.mxu0 0.0
    %7176 = vmatpush.msra.mxu0 0.0
    %7177 = vmatpush.msra.mxu0 0.0
    %7178 = vmatpush.msra.mxu0 0.0
    %7179 = vmatpush.msra.mxu0 0.0
    %7180 = vmatpush.msra.mxu0 0.0
    %7181 = vmatpush.msra.mxu0 0.0
    %7182 = vmatpush.msra.mxu0 0.0
    %7183 = vmatpush.msra.mxu0 0.0
    %7184 = vmatpush.msra.mxu0 0.0
    %7185 = vmatpush.msra.mxu0 0.0
    %7186 = vmatpush.msra.mxu0 %v5777
    %7187 = vmatpush.msra.mxu0 %v5776
    %7188 = vmatmul.f32.gmra.mxu0 %v7161
    %v7189 = vpop.f32.mrf.mxu0
    %v7190 = vadd.f32 0.0, %v7189
    %7191 = vmatmul.f32.gmra.mxu0 %v7164
    %v7192 = vpop.f32.mrf.mxu0
    %v7193 = vadd.f32 0.0, %v7192
    %7194 = vmatmul.f32.gmra.mxu0 %v7167
    %v7195 = vpop.f32.mrf.mxu0
    %v7196 = vadd.f32 0.0, %v7195
    %7197 = vmatmul.f32.gmra.mxu0 %v7170
    %v7198 = vpop.f32.mrf.mxu0
    %v7199 = vadd.f32 0.0, %v7198
    %7200 = vdwg.mxu0
    %v7201 = vadd.f32 %v6912, %v7190
    %v7202 = vadd.f32 %v6913, %v7193
    %v7203 = vadd.f32 %v6914, %v7196
    %v7204 = vadd.f32 %v6915, %v7199
    %7205 = vrot.lane.b32.xlu0 %v5763, 48
    %v7206 = vpop.permute.xlu0 %7205
    %7207 = vrot.lane.b32.xlu0 %v5764, 48
    %v7208 = vpop.permute.xlu0 %7207
    %7209 = vrot.lane.b32.xlu0 %v5723, 48
    %v7210 = vpop.permute.xlu0 %7209
    %7211 = vrot.lane.b32.xlu0 %v5726, 48
    %v7212 = vpop.permute.xlu0 %7211
    %v7213 = vsel %vm274, %v7206, 0
    %v7215 = vsel %vm274, %v7208, 0
    %v7217 = vsel %vm274, %v7210, 0
    %v7219 = vsel %vm274, %v7212, 0
    %7221 = vmatpush.xpose.msra.mxu0 0.0
    %7222 = vmatpush.xpose.msra.mxu0 0.0
    %7223 = vmatpush.xpose.msra.mxu0 0.0
    %7224 = vmatpush.xpose.msra.mxu0 0.0
    %7225 = vmatpush.xpose.msra.mxu0 0.0
    %7226 = vmatpush.xpose.msra.mxu0 0.0
    %7227 = vmatpush.xpose.msra.mxu0 0.0
    %7228 = vmatpush.xpose.msra.mxu0 0.0
    %7229 = vmatpush.xpose.msra.mxu0 0.0
    %7230 = vmatpush.xpose.msra.mxu0 0.0
    %7231 = vmatpush.xpose.msra.mxu0 0.0
    %7232 = vmatpush.xpose.msra.mxu0 0.0
    %7233 = vmatpush.xpose.msra.mxu0 0.0
    %7234 = vmatpush.xpose.msra.mxu0 0.0
    %7235 = vmatpush.xpose.msra.mxu0 %v7219
    %7236 = vmatpush.xpose.msra.mxu0 %v7217
    %7237 = vmatmul.f32.gmra.mxu0 %v7213
    %v7238 = vpop.f32.mrf.mxu0
    %v7239 = vadd.f32 0.0, %v7238
    %7240 = vmatmul.f32.gmra.mxu0 %v7215
    %v7241 = vpop.f32.mrf.mxu0
    %v7242 = vadd.f32 0.0, %v7241
    %7243 = vdwg.mxu0
    %7244 = vrot.lane.b32.xlu0 %v5765, 48
    %v7245 = vpop.permute.xlu0 %7244
    %7246 = vrot.lane.b32.xlu0 %v5766, 48
    %v7247 = vpop.permute.xlu0 %7246
    %7248 = vrot.lane.b32.xlu0 %v5729, 48
    %v7249 = vpop.permute.xlu0 %7248
    %7250 = vrot.lane.b32.xlu0 %v5732, 48
    %v7251 = vpop.permute.xlu0 %7250
    %v7252 = vsel %vm274, %v7245, 0
    %v7254 = vsel %vm274, %v7247, 0
    %v7256 = vsel %vm274, %v7249, 0
    %v7258 = vsel %vm274, %v7251, 0
    %7260 = vmatpush.xpose.msra.mxu0 0.0
    %7261 = vmatpush.xpose.msra.mxu0 0.0
    %7262 = vmatpush.xpose.msra.mxu0 0.0
    %7263 = vmatpush.xpose.msra.mxu0 0.0
    %7264 = vmatpush.xpose.msra.mxu0 0.0
    %7265 = vmatpush.xpose.msra.mxu0 0.0
    %7266 = vmatpush.xpose.msra.mxu0 0.0
    %7267 = vmatpush.xpose.msra.mxu0 0.0
    %7268 = vmatpush.xpose.msra.mxu0 0.0
    %7269 = vmatpush.xpose.msra.mxu0 0.0
    %7270 = vmatpush.xpose.msra.mxu0 0.0
    %7271 = vmatpush.xpose.msra.mxu0 0.0
    %7272 = vmatpush.xpose.msra.mxu0 0.0
    %7273 = vmatpush.xpose.msra.mxu0 0.0
    %7274 = vmatpush.xpose.msra.mxu0 %v7258
    %7275 = vmatpush.xpose.msra.mxu0 %v7256
    %7276 = vmatmul.f32.gmra.mxu0 %v7252
    %v7277 = vpop.f32.mrf.mxu0
    %v7278 = vadd.f32 0.0, %v7277
    %7279 = vmatmul.f32.gmra.mxu0 %v7254
    %v7280 = vpop.f32.mrf.mxu0
    %v7281 = vadd.f32 0.0, %v7280
    %7282 = vdwg.mxu0
    %v7283 = vsel %vm274, %v7239, -inf
    %7284 = vmax.xlane.f32.xlu0 %v7283
    %v7285 = vpop.xlane.xlu0 %7284
    %v7286 = vsel %vm274, %v7242, -inf
    %7287 = vmax.xlane.f32.xlu0 %v7286
    %v7288 = vpop.xlane.xlu0 %7287
    %v7289 = vsel %vm274, %v7278, -inf
    %7290 = vmax.xlane.f32.xlu0 %v7289
    %v7291 = vpop.xlane.xlu0 %7290
    %v7292 = vsel %vm274, %v7281, -inf
    %7293 = vmax.xlane.f32.xlu0 %v7292
    %v7294 = vpop.xlane.xlu0 %7293
    %v7295 = vsub.f32 %v7239, %v7285
    %v7296 = vsub.f32 %v7242, %v7288
    %v7297 = vsub.f32 %v7278, %v7291
    %v7298 = vsub.f32 %v7281, %v7294
    %v7299 = vmul.f32 %v7295, 1.442695
    %v7300 = vpow.pop %v7299
    %v7301 = vmul.f32 %v7296, 1.442695
    %v7302 = vpow.pop %v7301
    %v7303 = vmul.f32 %v7297, 1.442695
    %v7304 = vpow.pop %v7303
    %v7305 = vmul.f32 %v7298, 1.442695
    %v7306 = vpow.pop %v7305
    %v7307 = vsel %vm274, %v7300, 0.0
    %7308 = vadd.xlane.f32.xlu0 %v7307
    %v7309 = vpop.xlane.xlu0 %7308
    %v7310 = vsel %vm274, %v7302, 0.0
    %7311 = vadd.xlane.f32.xlu0 %v7310
    %v7312 = vpop.xlane.xlu0 %7311
    %v7313 = vsel %vm274, %v7304, 0.0
    %7314 = vadd.xlane.f32.xlu0 %v7313
    %v7315 = vpop.xlane.xlu0 %7314
    %v7316 = vsel %vm274, %v7306, 0.0
    %7317 = vadd.xlane.f32.xlu0 %v7316
    %v7318 = vpop.xlane.xlu0 %7317
    %v7319 = vrcp.pop %v7309
    %v7320 = vmul.f32 %v7309, %v7319
    %v7321 = vsub.f32 1.0, %v7320
    %v7322 = vmul.f32 %v7319, %v7321
    %v7323 = vadd.f32 %v7319, %v7322
    %vm7324 = vweird.f32 %v7309
    %vm7325 = vweird.f32 %v7319
    %vm7326 = vmor %vm7324, %vm7325
    %v7327 = vsel %vm7326, %v7319, %v7323
    %v7328 = vand.u32 2147483647, %v7309
    %vm7329 = vcmp.eq.f32.partialorder %v7328, 8.507059e+37
    %v7330 = vand.u32 %v7309, 2147483648
    %v7331 = vor.u32 1.1754944e-38, %v7330
    %v7332 = vsel %vm7329, %v7331, %v7327
    %v7333 = vmul.f32 %v7300, %v7332
    %v7334 = vrcp.pop %v7312
    %v7335 = vmul.f32 %v7312, %v7334
    %v7336 = vsub.f32 1.0, %v7335
    %v7337 = vmul.f32 %v7334, %v7336
    %v7338 = vadd.f32 %v7334, %v7337
    %vm7339 = vweird.f32 %v7312
    %vm7340 = vweird.f32 %v7334
    %vm7341 = vmor %vm7339, %vm7340
    %v7342 = vsel %vm7341, %v7334, %v7338
    %v7343 = vand.u32 2147483647, %v7312
    %vm7344 = vcmp.eq.f32.partialorder %v7343, 8.507059e+37
    %v7345 = vand.u32 %v7312, 2147483648
    %v7346 = vor.u32 1.1754944e-38, %v7345
    %v7347 = vsel %vm7344, %v7346, %v7342
    %v7348 = vmul.f32 %v7302, %v7347
    %v7349 = vrcp.pop %v7315
    %v7350 = vmul.f32 %v7315, %v7349
    %v7351 = vsub.f32 1.0, %v7350
    %v7352 = vmul.f32 %v7349, %v7351
    %v7353 = vadd.f32 %v7349, %v7352
    %vm7354 = vweird.f32 %v7315
    %vm7355 = vweird.f32 %v7349
    %vm7356 = vmor %vm7354, %vm7355
    %v7357 = vsel %vm7356, %v7349, %v7353
    %v7358 = vand.u32 2147483647, %v7315
    %vm7359 = vcmp.eq.f32.partialorder %v7358, 8.507059e+37
    %v7360 = vand.u32 %v7315, 2147483648
    %v7361 = vor.u32 1.1754944e-38, %v7360
    %v7362 = vsel %vm7359, %v7361, %v7357
    %v7363 = vmul.f32 %v7304, %v7362
    %v7364 = vrcp.pop %v7318
    %v7365 = vmul.f32 %v7318, %v7364
    %v7366 = vsub.f32 1.0, %v7365
    %v7367 = vmul.f32 %v7364, %v7366
    %v7368 = vadd.f32 %v7364, %v7367
    %vm7369 = vweird.f32 %v7318
    %vm7370 = vweird.f32 %v7364
    %vm7371 = vmor %vm7369, %vm7370
    %v7372 = vsel %vm7371, %v7364, %v7368
    %v7373 = vand.u32 2147483647, %v7318
    %vm7374 = vcmp.eq.f32.partialorder %v7373, 8.507059e+37
    %v7375 = vand.u32 %v7318, 2147483648
    %v7376 = vor.u32 1.1754944e-38, %v7375
    %v7377 = vsel %vm7374, %v7376, %v7372
    %v7378 = vmul.f32 %v7306, %v7377
    %7379 = vrot.lane.b32.xlu0 %v5752, 48
    %v7380 = vpop.permute.xlu0 %7379
    %7381 = vrot.lane.b32.xlu0 %v5755, 48
    %v7382 = vpop.permute.xlu0 %7381
    %v7386 = vsel %vm274, %v7333, 0
    %v7389 = vsel %vm274, %v7348, 0
    %7391 = vmatpush.msra.mxu0 0.0
    %7392 = vmatpush.msra.mxu0 0.0
    %7393 = vmatpush.msra.mxu0 0.0
    %7394 = vmatpush.msra.mxu0 0.0
    %7395 = vmatpush.msra.mxu0 0.0
    %7396 = vmatpush.msra.mxu0 0.0
    %7397 = vmatpush.msra.mxu0 0.0
    %7398 = vmatpush.msra.mxu0 0.0
    %7399 = vmatpush.msra.mxu0 0.0
    %7400 = vmatpush.msra.mxu0 0.0
    %7401 = vmatpush.msra.mxu0 0.0
    %7402 = vmatpush.msra.mxu0 0.0
    %7403 = vmatpush.msra.mxu0 0.0
    %7404 = vmatpush.msra.mxu0 0.0
    %7405 = vmatpush.msra.mxu0 %v7382
    %7406 = vmatpush.msra.mxu0 %v7380
    %7407 = vmatmul.f32.gmra.mxu0 %v7386
    %v7408 = vpop.f32.mrf.mxu0
    %v7409 = vadd.f32 0.0, %v7408
    %7410 = vmatmul.f32.gmra.mxu0 %v7389
    %v7411 = vpop.f32.mrf.mxu0
    %v7412 = vadd.f32 0.0, %v7411
    %7413 = vdwg.mxu0
    %7414 = vrot.lane.b32.xlu0 %v5758, 48
    %v7415 = vpop.permute.xlu0 %7414
    %7416 = vrot.lane.b32.xlu0 %v5761, 48
    %v7417 = vpop.permute.xlu0 %7416
    %v7421 = vsel %vm274, %v7363, 0
    %v7424 = vsel %vm274, %v7378, 0
    %7426 = vmatpush.msra.mxu0 0.0
    %7427 = vmatpush.msra.mxu0 0.0
    %7428 = vmatpush.msra.mxu0 0.0
    %7429 = vmatpush.msra.mxu0 0.0
    %7430 = vmatpush.msra.mxu0 0.0
    %7431 = vmatpush.msra.mxu0 0.0
    %7432 = vmatpush.msra.mxu0 0.0
    %7433 = vmatpush.msra.mxu0 0.0
    %7434 = vmatpush.msra.mxu0 0.0
    %7435 = vmatpush.msra.mxu0 0.0
    %7436 = vmatpush.msra.mxu0 0.0
    %7437 = vmatpush.msra.mxu0 0.0
    %7438 = vmatpush.msra.mxu0 0.0
    %7439 = vmatpush.msra.mxu0 0.0
    %7440 = vmatpush.msra.mxu0 %v7417
    %7441 = vmatpush.msra.mxu0 %v7415
    %7442 = vmatmul.f32.gmra.mxu0 %v7421
    %v7443 = vpop.f32.mrf.mxu0
    %v7444 = vadd.f32 0.0, %v7443
    %7445 = vmatmul.f32.gmra.mxu0 %v7424
    %v7446 = vpop.f32.mrf.mxu0
    %v7447 = vadd.f32 0.0, %v7446
    %7448 = vdwg.mxu0
    %v7450 = vsel %vm274, %v7409, 0
    %v7453 = vsel %vm274, %v7412, 0
    %v7456 = vsel %vm274, %v7444, 0
    %v7459 = vsel %vm274, %v7447, 0
    %7461 = vmatpush.msra.mxu0 0.0
    %7462 = vmatpush.msra.mxu0 0.0
    %7463 = vmatpush.msra.mxu0 0.0
    %7464 = vmatpush.msra.mxu0 0.0
    %7465 = vmatpush.msra.mxu0 0.0
    %7466 = vmatpush.msra.mxu0 0.0
    %7467 = vmatpush.msra.mxu0 0.0
    %7468 = vmatpush.msra.mxu0 0.0
    %7469 = vmatpush.msra.mxu0 0.0
    %7470 = vmatpush.msra.mxu0 0.0
    %7471 = vmatpush.msra.mxu0 0.0
    %7472 = vmatpush.msra.mxu0 0.0
    %7473 = vmatpush.msra.mxu0 0.0
    %7474 = vmatpush.msra.mxu0 0.0
    %7475 = vmatpush.msra.mxu0 %v5779
    %7476 = vmatpush.msra.mxu0 %v5778
    %7477 = vmatmul.f32.gmra.mxu0 %v7450
    %v7478 = vpop.f32.mrf.mxu0
    %v7479 = vadd.f32 0.0, %v7478
    %7480 = vmatmul.f32.gmra.mxu0 %v7453
    %v7481 = vpop.f32.mrf.mxu0
    %v7482 = vadd.f32 0.0, %v7481
    %7483 = vmatmul.f32.gmra.mxu0 %v7456
    %v7484 = vpop.f32.mrf.mxu0
    %v7485 = vadd.f32 0.0, %v7484
    %7486 = vmatmul.f32.gmra.mxu0 %v7459
    %v7487 = vpop.f32.mrf.mxu0
    %v7488 = vadd.f32 0.0, %v7487
    %7489 = vdwg.mxu0
    %v7490 = vadd.f32 %v7201, %v7479
    %v7491 = vadd.f32 %v7202, %v7482
    %v7492 = vadd.f32 %v7203, %v7485
    %v7493 = vadd.f32 %v7204, %v7488
    %7494 = vrot.lane.b32.xlu0 %v5763, 32
    %v7495 = vpop.permute.xlu0 %7494
    %7496 = vrot.lane.b32.xlu0 %v5764, 32
    %v7497 = vpop.permute.xlu0 %7496
    %7498 = vrot.lane.b32.xlu0 %v5723, 32
    %v7499 = vpop.permute.xlu0 %7498
    %7500 = vrot.lane.b32.xlu0 %v5726, 32
    %v7501 = vpop.permute.xlu0 %7500
    %v7502 = vsel %vm274, %v7495, 0
    %v7504 = vsel %vm274, %v7497, 0
    %v7506 = vsel %vm274, %v7499, 0
    %v7508 = vsel %vm274, %v7501, 0
    %7510 = vmatpush.xpose.msra.mxu0 0.0
    %7511 = vmatpush.xpose.msra.mxu0 0.0
    %7512 = vmatpush.xpose.msra.mxu0 0.0
    %7513 = vmatpush.xpose.msra.mxu0 0.0
    %7514 = vmatpush.xpose.msra.mxu0 0.0
    %7515 = vmatpush.xpose.msra.mxu0 0.0
    %7516 = vmatpush.xpose.msra.mxu0 0.0
    %7517 = vmatpush.xpose.msra.mxu0 0.0
    %7518 = vmatpush.xpose.msra.mxu0 0.0
    %7519 = vmatpush.xpose.msra.mxu0 0.0
    %7520 = vmatpush.xpose.msra.mxu0 0.0
    %7521 = vmatpush.xpose.msra.mxu0 0.0
    %7522 = vmatpush.xpose.msra.mxu0 0.0
    %7523 = vmatpush.xpose.msra.mxu0 0.0
    %7524 = vmatpush.xpose.msra.mxu0 %v7508
    %7525 = vmatpush.xpose.msra.mxu0 %v7506
    %7526 = vmatmul.f32.gmra.mxu0 %v7502
    %v7527 = vpop.f32.mrf.mxu0
    %v7528 = vadd.f32 0.0, %v7527
    %7529 = vmatmul.f32.gmra.mxu0 %v7504
    %v7530 = vpop.f32.mrf.mxu0
    %v7531 = vadd.f32 0.0, %v7530
    %7532 = vdwg.mxu0
    %7533 = vrot.lane.b32.xlu0 %v5765, 32
    %v7534 = vpop.permute.xlu0 %7533
    %7535 = vrot.lane.b32.xlu0 %v5766, 32
    %v7536 = vpop.permute.xlu0 %7535
    %7537 = vrot.lane.b32.xlu0 %v5729, 32
    %v7538 = vpop.permute.xlu0 %7537
    %7539 = vrot.lane.b32.xlu0 %v5732, 32
    %v7540 = vpop.permute.xlu0 %7539
    %v7541 = vsel %vm274, %v7534, 0
    %v7543 = vsel %vm274, %v7536, 0
    %v7545 = vsel %vm274, %v7538, 0
    %v7547 = vsel %vm274, %v7540, 0
    %7549 = vmatpush.xpose.msra.mxu0 0.0
    %7550 = vmatpush.xpose.msra.mxu0 0.0
    %7551 = vmatpush.xpose.msra.mxu0 0.0
    %7552 = vmatpush.xpose.msra.mxu0 0.0
    %7553 = vmatpush.xpose.msra.mxu0 0.0
    %7554 = vmatpush.xpose.msra.mxu0 0.0
    %7555 = vmatpush.xpose.msra.mxu0 0.0
    %7556 = vmatpush.xpose.msra.mxu0 0.0
    %7557 = vmatpush.xpose.msra.mxu0 0.0
    %7558 = vmatpush.xpose.msra.mxu0 0.0
    %7559 = vmatpush.xpose.msra.mxu0 0.0
    %7560 = vmatpush.xpose.msra.mxu0 0.0
    %7561 = vmatpush.xpose.msra.mxu0 0.0
    %7562 = vmatpush.xpose.msra.mxu0 0.0
    %7563 = vmatpush.xpose.msra.mxu0 %v7547
    %7564 = vmatpush.xpose.msra.mxu0 %v7545
    %7565 = vmatmul.f32.gmra.mxu0 %v7541
    %v7566 = vpop.f32.mrf.mxu0
    %v7567 = vadd.f32 0.0, %v7566
    %7568 = vmatmul.f32.gmra.mxu0 %v7543
    %v7569 = vpop.f32.mrf.mxu0
    %v7570 = vadd.f32 0.0, %v7569
    %7571 = vdwg.mxu0
    %v7572 = vsel %vm274, %v7528, -inf
    %7573 = vmax.xlane.f32.xlu0 %v7572
    %v7574 = vpop.xlane.xlu0 %7573
    %v7575 = vsel %vm274, %v7531, -inf
    %7576 = vmax.xlane.f32.xlu0 %v7575
    %v7577 = vpop.xlane.xlu0 %7576
    %v7578 = vsel %vm274, %v7567, -inf
    %7579 = vmax.xlane.f32.xlu0 %v7578
    %v7580 = vpop.xlane.xlu0 %7579
    %v7581 = vsel %vm274, %v7570, -inf
    %7582 = vmax.xlane.f32.xlu0 %v7581
    %v7583 = vpop.xlane.xlu0 %7582
    %v7584 = vsub.f32 %v7528, %v7574
    %v7585 = vsub.f32 %v7531, %v7577
    %v7586 = vsub.f32 %v7567, %v7580
    %v7587 = vsub.f32 %v7570, %v7583
    %v7588 = vmul.f32 %v7584, 1.442695
    %v7589 = vpow.pop %v7588
    %v7590 = vmul.f32 %v7585, 1.442695
    %v7591 = vpow.pop %v7590
    %v7592 = vmul.f32 %v7586, 1.442695
    %v7593 = vpow.pop %v7592
    %v7594 = vmul.f32 %v7587, 1.442695
    %v7595 = vpow.pop %v7594
    %v7596 = vsel %vm274, %v7589, 0.0
    %7597 = vadd.xlane.f32.xlu0 %v7596
    %v7598 = vpop.xlane.xlu0 %7597
    %v7599 = vsel %vm274, %v7591, 0.0
    %7600 = vadd.xlane.f32.xlu0 %v7599
    %v7601 = vpop.xlane.xlu0 %7600
    %v7602 = vsel %vm274, %v7593, 0.0
    %7603 = vadd.xlane.f32.xlu0 %v7602
    %v7604 = vpop.xlane.xlu0 %7603
    %v7605 = vsel %vm274, %v7595, 0.0
    %7606 = vadd.xlane.f32.xlu0 %v7605
    %v7607 = vpop.xlane.xlu0 %7606
    %v7608 = vrcp.pop %v7598
    %v7609 = vmul.f32 %v7598, %v7608
    %v7610 = vsub.f32 1.0, %v7609
    %v7611 = vmul.f32 %v7608, %v7610
    %v7612 = vadd.f32 %v7608, %v7611
    %vm7613 = vweird.f32 %v7598
    %vm7614 = vweird.f32 %v7608
    %vm7615 = vmor %vm7613, %vm7614
    %v7616 = vsel %vm7615, %v7608, %v7612
    %v7617 = vand.u32 2147483647, %v7598
    %vm7618 = vcmp.eq.f32.partialorder %v7617, 8.507059e+37
    %v7619 = vand.u32 %v7598, 2147483648
    %v7620 = vor.u32 1.1754944e-38, %v7619
    %v7621 = vsel %vm7618, %v7620, %v7616
    %v7622 = vmul.f32 %v7589, %v7621
    %v7623 = vrcp.pop %v7601
    %v7624 = vmul.f32 %v7601, %v7623
    %v7625 = vsub.f32 1.0, %v7624
    %v7626 = vmul.f32 %v7623, %v7625
    %v7627 = vadd.f32 %v7623, %v7626
    %vm7628 = vweird.f32 %v7601
    %vm7629 = vweird.f32 %v7623
    %vm7630 = vmor %vm7628, %vm7629
    %v7631 = vsel %vm7630, %v7623, %v7627
    %v7632 = vand.u32 2147483647, %v7601
    %vm7633 = vcmp.eq.f32.partialorder %v7632, 8.507059e+37
    %v7634 = vand.u32 %v7601, 2147483648
    %v7635 = vor.u32 1.1754944e-38, %v7634
    %v7636 = vsel %vm7633, %v7635, %v7631
    %v7637 = vmul.f32 %v7591, %v7636
    %v7638 = vrcp.pop %v7604
    %v7639 = vmul.f32 %v7604, %v7638
    %v7640 = vsub.f32 1.0, %v7639
    %v7641 = vmul.f32 %v7638, %v7640
    %v7642 = vadd.f32 %v7638, %v7641
    %vm7643 = vweird.f32 %v7604
    %vm7644 = vweird.f32 %v7638
    %vm7645 = vmor %vm7643, %vm7644
    %v7646 = vsel %vm7645, %v7638, %v7642
    %v7647 = vand.u32 2147483647, %v7604
    %vm7648 = vcmp.eq.f32.partialorder %v7647, 8.507059e+37
    %v7649 = vand.u32 %v7604, 2147483648
    %v7650 = vor.u32 1.1754944e-38, %v7649
    %v7651 = vsel %vm7648, %v7650, %v7646
    %v7652 = vmul.f32 %v7593, %v7651
    %v7653 = vrcp.pop %v7607
    %v7654 = vmul.f32 %v7607, %v7653
    %v7655 = vsub.f32 1.0, %v7654
    %v7656 = vmul.f32 %v7653, %v7655
    %v7657 = vadd.f32 %v7653, %v7656
    %vm7658 = vweird.f32 %v7607
    %vm7659 = vweird.f32 %v7653
    %vm7660 = vmor %vm7658, %vm7659
    %v7661 = vsel %vm7660, %v7653, %v7657
    %v7662 = vand.u32 2147483647, %v7607
    %vm7663 = vcmp.eq.f32.partialorder %v7662, 8.507059e+37
    %v7664 = vand.u32 %v7607, 2147483648
    %v7665 = vor.u32 1.1754944e-38, %v7664
    %v7666 = vsel %vm7663, %v7665, %v7661
    %v7667 = vmul.f32 %v7595, %v7666
    %7668 = vrot.lane.b32.xlu0 %v5752, 32
    %v7669 = vpop.permute.xlu0 %7668
    %7670 = vrot.lane.b32.xlu0 %v5755, 32
    %v7671 = vpop.permute.xlu0 %7670
    %v7675 = vsel %vm274, %v7622, 0
    %v7678 = vsel %vm274, %v7637, 0
    %7680 = vmatpush.msra.mxu0 0.0
    %7681 = vmatpush.msra.mxu0 0.0
    %7682 = vmatpush.msra.mxu0 0.0
    %7683 = vmatpush.msra.mxu0 0.0
    %7684 = vmatpush.msra.mxu0 0.0
    %7685 = vmatpush.msra.mxu0 0.0
    %7686 = vmatpush.msra.mxu0 0.0
    %7687 = vmatpush.msra.mxu0 0.0
    %7688 = vmatpush.msra.mxu0 0.0
    %7689 = vmatpush.msra.mxu0 0.0
    %7690 = vmatpush.msra.mxu0 0.0
    %7691 = vmatpush.msra.mxu0 0.0
    %7692 = vmatpush.msra.mxu0 0.0
    %7693 = vmatpush.msra.mxu0 0.0
    %7694 = vmatpush.msra.mxu0 %v7671
    %7695 = vmatpush.msra.mxu0 %v7669
    %7696 = vmatmul.f32.gmra.mxu0 %v7675
    %v7697 = vpop.f32.mrf.mxu0
    %v7698 = vadd.f32 0.0, %v7697
    %7699 = vmatmul.f32.gmra.mxu0 %v7678
    %v7700 = vpop.f32.mrf.mxu0
    %v7701 = vadd.f32 0.0, %v7700
    %7702 = vdwg.mxu0
    %7703 = vrot.lane.b32.xlu0 %v5758, 32
    %v7704 = vpop.permute.xlu0 %7703
    %7705 = vrot.lane.b32.xlu0 %v5761, 32
    %v7706 = vpop.permute.xlu0 %7705
    %v7710 = vsel %vm274, %v7652, 0
    %v7713 = vsel %vm274, %v7667, 0
    %7715 = vmatpush.msra.mxu0 0.0
    %7716 = vmatpush.msra.mxu0 0.0
    %7717 = vmatpush.msra.mxu0 0.0
    %7718 = vmatpush.msra.mxu0 0.0
    %7719 = vmatpush.msra.mxu0 0.0
    %7720 = vmatpush.msra.mxu0 0.0
    %7721 = vmatpush.msra.mxu0 0.0
    %7722 = vmatpush.msra.mxu0 0.0
    %7723 = vmatpush.msra.mxu0 0.0
    %7724 = vmatpush.msra.mxu0 0.0
    %7725 = vmatpush.msra.mxu0 0.0
    %7726 = vmatpush.msra.mxu0 0.0
    %7727 = vmatpush.msra.mxu0 0.0
    %7728 = vmatpush.msra.mxu0 0.0
    %7729 = vmatpush.msra.mxu0 %v7706
    %7730 = vmatpush.msra.mxu0 %v7704
    %7731 = vmatmul.f32.gmra.mxu0 %v7710
    %v7732 = vpop.f32.mrf.mxu0
    %v7733 = vadd.f32 0.0, %v7732
    %7734 = vmatmul.f32.gmra.mxu0 %v7713
    %v7735 = vpop.f32.mrf.mxu0
    %v7736 = vadd.f32 0.0, %v7735
    %7737 = vdwg.mxu0
    %v7739 = vsel %vm274, %v7698, 0
    %v7742 = vsel %vm274, %v7701, 0
    %v7745 = vsel %vm274, %v7733, 0
    %v7748 = vsel %vm274, %v7736, 0
    %7750 = vmatpush.msra.mxu0 0.0
    %7751 = vmatpush.msra.mxu0 0.0
    %7752 = vmatpush.msra.mxu0 0.0
    %7753 = vmatpush.msra.mxu0 0.0
    %7754 = vmatpush.msra.mxu0 0.0
    %7755 = vmatpush.msra.mxu0 0.0
    %7756 = vmatpush.msra.mxu0 0.0
    %7757 = vmatpush.msra.mxu0 0.0
    %7758 = vmatpush.msra.mxu0 0.0
    %7759 = vmatpush.msra.mxu0 0.0
    %7760 = vmatpush.msra.mxu0 0.0
    %7761 = vmatpush.msra.mxu0 0.0
    %7762 = vmatpush.msra.mxu0 0.0
    %7763 = vmatpush.msra.mxu0 0.0
    %7764 = vmatpush.msra.mxu0 %v5781
    %7765 = vmatpush.msra.mxu0 %v5780
    %7766 = vmatmul.f32.gmra.mxu0 %v7739
    %v7767 = vpop.f32.mrf.mxu0
    %v7768 = vadd.f32 0.0, %v7767
    %7769 = vmatmul.f32.gmra.mxu0 %v7742
    %v7770 = vpop.f32.mrf.mxu0
    %v7771 = vadd.f32 0.0, %v7770
    %7772 = vmatmul.f32.gmra.mxu0 %v7745
    %v7773 = vpop.f32.mrf.mxu0
    %v7774 = vadd.f32 0.0, %v7773
    %7775 = vmatmul.f32.gmra.mxu0 %v7748
    %v7776 = vpop.f32.mrf.mxu0
    %v7777 = vadd.f32 0.0, %v7776
    %7778 = vdwg.mxu0
    %v7779 = vadd.f32 %v7490, %v7768
    %v7780 = vadd.f32 %v7491, %v7771
    %v7781 = vadd.f32 %v7492, %v7774
    %v7782 = vadd.f32 %v7493, %v7777
    %7783 = vrot.lane.b32.xlu0 %v5763, 16
    %v7784 = vpop.permute.xlu0 %7783
    %7785 = vrot.lane.b32.xlu0 %v5764, 16
    %v7786 = vpop.permute.xlu0 %7785
    %7787 = vrot.lane.b32.xlu0 %v5723, 16
    %v7788 = vpop.permute.xlu0 %7787
    %7789 = vrot.lane.b32.xlu0 %v5726, 16
    %v7790 = vpop.permute.xlu0 %7789
    %v7791 = vsel %vm274, %v7784, 0
    %v7793 = vsel %vm274, %v7786, 0
    %v7795 = vsel %vm274, %v7788, 0
    %v7797 = vsel %vm274, %v7790, 0
    %7799 = vmatpush.xpose.msra.mxu0 0.0
    %7800 = vmatpush.xpose.msra.mxu0 0.0
    %7801 = vmatpush.xpose.msra.mxu0 0.0
    %7802 = vmatpush.xpose.msra.mxu0 0.0
    %7803 = vmatpush.xpose.msra.mxu0 0.0
    %7804 = vmatpush.xpose.msra.mxu0 0.0
    %7805 = vmatpush.xpose.msra.mxu0 0.0
    %7806 = vmatpush.xpose.msra.mxu0 0.0
    %7807 = vmatpush.xpose.msra.mxu0 0.0
    %7808 = vmatpush.xpose.msra.mxu0 0.0
    %7809 = vmatpush.xpose.msra.mxu0 0.0
    %7810 = vmatpush.xpose.msra.mxu0 0.0
    %7811 = vmatpush.xpose.msra.mxu0 0.0
    %7812 = vmatpush.xpose.msra.mxu0 0.0
    %7813 = vmatpush.xpose.msra.mxu0 %v7797
    %7814 = vmatpush.xpose.msra.mxu0 %v7795
    %7815 = vmatmul.f32.gmra.mxu0 %v7791
    %v7816 = vpop.f32.mrf.mxu0
    %v7817 = vadd.f32 0.0, %v7816
    %7818 = vmatmul.f32.gmra.mxu0 %v7793
    %v7819 = vpop.f32.mrf.mxu0
    %v7820 = vadd.f32 0.0, %v7819
    %7821 = vdwg.mxu0
    %7822 = vrot.lane.b32.xlu0 %v5765, 16
    %v7823 = vpop.permute.xlu0 %7822
    %7824 = vrot.lane.b32.xlu0 %v5766, 16
    %v7825 = vpop.permute.xlu0 %7824
    %7826 = vrot.lane.b32.xlu0 %v5729, 16
    %v7827 = vpop.permute.xlu0 %7826
    %7828 = vrot.lane.b32.xlu0 %v5732, 16
    %v7829 = vpop.permute.xlu0 %7828
    %v7830 = vsel %vm274, %v7823, 0
    %v7832 = vsel %vm274, %v7825, 0
    %v7834 = vsel %vm274, %v7827, 0
    %v7836 = vsel %vm274, %v7829, 0
    %7838 = vmatpush.xpose.msra.mxu0 0.0
    %7839 = vmatpush.xpose.msra.mxu0 0.0
    %7840 = vmatpush.xpose.msra.mxu0 0.0
    %7841 = vmatpush.xpose.msra.mxu0 0.0
    %7842 = vmatpush.xpose.msra.mxu0 0.0
    %7843 = vmatpush.xpose.msra.mxu0 0.0
    %7844 = vmatpush.xpose.msra.mxu0 0.0
    %7845 = vmatpush.xpose.msra.mxu0 0.0
    %7846 = vmatpush.xpose.msra.mxu0 0.0
    %7847 = vmatpush.xpose.msra.mxu0 0.0
    %7848 = vmatpush.xpose.msra.mxu0 0.0
    %7849 = vmatpush.xpose.msra.mxu0 0.0
    %7850 = vmatpush.xpose.msra.mxu0 0.0
    %7851 = vmatpush.xpose.msra.mxu0 0.0
    %7852 = vmatpush.xpose.msra.mxu0 %v7836
    %7853 = vmatpush.xpose.msra.mxu0 %v7834
    %7854 = vmatmul.f32.gmra.mxu0 %v7830
    %v7855 = vpop.f32.mrf.mxu0
    %v7856 = vadd.f32 0.0, %v7855
    %7857 = vmatmul.f32.gmra.mxu0 %v7832
    %v7858 = vpop.f32.mrf.mxu0
    %v7859 = vadd.f32 0.0, %v7858
    %7860 = vdwg.mxu0
    %v7861 = vsel %vm274, %v7817, -inf
    %7862 = vmax.xlane.f32.xlu0 %v7861
    %v7863 = vpop.xlane.xlu0 %7862
    %v7864 = vsel %vm274, %v7820, -inf
    %7865 = vmax.xlane.f32.xlu0 %v7864
    %v7866 = vpop.xlane.xlu0 %7865
    %v7867 = vsel %vm274, %v7856, -inf
    %7868 = vmax.xlane.f32.xlu0 %v7867
    %v7869 = vpop.xlane.xlu0 %7868
    %v7870 = vsel %vm274, %v7859, -inf
    %7871 = vmax.xlane.f32.xlu0 %v7870
    %v7872 = vpop.xlane.xlu0 %7871
    %v7873 = vsub.f32 %v7817, %v7863
    %v7874 = vsub.f32 %v7820, %v7866
    %v7875 = vsub.f32 %v7856, %v7869
    %v7876 = vsub.f32 %v7859, %v7872
    %v7877 = vmul.f32 %v7873, 1.442695
    %v7878 = vpow.pop %v7877
    %v7879 = vmul.f32 %v7874, 1.442695
    %v7880 = vpow.pop %v7879
    %v7881 = vmul.f32 %v7875, 1.442695
    %v7882 = vpow.pop %v7881
    %v7883 = vmul.f32 %v7876, 1.442695
    %v7884 = vpow.pop %v7883
    %v7885 = vsel %vm274, %v7878, 0.0
    %7886 = vadd.xlane.f32.xlu0 %v7885
    %v7887 = vpop.xlane.xlu0 %7886
    %v7888 = vsel %vm274, %v7880, 0.0
    %7889 = vadd.xlane.f32.xlu0 %v7888
    %v7890 = vpop.xlane.xlu0 %7889
    %v7891 = vsel %vm274, %v7882, 0.0
    %7892 = vadd.xlane.f32.xlu0 %v7891
    %v7893 = vpop.xlane.xlu0 %7892
    %v7894 = vsel %vm274, %v7884, 0.0
    %7895 = vadd.xlane.f32.xlu0 %v7894
    %v7896 = vpop.xlane.xlu0 %7895
    %v7897 = vrcp.pop %v7887
    %v7898 = vmul.f32 %v7887, %v7897
    %v7899 = vsub.f32 1.0, %v7898
    %v7900 = vmul.f32 %v7897, %v7899
    %v7901 = vadd.f32 %v7897, %v7900
    %vm7902 = vweird.f32 %v7887
    %vm7903 = vweird.f32 %v7897
    %vm7904 = vmor %vm7902, %vm7903
    %v7905 = vsel %vm7904, %v7897, %v7901
    %v7906 = vand.u32 2147483647, %v7887
    %vm7907 = vcmp.eq.f32.partialorder %v7906, 8.507059e+37
    %v7908 = vand.u32 %v7887, 2147483648
    %v7909 = vor.u32 1.1754944e-38, %v7908
    %v7910 = vsel %vm7907, %v7909, %v7905
    %v7911 = vmul.f32 %v7878, %v7910
    %v7912 = vrcp.pop %v7890
    %v7913 = vmul.f32 %v7890, %v7912
    %v7914 = vsub.f32 1.0, %v7913
    %v7915 = vmul.f32 %v7912, %v7914
    %v7916 = vadd.f32 %v7912, %v7915
    %vm7917 = vweird.f32 %v7890
    %vm7918 = vweird.f32 %v7912
    %vm7919 = vmor %vm7917, %vm7918
    %v7920 = vsel %vm7919, %v7912, %v7916
    %v7921 = vand.u32 2147483647, %v7890
    %vm7922 = vcmp.eq.f32.partialorder %v7921, 8.507059e+37
    %v7923 = vand.u32 %v7890, 2147483648
    %v7924 = vor.u32 1.1754944e-38, %v7923
    %v7925 = vsel %vm7922, %v7924, %v7920
    %v7926 = vmul.f32 %v7880, %v7925
    %v7927 = vrcp.pop %v7893
    %v7928 = vmul.f32 %v7893, %v7927
    %v7929 = vsub.f32 1.0, %v7928
    %v7930 = vmul.f32 %v7927, %v7929
    %v7931 = vadd.f32 %v7927, %v7930
    %vm7932 = vweird.f32 %v7893
    %vm7933 = vweird.f32 %v7927
    %vm7934 = vmor %vm7932, %vm7933
    %v7935 = vsel %vm7934, %v7927, %v7931
    %v7936 = vand.u32 2147483647, %v7893
    %vm7937 = vcmp.eq.f32.partialorder %v7936, 8.507059e+37
    %v7938 = vand.u32 %v7893, 2147483648
    %v7939 = vor.u32 1.1754944e-38, %v7938
    %v7940 = vsel %vm7937, %v7939, %v7935
    %v7941 = vmul.f32 %v7882, %v7940
    %v7942 = vrcp.pop %v7896
    %v7943 = vmul.f32 %v7896, %v7942
    %v7944 = vsub.f32 1.0, %v7943
    %v7945 = vmul.f32 %v7942, %v7944
    %v7946 = vadd.f32 %v7942, %v7945
    %vm7947 = vweird.f32 %v7896
    %vm7948 = vweird.f32 %v7942
    %vm7949 = vmor %vm7947, %vm7948
    %v7950 = vsel %vm7949, %v7942, %v7946
    %v7951 = vand.u32 2147483647, %v7896
    %vm7952 = vcmp.eq.f32.partialorder %v7951, 8.507059e+37
    %v7953 = vand.u32 %v7896, 2147483648
    %v7954 = vor.u32 1.1754944e-38, %v7953
    %v7955 = vsel %vm7952, %v7954, %v7950
    %v7956 = vmul.f32 %v7884, %v7955
    %7957 = vrot.lane.b32.xlu0 %v5752, 16
    %v7958 = vpop.permute.xlu0 %7957
    %7959 = vrot.lane.b32.xlu0 %v5755, 16
    %v7960 = vpop.permute.xlu0 %7959
    %v7964 = vsel %vm274, %v7911, 0
    %v7967 = vsel %vm274, %v7926, 0
    %7969 = vmatpush.msra.mxu0 0.0
    %7970 = vmatpush.msra.mxu0 0.0
    %7971 = vmatpush.msra.mxu0 0.0
    %7972 = vmatpush.msra.mxu0 0.0
    %7973 = vmatpush.msra.mxu0 0.0
    %7974 = vmatpush.msra.mxu0 0.0
    %7975 = vmatpush.msra.mxu0 0.0
    %7976 = vmatpush.msra.mxu0 0.0
    %7977 = vmatpush.msra.mxu0 0.0
    %7978 = vmatpush.msra.mxu0 0.0
    %7979 = vmatpush.msra.mxu0 0.0
    %7980 = vmatpush.msra.mxu0 0.0
    %7981 = vmatpush.msra.mxu0 0.0
    %7982 = vmatpush.msra.mxu0 0.0
    %7983 = vmatpush.msra.mxu0 %v7960
    %7984 = vmatpush.msra.mxu0 %v7958
    %7985 = vmatmul.f32.gmra.mxu0 %v7964
    %v7986 = vpop.f32.mrf.mxu0
    %v7987 = vadd.f32 0.0, %v7986
    %7988 = vmatmul.f32.gmra.mxu0 %v7967
    %v7989 = vpop.f32.mrf.mxu0
    %v7990 = vadd.f32 0.0, %v7989
    %7991 = vdwg.mxu0
    %7992 = vrot.lane.b32.xlu0 %v5758, 16
    %v7993 = vpop.permute.xlu0 %7992
    %7994 = vrot.lane.b32.xlu0 %v5761, 16
    %v7995 = vpop.permute.xlu0 %7994
    %v7999 = vsel %vm274, %v7941, 0
    %v8002 = vsel %vm274, %v7956, 0
    %8004 = vmatpush.msra.mxu0 0.0
    %8005 = vmatpush.msra.mxu0 0.0
    %8006 = vmatpush.msra.mxu0 0.0
    %8007 = vmatpush.msra.mxu0 0.0
    %8008 = vmatpush.msra.mxu0 0.0
    %8009 = vmatpush.msra.mxu0 0.0
    %8010 = vmatpush.msra.mxu0 0.0
    %8011 = vmatpush.msra.mxu0 0.0
    %8012 = vmatpush.msra.mxu0 0.0
    %8013 = vmatpush.msra.mxu0 0.0
    %8014 = vmatpush.msra.mxu0 0.0
    %8015 = vmatpush.msra.mxu0 0.0
    %8016 = vmatpush.msra.mxu0 0.0
    %8017 = vmatpush.msra.mxu0 0.0
    %8018 = vmatpush.msra.mxu0 %v7995
    %8019 = vmatpush.msra.mxu0 %v7993
    %8020 = vmatmul.f32.gmra.mxu0 %v7999
    %v8021 = vpop.f32.mrf.mxu0
    %v8022 = vadd.f32 0.0, %v8021
    %8023 = vmatmul.f32.gmra.mxu0 %v8002
    %v8024 = vpop.f32.mrf.mxu0
    %v8025 = vadd.f32 0.0, %v8024
    %8026 = vdwg.mxu0
    %v8028 = vsel %vm274, %v7987, 0
    %v8031 = vsel %vm274, %v7990, 0
    %v8034 = vsel %vm274, %v8022, 0
    %v8037 = vsel %vm274, %v8025, 0
    %8039 = vmatpush.msra.mxu0 0.0
    %8040 = vmatpush.msra.mxu0 0.0
    %8041 = vmatpush.msra.mxu0 0.0
    %8042 = vmatpush.msra.mxu0 0.0
    %8043 = vmatpush.msra.mxu0 0.0
    %8044 = vmatpush.msra.mxu0 0.0
    %8045 = vmatpush.msra.mxu0 0.0
    %8046 = vmatpush.msra.mxu0 0.0
    %8047 = vmatpush.msra.mxu0 0.0
    %8048 = vmatpush.msra.mxu0 0.0
    %8049 = vmatpush.msra.mxu0 0.0
    %8050 = vmatpush.msra.mxu0 0.0
    %8051 = vmatpush.msra.mxu0 0.0
    %8052 = vmatpush.msra.mxu0 0.0
    %8053 = vmatpush.msra.mxu0 %v5783
    %8054 = vmatpush.msra.mxu0 %v5782
    %8055 = vmatmul.f32.gmra.mxu0 %v8028
    %v8056 = vpop.f32.mrf.mxu0
    %v8057 = vadd.f32 0.0, %v8056
    %8058 = vmatmul.f32.gmra.mxu0 %v8031
    %v8059 = vpop.f32.mrf.mxu0
    %v8060 = vadd.f32 0.0, %v8059
    %8061 = vmatmul.f32.gmra.mxu0 %v8034
    %v8062 = vpop.f32.mrf.mxu0
    %v8063 = vadd.f32 0.0, %v8062
    %8064 = vmatmul.f32.gmra.mxu0 %v8037
    %v8065 = vpop.f32.mrf.mxu0
    %v8066 = vadd.f32 0.0, %v8065
    %8067 = vdwg.mxu0
    %v8068 = vadd.f32 %v7779, %v8057
    %v8069 = vadd.f32 %v7780, %v8060
    %v8070 = vadd.f32 %v7781, %v8063
    %v8071 = vadd.f32 %v7782, %v8066
    %v8072 = vld [vmem:[%s4 + $0x2] sm:$0x1]
    %v8073 = vperm.slane %v8072, 0
    %v8074 = vadd.f32 %v8068, %v8073
    %v8075 = vadd.f32 %v8069, %v8073
    %v8076 = vadd.f32 %v8070, %v8073
    %v8077 = vadd.f32 %v8071, %v8073
    %v8078 = vadd.f32 %v5614, %v8074
    %v8079 = vadd.f32 %v5615, %v8075
    %v8080 = vadd.f32 %v5616, %v8076
    %v8081 = vadd.f32 %v5617, %v8077
    %v8082 = vld [vmem:[%s5 + $0x2] sm:$0x1]
    %v8083 = vld [vmem:[%s6 + $0x2] sm:$0x1]
    %8084 = vadd.xlane.f32.xlu0 %v8078
    %v8085 = vpop.xlane.xlu0 %8084
    %8086 = vadd.xlane.f32.xlu0 %v8079
    %v8087 = vpop.xlane.xlu0 %8086
    %8088 = vadd.xlane.f32.xlu0 %v8080
    %v8089 = vpop.xlane.xlu0 %8088
    %8090 = vadd.xlane.f32.xlu0 %v8081
    %v8091 = vpop.xlane.xlu0 %8090
    %v8092 = vmul.f32 %v8085, %v2589
    %v8093 = vmul.f32 %v8087, %v2589
    %v8094 = vmul.f32 %v8089, %v2589
    %v8095 = vmul.f32 %v8091, %v2589
    %v8096 = vsub.f32 %v8078, %v8092
    %v8097 = vsub.f32 %v8079, %v8093
    %v8098 = vsub.f32 %v8080, %v8094
    %v8099 = vsub.f32 %v8081, %v8095
    %v8100 = vmul.f32 %v8096, %v8096
    %v8101 = vmul.f32 %v8097, %v8097
    %v8102 = vmul.f32 %v8098, %v8098
    %v8103 = vmul.f32 %v8099, %v8099
    %8104 = vadd.xlane.f32.xlu0 %v8100
    %v8105 = vpop.xlane.xlu0 %8104
    %8106 = vadd.xlane.f32.xlu0 %v8101
    %v8107 = vpop.xlane.xlu0 %8106
    %8108 = vadd.xlane.f32.xlu0 %v8102
    %v8109 = vpop.xlane.xlu0 %8108
    %8110 = vadd.xlane.f32.xlu0 %v8103
    %v8111 = vpop.xlane.xlu0 %8110
    %v8112 = vmul.f32 %v8105, %v2589
    %v8113 = vmul.f32 %v8107, %v2589
    %v8114 = vmul.f32 %v8109, %v2589
    %v8115 = vmul.f32 %v8111, %v2589
    %v8116 = vadd.f32 %v8112, 1e-05
    %v8117 = vadd.f32 %v8113, 1e-05
    %v8118 = vadd.f32 %v8114, 1e-05
    %v8119 = vadd.f32 %v8115, 1e-05
    %v8120 = vrsqrt.pop %v8116
    %v8121 = vmul.f32 %v8120, %v8116
    %v8122 = vmul.f32 %v8121, %v8120
    %v8123 = vmul.f32 0.5, %v8122
    %v8124 = vsub.f32 1.5, %v8123
    %v8125 = vmul.f32 %v8120, %v8124
    %vm8126 = vweird.f32 %v8116
    %vm8127 = vweird.f32 %v8120
    %vm8128 = vmor %vm8126, %vm8127
    %v8129 = vsel %vm8128, %v8120, %v8125
    %v8130 = vrsqrt.pop %v8117
    %v8131 = vmul.f32 %v8130, %v8117
    %v8132 = vmul.f32 %v8131, %v8130
    %v8133 = vmul.f32 0.5, %v8132
    %v8134 = vsub.f32 1.5, %v8133
    %v8135 = vmul.f32 %v8130, %v8134
    %vm8136 = vweird.f32 %v8117
    %vm8137 = vweird.f32 %v8130
    %vm8138 = vmor %vm8136, %vm8137
    %v8139 = vsel %vm8138, %v8130, %v8135
    %v8140 = vrsqrt.pop %v8118
    %v8141 = vmul.f32 %v8140, %v8118
    %v8142 = vmul.f32 %v8141, %v8140
    %v8143 = vmul.f32 0.5, %v8142
    %v8144 = vsub.f32 1.5, %v8143
    %v8145 = vmul.f32 %v8140, %v8144
    %vm8146 = vweird.f32 %v8118
    %vm8147 = vweird.f32 %v8140
    %vm8148 = vmor %vm8146, %vm8147
    %v8149 = vsel %vm8148, %v8140, %v8145
    %v8150 = vrsqrt.pop %v8119
    %v8151 = vmul.f32 %v8150, %v8119
    %v8152 = vmul.f32 %v8151, %v8150
    %v8153 = vmul.f32 0.5, %v8152
    %v8154 = vsub.f32 1.5, %v8153
    %v8155 = vmul.f32 %v8150, %v8154
    %vm8156 = vweird.f32 %v8119
    %vm8157 = vweird.f32 %v8150
    %vm8158 = vmor %vm8156, %vm8157
    %v8159 = vsel %vm8158, %v8150, %v8155
    %v8160 = vmul.f32 %v8096, %v8129
    %v8161 = vmul.f32 %v8097, %v8139
    %v8162 = vmul.f32 %v8098, %v8149
    %v8163 = vmul.f32 %v8099, %v8159
    %v8164 = vperm.slane %v8082, 0
    %v8165 = vmul.f32 %v8160, %v8164
    %v8166 = vmul.f32 %v8161, %v8164
    %v8167 = vmul.f32 %v8162, %v8164
    %v8168 = vmul.f32 %v8163, %v8164
    %v8169 = vperm.slane %v8083, 0
    %v8170 = vadd.f32 %v8165, %v8169
    %v8171 = vadd.f32 %v8166, %v8169
    %v8172 = vadd.f32 %v8167, %v8169
    %v8173 = vadd.f32 %v8168, %v8169
    %s8174 = scalar_lea.vmem [#allocation6], 256
    %v8175 = vld [vmem:[%s8174] sm:$0xff]
    %v8176 = vld [vmem:[%s8174 + $0x8] sm:$0xff]
    %v8177 = vld [vmem:[%s8174 + $0x10] sm:$0xff]
    %v8178 = vld [vmem:[%s8174 + $0x18] sm:$0xff]
    %v8179 = vld [vmem:[%s8174 + $0x20] sm:$0xff]
    %v8180 = vld [vmem:[%s8174 + $0x28] sm:$0xff]
    %v8181 = vld [vmem:[%s8174 + $0x30] sm:$0xff]
    %v8182 = vld [vmem:[%s8174 + $0x38] sm:$0xff]
    %v8183 = vld [vmem:[%s8174 + $0x40] sm:$0xff]
    %v8184 = vld [vmem:[%s8174 + $0x48] sm:$0xff]
    %v8185 = vld [vmem:[%s8174 + $0x50] sm:$0xff]
    %v8186 = vld [vmem:[%s8174 + $0x58] sm:$0xff]
    %v8187 = vld [vmem:[%s8174 + $0x60] sm:$0xff]
    %v8188 = vld [vmem:[%s8174 + $0x68] sm:$0xff]
    %v8189 = vld [vmem:[%s8174 + $0x70] sm:$0xff]
    %v8190 = vld [vmem:[%s8174 + $0x78] sm:$0xff]
    %v8191 = vld [vmem:[%s8 + $0x2] sm:$0x1]
    %v8192 = vperm.slane %v8191, 0
    %8193 = vmatpush.msra.mxu0 %v8190
    %8194 = vmatpush.msra.mxu0 %v8189
    %8195 = vmatpush.msra.mxu0 %v8188
    %8196 = vmatpush.msra.mxu0 %v8187
    %8197 = vmatpush.msra.mxu0 %v8186
    %8198 = vmatpush.msra.mxu0 %v8185
    %8199 = vmatpush.msra.mxu0 %v8184
    %8200 = vmatpush.msra.mxu0 %v8183
    %8201 = vmatpush.msra.mxu0 %v8182
    %8202 = vmatpush.msra.mxu0 %v8181
    %8203 = vmatpush.msra.mxu0 %v8180
    %8204 = vmatpush.msra.mxu0 %v8179
    %8205 = vmatpush.msra.mxu0 %v8178
    %8206 = vmatpush.msra.mxu0 %v8177
    %8207 = vmatpush.msra.mxu0 %v8176
    %8208 = vmatpush.msra.mxu0 %v8175
    %8209 = vmatmul.f32.gmra.mxu0 %v8170
    %v8210 = vpop.f32.mrf.mxu0
    %v8211 = vadd.f32 %v8192, %v8210
    %8212 = vmatmul.f32.gmra.mxu0 %v8171
    %v8213 = vpop.f32.mrf.mxu0
    %v8214 = vadd.f32 %v8192, %v8213
    %8215 = vmatmul.f32.gmra.mxu0 %v8172
    %v8216 = vpop.f32.mrf.mxu0
    %v8217 = vadd.f32 %v8192, %v8216
    %8218 = vmatmul.f32.gmra.mxu0 %v8173
    %v8219 = vpop.f32.mrf.mxu0
    %v8220 = vadd.f32 %v8192, %v8219
    %8221 = vdwg.mxu0
    %v8222 = vmax.f32 %v8211, 0.0
    %v8223 = vmax.f32 %v8214, 0.0
    %v8224 = vmax.f32 %v8217, 0.0
    %v8225 = vmax.f32 %v8220, 0.0
    %s8226 = scalar_lea.vmem [#allocation7], 256
    %v8227 = vld [vmem:[%s8226] sm:$0xff]
    %v8228 = vld [vmem:[%s8226 + $0x8] sm:$0xff]
    %v8229 = vld [vmem:[%s8226 + $0x10] sm:$0xff]
    %v8230 = vld [vmem:[%s8226 + $0x18] sm:$0xff]
    %v8231 = vld [vmem:[%s8226 + $0x20] sm:$0xff]
    %v8232 = vld [vmem:[%s8226 + $0x28] sm:$0xff]
    %v8233 = vld [vmem:[%s8226 + $0x30] sm:$0xff]
    %v8234 = vld [vmem:[%s8226 + $0x38] sm:$0xff]
    %v8235 = vld [vmem:[%s8226 + $0x40] sm:$0xff]
    %v8236 = vld [vmem:[%s8226 + $0x48] sm:$0xff]
    %v8237 = vld [vmem:[%s8226 + $0x50] sm:$0xff]
    %v8238 = vld [vmem:[%s8226 + $0x58] sm:$0xff]
    %v8239 = vld [vmem:[%s8226 + $0x60] sm:$0xff]
    %v8240 = vld [vmem:[%s8226 + $0x68] sm:$0xff]
    %v8241 = vld [vmem:[%s8226 + $0x70] sm:$0xff]
    %v8242 = vld [vmem:[%s8226 + $0x78] sm:$0xff]
    %v8243 = vld [vmem:[%s10 + $0x2] sm:$0x1]
    %v8244 = vperm.slane %v8243, 0
    %8245 = vmatpush.msra.mxu0 %v8242
    %8246 = vmatpush.msra.mxu0 %v8241
    %8247 = vmatpush.msra.mxu0 %v8240
    %8248 = vmatpush.msra.mxu0 %v8239
    %8249 = vmatpush.msra.mxu0 %v8238
    %8250 = vmatpush.msra.mxu0 %v8237
    %8251 = vmatpush.msra.mxu0 %v8236
    %8252 = vmatpush.msra.mxu0 %v8235
    %8253 = vmatpush.msra.mxu0 %v8234
    %8254 = vmatpush.msra.mxu0 %v8233
    %8255 = vmatpush.msra.mxu0 %v8232
    %8256 = vmatpush.msra.mxu0 %v8231
    %8257 = vmatpush.msra.mxu0 %v8230
    %8258 = vmatpush.msra.mxu0 %v8229
    %8259 = vmatpush.msra.mxu0 %v8228
    %8260 = vmatpush.msra.mxu0 %v8227
    %8261 = vmatmul.f32.gmra.mxu0 %v8222
    %v8262 = vpop.f32.mrf.mxu0
    %v8263 = vadd.f32 %v8244, %v8262
    %8264 = vmatmul.f32.gmra.mxu0 %v8223
    %v8265 = vpop.f32.mrf.mxu0
    %v8266 = vadd.f32 %v8244, %v8265
    %8267 = vmatmul.f32.gmra.mxu0 %v8224
    %v8268 = vpop.f32.mrf.mxu0
    %v8269 = vadd.f32 %v8244, %v8268
    %8270 = vmatmul.f32.gmra.mxu0 %v8225
    %v8271 = vpop.f32.mrf.mxu0
    %v8272 = vadd.f32 %v8244, %v8271
    %8273 = vdwg.mxu0
    %v8274 = vadd.f32 %v8170, %v8263
    %v8275 = vadd.f32 %v8171, %v8266
    %v8276 = vadd.f32 %v8172, %v8269
    %v8277 = vadd.f32 %v8173, %v8272
    %v8278 = vld [vmem:[%s11 + $0x2] sm:$0x1]
    %v8279 = vld [vmem:[%s12 + $0x2] sm:$0x1]
    %8280 = vadd.xlane.f32.xlu0 %v8274
    %v8281 = vpop.xlane.xlu0 %8280
    %8282 = vadd.xlane.f32.xlu0 %v8275
    %v8283 = vpop.xlane.xlu0 %8282
    %8284 = vadd.xlane.f32.xlu0 %v8276
    %v8285 = vpop.xlane.xlu0 %8284
    %8286 = vadd.xlane.f32.xlu0 %v8277
    %v8287 = vpop.xlane.xlu0 %8286
    %v8288 = vmul.f32 %v8281, %v2589
    %v8289 = vmul.f32 %v8283, %v2589
    %v8290 = vmul.f32 %v8285, %v2589
    %v8291 = vmul.f32 %v8287, %v2589
    %v8292 = vsub.f32 %v8274, %v8288
    %v8293 = vsub.f32 %v8275, %v8289
    %v8294 = vsub.f32 %v8276, %v8290
    %v8295 = vsub.f32 %v8277, %v8291
    %v8296 = vmul.f32 %v8292, %v8292
    %v8297 = vmul.f32 %v8293, %v8293
    %v8298 = vmul.f32 %v8294, %v8294
    %v8299 = vmul.f32 %v8295, %v8295
    %8300 = vadd.xlane.f32.xlu0 %v8296
    %v8301 = vpop.xlane.xlu0 %8300
    %8302 = vadd.xlane.f32.xlu0 %v8297
    %v8303 = vpop.xlane.xlu0 %8302
    %8304 = vadd.xlane.f32.xlu0 %v8298
    %v8305 = vpop.xlane.xlu0 %8304
    %8306 = vadd.xlane.f32.xlu0 %v8299
    %v8307 = vpop.xlane.xlu0 %8306
    %v8308 = vmul.f32 %v8301, %v2589
    %v8309 = vmul.f32 %v8303, %v2589
    %v8310 = vmul.f32 %v8305, %v2589
    %v8311 = vmul.f32 %v8307, %v2589
    %v8312 = vadd.f32 %v8308, 1e-05
    %v8313 = vadd.f32 %v8309, 1e-05
    %v8314 = vadd.f32 %v8310, 1e-05
    %v8315 = vadd.f32 %v8311, 1e-05
    %v8316 = vrsqrt.pop %v8312
    %v8317 = vmul.f32 %v8316, %v8312
    %v8318 = vmul.f32 %v8317, %v8316
    %v8319 = vmul.f32 0.5, %v8318
    %v8320 = vsub.f32 1.5, %v8319
    %v8321 = vmul.f32 %v8316, %v8320
    %vm8322 = vweird.f32 %v8312
    %vm8323 = vweird.f32 %v8316
    %vm8324 = vmor %vm8322, %vm8323
    %v8325 = vsel %vm8324, %v8316, %v8321
    %v8326 = vrsqrt.pop %v8313
    %v8327 = vmul.f32 %v8326, %v8313
    %v8328 = vmul.f32 %v8327, %v8326
    %v8329 = vmul.f32 0.5, %v8328
    %v8330 = vsub.f32 1.5, %v8329
    %v8331 = vmul.f32 %v8326, %v8330
    %vm8332 = vweird.f32 %v8313
    %vm8333 = vweird.f32 %v8326
    %vm8334 = vmor %vm8332, %vm8333
    %v8335 = vsel %vm8334, %v8326, %v8331
    %v8336 = vrsqrt.pop %v8314
    %v8337 = vmul.f32 %v8336, %v8314
    %v8338 = vmul.f32 %v8337, %v8336
    %v8339 = vmul.f32 0.5, %v8338
    %v8340 = vsub.f32 1.5, %v8339
    %v8341 = vmul.f32 %v8336, %v8340
    %vm8342 = vweird.f32 %v8314
    %vm8343 = vweird.f32 %v8336
    %vm8344 = vmor %vm8342, %vm8343
    %v8345 = vsel %vm8344, %v8336, %v8341
    %v8346 = vrsqrt.pop %v8315
    %v8347 = vmul.f32 %v8346, %v8315
    %v8348 = vmul.f32 %v8347, %v8346
    %v8349 = vmul.f32 0.5, %v8348
    %v8350 = vsub.f32 1.5, %v8349
    %v8351 = vmul.f32 %v8346, %v8350
    %vm8352 = vweird.f32 %v8315
    %vm8353 = vweird.f32 %v8346
    %vm8354 = vmor %vm8352, %vm8353
    %v8355 = vsel %vm8354, %v8346, %v8351
    %v8356 = vmul.f32 %v8292, %v8325
    %v8357 = vmul.f32 %v8293, %v8335
    %v8358 = vmul.f32 %v8294, %v8345
    %v8359 = vmul.f32 %v8295, %v8355
    %v8360 = vperm.slane %v8278, 0
    %v8361 = vmul.f32 %v8356, %v8360
    %v8362 = vmul.f32 %v8357, %v8360
    %v8363 = vmul.f32 %v8358, %v8360
    %v8364 = vmul.f32 %v8359, %v8360
    %v8365 = vperm.slane %v8279, 0
    %v8366 = vadd.f32 %v8361, %v8365
    %v8367 = vadd.f32 %v8362, %v8365
    %v8368 = vadd.f32 %v8363, %v8365
    %v8369 = vadd.f32 %v8364, %v8365
    %8370 = vst [vmem:[%s13] sm:$0xff] %v8366
    %8371 = vst [vmem:[%s13 + $0x8] sm:$0xff] %v8367
    %8372 = vst [vmem:[%s13 + $0x10] sm:$0xff] %v8368
    %8373 = vst [vmem:[%s13 + $0x18] sm:$0xff] %v8369
    // Predicated region
    $region70: #{a_call__.2} parent=1 // pred_check
      _
    $region71: #{a_call__.2} parent=1 // pred_check_branch
      %8375 = sbr.rel (0) target = $region73
    $region72: #{a_call__.2} parent=1 // pred_region
      _
    $region73: #{a_call__.2} parent=1 // pred_fallthru
      _
    // Predicated region
    $region74: #{a_call__.2} parent=1 // pred_check
      _
    $region75: #{a_call__.2} parent=1 // pred_check_branch
      %8377 = sbr.rel (0) target = $region77
    $region76: #{a_call__.2} parent=1 // pred_region
      _
    $region77: #{a_call__.2} parent=1 // pred_fallthru
      _
    %8378 = vsyncpa [#allocation3], 1
    %8379 = vsyncpa [#allocation5], 1
    %8380 = vsyncpa [#allocation8], 1

</llo_original>
